<compile_context>
chip_gen: v6e
topology: v6e:2x2x1
jax: 0.10.0
libtpu: 0.0.40
codegen_flags: <defaults>
</compile_context>

<pallas_src>
import functools

import jax
import jax.numpy as jnp
from jax.experimental import pallas as pl
from jax.experimental.pallas import tpu as pltpu


_TRANS_B = (((1,), (1,)), ((), ()))  # A @ B.T dimension numbers (2-D)


# ---------------------------------------------------------------------------
# Generic linear kernel (used for the conv1 im2col GEMM and GRU layer-2 input proj)
# ---------------------------------------------------------------------------

def _matmul_bias_act_kernel(a_ref, w_ref, b_ref, o_ref, *, activation):
    a = a_ref[...].astype(jnp.bfloat16)
    acc = jnp.dot(a, w_ref[...], preferred_element_type=jnp.float32) + b_ref[...]
    if activation == "relu":
        acc = jnp.maximum(acc, 0.0)
    o_ref[...] = acc.astype(o_ref.dtype)


def pallas_linear(a, w, b, activation=None):
    """y = act(a @ w + b);  a:(M,K)  w:(K,N)  b:(N,).  bf16 MXU, f32 accumulate."""
    M, K = a.shape
    K2, N = w.shape
    assert K == K2
    tm = M if M <= 1024 else 512          # bigger tiles -> fewer grid steps
    grid_m = pl.cdiv(M, tm)
    kernel = functools.partial(_matmul_bias_act_kernel, activation=activation)
    return pl.pallas_call(
        kernel,
        out_shape=jax.ShapeDtypeStruct((M, N), jnp.float32),
        grid=(grid_m,),
        in_specs=[
            pl.BlockSpec((tm, K), lambda i: (i, 0)),
            pl.BlockSpec((K, N), lambda i: (0, 0)),
            pl.BlockSpec((1, N), lambda i: (0, 0)),
        ],
        out_specs=pl.BlockSpec((tm, N), lambda i: (i, 0)),
        compiler_params=pltpu.CompilerParams(dimension_semantics=("parallel",)),
    )(a, w.astype(jnp.bfloat16), b.reshape(1, N))


# ---------------------------------------------------------------------------
# Fused CNN head: conv2-GEMM -> ReLU -> global average pool -> fc feature head
# ---------------------------------------------------------------------------

def _cnn_head_kernel(p_ref, c2w_ref, c2b_ref, fcw_ref, fcb_ref, o_ref, *, n_frames):
    y = jnp.dot(p_ref[...], c2w_ref[...],
                preferred_element_type=jnp.float32) + c2b_ref[...]
    y = jnp.maximum(y, 0.0)                                   # (Np, C) lane-dense (C=128)
    Np, C = y.shape
    pooled = jnp.mean(y.reshape(n_frames, Np // n_frames, C), axis=1)   # (n_frames, C)
    feat = jnp.dot(pooled.astype(jnp.bfloat16), fcw_ref[...],
                   preferred_element_type=jnp.float32) + fcb_ref[...]
    o_ref[...] = feat


def pallas_cnn_head(patches, c2w, c2b, fcw, fcb, n_frames):
    Np, K2 = patches.shape
    C = c2w.shape[1]
    F = fcw.shape[1]
    kernel = functools.partial(_cnn_head_kernel, n_frames=n_frames)

    def s2(shape):
        return pl.BlockSpec(shape, lambda i: (0, 0))

    return pl.pallas_call(
        kernel,
        out_shape=jax.ShapeDtypeStruct((n_frames, F), jnp.float32),
        grid=(1,),
        in_specs=[s2((Np, K2)), s2((K2, C)), s2((1, C)), s2((C, F)), s2((1, F))],
        out_specs=s2((n_frames, F)),
    )(patches.astype(jnp.bfloat16), c2w.astype(jnp.bfloat16), c2b.reshape(1, -1),
      fcw.astype(jnp.bfloat16), fcb.reshape(1, -1))


# ---------------------------------------------------------------------------
# Fused AutoEncoder (+ GRU layer-1 input projection) — single pallas_call,
# all intermediates stay in VMEM.
# ---------------------------------------------------------------------------

def _ae_kernel(x_ref, e1w, e1b, e2w, e2b, d1w, d1b, d2w, d2b, g1w, g1b,
               lat_ref, rec_ref, gi_ref):
    x = x_ref[...].astype(jnp.bfloat16)
    h = jnp.maximum(jnp.dot(x, e1w[...], preferred_element_type=jnp.float32) + e1b[...], 0.0)
    lat = jnp.maximum(jnp.dot(h.astype(jnp.bfloat16), e2w[...],
                              preferred_element_type=jnp.float32) + e2b[...], 0.0)
    lat_ref[...] = lat
    lat_b = lat.astype(jnp.bfloat16)
    d = jnp.maximum(jnp.dot(lat_b, d1w[...], preferred_element_type=jnp.float32) + d1b[...], 0.0)
    rec_ref[...] = jnp.dot(d.astype(jnp.bfloat16), d2w[...],
                           preferred_element_type=jnp.float32) + d2b[...]
    # GRU layer-1 input projection (hoisted out of the recurrence).
    gi_ref[...] = jnp.dot(lat_b, g1w[...], preferred_element_type=jnp.float32) + g1b[...]


def pallas_ae_and_gru_in(feat, p, gru0):
    M, F = feat.shape
    L = p["ae_e2_w"].shape[1]
    G = gru0["wih"].shape[1]
    D512 = p["ae_e1_w"].shape[1]

    def s2(shape):
        return pl.BlockSpec(shape, lambda i: (0, 0))

    bf = lambda w: w.astype(jnp.bfloat16)
    rb = lambda b: b.reshape(1, -1)

    return pl.pallas_call(
        _ae_kernel,
        out_shape=(jax.ShapeDtypeStruct((M, L), jnp.float32),
                   jax.ShapeDtypeStruct((M, F), jnp.float32),
                   jax.ShapeDtypeStruct((M, G), jnp.float32)),
        grid=(1,),
        in_specs=[
            s2((M, F)),
            s2((F, D512)), s2((1, D512)),
            s2((D512, L)), s2((1, L)),
            s2((L, D512)), s2((1, D512)),
            s2((D512, F)), s2((1, F)),
            s2((L, G)), s2((1, G)),
        ],
        out_specs=[s2((M, L)), s2((M, F)), s2((M, G))],
    )(feat,
      bf(p["ae_e1_w"]), rb(p["ae_e1_b"]),
      bf(p["ae_e2_w"]), rb(p["ae_e2_b"]),
      bf(p["ae_d1_w"]), rb(p["ae_d1_b"]),
      bf(p["ae_d2_w"]), rb(p["ae_d2_b"]),
      bf(gru0["wih"]), rb(gru0["bih"]))


# ---------------------------------------------------------------------------
# GRU layer (input projection precomputed; recurrence only does h @ Whh per step)
# ---------------------------------------------------------------------------

def _gru_layer_kernel(gi_ref, whh_ref, bhh_ref, o_ref, h_scr):
    # gi_ref: (S, B, 3H) precomputed x @ Wih + bih;  o_ref: (S, B, H)
    S = gi_ref.shape[0]
    H = o_ref.shape[2]
    h_scr[...] = jnp.zeros_like(h_scr)

    # NOTE: keeping Whh resident in MXU weight registers (pltpu.matmul_push_rhs) would
    # further shorten the serial chain on v6e/v7x; omitted to keep the portable jnp.dot.
    @pl.loop(0, S)
    def _(t):
        h = h_scr[...]                                     # (B, H) f32
        gh = jnp.dot(h.astype(jnp.bfloat16), whh_ref[...],
                     preferred_element_type=jnp.float32) + bhh_ref[...]
        gi = gi_ref[t]                                     # (B, 3H)
        # PyTorch GRU gate ordering: [r, z, n]
        r = jax.nn.sigmoid(gi[:, 0:H] + gh[:, 0:H])
        z = jax.nn.sigmoid(gi[:, H:2 * H] + gh[:, H:2 * H])
        n = jnp.tanh(gi[:, 2 * H:3 * H] + r * gh[:, 2 * H:3 * H])
        h_new = (1.0 - z) * n + z * h
        h_scr[...] = h_new
        o_ref[t] = h_new


def pallas_gru_layer(gi_seq, whh, bhh):
    """gi_seq: (S, B, 3H) -> hidden sequence (S, B, H)."""
    S, B, G = gi_seq.shape
    H = whh.shape[0]
    assert G == 3 * H
    return pl.pallas_call(
        _gru_layer_kernel,
        out_shape=jax.ShapeDtypeStruct((S, B, H), jnp.float32),
        grid=(1,),
        in_specs=[
            pl.BlockSpec((S, B, 3 * H), lambda i: (0, 0, 0)),
            pl.BlockSpec((H, 3 * H), lambda i: (0, 0)),
            pl.BlockSpec((1, 3 * H), lambda i: (0, 0)),
        ],
        out_specs=pl.BlockSpec((S, B, H), lambda i: (0, 0, 0)),
        scratch_shapes=[pltpu.VMEM((B, H), jnp.float32)],
    )(gi_seq, whh.astype(jnp.bfloat16), bhh.reshape(1, -1))


# ---------------------------------------------------------------------------
# Transformer encoder layer (post-norm, ReLU FFN, eval) + fused classifier head
# ---------------------------------------------------------------------------

def _layernorm(x, g, b, eps=1e-5):
    mu = jnp.mean(x, axis=-1, keepdims=True)
    var = jnp.mean(jnp.square(x - mu), axis=-1, keepdims=True)
    return (x - mu) * jax.lax.rsqrt(var + eps) * g + b


def _transformer_cls_kernel(x_ref, wqkv_ref, bqkv_ref, wo_ref, bo_ref,
                            g1_ref, bt1_ref, w1_ref, b1_ref, w2_ref, b2_ref,
                            g2_ref, bt2_ref, wc_ref, bc_ref, o_ref, *, nhead):
    x = x_ref[0]                                # (S, D) f32 — one batch element
    S, D = x.shape
    hd = D // nhead

    xb = x.astype(jnp.bfloat16)
    qkv = jnp.dot(xb, wqkv_ref[...], preferred_element_type=jnp.float32) + bqkv_ref[...]
    scale = 1.0 / jnp.sqrt(jnp.float32(hd))
    q = qkv[:, 0:D] * scale                     # scale folded into q
    k = qkv[:, D:2 * D]
    v = qkv[:, 2 * D:3 * D]

    # Per-head attention; contexts are accumulated through Wo row-slices
    # (attn = sum_h ctx_h @ Wo[h]) so no lane concatenate / relayout is needed.
    attn = jnp.zeros((S, D), jnp.float32)
    for h in range(nhead):                      # static unroll (nhead = 4)
        qh = q[:, h * hd:(h + 1) * hd].astype(jnp.bfloat16)
        kh = k[:, h * hd:(h + 1) * hd].astype(jnp.bfloat16)
        vh = v[:, h * hd:(h + 1) * hd].astype(jnp.bfloat16)
        s = jax.lax.dot_general(qh, kh, _TRANS_B,
                                preferred_element_type=jnp.float32)       # (S, S)
        s = s - jnp.max(s, axis=-1, keepdims=True)
        ps = jnp.exp(s)
        ps = ps * pl.reciprocal(jnp.sum(ps, axis=-1, keepdims=True), approx=True)
        ctx = jnp.dot(ps.astype(jnp.bfloat16), vh,
                      preferred_element_type=jnp.float32)                  # (S, hd)
        attn = attn + jnp.dot(ctx.astype(jnp.bfloat16),
                              wo_ref[h * hd:(h + 1) * hd, :],
                              preferred_element_type=jnp.float32)
    attn = attn + bo_ref[...]

    x1 = _layernorm(x + attn, g1_ref[...], bt1_ref[...])
    h1 = jnp.maximum(
        jnp.dot(x1.astype(jnp.bfloat16), w1_ref[...],
                preferred_element_type=jnp.float32) + b1_ref[...], 0.0)
    ff = jnp.dot(h1.astype(jnp.bfloat16), w2_ref[...],
                 preferred_element_type=jnp.float32) + b2_ref[...]
    x2 = _layernorm(x1 + ff, g2_ref[...], bt2_ref[...])

    # Fused classifier head on the last token.
    last = x2[S - 1:S, :]                        # (1, D)
    logits = jnp.dot(last.astype(jnp.bfloat16), wc_ref[...],
                     preferred_element_type=jnp.float32) + bc_ref[...]
    o_ref[...] = logits.reshape(1, 1, -1)


def pallas_transformer_cls(x, tp, cls_w, cls_b, nhead):
    B, S, D = x.shape
    dff = tp["w1"].shape[1]
    nc = cls_w.shape[1]
    kernel = functools.partial(_transformer_cls_kernel, nhead=nhead)

    def s2(shape):
        return pl.BlockSpec(shape, lambda i: (0, 0))

    bf = lambda w: w.astype(jnp.bfloat16)
    rb = lambda b: b.reshape(1, -1)

    out = pl.pallas_call(
        kernel,
        out_shape=jax.ShapeDtypeStruct((B, 1, nc), jnp.float32),
        grid=(B,),
        in_specs=[
            pl.BlockSpec((1, S, D), lambda i: (i, 0, 0)),
            s2((D, 3 * D)), s2((1, 3 * D)),
            s2((D, D)), s2((1, D)),
            s2((1, D)), s2((1, D)),
            s2((D, dff)), s2((1, dff)),
            s2((dff, D)), s2((1, D)),
            s2((1, D)), s2((1, D)),
            s2((D, nc)), s2((1, nc)),
        ],
        out_specs=pl.BlockSpec((1, 1, nc), lambda i: (i, 0, 0)),
        compiler_params=pltpu.CompilerParams(dimension_semantics=("parallel",)),
    )(
        x,
        bf(tp["wqkv"]), rb(tp["bqkv"]),
        bf(tp["wo"]), rb(tp["bo"]),
        rb(tp["ln1_g"]), rb(tp["ln1_b"]),
        bf(tp["w1"]), rb(tp["b1"]),
        bf(tp["w2"]), rb(tp["b2"]),
        rb(tp["ln2_g"]), rb(tp["ln2_b"]),
        bf(cls_w), rb(cls_b),
    )
    return out.reshape(B, nc)


# ---------------------------------------------------------------------------
# Glue (reshapes / im2col / parameter setup) in plain JAX
# ---------------------------------------------------------------------------

def _im2col(x, kh, kw, stride, pad):
    """x: (N, H, W, C) NHWC -> (N*Ho*Wo, kh*kw*C) patches (tap-major, then C)."""
    xp = jnp.pad(x, ((0, 0), (pad, pad), (pad, pad), (0, 0)))
    N, Hp, Wp, C = xp.shape
    Ho = (Hp - kh) // stride + 1
    Wo = (Wp - kw) // stride + 1
    cols = []
    for i in range(kh):
        for j in range(kw):
            cols.append(xp[:, i:i + stride * Ho:stride, j:j + stride * Wo:stride, :])
    patches = jnp.concatenate(cols, axis=-1)             # (N, Ho, Wo, kh*kw*C)
    return patches.reshape(N * Ho * Wo, kh * kw * C), Ho, Wo


def cnn_forward(p, x_nhwc):
    # TODO(synk): ImprovedLightweightCNN_v5 (Bottleneck + SEBlock) definition was not
    # provided; a deterministic lightweight conv backbone with the same
    # (N, 3, H, W) -> (N, 256) interface is implemented instead (conv3x3/s2 -> ReLU,
    # conv3x3/s2 -> ReLU, global-average-pool, linear). Channel dims are zero-padded to
    # 128 so all Pallas intermediates are lane-dense; pads are exact zeros end-to-end.
    a1, Ho, Wo = _im2col(x_nhwc, 3, 3, 2, 1)
    y1 = pallas_linear(a1, p["c1_w"], p["c1_b"], "relu")          # (N*Ho*Wo, 128)
    y1 = y1.reshape(-1, Ho, Wo, y1.shape[-1])
    a2, _, _ = _im2col(y1, 3, 3, 2, 1)                            # (N*Ho2*Wo2, 9*128)
    n_frames = x_nhwc.shape[0]
    # conv2-GEMM + ReLU + global average pool + fc feature head, fused in one kernel.
    feat = pallas_cnn_head(a2, p["c2_w"], p["c2_b"], p["fc_w"], p["fc_b"], n_frames)
    return feat


def forward(params, x):
    # x: (B, seq, C, H, W) — same convention as the PyTorch module.
    B, seq, C, H, W = x.shape
    frames = x.reshape(B * seq, C, H, W).transpose(0, 2, 3, 1)    # NCHW -> NHWC
    feat_orig = cnn_forward(params["cnn"], frames)                # (B*seq, 256)

    # Fused AutoEncoder (+ GRU layer-1 input projection).
    gru0, gru1 = params["gru"]
    latent, feat_recon, gi1 = pallas_ae_and_gru_in(feat_orig, params, gru0)

    S = seq
    Hd = gru0["whh"].shape[0]

    # GRU layer 1 (recurrence only; gi precomputed, batch-major -> time-major).
    gi1 = gi1.reshape(B, S, 3 * Hd).transpose(1, 0, 2)            # (S, B, 3H)
    h1 = pallas_gru_layer(gi1, gru0["whh"], gru0["bhh"])          # (S, B, H)

    # GRU layer 2: input projection as one flat GEMM, then the recurrence.
    gi2 = pallas_linear(h1.reshape(S * B, Hd), gru1["wih"], gru1["bih"])
    h2 = pallas_gru_layer(gi2.reshape(S, B, 3 * Hd), gru1["whh"], gru1["bhh"])

    gru_out = h2.transpose(1, 0, 2)                               # (B, S, 256)

    # Transformer encoder layer + fused classifier head (grid split over batch).
    logits = pallas_transformer_cls(gru_out, params["transformer"],
                                    params["cls_w"], params["cls_b"], nhead=4)
    return logits, feat_orig, feat_recon


def init_params(key):
    keys = iter(jax.random.split(key, 64))

    def dense(fan_in, fan_out):
        s = 1.0 / float(fan_in) ** 0.5
        w = jax.random.uniform(next(keys), (fan_in, fan_out), jnp.float32, -s, s)
        b = jax.random.uniform(next(keys), (fan_out,), jnp.float32, -s, s)
        return w, b

    p = {}

    # CNN stand-in backbone; output channels zero-padded to 128 for lane-dense GEMMs.
    cnn = {}
    c1w, c1b = dense(3 * 3 * 3, 32)                     # conv1 3x3, 3 -> 32 (pad -> 128)
    cnn["c1_w"] = jnp.zeros((27, 128), jnp.float32).at[:, :32].set(c1w)
    cnn["c1_b"] = jnp.zeros((128,), jnp.float32).at[:32].set(c1b)
    c2w, c2b = dense(3 * 3 * 32, 64)                    # conv2 3x3, 32 -> 64 (pad -> 128)
    c2w = c2w.reshape(9, 32, 64)
    cnn["c2_w"] = (jnp.zeros((9, 128, 128), jnp.float32)
                   .at[:, :32, :64].set(c2w).reshape(9 * 128, 128))
    cnn["c2_b"] = jnp.zeros((128,), jnp.float32).at[:64].set(c2b)
    fcw, fcb = dense(64, 256)                           # feature head -> 256
    cnn["fc_w"] = jnp.zeros((128, 256), jnp.float32).at[:64, :].set(fcw)
    cnn["fc_b"] = fcb
    p["cnn"] = cnn

    p["ae_e1_w"], p["ae_e1_b"] = dense(256, 512)
    p["ae_e2_w"], p["ae_e2_b"] = dense(512, 128)
    p["ae_d1_w"], p["ae_d1_b"] = dense(128, 512)
    p["ae_d2_w"], p["ae_d2_b"] = dense(512, 256)

    gru = []
    din, Hh = 128, 256
    for _ in range(2):
        wih, bih = dense(din, 3 * Hh)
        whh, bhh = dense(Hh, 3 * Hh)
        gru.append({"wih": wih, "whh": whh, "bih": bih, "bhh": bhh})
        din = Hh
    p["gru"] = gru

    D, dff = 256, 1024
    t = {}
    t["wqkv"], t["bqkv"] = dense(D, 3 * D)
    t["wo"], t["bo"] = dense(D, D)
    t["w1"], t["b1"] = dense(D, dff)
    t["w2"], t["b2"] = dense(dff, D)
    t["ln1_g"] = jnp.ones((D,), jnp.float32)
    t["ln1_b"] = jnp.zeros((D,), jnp.float32)
    t["ln2_g"] = jnp.ones((D,), jnp.float32)
    t["ln2_b"] = jnp.zeros((D,), jnp.float32)
    p["transformer"] = t

    p["cls_w"], p["cls_b"] = dense(256, 2)
    return p


if __name__ == "__main__":
    key = jax.random.PRNGKey(0)
    pkey, xkey = jax.random.split(key)
    params = init_params(pkey)

    B, seq, C, H, W = 2, 8, 3, 16, 16
    x = jax.random.normal(xkey, (B, seq, C, H, W), jnp.float32)

    logits, feat_orig, feat_recon = jax.jit(forward)(params, x)
    jax.block_until_ready((logits, feat_orig, feat_recon))

    assert logits.shape == (B, 2)
    assert feat_orig.shape == (B * seq, 256)
    assert feat_recon.shape == (B * seq, 256)
    print("KERNEL_OK")
</pallas_src>

<mosaic_0001>
module attributes {stable_mosaic.version = 11 : i64} {
  func.func @_matmul_bias_act_kernel(%arg0: i32, %arg1: memref<1024x27xf32, #tpu.memory_space<vmem>>, %arg2: memref<27x128xbf16, #tpu.memory_space<vmem>>, %arg3: memref<1x128xf32, #tpu.memory_space<vmem>>, %arg4: memref<1024x128xf32, #tpu.memory_space<vmem>>) attributes {dimension_semantics = [#tpu.dimension_semantics<parallel>], iteration_bounds = array<i64: 1>, scalar_prefetch = 0 : i64, scratch_operands = 0 : i64, tpu.core_type = #tpu.core_type<tc>, window_params = [{transform_indices = @transform_0, window_bounds = array<i64: 1024, 27>}, {pipeline_mode = #tpu.pipeline_mode<synchronous>, transform_indices = @transform_1, window_bounds = array<i64: 27, 128>}, {pipeline_mode = #tpu.pipeline_mode<synchronous>, transform_indices = @transform_2, window_bounds = array<i64: 1, 128>}, {transform_indices = @transform_3, window_bounds = array<i64: 1024, 128>}]} {
    %c0 = arith.constant 0 : index
    %c0_0 = arith.constant 0 : index
    %0 = vector.load %arg1[%c0, %c0_0] : memref<1024x27xf32, #tpu.memory_space<vmem>>, vector<1024x27xf32>
    %1 = arith.truncf %0 : vector<1024x27xf32> to vector<1024x27xbf16>
    %c0_1 = arith.constant 0 : index
    %c0_2 = arith.constant 0 : index
    %2 = vector.load %arg2[%c0_1, %c0_2] : memref<27x128xbf16, #tpu.memory_space<vmem>>, vector<27x128xbf16>
    %cst = arith.constant dense<0.000000e+00> : vector<1024x128xf32>
    %3 = tpu.matmul %1, %2, %cst {dimension_numbers = #tpu.dot_dimension_numbers<[1], [0], [0], [1], [0, 0, 1, 1], [], []>} : vector<1024x27xbf16>, vector<27x128xbf16>, vector<1024x128xf32> -> vector<1024x128xf32>
    %c0_3 = arith.constant 0 : index
    %c0_4 = arith.constant 0 : index
    %4 = vector.load %arg3[%c0_3, %c0_4] : memref<1x128xf32, #tpu.memory_space<vmem>>, vector<1x128xf32>
    %5 = vector.broadcast %4 : vector<1x128xf32> to vector<1024x128xf32>
    %6 = arith.addf %3, %5 : vector<1024x128xf32>
    %cst_5 = arith.constant 0.000000e+00 : f32
    %7 = vector.broadcast %cst_5 : f32 to vector<1024x128xf32>
    %8 = arith.maximumf %6, %7 : vector<1024x128xf32>
    %c0_6 = arith.constant 0 : index
    %c0_7 = arith.constant 0 : index
    %9 = vector.load %arg4[%c0_6, %c0_7] : memref<1024x128xf32, #tpu.memory_space<vmem>>, vector<1024x128xf32>
    tpu.vector_store %arg4[%c0_6, %c0_7], %8 {strides = array<i32>} : memref<1024x128xf32, #tpu.memory_space<vmem>>, vector<1024x128xf32>,
    return
  }
  func.func @transform_0(%arg0: i32) -> (i32, i32) {
    %c0_i32 = arith.constant 0 : i32
    %c0_i32_0 = arith.constant 0 : i32
    return %arg0, %c0_i32 : i32, i32
  }
  func.func @transform_1(%arg0: i32) -> (i32, i32) {
    %c0_i32 = arith.constant 0 : i32
    %c0_i32_0 = arith.constant 0 : i32
    %c0_i32_1 = arith.constant 0 : i32
    return %c0_i32, %c0_i32_0 : i32, i32
  }
  func.func @transform_2(%arg0: i32) -> (i32, i32) {
    %c0_i32 = arith.constant 0 : i32
    %c0_i32_0 = arith.constant 0 : i32
    %c0_i32_1 = arith.constant 0 : i32
    return %c0_i32, %c0_i32_0 : i32, i32
  }
  func.func @transform_3(%arg0: i32) -> (i32, i32) {
    %c0_i32 = arith.constant 0 : i32
    %c0_i32_0 = arith.constant 0 : i32
    return %arg0, %c0_i32 : i32, i32
  }
}

module attributes {stable_mosaic.version = 11 : i64} {
  func.func @_cnn_head_kernel(%arg0: i32, %arg1: memref<256x1152xbf16, #tpu.memory_space<vmem>>, %arg2: memref<1152x128xbf16, #tpu.memory_space<vmem>>, %arg3: memref<1x128xf32, #tpu.memory_space<vmem>>, %arg4: memref<128x256xbf16, #tpu.memory_space<vmem>>, %arg5: memref<1x256xf32, #tpu.memory_space<vmem>>, %arg6: memref<16x256xf32, #tpu.memory_space<vmem>>) attributes {dimension_semantics = [#tpu.dimension_semantics<arbitrary>], iteration_bounds = array<i64: 1>, scalar_prefetch = 0 : i64, scratch_operands = 0 : i64, tpu.core_type = #tpu.core_type<tc>, window_params = [{pipeline_mode = #tpu.pipeline_mode<synchronous>, transform_indices = @transform_0, window_bounds = array<i64: 256, 1152>}, {pipeline_mode = #tpu.pipeline_mode<synchronous>, transform_indices = @transform_1, window_bounds = array<i64: 1152, 128>}, {pipeline_mode = #tpu.pipeline_mode<synchronous>, transform_indices = @transform_2, window_bounds = array<i64: 1, 128>}, {pipeline_mode = #tpu.pipeline_mode<synchronous>, transform_indices = @transform_3, window_bounds = array<i64: 128, 256>}, {pipeline_mode = #tpu.pipeline_mode<synchronous>, transform_indices = @transform_4, window_bounds = array<i64: 1, 256>}, {pipeline_mode = #tpu.pipeline_mode<synchronous>, transform_indices = @transform_5, window_bounds = array<i64: 16, 256>}]} {
    %c0 = arith.constant 0 : index
    %c0_0 = arith.constant 0 : index
    %0 = vector.load %arg1[%c0, %c0_0] : memref<256x1152xbf16, #tpu.memory_space<vmem>>, vector<256x1152xbf16>
    %c0_1 = arith.constant 0 : index
    %c0_2 = arith.constant 0 : index
    %1 = vector.load %arg2[%c0_1, %c0_2] : memref<1152x128xbf16, #tpu.memory_space<vmem>>, vector<1152x128xbf16>
    %cst = arith.constant dense<0.000000e+00> : vector<256x128xf32>
    %2 = tpu.matmul %0, %1, %cst {dimension_numbers = #tpu.dot_dimension_numbers<[1], [0], [0], [1], [0, 0, 1, 1], [], []>} : vector<256x1152xbf16>, vector<1152x128xbf16>, vector<256x128xf32> -> vector<256x128xf32>
    %c0_3 = arith.constant 0 : index
    %c0_4 = arith.constant 0 : index
    %3 = vector.load %arg3[%c0_3, %c0_4] : memref<1x128xf32, #tpu.memory_space<vmem>>, vector<1x128xf32>
    %4 = vector.broadcast %3 : vector<1x128xf32> to vector<256x128xf32>
    %5 = arith.addf %2, %4 : vector<256x128xf32>
    %cst_5 = arith.constant 0.000000e+00 : f32
    %6 = vector.broadcast %cst_5 : f32 to vector<256x128xf32>
    %7 = arith.maximumf %5, %6 : vector<256x128xf32>
    %8 = vector.shape_cast %7 : vector<256x128xf32> to vector<16x16x128xf32>
    %cst_6 = arith.constant dense<0.000000e+00> : vector<16x128xf32>
    %9 = vector.multi_reduction <add>, %8, %cst_6 [1] : vector<16x16x128xf32> to vector<16x128xf32>
    %cst_7 = arith.constant 1.600000e+01 : f32
    %10 = vector.broadcast %cst_7 : f32 to vector<16x128xf32>
    %11 = arith.divf %9, %10 : vector<16x128xf32>
    %12 = arith.truncf %11 : vector<16x128xf32> to vector<16x128xbf16>
    %c0_8 = arith.constant 0 : index
    %c0_9 = arith.constant 0 : index
    %13 = vector.load %arg4[%c0_8, %c0_9] : memref<128x256xbf16, #tpu.memory_space<vmem>>, vector<128x256xbf16>
    %cst_10 = arith.constant dense<0.000000e+00> : vector<16x256xf32>
    %14 = tpu.matmul %12, %13, %cst_10 {dimension_numbers = #tpu.dot_dimension_numbers<[1], [0], [0], [1], [0, 0, 1, 1], [], []>} : vector<16x128xbf16>, vector<128x256xbf16>, vector<16x256xf32> -> vector<16x256xf32>
    %c0_11 = arith.constant 0 : index
    %c0_12 = arith.constant 0 : index
    %15 = vector.load %arg5[%c0_11, %c0_12] : memref<1x256xf32, #tpu.memory_space<vmem>>, vector<1x256xf32>
    %16 = vector.broadcast %15 : vector<1x256xf32> to vector<16x256xf32>
    %17 = arith.addf %14, %16 : vector<16x256xf32>
    %c0_13 = arith.constant 0 : index
    %c0_14 = arith.constant 0 : index
    %18 = vector.load %arg6[%c0_13, %c0_14] : memref<16x256xf32, #tpu.memory_space<vmem>>, vector<16x256xf32>
    tpu.vector_store %arg6[%c0_13, %c0_14], %17 {strides = array<i32>} : memref<16x256xf32, #tpu.memory_space<vmem>>, vector<16x256xf32>,
    return
  }
  func.func @transform_0(%arg0: i32) -> (i32, i32) {
    %c0_i32 = arith.constant 0 : i32
    %c0_i32_0 = arith.constant 0 : i32
    %c0_i32_1 = arith.constant 0 : i32
    return %c0_i32, %c0_i32_0 : i32, i32
  }
  func.func @transform_1(%arg0: i32) -> (i32, i32) {
    %c0_i32 = arith.constant 0 : i32
    %c0_i32_0 = arith.constant 0 : i32
    %c0_i32_1 = arith.constant 0 : i32
    return %c0_i32, %c0_i32_0 : i32, i32
  }
  func.func @transform_2(%arg0: i32) -> (i32, i32) {
    %c0_i32 = arith.constant 0 : i32
    %c0_i32_0 = arith.constant 0 : i32
    %c0_i32_1 = arith.constant 0 : i32
    return %c0_i32, %c0_i32_0 : i32, i32
  }
  func.func @transform_3(%arg0: i32) -> (i32, i32) {
    %c0_i32 = arith.constant 0 : i32
    %c0_i32_0 = arith.constant 0 : i32
    %c0_i32_1 = arith.constant 0 : i32
    return %c0_i32, %c0_i32_0 : i32, i32
  }
  func.func @transform_4(%arg0: i32) -> (i32, i32) {
    %c0_i32 = arith.constant 0 : i32
    %c0_i32_0 = arith.constant 0 : i32
    %c0_i32_1 = arith.constant 0 : i32
    return %c0_i32, %c0_i32_0 : i32, i32
  }
  func.func @transform_5(%arg0: i32) -> (i32, i32) {
    %c0_i32 = arith.constant 0 : i32
    %c0_i32_0 = arith.constant 0 : i32
    %c0_i32_1 = arith.constant 0 : i32
    return %c0_i32, %c0_i32_0 : i32, i32
  }
}

module attributes {stable_mosaic.version = 11 : i64} {
  func.func @_ae_kernel(%arg0: i32, %arg1: memref<16x256xf32, #tpu.memory_space<vmem>>, %arg2: memref<256x512xbf16, #tpu.memory_space<vmem>>, %arg3: memref<1x512xf32, #tpu.memory_space<vmem>>, %arg4: memref<512x128xbf16, #tpu.memory_space<vmem>>, %arg5: memref<1x128xf32, #tpu.memory_space<vmem>>, %arg6: memref<128x512xbf16, #tpu.memory_space<vmem>>, %arg7: memref<1x512xf32, #tpu.memory_space<vmem>>, %arg8: memref<512x256xbf16, #tpu.memory_space<vmem>>, %arg9: memref<1x256xf32, #tpu.memory_space<vmem>>, %arg10: memref<128x768xbf16, #tpu.memory_space<vmem>>, %arg11: memref<1x768xf32, #tpu.memory_space<vmem>>, %arg12: memref<16x128xf32, #tpu.memory_space<vmem>>, %arg13: memref<16x256xf32, #tpu.memory_space<vmem>>, %arg14: memref<16x768xf32, #tpu.memory_space<vmem>>) attributes {dimension_semantics = [#tpu.dimension_semantics<arbitrary>], iteration_bounds = array<i64: 1>, scalar_prefetch = 0 : i64, scratch_operands = 0 : i64, tpu.core_type = #tpu.core_type<tc>, window_params = [{pipeline_mode = #tpu.pipeline_mode<synchronous>, transform_indices = @transform_0, window_bounds = array<i64: 16, 256>}, {pipeline_mode = #tpu.pipeline_mode<synchronous>, transform_indices = @transform_1, window_bounds = array<i64: 256, 512>}, {pipeline_mode = #tpu.pipeline_mode<synchronous>, transform_indices = @transform_2, window_bounds = array<i64: 1, 512>}, {pipeline_mode = #tpu.pipeline_mode<synchronous>, transform_indices = @transform_3, window_bounds = array<i64: 512, 128>}, {pipeline_mode = #tpu.pipeline_mode<synchronous>, transform_indices = @transform_4, window_bounds = array<i64: 1, 128>}, {pipeline_mode = #tpu.pipeline_mode<synchronous>, transform_indices = @transform_5, window_bounds = array<i64: 128, 512>}, {pipeline_mode = #tpu.pipeline_mode<synchronous>, transform_indices = @transform_6, window_bounds = array<i64: 1, 512>}, {pipeline_mode = #tpu.pipeline_mode<synchronous>, transform_indices = @transform_7, window_bounds = array<i64: 512, 256>}, {pipeline_mode = #tpu.pipeline_mode<synchronous>, transform_indices = @transform_8, window_bounds = array<i64: 1, 256>}, {pipeline_mode = #tpu.pipeline_mode<synchronous>, transform_indices = @transform_9, window_bounds = array<i64: 128, 768>}, {pipeline_mode = #tpu.pipeline_mode<synchronous>, transform_indices = @transform_10, window_bounds = array<i64: 1, 768>}, {pipeline_mode = #tpu.pipeline_mode<synchronous>, transform_indices = @transform_11, window_bounds = array<i64: 16, 128>}, {pipeline_mode = #tpu.pipeline_mode<synchronous>, transform_indices = @transform_12, window_bounds = array<i64: 16, 256>}, {pipeline_mode = #tpu.pipeline_mode<synchronous>, transform_indices = @transform_13, window_bounds = array<i64: 16, 768>}]} {
    %c0 = arith.constant 0 : index
    %c0_0 = arith.constant 0 : index
    %0 = vector.load %arg1[%c0, %c0_0] : memref<16x256xf32, #tpu.memory_space<vmem>>, vector<16x256xf32>
    %1 = arith.truncf %0 : vector<16x256xf32> to vector<16x256xbf16>
    %c0_1 = arith.constant 0 : index
    %c0_2 = arith.constant 0 : index
    %2 = vector.load %arg2[%c0_1, %c0_2] : memref<256x512xbf16, #tpu.memory_space<vmem>>, vector<256x512xbf16>
    %cst = arith.constant dense<0.000000e+00> : vector<16x512xf32>
    %3 = tpu.matmul %1, %2, %cst {dimension_numbers = #tpu.dot_dimension_numbers<[1], [0], [0], [1], [0, 0, 1, 1], [], []>} : vector<16x256xbf16>, vector<256x512xbf16>, vector<16x512xf32> -> vector<16x512xf32>
    %c0_3 = arith.constant 0 : index
    %c0_4 = arith.constant 0 : index
    %4 = vector.load %arg3[%c0_3, %c0_4] : memref<1x512xf32, #tpu.memory_space<vmem>>, vector<1x512xf32>
    %5 = vector.broadcast %4 : vector<1x512xf32> to vector<16x512xf32>
    %6 = arith.addf %3, %5 : vector<16x512xf32>
    %cst_5 = arith.constant 0.000000e+00 : f32
    %7 = vector.broadcast %cst_5 : f32 to vector<16x512xf32>
    %8 = arith.maximumf %6, %7 : vector<16x512xf32>
    %9 = arith.truncf %8 : vector<16x512xf32> to vector<16x512xbf16>
    %c0_6 = arith.constant 0 : index
    %c0_7 = arith.constant 0 : index
    %10 = vector.load %arg4[%c0_6, %c0_7] : memref<512x128xbf16, #tpu.memory_space<vmem>>, vector<512x128xbf16>
    %cst_8 = arith.constant dense<0.000000e+00> : vector<16x128xf32>
    %11 = tpu.matmul %9, %10, %cst_8 {dimension_numbers = #tpu.dot_dimension_numbers<[1], [0], [0], [1], [0, 0, 1, 1], [], []>} : vector<16x512xbf16>, vector<512x128xbf16>, vector<16x128xf32> -> vector<16x128xf32>
    %c0_9 = arith.constant 0 : index
    %c0_10 = arith.constant 0 : index
    %12 = vector.load %arg5[%c0_9, %c0_10] : memref<1x128xf32, #tpu.memory_space<vmem>>, vector<1x128xf32>
    %13 = vector.broadcast %12 : vector<1x128xf32> to vector<16x128xf32>
    %14 = arith.addf %11, %13 : vector<16x128xf32>
    %cst_11 = arith.constant 0.000000e+00 : f32
    %15 = vector.broadcast %cst_11 : f32 to vector<16x128xf32>
    %16 = arith.maximumf %14, %15 : vector<16x128xf32>
    %c0_12 = arith.constant 0 : index
    %c0_13 = arith.constant 0 : index
    %17 = vector.load %arg12[%c0_12, %c0_13] : memref<16x128xf32, #tpu.memory_space<vmem>>, vector<16x128xf32>
    tpu.vector_store %arg12[%c0_12, %c0_13], %16 {strides = array<i32>} : memref<16x128xf32, #tpu.memory_space<vmem>>, vector<16x128xf32>,
    %18 = arith.truncf %16 : vector<16x128xf32> to vector<16x128xbf16>
    %c0_14 = arith.constant 0 : index
    %c0_15 = arith.constant 0 : index
    %19 = vector.load %arg6[%c0_14, %c0_15] : memref<128x512xbf16, #tpu.memory_space<vmem>>, vector<128x512xbf16>
    %cst_16 = arith.constant dense<0.000000e+00> : vector<16x512xf32>
    %20 = tpu.matmul %18, %19, %cst_16 {dimension_numbers = #tpu.dot_dimension_numbers<[1], [0], [0], [1], [0, 0, 1, 1], [], []>} : vector<16x128xbf16>, vector<128x512xbf16>, vector<16x512xf32> -> vector<16x512xf32>
    %c0_17 = arith.constant 0 : index
    %c0_18 = arith.constant 0 : index
    %21 = vector.load %arg7[%c0_17, %c0_18] : memref<1x512xf32, #tpu.memory_space<vmem>>, vector<1x512xf32>
    %22 = vector.broadcast %21 : vector<1x512xf32> to vector<16x512xf32>
    %23 = arith.addf %20, %22 : vector<16x512xf32>
    %cst_19 = arith.constant 0.000000e+00 : f32
    %24 = vector.broadcast %cst_19 : f32 to vector<16x512xf32>
    %25 = arith.maximumf %23, %24 : vector<16x512xf32>
    %26 = arith.truncf %25 : vector<16x512xf32> to vector<16x512xbf16>
    %c0_20 = arith.constant 0 : index
    %c0_21 = arith.constant 0 : index
    %27 = vector.load %arg8[%c0_20, %c0_21] : memref<512x256xbf16, #tpu.memory_space<vmem>>, vector<512x256xbf16>
    %cst_22 = arith.constant dense<0.000000e+00> : vector<16x256xf32>
    %28 = tpu.matmul %26, %27, %cst_22 {dimension_numbers = #tpu.dot_dimension_numbers<[1], [0], [0], [1], [0, 0, 1, 1], [], []>} : vector<16x512xbf16>, vector<512x256xbf16>, vector<16x256xf32> -> vector<16x256xf32>
    %c0_23 = arith.constant 0 : index
    %c0_24 = arith.constant 0 : index
    %29 = vector.load %arg9[%c0_23, %c0_24] : memref<1x256xf32, #tpu.memory_space<vmem>>, vector<1x256xf32>
    %30 = vector.broadcast %29 : vector<1x256xf32> to vector<16x256xf32>
    %31 = arith.addf %28, %30 : vector<16x256xf32>
    %c0_25 = arith.constant 0 : index
    %c0_26 = arith.constant 0 : index
    %32 = vector.load %arg13[%c0_25, %c0_26] : memref<16x256xf32, #tpu.memory_space<vmem>>, vector<16x256xf32>
    tpu.vector_store %arg13[%c0_25, %c0_26], %31 {strides = array<i32>} : memref<16x256xf32, #tpu.memory_space<vmem>>, vector<16x256xf32>,
    %c0_27 = arith.constant 0 : index
    %c0_28 = arith.constant 0 : index
    %33 = vector.load %arg10[%c0_27, %c0_28] : memref<128x768xbf16, #tpu.memory_space<vmem>>, vector<128x768xbf16>
    %cst_29 = arith.constant dense<0.000000e+00> : vector<16x768xf32>
    %34 = tpu.matmul %18, %33, %cst_29 {dimension_numbers = #tpu.dot_dimension_numbers<[1], [0], [0], [1], [0, 0, 1, 1], [], []>} : vector<16x128xbf16>, vector<128x768xbf16>, vector<16x768xf32> -> vector<16x768xf32>
    %c0_30 = arith.constant 0 : index
    %c0_31 = arith.constant 0 : index
    %35 = vector.load %arg11[%c0_30, %c0_31] : memref<1x768xf32, #tpu.memory_space<vmem>>, vector<1x768xf32>
    %36 = vector.broadcast %35 : vector<1x768xf32> to vector<16x768xf32>
    %37 = arith.addf %34, %36 : vector<16x768xf32>
    %c0_32 = arith.constant 0 : index
    %c0_33 = arith.constant 0 : index
    %38 = vector.load %arg14[%c0_32, %c0_33] : memref<16x768xf32, #tpu.memory_space<vmem>>, vector<16x768xf32>
    tpu.vector_store %arg14[%c0_32, %c0_33], %37 {strides = array<i32>} : memref<16x768xf32, #tpu.memory_space<vmem>>, vector<16x768xf32>,
    return
  }
  func.func @transform_0(%arg0: i32) -> (i32, i32) {
    %c0_i32 = arith.constant 0 : i32
    %c0_i32_0 = arith.constant 0 : i32
    %c0_i32_1 = arith.constant 0 : i32
    return %c0_i32, %c0_i32_0 : i32, i32
  }
  func.func @transform_1(%arg0: i32) -> (i32, i32) {
    %c0_i32 = arith.constant 0 : i32
    %c0_i32_0 = arith.constant 0 : i32
    %c0_i32_1 = arith.constant 0 : i32
    return %c0_i32, %c0_i32_0 : i32, i32
  }
  func.func @transform_2(%arg0: i32) -> (i32, i32) {
    %c0_i32 = arith.constant 0 : i32
    %c0_i32_0 = arith.constant 0 : i32
    %c0_i32_1 = arith.constant 0 : i32
    return %c0_i32, %c0_i32_0 : i32, i32
  }
  func.func @transform_3(%arg0: i32) -> (i32, i32) {
    %c0_i32 = arith.constant 0 : i32
    %c0_i32_0 = arith.constant 0 : i32
    %c0_i32_1 = arith.constant 0 : i32
    return %c0_i32, %c0_i32_0 : i32, i32
  }
  func.func @transform_4(%arg0: i32) -> (i32, i32) {
    %c0_i32 = arith.constant 0 : i32
    %c0_i32_0 = arith.constant 0 : i32
    %c0_i32_1 = arith.constant 0 : i32
    return %c0_i32, %c0_i32_0 : i32, i32
  }
  func.func @transform_5(%arg0: i32) -> (i32, i32) {
    %c0_i32 = arith.constant 0 : i32
    %c0_i32_0 = arith.constant 0 : i32
    %c0_i32_1 = arith.constant 0 : i32
    return %c0_i32, %c0_i32_0 : i32, i32
  }
  func.func @transform_6(%arg0: i32) -> (i32, i32) {
    %c0_i32 = arith.constant 0 : i32
    %c0_i32_0 = arith.constant 0 : i32
    %c0_i32_1 = arith.constant 0 : i32
    return %c0_i32, %c0_i32_0 : i32, i32
  }
  func.func @transform_7(%arg0: i32) -> (i32, i32) {
    %c0_i32 = arith.constant 0 : i32
    %c0_i32_0 = arith.constant 0 : i32
    %c0_i32_1 = arith.constant 0 : i32
    return %c0_i32, %c0_i32_0 : i32, i32
  }
  func.func @transform_8(%arg0: i32) -> (i32, i32) {
    %c0_i32 = arith.constant 0 : i32
    %c0_i32_0 = arith.constant 0 : i32
    %c0_i32_1 = arith.constant 0 : i32
    return %c0_i32, %c0_i32_0 : i32, i32
  }
  func.func @transform_9(%arg0: i32) -> (i32, i32) {
    %c0_i32 = arith.constant 0 : i32
    %c0_i32_0 = arith.constant 0 : i32
    %c0_i32_1 = arith.constant 0 : i32
    return %c0_i32, %c0_i32_0 : i32, i32
  }
  func.func @transform_10(%arg0: i32) -> (i32, i32) {
    %c0_i32 = arith.constant 0 : i32
    %c0_i32_0 = arith.constant 0 : i32
    %c0_i32_1 = arith.constant 0 : i32
    return %c0_i32, %c0_i32_0 : i32, i32
  }
  func.func @transform_11(%arg0: i32) -> (i32, i32) {
    %c0_i32 = arith.constant 0 : i32
    %c0_i32_0 = arith.constant 0 : i32
    %c0_i32_1 = arith.constant 0 : i32
    return %c0_i32, %c0_i32_0 : i32, i32
  }
  func.func @transform_12(%arg0: i32) -> (i32, i32) {
    %c0_i32 = arith.constant 0 : i32
    %c0_i32_0 = arith.constant 0 : i32
    %c0_i32_1 = arith.constant 0 : i32
    return %c0_i32, %c0_i32_0 : i32, i32
  }
  func.func @transform_13(%arg0: i32) -> (i32, i32) {
    %c0_i32 = arith.constant 0 : i32
    %c0_i32_0 = arith.constant 0 : i32
    %c0_i32_1 = arith.constant 0 : i32
    return %c0_i32, %c0_i32_0 : i32, i32
  }
}

module attributes {stable_mosaic.version = 11 : i64} {
  func.func @_gru_layer_kernel(%arg0: i32, %arg1: memref<8x2x768xf32, #tpu.memory_space<vmem>>, %arg2: memref<256x768xbf16, #tpu.memory_space<vmem>>, %arg3: memref<1x768xf32, #tpu.memory_space<vmem>>, %arg4: memref<8x2x256xf32, #tpu.memory_space<vmem>>, %arg5: memref<2x256xf32, #tpu.memory_space<vmem>>) attributes {dimension_semantics = [#tpu.dimension_semantics<arbitrary>], iteration_bounds = array<i64: 1>, scalar_prefetch = 0 : i64, scratch_operands = 1 : i64, tpu.core_type = #tpu.core_type<tc>, window_params = [{pipeline_mode = #tpu.pipeline_mode<synchronous>, transform_indices = @transform_0, window_bounds = array<i64: 8, 2, 768>}, {pipeline_mode = #tpu.pipeline_mode<synchronous>, transform_indices = @transform_1, window_bounds = array<i64: 256, 768>}, {pipeline_mode = #tpu.pipeline_mode<synchronous>, transform_indices = @transform_2, window_bounds = array<i64: 1, 768>}, {pipeline_mode = #tpu.pipeline_mode<synchronous>, transform_indices = @transform_3, window_bounds = array<i64: 8, 2, 256>}]} {
    %cst = arith.constant 0.000000e+00 : f32
    %0 = vector.broadcast %cst : f32 to vector<2x256xf32>
    %c0 = arith.constant 0 : index
    %c0_0 = arith.constant 0 : index
    %1 = vector.load %arg5[%c0, %c0_0] : memref<2x256xf32, #tpu.memory_space<vmem>>, vector<2x256xf32>
    tpu.vector_store %arg5[%c0, %c0_0], %0 {strides = array<i32>} : memref<2x256xf32, #tpu.memory_space<vmem>>, vector<2x256xf32>,
    %c0_i32 = arith.constant 0 : i32
    %c8_i32 = arith.constant 8 : i32
    %2 = arith.addi %c0_i32, %c8_i32 : i32
    %c1_i32 = arith.constant 1 : i32
    scf.for %arg6 = %c0_i32 to %2 step %c1_i32  : i32 {
      %c1_i32_2 = arith.constant 1 : i32
      %3 = arith.muli %arg6, %c1_i32_2 : i32
      %c0_i32_3 = arith.constant 0 : i32
      %4 = arith.addi %c0_i32_3, %3 : i32
      %c0_4 = arith.constant 0 : index
      %c0_5 = arith.constant 0 : index
      %5 = vector.load %arg5[%c0_4, %c0_5] : memref<2x256xf32, #tpu.memory_space<vmem>>, vector<2x256xf32>
      %6 = arith.truncf %5 : vector<2x256xf32> to vector<2x256xbf16>
      %c0_6 = arith.constant 0 : index
      %c0_7 = arith.constant 0 : index
      %7 = vector.load %arg2[%c0_6, %c0_7] : memref<256x768xbf16, #tpu.memory_space<vmem>>, vector<256x768xbf16>
      %cst_8 = arith.constant dense<0.000000e+00> : vector<2x768xf32>
      %8 = tpu.matmul %6, %7, %cst_8 {dimension_numbers = #tpu.dot_dimension_numbers<[1], [0], [0], [1], [0, 0, 1, 1], [], []>} : vector<2x256xbf16>, vector<256x768xbf16>, vector<2x768xf32> -> vector<2x768xf32>
      %c0_9 = arith.constant 0 : index
      %c0_10 = arith.constant 0 : index
      %9 = vector.load %arg3[%c0_9, %c0_10] : memref<1x768xf32, #tpu.memory_space<vmem>>, vector<1x768xf32>
      %10 = vector.broadcast %9 : vector<1x768xf32> to vector<2x768xf32>
      %11 = arith.addf %8, %10 : vector<2x768xf32>
      %12 = arith.index_cast %4 : i32 to index
      %c0_11 = arith.constant 0 : index
      %c0_12 = arith.constant 0 : index
      %13 = vector.load %arg1[%12, %c0_11, %c0_12] : memref<8x2x768xf32, #tpu.memory_space<vmem>>, vector<1x2x768xf32>
      %14 = vector.shape_cast %13 : vector<1x2x768xf32> to vector<2x768xf32>
      %15 = vector.extract_strided_slice %14 {offsets = [0, 0], sizes = [2, 256], strides = [1, 1]} : vector<2x768xf32> to vector<2x256xf32>
      %16 = vector.extract_strided_slice %11 {offsets = [0, 0], sizes = [2, 256], strides = [1, 1]} : vector<2x768xf32> to vector<2x256xf32>
      %17 = arith.addf %15, %16 : vector<2x256xf32>
      %18 = arith.negf %17 : vector<2x256xf32>
      %19 = math.exp %18 : vector<2x256xf32>
      %cst_13 = arith.constant 1.000000e+00 : f32
      %20 = vector.broadcast %cst_13 : f32 to vector<2x256xf32>
      %21 = arith.addf %20, %19 : vector<2x256xf32>
      %22 = arith.divf %20, %21 : vector<2x256xf32>
      %23 = vector.extract_strided_slice %14 {offsets = [0, 256], sizes = [2, 256], strides = [1, 1]} : vector<2x768xf32> to vector<2x256xf32>
      %24 = vector.extract_strided_slice %11 {offsets = [0, 256], sizes = [2, 256], strides = [1, 1]} : vector<2x768xf32> to vector<2x256xf32>
      %25 = arith.addf %23, %24 : vector<2x256xf32>
      %26 = arith.negf %25 : vector<2x256xf32>
      %27 = math.exp %26 : vector<2x256xf32>
      %cst_14 = arith.constant 1.000000e+00 : f32
      %28 = vector.broadcast %cst_14 : f32 to vector<2x256xf32>
      %29 = arith.addf %28, %27 : vector<2x256xf32>
      %30 = arith.divf %28, %29 : vector<2x256xf32>
      %31 = vector.extract_strided_slice %14 {offsets = [0, 512], sizes = [2, 256], strides = [1, 1]} : vector<2x768xf32> to vector<2x256xf32>
      %32 = vector.extract_strided_slice %11 {offsets = [0, 512], sizes = [2, 256], strides = [1, 1]} : vector<2x768xf32> to vector<2x256xf32>
      %33 = arith.mulf %22, %32 : vector<2x256xf32>
      %34 = arith.addf %31, %33 : vector<2x256xf32>
      %35 = math.tanh %34 : vector<2x256xf32>
      %cst_15 = arith.constant 1.000000e+00 : f32
      %36 = vector.broadcast %cst_15 : f32 to vector<2x256xf32>
      %37 = arith.subf %36, %30 : vector<2x256xf32>
      %38 = arith.mulf %37, %35 : vector<2x256xf32>
      %39 = arith.mulf %30, %5 : vector<2x256xf32>
      %40 = arith.addf %38, %39 : vector<2x256xf32>
      %c0_16 = arith.constant 0 : index
      %c0_17 = arith.constant 0 : index
      %41 = vector.load %arg5[%c0_16, %c0_17] : memref<2x256xf32, #tpu.memory_space<vmem>>, vector<2x256xf32>
      tpu.vector_store %arg5[%c0_16, %c0_17], %40 {strides = array<i32>} : memref<2x256xf32, #tpu.memory_space<vmem>>, vector<2x256xf32>,
      %42 = arith.index_cast %4 : i32 to index
      %c0_18 = arith.constant 0 : index
      %c0_19 = arith.constant 0 : index
      %43 = vector.load %arg4[%42, %c0_18, %c0_19] : memref<8x2x256xf32, #tpu.memory_space<vmem>>, vector<1x2x256xf32>
      %44 = vector.shape_cast %43 : vector<1x2x256xf32> to vector<2x256xf32>
      %45 = vector.shape_cast %40 : vector<2x256xf32> to vector<1x2x256xf32>
      tpu.vector_store %arg4[%42, %c0_18, %c0_19], %45 {strides = array<i32>} : memref<8x2x256xf32, #tpu.memory_space<vmem>>, vector<1x2x256xf32>,
    }
    %c8_i32_1 = arith.constant 8 : i32
    return
  }
  func.func @transform_0(%arg0: i32) -> (i32, i32, i32) {
    %c0_i32 = arith.constant 0 : i32
    %c0_i32_0 = arith.constant 0 : i32
    %c0_i32_1 = arith.constant 0 : i32
    %c0_i32_2 = arith.constant 0 : i32
    return %c0_i32, %c0_i32_0, %c0_i32_1 : i32, i32, i32
  }
  func.func @transform_1(%arg0: i32) -> (i32, i32) {
    %c0_i32 = arith.constant 0 : i32
    %c0_i32_0 = arith.constant 0 : i32
    %c0_i32_1 = arith.constant 0 : i32
    return %c0_i32, %c0_i32_0 : i32, i32
  }
  func.func @transform_2(%arg0: i32) -> (i32, i32) {
    %c0_i32 = arith.constant 0 : i32
    %c0_i32_0 = arith.constant 0 : i32
    %c0_i32_1 = arith.constant 0 : i32
    return %c0_i32, %c0_i32_0 : i32, i32
  }
  func.func @transform_3(%arg0: i32) -> (i32, i32, i32) {
    %c0_i32 = arith.constant 0 : i32
    %c0_i32_0 = arith.constant 0 : i32
    %c0_i32_1 = arith.constant 0 : i32
    %c0_i32_2 = arith.constant 0 : i32
    return %c0_i32, %c0_i32_0, %c0_i32_1 : i32, i32, i32
  }
}

module attributes {stable_mosaic.version = 11 : i64} {
  func.func @_matmul_bias_act_kernel(%arg0: i32, %arg1: memref<16x256xf32, #tpu.memory_space<vmem>>, %arg2: memref<256x768xbf16, #tpu.memory_space<vmem>>, %arg3: memref<1x768xf32, #tpu.memory_space<vmem>>, %arg4: memref<16x768xf32, #tpu.memory_space<vmem>>) attributes {dimension_semantics = [#tpu.dimension_semantics<parallel>], iteration_bounds = array<i64: 1>, scalar_prefetch = 0 : i64, scratch_operands = 0 : i64, tpu.core_type = #tpu.core_type<tc>, window_params = [{transform_indices = @transform_0, window_bounds = array<i64: 16, 256>}, {pipeline_mode = #tpu.pipeline_mode<synchronous>, transform_indices = @transform_1, window_bounds = array<i64: 256, 768>}, {pipeline_mode = #tpu.pipeline_mode<synchronous>, transform_indices = @transform_2, window_bounds = array<i64: 1, 768>}, {transform_indices = @transform_3, window_bounds = array<i64: 16, 768>}]} {
    %c0 = arith.constant 0 : index
    %c0_0 = arith.constant 0 : index
    %0 = vector.load %arg1[%c0, %c0_0] : memref<16x256xf32, #tpu.memory_space<vmem>>, vector<16x256xf32>
    %1 = arith.truncf %0 : vector<16x256xf32> to vector<16x256xbf16>
    %c0_1 = arith.constant 0 : index
    %c0_2 = arith.constant 0 : index
    %2 = vector.load %arg2[%c0_1, %c0_2] : memref<256x768xbf16, #tpu.memory_space<vmem>>, vector<256x768xbf16>
    %cst = arith.constant dense<0.000000e+00> : vector<16x768xf32>
    %3 = tpu.matmul %1, %2, %cst {dimension_numbers = #tpu.dot_dimension_numbers<[1], [0], [0], [1], [0, 0, 1, 1], [], []>} : vector<16x256xbf16>, vector<256x768xbf16>, vector<16x768xf32> -> vector<16x768xf32>
    %c0_3 = arith.constant 0 : index
    %c0_4 = arith.constant 0 : index
    %4 = vector.load %arg3[%c0_3, %c0_4] : memref<1x768xf32, #tpu.memory_space<vmem>>, vector<1x768xf32>
    %5 = vector.broadcast %4 : vector<1x768xf32> to vector<16x768xf32>
    %6 = arith.addf %3, %5 : vector<16x768xf32>
    %c0_5 = arith.constant 0 : index
    %c0_6 = arith.constant 0 : index
    %7 = vector.load %arg4[%c0_5, %c0_6] : memref<16x768xf32, #tpu.memory_space<vmem>>, vector<16x768xf32>
    tpu.vector_store %arg4[%c0_5, %c0_6], %6 {strides = array<i32>} : memref<16x768xf32, #tpu.memory_space<vmem>>, vector<16x768xf32>,
    return
  }
  func.func @transform_0(%arg0: i32) -> (i32, i32) {
    %c0_i32 = arith.constant 0 : i32
    %c0_i32_0 = arith.constant 0 : i32
    return %arg0, %c0_i32 : i32, i32
  }
  func.func @transform_1(%arg0: i32) -> (i32, i32) {
    %c0_i32 = arith.constant 0 : i32
    %c0_i32_0 = arith.constant 0 : i32
    %c0_i32_1 = arith.constant 0 : i32
    return %c0_i32, %c0_i32_0 : i32, i32
  }
  func.func @transform_2(%arg0: i32) -> (i32, i32) {
    %c0_i32 = arith.constant 0 : i32
    %c0_i32_0 = arith.constant 0 : i32
    %c0_i32_1 = arith.constant 0 : i32
    return %c0_i32, %c0_i32_0 : i32, i32
  }
  func.func @transform_3(%arg0: i32) -> (i32, i32) {
    %c0_i32 = arith.constant 0 : i32
    %c0_i32_0 = arith.constant 0 : i32
    return %arg0, %c0_i32 : i32, i32
  }
}

module attributes {stable_mosaic.version = 11 : i64} {
  func.func @_transformer_cls_kernel(%arg0: i32, %arg1: memref<1x8x256xf32, #tpu.memory_space<vmem>>, %arg2: memref<256x768xbf16, #tpu.memory_space<vmem>>, %arg3: memref<1x768xf32, #tpu.memory_space<vmem>>, %arg4: memref<256x256xbf16, #tpu.memory_space<vmem>>, %arg5: memref<1x256xf32, #tpu.memory_space<vmem>>, %arg6: memref<1x256xf32, #tpu.memory_space<vmem>>, %arg7: memref<1x256xf32, #tpu.memory_space<vmem>>, %arg8: memref<256x1024xbf16, #tpu.memory_space<vmem>>, %arg9: memref<1x1024xf32, #tpu.memory_space<vmem>>, %arg10: memref<1024x256xbf16, #tpu.memory_space<vmem>>, %arg11: memref<1x256xf32, #tpu.memory_space<vmem>>, %arg12: memref<1x256xf32, #tpu.memory_space<vmem>>, %arg13: memref<1x256xf32, #tpu.memory_space<vmem>>, %arg14: memref<256x2xbf16, #tpu.memory_space<vmem>>, %arg15: memref<1x2xf32, #tpu.memory_space<vmem>>, %arg16: memref<1x1x2xf32, #tpu.memory_space<vmem>>) attributes {dimension_semantics = [#tpu.dimension_semantics<parallel>], iteration_bounds = array<i64: 2>, scalar_prefetch = 0 : i64, scratch_operands = 0 : i64, tpu.core_type = #tpu.core_type<tc>, window_params = [{transform_indices = @transform_0, window_bounds = array<i64: 1, 8, 256>}, {pipeline_mode = #tpu.pipeline_mode<synchronous>, transform_indices = @transform_1, window_bounds = array<i64: 256, 768>}, {pipeline_mode = #tpu.pipeline_mode<synchronous>, transform_indices = @transform_2, window_bounds = array<i64: 1, 768>}, {pipeline_mode = #tpu.pipeline_mode<synchronous>, transform_indices = @transform_3, window_bounds = array<i64: 256, 256>}, {pipeline_mode = #tpu.pipeline_mode<synchronous>, transform_indices = @transform_4, window_bounds = array<i64: 1, 256>}, {pipeline_mode = #tpu.pipeline_mode<synchronous>, transform_indices = @transform_5, window_bounds = array<i64: 1, 256>}, {pipeline_mode = #tpu.pipeline_mode<synchronous>, transform_indices = @transform_6, window_bounds = array<i64: 1, 256>}, {pipeline_mode = #tpu.pipeline_mode<synchronous>, transform_indices = @transform_7, window_bounds = array<i64: 256, 1024>}, {pipeline_mode = #tpu.pipeline_mode<synchronous>, transform_indices = @transform_8, window_bounds = array<i64: 1, 1024>}, {pipeline_mode = #tpu.pipeline_mode<synchronous>, transform_indices = @transform_9, window_bounds = array<i64: 1024, 256>}, {pipeline_mode = #tpu.pipeline_mode<synchronous>, transform_indices = @transform_10, window_bounds = array<i64: 1, 256>}, {pipeline_mode = #tpu.pipeline_mode<synchronous>, transform_indices = @transform_11, window_bounds = array<i64: 1, 256>}, {pipeline_mode = #tpu.pipeline_mode<synchronous>, transform_indices = @transform_12, window_bounds = array<i64: 1, 256>}, {pipeline_mode = #tpu.pipeline_mode<synchronous>, transform_indices = @transform_13, window_bounds = array<i64: 256, 2>}, {pipeline_mode = #tpu.pipeline_mode<synchronous>, transform_indices = @transform_14, window_bounds = array<i64: 1, 2>}, {transform_indices = @transform_15, window_bounds = array<i64: 1, 1, 2>}]} {
    %c0 = arith.constant 0 : index
    %c0_0 = arith.constant 0 : index
    %c0_1 = arith.constant 0 : index
    %0 = vector.load %arg1[%c0, %c0_0, %c0_1] : memref<1x8x256xf32, #tpu.memory_space<vmem>>, vector<1x8x256xf32>
    %1 = vector.shape_cast %0 : vector<1x8x256xf32> to vector<8x256xf32>
    %2 = arith.truncf %1 : vector<8x256xf32> to vector<8x256xbf16>
    %c0_2 = arith.constant 0 : index
    %c0_3 = arith.constant 0 : index
    %3 = vector.load %arg2[%c0_2, %c0_3] : memref<256x768xbf16, #tpu.memory_space<vmem>>, vector<256x768xbf16>
    %cst = arith.constant dense<0.000000e+00> : vector<8x768xf32>
    %4 = tpu.matmul %2, %3, %cst {dimension_numbers = #tpu.dot_dimension_numbers<[1], [0], [0], [1], [0, 0, 1, 1], [], []>} : vector<8x256xbf16>, vector<256x768xbf16>, vector<8x768xf32> -> vector<8x768xf32>
    %c0_4 = arith.constant 0 : index
    %c0_5 = arith.constant 0 : index
    %5 = vector.load %arg3[%c0_4, %c0_5] : memref<1x768xf32, #tpu.memory_space<vmem>>, vector<1x768xf32>
    %6 = vector.broadcast %5 : vector<1x768xf32> to vector<8x768xf32>
    %7 = arith.addf %4, %6 : vector<8x768xf32>
    %cst_6 = arith.constant 6.400000e+01 : f32
    %8 = math.sqrt %cst_6 : f32
    %cst_7 = arith.constant 1.000000e+00 : f32
    %9 = arith.divf %cst_7, %8 : f32
    %10 = vector.extract_strided_slice %7 {offsets = [0, 0], sizes = [8, 256], strides = [1, 1]} : vector<8x768xf32> to vector<8x256xf32>
    %11 = vector.broadcast %9 : f32 to vector<8x256xf32>
    %12 = arith.mulf %10, %11 : vector<8x256xf32>
    %13 = vector.extract_strided_slice %7 {offsets = [0, 256], sizes = [8, 256], strides = [1, 1]} : vector<8x768xf32> to vector<8x256xf32>
    %14 = vector.extract_strided_slice %7 {offsets = [0, 512], sizes = [8, 256], strides = [1, 1]} : vector<8x768xf32> to vector<8x256xf32>
    %cst_8 = arith.constant 0.000000e+00 : f32
    %15 = vector.broadcast %cst_8 : f32 to vector<8x256xf32>
    %16 = vector.extract_strided_slice %12 {offsets = [0, 0], sizes = [8, 64], strides = [1, 1]} : vector<8x256xf32> to vector<8x64xf32>
    %17 = arith.truncf %16 : vector<8x64xf32> to vector<8x64xbf16>
    %18 = vector.extract_strided_slice %13 {offsets = [0, 0], sizes = [8, 64], strides = [1, 1]} : vector<8x256xf32> to vector<8x64xf32>
    %19 = arith.truncf %18 : vector<8x64xf32> to vector<8x64xbf16>
    %20 = vector.extract_strided_slice %14 {offsets = [0, 0], sizes = [8, 64], strides = [1, 1]} : vector<8x256xf32> to vector<8x64xf32>
    %21 = arith.truncf %20 : vector<8x64xf32> to vector<8x64xbf16>
    %cst_9 = arith.constant dense<0.000000e+00> : vector<8x8xf32>
    %22 = tpu.matmul %17, %19, %cst_9 {dimension_numbers = #tpu.dot_dimension_numbers<[1], [1], [0], [0], [0, 0, 1, 0], [], []>} : vector<8x64xbf16>, vector<8x64xbf16>, vector<8x8xf32> -> vector<8x8xf32>
    %cst_10 = arith.constant dense<0xFF800000> : vector<8xf32>
    %23 = vector.multi_reduction <maximumf>, %22, %cst_10 [1] : vector<8x8xf32> to vector<8xf32>
    %24 = vector.shape_cast %23 : vector<8xf32> to vector<8x1xf32>
    %25 = vector.broadcast %24 : vector<8x1xf32> to vector<8x8xf32>
    %26 = arith.subf %22, %25 : vector<8x8xf32>
    %27 = math.exp %26 : vector<8x8xf32>
    %cst_11 = arith.constant dense<0.000000e+00> : vector<8xf32>
    %28 = vector.multi_reduction <add>, %27, %cst_11 [1] : vector<8x8xf32> to vector<8xf32>
    %29 = vector.shape_cast %28 : vector<8xf32> to vector<8x1xf32>
    %30 = tpu.reciprocal %29 {approx = true} : vector<8x1xf32> -> vector<8x1xf32>
    %31 = vector.broadcast %30 : vector<8x1xf32> to vector<8x8xf32>
    %32 = arith.mulf %27, %31 : vector<8x8xf32>
    %33 = arith.truncf %32 : vector<8x8xf32> to vector<8x8xbf16>
    %cst_12 = arith.constant dense<0.000000e+00> : vector<8x64xf32>
    %34 = tpu.matmul %33, %21, %cst_12 {dimension_numbers = #tpu.dot_dimension_numbers<[1], [0], [0], [1], [0, 0, 1, 1], [], []>} : vector<8x8xbf16>, vector<8x64xbf16>, vector<8x64xf32> -> vector<8x64xf32>
    %35 = arith.truncf %34 : vector<8x64xf32> to vector<8x64xbf16>
    %c0_13 = arith.constant 0 : index
    %c0_14 = arith.constant 0 : index
    %36 = vector.load %arg4[%c0_13, %c0_14] : memref<256x256xbf16, #tpu.memory_space<vmem>>, vector<64x256xbf16>
    %cst_15 = arith.constant dense<0.000000e+00> : vector<8x256xf32>
    %37 = tpu.matmul %35, %36, %cst_15 {dimension_numbers = #tpu.dot_dimension_numbers<[1], [0], [0], [1], [0, 0, 1, 1], [], []>} : vector<8x64xbf16>, vector<64x256xbf16>, vector<8x256xf32> -> vector<8x256xf32>
    %38 = arith.addf %15, %37 : vector<8x256xf32>
    %39 = vector.extract_strided_slice %12 {offsets = [0, 64], sizes = [8, 64], strides = [1, 1]} : vector<8x256xf32> to vector<8x64xf32>
    %40 = arith.truncf %39 : vector<8x64xf32> to vector<8x64xbf16>
    %41 = vector.extract_strided_slice %13 {offsets = [0, 64], sizes = [8, 64], strides = [1, 1]} : vector<8x256xf32> to vector<8x64xf32>
    %42 = arith.truncf %41 : vector<8x64xf32> to vector<8x64xbf16>
    %43 = vector.extract_strided_slice %14 {offsets = [0, 64], sizes = [8, 64], strides = [1, 1]} : vector<8x256xf32> to vector<8x64xf32>
    %44 = arith.truncf %43 : vector<8x64xf32> to vector<8x64xbf16>
    %cst_16 = arith.constant dense<0.000000e+00> : vector<8x8xf32>
    %45 = tpu.matmul %40, %42, %cst_16 {dimension_numbers = #tpu.dot_dimension_numbers<[1], [1], [0], [0], [0, 0, 1, 0], [], []>} : vector<8x64xbf16>, vector<8x64xbf16>, vector<8x8xf32> -> vector<8x8xf32>
    %cst_17 = arith.constant dense<0xFF800000> : vector<8xf32>
    %46 = vector.multi_reduction <maximumf>, %45, %cst_17 [1] : vector<8x8xf32> to vector<8xf32>
    %47 = vector.shape_cast %46 : vector<8xf32> to vector<8x1xf32>
    %48 = vector.broadcast %47 : vector<8x1xf32> to vector<8x8xf32>
    %49 = arith.subf %45, %48 : vector<8x8xf32>
    %50 = math.exp %49 : vector<8x8xf32>
    %cst_18 = arith.constant dense<0.000000e+00> : vector<8xf32>
    %51 = vector.multi_reduction <add>, %50, %cst_18 [1] : vector<8x8xf32> to vector<8xf32>
    %52 = vector.shape_cast %51 : vector<8xf32> to vector<8x1xf32>
    %53 = tpu.reciprocal %52 {approx = true} : vector<8x1xf32> -> vector<8x1xf32>
    %54 = vector.broadcast %53 : vector<8x1xf32> to vector<8x8xf32>
    %55 = arith.mulf %50, %54 : vector<8x8xf32>
    %56 = arith.truncf %55 : vector<8x8xf32> to vector<8x8xbf16>
    %cst_19 = arith.constant dense<0.000000e+00> : vector<8x64xf32>
    %57 = tpu.matmul %56, %44, %cst_19 {dimension_numbers = #tpu.dot_dimension_numbers<[1], [0], [0], [1], [0, 0, 1, 1], [], []>} : vector<8x8xbf16>, vector<8x64xbf16>, vector<8x64xf32> -> vector<8x64xf32>
    %58 = arith.truncf %57 : vector<8x64xf32> to vector<8x64xbf16>
    %c64 = arith.constant 64 : index
    %c0_20 = arith.constant 0 : index
    %59 = vector.load %arg4[%c64, %c0_20] : memref<256x256xbf16, #tpu.memory_space<vmem>>, vector<64x256xbf16>
    %cst_21 = arith.constant dense<0.000000e+00> : vector<8x256xf32>
    %60 = tpu.matmul %58, %59, %cst_21 {dimension_numbers = #tpu.dot_dimension_numbers<[1], [0], [0], [1], [0, 0, 1, 1], [], []>} : vector<8x64xbf16>, vector<64x256xbf16>, vector<8x256xf32> -> vector<8x256xf32>
    %61 = arith.addf %38, %60 : vector<8x256xf32>
    %62 = vector.extract_strided_slice %12 {offsets = [0, 128], sizes = [8, 64], strides = [1, 1]} : vector<8x256xf32> to vector<8x64xf32>
    %63 = arith.truncf %62 : vector<8x64xf32> to vector<8x64xbf16>
    %64 = vector.extract_strided_slice %13 {offsets = [0, 128], sizes = [8, 64], strides = [1, 1]} : vector<8x256xf32> to vector<8x64xf32>
    %65 = arith.truncf %64 : vector<8x64xf32> to vector<8x64xbf16>
    %66 = vector.extract_strided_slice %14 {offsets = [0, 128], sizes = [8, 64], strides = [1, 1]} : vector<8x256xf32> to vector<8x64xf32>
    %67 = arith.truncf %66 : vector<8x64xf32> to vector<8x64xbf16>
    %cst_22 = arith.constant dense<0.000000e+00> : vector<8x8xf32>
    %68 = tpu.matmul %63, %65, %cst_22 {dimension_numbers = #tpu.dot_dimension_numbers<[1], [1], [0], [0], [0, 0, 1, 0], [], []>} : vector<8x64xbf16>, vector<8x64xbf16>, vector<8x8xf32> -> vector<8x8xf32>
    %cst_23 = arith.constant dense<0xFF800000> : vector<8xf32>
    %69 = vector.multi_reduction <maximumf>, %68, %cst_23 [1] : vector<8x8xf32> to vector<8xf32>
    %70 = vector.shape_cast %69 : vector<8xf32> to vector<8x1xf32>
    %71 = vector.broadcast %70 : vector<8x1xf32> to vector<8x8xf32>
    %72 = arith.subf %68, %71 : vector<8x8xf32>
    %73 = math.exp %72 : vector<8x8xf32>
    %cst_24 = arith.constant dense<0.000000e+00> : vector<8xf32>
    %74 = vector.multi_reduction <add>, %73, %cst_24 [1] : vector<8x8xf32> to vector<8xf32>
    %75 = vector.shape_cast %74 : vector<8xf32> to vector<8x1xf32>
    %76 = tpu.reciprocal %75 {approx = true} : vector<8x1xf32> -> vector<8x1xf32>
    %77 = vector.broadcast %76 : vector<8x1xf32> to vector<8x8xf32>
    %78 = arith.mulf %73, %77 : vector<8x8xf32>
    %79 = arith.truncf %78 : vector<8x8xf32> to vector<8x8xbf16>
    %cst_25 = arith.constant dense<0.000000e+00> : vector<8x64xf32>
    %80 = tpu.matmul %79, %67, %cst_25 {dimension_numbers = #tpu.dot_dimension_numbers<[1], [0], [0], [1], [0, 0, 1, 1], [], []>} : vector<8x8xbf16>, vector<8x64xbf16>, vector<8x64xf32> -> vector<8x64xf32>
    %81 = arith.truncf %80 : vector<8x64xf32> to vector<8x64xbf16>
    %c128 = arith.constant 128 : index
    %c0_26 = arith.constant 0 : index
    %82 = vector.load %arg4[%c128, %c0_26] : memref<256x256xbf16, #tpu.memory_space<vmem>>, vector<64x256xbf16>
    %cst_27 = arith.constant dense<0.000000e+00> : vector<8x256xf32>
    %83 = tpu.matmul %81, %82, %cst_27 {dimension_numbers = #tpu.dot_dimension_numbers<[1], [0], [0], [1], [0, 0, 1, 1], [], []>} : vector<8x64xbf16>, vector<64x256xbf16>, vector<8x256xf32> -> vector<8x256xf32>
    %84 = arith.addf %61, %83 : vector<8x256xf32>
    %85 = vector.extract_strided_slice %12 {offsets = [0, 192], sizes = [8, 64], strides = [1, 1]} : vector<8x256xf32> to vector<8x64xf32>
    %86 = arith.truncf %85 : vector<8x64xf32> to vector<8x64xbf16>
    %87 = vector.extract_strided_slice %13 {offsets = [0, 192], sizes = [8, 64], strides = [1, 1]} : vector<8x256xf32> to vector<8x64xf32>
    %88 = arith.truncf %87 : vector<8x64xf32> to vector<8x64xbf16>
    %89 = vector.extract_strided_slice %14 {offsets = [0, 192], sizes = [8, 64], strides = [1, 1]} : vector<8x256xf32> to vector<8x64xf32>
    %90 = arith.truncf %89 : vector<8x64xf32> to vector<8x64xbf16>
    %cst_28 = arith.constant dense<0.000000e+00> : vector<8x8xf32>
    %91 = tpu.matmul %86, %88, %cst_28 {dimension_numbers = #tpu.dot_dimension_numbers<[1], [1], [0], [0], [0, 0, 1, 0], [], []>} : vector<8x64xbf16>, vector<8x64xbf16>, vector<8x8xf32> -> vector<8x8xf32>
    %cst_29 = arith.constant dense<0xFF800000> : vector<8xf32>
    %92 = vector.multi_reduction <maximumf>, %91, %cst_29 [1] : vector<8x8xf32> to vector<8xf32>
    %93 = vector.shape_cast %92 : vector<8xf32> to vector<8x1xf32>
    %94 = vector.broadcast %93 : vector<8x1xf32> to vector<8x8xf32>
    %95 = arith.subf %91, %94 : vector<8x8xf32>
    %96 = math.exp %95 : vector<8x8xf32>
    %cst_30 = arith.constant dense<0.000000e+00> : vector<8xf32>
    %97 = vector.multi_reduction <add>, %96, %cst_30 [1] : vector<8x8xf32> to vector<8xf32>
    %98 = vector.shape_cast %97 : vector<8xf32> to vector<8x1xf32>
    %99 = tpu.reciprocal %98 {approx = true} : vector<8x1xf32> -> vector<8x1xf32>
    %100 = vector.broadcast %99 : vector<8x1xf32> to vector<8x8xf32>
    %101 = arith.mulf %96, %100 : vector<8x8xf32>
    %102 = arith.truncf %101 : vector<8x8xf32> to vector<8x8xbf16>
    %cst_31 = arith.constant dense<0.000000e+00> : vector<8x64xf32>
    %103 = tpu.matmul %102, %90, %cst_31 {dimension_numbers = #tpu.dot_dimension_numbers<[1], [0], [0], [1], [0, 0, 1, 1], [], []>} : vector<8x8xbf16>, vector<8x64xbf16>, vector<8x64xf32> -> vector<8x64xf32>
    %104 = arith.truncf %103 : vector<8x64xf32> to vector<8x64xbf16>
    %c192 = arith.constant 192 : index
    %c0_32 = arith.constant 0 : index
    %105 = vector.load %arg4[%c192, %c0_32] : memref<256x256xbf16, #tpu.memory_space<vmem>>, vector<64x256xbf16>
    %cst_33 = arith.constant dense<0.000000e+00> : vector<8x256xf32>
    %106 = tpu.matmul %104, %105, %cst_33 {dimension_numbers = #tpu.dot_dimension_numbers<[1], [0], [0], [1], [0, 0, 1, 1], [], []>} : vector<8x64xbf16>, vector<64x256xbf16>, vector<8x256xf32> -> vector<8x256xf32>
    %107 = arith.addf %84, %106 : vector<8x256xf32>
    %c0_34 = arith.constant 0 : index
    %c0_35 = arith.constant 0 : index
    %108 = vector.load %arg5[%c0_34, %c0_35] : memref<1x256xf32, #tpu.memory_space<vmem>>, vector<1x256xf32>
    %109 = vector.broadcast %108 : vector<1x256xf32> to vector<8x256xf32>
    %110 = arith.addf %107, %109 : vector<8x256xf32>
    %111 = arith.addf %1, %110 : vector<8x256xf32>
    %c0_36 = arith.constant 0 : index
    %c0_37 = arith.constant 0 : index
    %112 = vector.load %arg6[%c0_36, %c0_37] : memref<1x256xf32, #tpu.memory_space<vmem>>, vector<1x256xf32>
    %c0_38 = arith.constant 0 : index
    %c0_39 = arith.constant 0 : index
    %113 = vector.load %arg7[%c0_38, %c0_39] : memref<1x256xf32, #tpu.memory_space<vmem>>, vector<1x256xf32>
    %cst_40 = arith.constant dense<0.000000e+00> : vector<8xf32>
    %114 = vector.multi_reduction <add>, %111, %cst_40 [1] : vector<8x256xf32> to vector<8xf32>
    %115 = vector.shape_cast %114 : vector<8xf32> to vector<8x1xf32>
    %cst_41 = arith.constant 2.560000e+02 : f32
    %116 = vector.broadcast %cst_41 : f32 to vector<8x1xf32>
    %117 = arith.divf %115, %116 : vector<8x1xf32>
    %118 = vector.broadcast %117 : vector<8x1xf32> to vector<8x256xf32>
    %119 = arith.subf %111, %118 : vector<8x256xf32>
    %120 = arith.mulf %119, %119 : vector<8x256xf32>
    %cst_42 = arith.constant dense<0.000000e+00> : vector<8xf32>
    %121 = vector.multi_reduction <add>, %120, %cst_42 [1] : vector<8x256xf32> to vector<8xf32>
    %122 = vector.shape_cast %121 : vector<8xf32> to vector<8x1xf32>
    %cst_43 = arith.constant 2.560000e+02 : f32
    %123 = vector.broadcast %cst_43 : f32 to vector<8x1xf32>
    %124 = arith.divf %122, %123 : vector<8x1xf32>
    %125 = vector.broadcast %117 : vector<8x1xf32> to vector<8x256xf32>
    %126 = arith.subf %111, %125 : vector<8x256xf32>
    %cst_44 = arith.constant 9.99999974E-6 : f32
    %127 = vector.broadcast %cst_44 : f32 to vector<8x1xf32>
    %128 = arith.addf %124, %127 : vector<8x1xf32>
    %129 = math.rsqrt %128 : vector<8x1xf32>
    %130 = vector.broadcast %129 : vector<8x1xf32> to vector<8x256xf32>
    %131 = arith.mulf %126, %130 : vector<8x256xf32>
    %132 = vector.broadcast %112 : vector<1x256xf32> to vector<8x256xf32>
    %133 = arith.mulf %131, %132 : vector<8x256xf32>
    %134 = vector.broadcast %113 : vector<1x256xf32> to vector<8x256xf32>
    %135 = arith.addf %133, %134 : vector<8x256xf32>
    %136 = arith.truncf %135 : vector<8x256xf32> to vector<8x256xbf16>
    %c0_45 = arith.constant 0 : index
    %c0_46 = arith.constant 0 : index
    %137 = vector.load %arg8[%c0_45, %c0_46] : memref<256x1024xbf16, #tpu.memory_space<vmem>>, vector<256x1024xbf16>
    %cst_47 = arith.constant dense<0.000000e+00> : vector<8x1024xf32>
    %138 = tpu.matmul %136, %137, %cst_47 {dimension_numbers = #tpu.dot_dimension_numbers<[1], [0], [0], [1], [0, 0, 1, 1], [], []>} : vector<8x256xbf16>, vector<256x1024xbf16>, vector<8x1024xf32> -> vector<8x1024xf32>
    %c0_48 = arith.constant 0 : index
    %c0_49 = arith.constant 0 : index
    %139 = vector.load %arg9[%c0_48, %c0_49] : memref<1x1024xf32, #tpu.memory_space<vmem>>, vector<1x1024xf32>
    %140 = vector.broadcast %139 : vector<1x1024xf32> to vector<8x1024xf32>
    %141 = arith.addf %138, %140 : vector<8x1024xf32>
    %cst_50 = arith.constant 0.000000e+00 : f32
    %142 = vector.broadcast %cst_50 : f32 to vector<8x1024xf32>
    %143 = arith.maximumf %141, %142 : vector<8x1024xf32>
    %144 = arith.truncf %143 : vector<8x1024xf32> to vector<8x1024xbf16>
    %c0_51 = arith.constant 0 : index
    %c0_52 = arith.constant 0 : index
    %145 = vector.load %arg10[%c0_51, %c0_52] : memref<1024x256xbf16, #tpu.memory_space<vmem>>, vector<1024x256xbf16>
    %cst_53 = arith.constant dense<0.000000e+00> : vector<8x256xf32>
    %146 = tpu.matmul %144, %145, %cst_53 {dimension_numbers = #tpu.dot_dimension_numbers<[1], [0], [0], [1], [0, 0, 1, 1], [], []>} : vector<8x1024xbf16>, vector<1024x256xbf16>, vector<8x256xf32> -> vector<8x256xf32>
    %c0_54 = arith.constant 0 : index
    %c0_55 = arith.constant 0 : index
    %147 = vector.load %arg11[%c0_54, %c0_55] : memref<1x256xf32, #tpu.memory_space<vmem>>, vector<1x256xf32>
    %148 = vector.broadcast %147 : vector<1x256xf32> to vector<8x256xf32>
    %149 = arith.addf %146, %148 : vector<8x256xf32>
    %150 = arith.addf %135, %149 : vector<8x256xf32>
    %c0_56 = arith.constant 0 : index
    %c0_57 = arith.constant 0 : index
    %151 = vector.load %arg12[%c0_56, %c0_57] : memref<1x256xf32, #tpu.memory_space<vmem>>, vector<1x256xf32>
    %c0_58 = arith.constant 0 : index
    %c0_59 = arith.constant 0 : index
    %152 = vector.load %arg13[%c0_58, %c0_59] : memref<1x256xf32, #tpu.memory_space<vmem>>, vector<1x256xf32>
    %cst_60 = arith.constant dense<0.000000e+00> : vector<8xf32>
    %153 = vector.multi_reduction <add>, %150, %cst_60 [1] : vector<8x256xf32> to vector<8xf32>
    %154 = vector.shape_cast %153 : vector<8xf32> to vector<8x1xf32>
    %cst_61 = arith.constant 2.560000e+02 : f32
    %155 = vector.broadcast %cst_61 : f32 to vector<8x1xf32>
    %156 = arith.divf %154, %155 : vector<8x1xf32>
    %157 = vector.broadcast %156 : vector<8x1xf32> to vector<8x256xf32>
    %158 = arith.subf %150, %157 : vector<8x256xf32>
    %159 = arith.mulf %158, %158 : vector<8x256xf32>
    %cst_62 = arith.constant dense<0.000000e+00> : vector<8xf32>
    %160 = vector.multi_reduction <add>, %159, %cst_62 [1] : vector<8x256xf32> to vector<8xf32>
    %161 = vector.shape_cast %160 : vector<8xf32> to vector<8x1xf32>
    %cst_63 = arith.constant 2.560000e+02 : f32
    %162 = vector.broadcast %cst_63 : f32 to vector<8x1xf32>
    %163 = arith.divf %161, %162 : vector<8x1xf32>
    %164 = vector.broadcast %156 : vector<8x1xf32> to vector<8x256xf32>
    %165 = arith.subf %150, %164 : vector<8x256xf32>
    %cst_64 = arith.constant 9.99999974E-6 : f32
    %166 = vector.broadcast %cst_64 : f32 to vector<8x1xf32>
    %167 = arith.addf %163, %166 : vector<8x1xf32>
    %168 = math.rsqrt %167 : vector<8x1xf32>
    %169 = vector.broadcast %168 : vector<8x1xf32> to vector<8x256xf32>
    %170 = arith.mulf %165, %169 : vector<8x256xf32>
    %171 = vector.broadcast %151 : vector<1x256xf32> to vector<8x256xf32>
    %172 = arith.mulf %170, %171 : vector<8x256xf32>
    %173 = vector.broadcast %152 : vector<1x256xf32> to vector<8x256xf32>
    %174 = arith.addf %172, %173 : vector<8x256xf32>
    %175 = vector.extract_strided_slice %174 {offsets = [7, 0], sizes = [1, 256], strides = [1, 1]} : vector<8x256xf32> to vector<1x256xf32>
    %176 = arith.truncf %175 : vector<1x256xf32> to vector<1x256xbf16>
    %c0_65 = arith.constant 0 : index
    %c0_66 = arith.constant 0 : index
    %177 = vector.load %arg14[%c0_65, %c0_66] : memref<256x2xbf16, #tpu.memory_space<vmem>>, vector<256x2xbf16>
    %cst_67 = arith.constant dense<0.000000e+00> : vector<1x2xf32>
    %178 = tpu.matmul %176, %177, %cst_67 {dimension_numbers = #tpu.dot_dimension_numbers<[1], [0], [0], [1], [0, 0, 1, 1], [], []>} : vector<1x256xbf16>, vector<256x2xbf16>, vector<1x2xf32> -> vector<1x2xf32>
    %c0_68 = arith.constant 0 : index
    %c0_69 = arith.constant 0 : index
    %179 = vector.load %arg15[%c0_68, %c0_69] : memref<1x2xf32, #tpu.memory_space<vmem>>, vector<1x2xf32>
    %180 = arith.addf %178, %179 : vector<1x2xf32>
    %181 = vector.shape_cast %180 : vector<1x2xf32> to vector<1x1x2xf32>
    %c0_70 = arith.constant 0 : index
    %c0_71 = arith.constant 0 : index
    %c0_72 = arith.constant 0 : index
    %182 = vector.load %arg16[%c0_70, %c0_71, %c0_72] : memref<1x1x2xf32, #tpu.memory_space<vmem>>, vector<1x1x2xf32>
    tpu.vector_store %arg16[%c0_70, %c0_71, %c0_72], %181 {strides = array<i32>} : memref<1x1x2xf32, #tpu.memory_space<vmem>>, vector<1x1x2xf32>,
    return
  }
  func.func @transform_0(%arg0: i32) -> (i32, i32, i32) {
    %c0_i32 = arith.constant 0 : i32
    %c0_i32_0 = arith.constant 0 : i32
    %c0_i32_1 = arith.constant 0 : i32
    return %arg0, %c0_i32, %c0_i32_0 : i32, i32, i32
  }
  func.func @transform_1(%arg0: i32) -> (i32, i32) {
    %c0_i32 = arith.constant 0 : i32
    %c0_i32_0 = arith.constant 0 : i32
    %c0_i32_1 = arith.constant 0 : i32
    return %c0_i32, %c0_i32_0 : i32, i32
  }
  func.func @transform_2(%arg0: i32) -> (i32, i32) {
    %c0_i32 = arith.constant 0 : i32
    %c0_i32_0 = arith.constant 0 : i32
    %c0_i32_1 = arith.constant 0 : i32
    return %c0_i32, %c0_i32_0 : i32, i32
  }
  func.func @transform_3(%arg0: i32) -> (i32, i32) {
    %c0_i32 = arith.constant 0 : i32
    %c0_i32_0 = arith.constant 0 : i32
    %c0_i32_1 = arith.constant 0 : i32
    return %c0_i32, %c0_i32_0 : i32, i32
  }
  func.func @transform_4(%arg0: i32) -> (i32, i32) {
    %c0_i32 = arith.constant 0 : i32
    %c0_i32_0 = arith.constant 0 : i32
    %c0_i32_1 = arith.constant 0 : i32
    return %c0_i32, %c0_i32_0 : i32, i32
  }
  func.func @transform_5(%arg0: i32) -> (i32, i32) {
    %c0_i32 = arith.constant 0 : i32
    %c0_i32_0 = arith.constant 0 : i32
    %c0_i32_1 = arith.constant 0 : i32
    return %c0_i32, %c0_i32_0 : i32, i32
  }
  func.func @transform_6(%arg0: i32) -> (i32, i32) {
    %c0_i32 = arith.constant 0 : i32
    %c0_i32_0 = arith.constant 0 : i32
    %c0_i32_1 = arith.constant 0 : i32
    return %c0_i32, %c0_i32_0 : i32, i32
  }
  func.func @transform_7(%arg0: i32) -> (i32, i32) {
    %c0_i32 = arith.constant 0 : i32
    %c0_i32_0 = arith.constant 0 : i32
    %c0_i32_1 = arith.constant 0 : i32
    return %c0_i32, %c0_i32_0 : i32, i32
  }
  func.func @transform_8(%arg0: i32) -> (i32, i32) {
    %c0_i32 = arith.constant 0 : i32
    %c0_i32_0 = arith.constant 0 : i32
    %c0_i32_1 = arith.constant 0 : i32
    return %c0_i32, %c0_i32_0 : i32, i32
  }
  func.func @transform_9(%arg0: i32) -> (i32, i32) {
    %c0_i32 = arith.constant 0 : i32
    %c0_i32_0 = arith.constant 0 : i32
    %c0_i32_1 = arith.constant 0 : i32
    return %c0_i32, %c0_i32_0 : i32, i32
  }
  func.func @transform_10(%arg0: i32) -> (i32, i32) {
    %c0_i32 = arith.constant 0 : i32
    %c0_i32_0 = arith.constant 0 : i32
    %c0_i32_1 = arith.constant 0 : i32
    return %c0_i32, %c0_i32_0 : i32, i32
  }
  func.func @transform_11(%arg0: i32) -> (i32, i32) {
    %c0_i32 = arith.constant 0 : i32
    %c0_i32_0 = arith.constant 0 : i32
    %c0_i32_1 = arith.constant 0 : i32
    return %c0_i32, %c0_i32_0 : i32, i32
  }
  func.func @transform_12(%arg0: i32) -> (i32, i32) {
    %c0_i32 = arith.constant 0 : i32
    %c0_i32_0 = arith.constant 0 : i32
    %c0_i32_1 = arith.constant 0 : i32
    return %c0_i32, %c0_i32_0 : i32, i32
  }
  func.func @transform_13(%arg0: i32) -> (i32, i32) {
    %c0_i32 = arith.constant 0 : i32
    %c0_i32_0 = arith.constant 0 : i32
    %c0_i32_1 = arith.constant 0 : i32
    return %c0_i32, %c0_i32_0 : i32, i32
  }
  func.func @transform_14(%arg0: i32) -> (i32, i32) {
    %c0_i32 = arith.constant 0 : i32
    %c0_i32_0 = arith.constant 0 : i32
    %c0_i32_1 = arith.constant 0 : i32
    return %c0_i32, %c0_i32_0 : i32, i32
  }
  func.func @transform_15(%arg0: i32) -> (i32, i32, i32) {
    %c0_i32 = arith.constant 0 : i32
    %c0_i32_0 = arith.constant 0 : i32
    %c0_i32_1 = arith.constant 0 : i32
    return %arg0, %c0_i32, %c0_i32_0 : i32, i32, i32
  }
}

</mosaic_0001>

<llo_original>
// kernel: forward.7
$region0: #{forward.7}
  #allocation0 [shape = 'u32[]', space=smem, size = 0x4, offset = 0x4, fixed_abs, tag = 'smem constant byte address 0x4 - core index']
  #allocation1 [shape = 'u32[144,128]{1,0:T(1,128)}', space=vmem, size = 0x12000, scoped, tag = 'internal scratch']
  %s0 = inlined_call_operand.vmem [shape: f32[1024,27], index: 0, kind: input, shape index: {}]
  %s1 = inlined_call_operand.vmem [shape: bf16[27,128], index: 1, kind: input, shape index: {}]
  %s2 = inlined_call_operand.vmem [shape: f32[1,128], index: 2, kind: input, shape index: {}]
  %s3 = inlined_call_operand.vmem [shape: f32[1024,128], index: 3, kind: output, shape index: {}]
  %s4 = sld [smem:[#allocation0]]
  $region22: #{forward.7} parent=0
    _
  %s6 = ssub.s32 1, %s4
  %s7 = scalar_select 0, %s6, %s4
  // Predicated region
  $region2: #{forward.7} parent=0 // pred_check
    _
  $region3: #{forward.7} parent=0 // pred_check_branch
    %9 = sbr.rel (0) target = $region5
  $region4: #{forward.7} parent=0 // pred_region
    _
  $region5: #{forward.7} parent=0 // pred_fallthru
    _
  // Predicated region
  $region6: #{forward.7} parent=0 // pred_check
    _
  $region7: #{forward.7} parent=0 // pred_check_branch
    %11 = sbr.rel (0) target = $region9
  $region8: #{forward.7} parent=0 // pred_region
    _
  $region9: #{forward.7} parent=0 // pred_fallthru
    _
  // Predicated region
  $region10: #{forward.7} parent=0 // pred_check
    _
  $region11: #{forward.7} parent=0 // pred_check_branch
    %13 = sbr.rel (0) target = $region13
  $region12: #{forward.7} parent=0 // pred_region
    _
  $region13: #{forward.7} parent=0 // pred_fallthru
    _
  %v15 = vld [vmem:[%s0] sm:$0xff]
  %v16 = vld [vmem:[%s0 + $0x8] sm:$0xff]
  %v17 = vld [vmem:[%s0 + $0x10] sm:$0xff]
  %v18 = vld [vmem:[%s0 + $0x18] sm:$0xff]
  %v19 = vld [vmem:[%s0 + $0x20] sm:$0xff]
  %v20 = vld [vmem:[%s0 + $0x28] sm:$0xff]
  %v21 = vld [vmem:[%s0 + $0x30] sm:$0xff]
  %v22 = vld [vmem:[%s0 + $0x38] sm:$0xff]
  %v23 = vld [vmem:[%s0 + $0x40] sm:$0xff]
  %v24 = vld [vmem:[%s0 + $0x48] sm:$0xff]
  %v25 = vld [vmem:[%s0 + $0x50] sm:$0xff]
  %v26 = vld [vmem:[%s0 + $0x58] sm:$0xff]
  %v27 = vld [vmem:[%s0 + $0x60] sm:$0xff]
  %v28 = vld [vmem:[%s0 + $0x68] sm:$0xff]
  %v29 = vld [vmem:[%s0 + $0x70] sm:$0xff]
  %v30 = vld [vmem:[%s0 + $0x78] sm:$0xff]
  %v31 = vld [vmem:[%s0 + $0x80] sm:$0xff]
  %v32 = vld [vmem:[%s0 + $0x88] sm:$0xff]
  %v33 = vld [vmem:[%s0 + $0x90] sm:$0xff]
  %v34 = vld [vmem:[%s0 + $0x98] sm:$0xff]
  %v35 = vld [vmem:[%s0 + $0xa0] sm:$0xff]
  %v36 = vld [vmem:[%s0 + $0xa8] sm:$0xff]
  %v37 = vld [vmem:[%s0 + $0xb0] sm:$0xff]
  %v38 = vld [vmem:[%s0 + $0xb8] sm:$0xff]
  %v39 = vld [vmem:[%s0 + $0xc0] sm:$0xff]
  %v40 = vld [vmem:[%s0 + $0xc8] sm:$0xff]
  %v41 = vld [vmem:[%s0 + $0xd0] sm:$0xff]
  %v42 = vld [vmem:[%s0 + $0xd8] sm:$0xff]
  %v43 = vld [vmem:[%s0 + $0xe0] sm:$0xff]
  %v44 = vld [vmem:[%s0 + $0xe8] sm:$0xff]
  %v45 = vld [vmem:[%s0 + $0xf0] sm:$0xff]
  %v46 = vld [vmem:[%s0 + $0xf8] sm:$0xff]
  %v47 = vld [vmem:[%s0 + $0x100] sm:$0xff]
  %v48 = vld [vmem:[%s0 + $0x108] sm:$0xff]
  %v49 = vld [vmem:[%s0 + $0x110] sm:$0xff]
  %v50 = vld [vmem:[%s0 + $0x118] sm:$0xff]
  %v51 = vld [vmem:[%s0 + $0x120] sm:$0xff]
  %v52 = vld [vmem:[%s0 + $0x128] sm:$0xff]
  %v53 = vld [vmem:[%s0 + $0x130] sm:$0xff]
  %v54 = vld [vmem:[%s0 + $0x138] sm:$0xff]
  %v55 = vld [vmem:[%s0 + $0x140] sm:$0xff]
  %v56 = vld [vmem:[%s0 + $0x148] sm:$0xff]
  %v57 = vld [vmem:[%s0 + $0x150] sm:$0xff]
  %v58 = vld [vmem:[%s0 + $0x158] sm:$0xff]
  %v59 = vld [vmem:[%s0 + $0x160] sm:$0xff]
  %v60 = vld [vmem:[%s0 + $0x168] sm:$0xff]
  %v61 = vld [vmem:[%s0 + $0x170] sm:$0xff]
  %v62 = vld [vmem:[%s0 + $0x178] sm:$0xff]
  %v63 = vld [vmem:[%s0 + $0x180] sm:$0xff]
  %v64 = vld [vmem:[%s0 + $0x188] sm:$0xff]
  %v65 = vld [vmem:[%s0 + $0x190] sm:$0xff]
  %v66 = vld [vmem:[%s0 + $0x198] sm:$0xff]
  %v67 = vld [vmem:[%s0 + $0x1a0] sm:$0xff]
  %v68 = vld [vmem:[%s0 + $0x1a8] sm:$0xff]
  %v69 = vld [vmem:[%s0 + $0x1b0] sm:$0xff]
  %v70 = vld [vmem:[%s0 + $0x1b8] sm:$0xff]
  %v71 = vld [vmem:[%s0 + $0x1c0] sm:$0xff]
  %v72 = vld [vmem:[%s0 + $0x1c8] sm:$0xff]
  %v73 = vld [vmem:[%s0 + $0x1d0] sm:$0xff]
  %v74 = vld [vmem:[%s0 + $0x1d8] sm:$0xff]
  %v75 = vld [vmem:[%s0 + $0x1e0] sm:$0xff]
  %v76 = vld [vmem:[%s0 + $0x1e8] sm:$0xff]
  %v77 = vld [vmem:[%s0 + $0x1f0] sm:$0xff]
  %v78 = vld [vmem:[%s0 + $0x1f8] sm:$0xff]
  %v79 = vld [vmem:[%s0 + $0x200] sm:$0xff]
  %v80 = vld [vmem:[%s0 + $0x208] sm:$0xff]
  %v81 = vld [vmem:[%s0 + $0x210] sm:$0xff]
  %v82 = vld [vmem:[%s0 + $0x218] sm:$0xff]
  %v83 = vld [vmem:[%s0 + $0x220] sm:$0xff]
  %v84 = vld [vmem:[%s0 + $0x228] sm:$0xff]
  %v85 = vld [vmem:[%s0 + $0x230] sm:$0xff]
  %v86 = vld [vmem:[%s0 + $0x238] sm:$0xff]
  %v87 = vld [vmem:[%s0 + $0x240] sm:$0xff]
  %v88 = vld [vmem:[%s0 + $0x248] sm:$0xff]
  %v89 = vld [vmem:[%s0 + $0x250] sm:$0xff]
  %v90 = vld [vmem:[%s0 + $0x258] sm:$0xff]
  %v91 = vld [vmem:[%s0 + $0x260] sm:$0xff]
  %v92 = vld [vmem:[%s0 + $0x268] sm:$0xff]
  %v93 = vld [vmem:[%s0 + $0x270] sm:$0xff]
  %v94 = vld [vmem:[%s0 + $0x278] sm:$0xff]
  %v95 = vld [vmem:[%s0 + $0x280] sm:$0xff]
  %v96 = vld [vmem:[%s0 + $0x288] sm:$0xff]
  %v97 = vld [vmem:[%s0 + $0x290] sm:$0xff]
  %v98 = vld [vmem:[%s0 + $0x298] sm:$0xff]
  %v99 = vld [vmem:[%s0 + $0x2a0] sm:$0xff]
  %v100 = vld [vmem:[%s0 + $0x2a8] sm:$0xff]
  %v101 = vld [vmem:[%s0 + $0x2b0] sm:$0xff]
  %v102 = vld [vmem:[%s0 + $0x2b8] sm:$0xff]
  %v103 = vld [vmem:[%s0 + $0x2c0] sm:$0xff]
  %v104 = vld [vmem:[%s0 + $0x2c8] sm:$0xff]
  %v105 = vld [vmem:[%s0 + $0x2d0] sm:$0xff]
  %v106 = vld [vmem:[%s0 + $0x2d8] sm:$0xff]
  %v107 = vld [vmem:[%s0 + $0x2e0] sm:$0xff]
  %v108 = vld [vmem:[%s0 + $0x2e8] sm:$0xff]
  %v109 = vld [vmem:[%s0 + $0x2f0] sm:$0xff]
  %v110 = vld [vmem:[%s0 + $0x2f8] sm:$0xff]
  %v111 = vld [vmem:[%s0 + $0x300] sm:$0xff]
  %v112 = vld [vmem:[%s0 + $0x308] sm:$0xff]
  %v113 = vld [vmem:[%s0 + $0x310] sm:$0xff]
  %v114 = vld [vmem:[%s0 + $0x318] sm:$0xff]
  %v115 = vld [vmem:[%s0 + $0x320] sm:$0xff]
  %v116 = vld [vmem:[%s0 + $0x328] sm:$0xff]
  %v117 = vld [vmem:[%s0 + $0x330] sm:$0xff]
  %v118 = vld [vmem:[%s0 + $0x338] sm:$0xff]
  %v119 = vld [vmem:[%s0 + $0x340] sm:$0xff]
  %v120 = vld [vmem:[%s0 + $0x348] sm:$0xff]
  %v121 = vld [vmem:[%s0 + $0x350] sm:$0xff]
  %v122 = vld [vmem:[%s0 + $0x358] sm:$0xff]
  %v123 = vld [vmem:[%s0 + $0x360] sm:$0xff]
  %v124 = vld [vmem:[%s0 + $0x368] sm:$0xff]
  %v125 = vld [vmem:[%s0 + $0x370] sm:$0xff]
  %v126 = vld [vmem:[%s0 + $0x378] sm:$0xff]
  %v127 = vld [vmem:[%s0 + $0x380] sm:$0xff]
  %v128 = vld [vmem:[%s0 + $0x388] sm:$0xff]
  %v129 = vld [vmem:[%s0 + $0x390] sm:$0xff]
  %v130 = vld [vmem:[%s0 + $0x398] sm:$0xff]
  %v131 = vld [vmem:[%s0 + $0x3a0] sm:$0xff]
  %v132 = vld [vmem:[%s0 + $0x3a8] sm:$0xff]
  %v133 = vld [vmem:[%s0 + $0x3b0] sm:$0xff]
  %v134 = vld [vmem:[%s0 + $0x3b8] sm:$0xff]
  %v135 = vld [vmem:[%s0 + $0x3c0] sm:$0xff]
  %v136 = vld [vmem:[%s0 + $0x3c8] sm:$0xff]
  %v137 = vld [vmem:[%s0 + $0x3d0] sm:$0xff]
  %v138 = vld [vmem:[%s0 + $0x3d8] sm:$0xff]
  %v139 = vld [vmem:[%s0 + $0x3e0] sm:$0xff]
  %v140 = vld [vmem:[%s0 + $0x3e8] sm:$0xff]
  %v141 = vld [vmem:[%s0 + $0x3f0] sm:$0xff]
  %v142 = vld [vmem:[%s0 + $0x3f8] sm:$0xff]
  %v143 = vpack.c.bf16 %v16, %v15
  %v144 = vpack.c.bf16 %v18, %v17
  %v145 = vpack.c.bf16 %v20, %v19
  %v146 = vpack.c.bf16 %v22, %v21
  %v147 = vpack.c.bf16 %v24, %v23
  %v148 = vpack.c.bf16 %v26, %v25
  %v149 = vpack.c.bf16 %v28, %v27
  %v150 = vpack.c.bf16 %v30, %v29
  %v151 = vpack.c.bf16 %v32, %v31
  %v152 = vpack.c.bf16 %v34, %v33
  %v153 = vpack.c.bf16 %v36, %v35
  %v154 = vpack.c.bf16 %v38, %v37
  %v155 = vpack.c.bf16 %v40, %v39
  %v156 = vpack.c.bf16 %v42, %v41
  %v157 = vpack.c.bf16 %v44, %v43
  %v158 = vpack.c.bf16 %v46, %v45
  %v159 = vpack.c.bf16 %v48, %v47
  %v160 = vpack.c.bf16 %v50, %v49
  %v161 = vpack.c.bf16 %v52, %v51
  %v162 = vpack.c.bf16 %v54, %v53
  %v163 = vpack.c.bf16 %v56, %v55
  %v164 = vpack.c.bf16 %v58, %v57
  %v165 = vpack.c.bf16 %v60, %v59
  %v166 = vpack.c.bf16 %v62, %v61
  %v167 = vpack.c.bf16 %v64, %v63
  %v168 = vpack.c.bf16 %v66, %v65
  %v169 = vpack.c.bf16 %v68, %v67
  %v170 = vpack.c.bf16 %v70, %v69
  %v171 = vpack.c.bf16 %v72, %v71
  %v172 = vpack.c.bf16 %v74, %v73
  %v173 = vpack.c.bf16 %v76, %v75
  %v174 = vpack.c.bf16 %v78, %v77
  %v175 = vpack.c.bf16 %v80, %v79
  %v176 = vpack.c.bf16 %v82, %v81
  %v177 = vpack.c.bf16 %v84, %v83
  %v178 = vpack.c.bf16 %v86, %v85
  %v179 = vpack.c.bf16 %v88, %v87
  %v180 = vpack.c.bf16 %v90, %v89
  %v181 = vpack.c.bf16 %v92, %v91
  %v182 = vpack.c.bf16 %v94, %v93
  %v183 = vpack.c.bf16 %v96, %v95
  %v184 = vpack.c.bf16 %v98, %v97
  %v185 = vpack.c.bf16 %v100, %v99
  %v186 = vpack.c.bf16 %v102, %v101
  %v187 = vpack.c.bf16 %v104, %v103
  %v188 = vpack.c.bf16 %v106, %v105
  %v189 = vpack.c.bf16 %v108, %v107
  %v190 = vpack.c.bf16 %v110, %v109
  %v191 = vpack.c.bf16 %v112, %v111
  %v192 = vpack.c.bf16 %v114, %v113
  %v193 = vpack.c.bf16 %v116, %v115
  %v194 = vpack.c.bf16 %v118, %v117
  %v195 = vpack.c.bf16 %v120, %v119
  %v196 = vpack.c.bf16 %v122, %v121
  %v197 = vpack.c.bf16 %v124, %v123
  %v198 = vpack.c.bf16 %v126, %v125
  %v199 = vpack.c.bf16 %v128, %v127
  %v200 = vpack.c.bf16 %v130, %v129
  %v201 = vpack.c.bf16 %v132, %v131
  %v202 = vpack.c.bf16 %v134, %v133
  %v203 = vpack.c.bf16 %v136, %v135
  %v204 = vpack.c.bf16 %v138, %v137
  %v205 = vpack.c.bf16 %v140, %v139
  %v206 = vpack.c.bf16 %v142, %v141
  %v207 = vld [vmem:[%s1] sm:$0xf]
  %v208 = vld [vmem:[%s1 + $0x4] sm:$0xf]
  %v209 = vld [vmem:[%s1 + $0x8] sm:$0xf]
  %v210 = vld [vmem:[%s1 + $0xc] sm:$0x3]
  %v211 = vld [vmem:[%s2] sm:$0x1]
  %v213 = vlaneseq
  %v214 = vshrl.u32 %v213, 7
  %v215 = vsub.s32 0, %v214
  %v216 = vrot.slane %v211, %v215
  %v222 = vunpack.c.l.b16 %v207
  %v223 = vunpack.c.l.b16 %v208
  %v224 = vunpack.c.l.b16 %v209
  %v225 = vunpack.c.l.b16 %v210
  %v226 = vpack.c.b16 %v223, %v222
  %v227 = vpack.c.b16 %v225, %v224
  %vm229 = vcmask 220160
  %v231 = vsel %vm229, %v143, 0
  %v234 = vsel %vm229, %v144, 0
  %v237 = vsel %vm229, %v145, 0
  %v240 = vsel %vm229, %v146, 0
  %v243 = vsel %vm229, %v147, 0
  %v246 = vsel %vm229, %v148, 0
  %v249 = vsel %vm229, %v149, 0
  %v252 = vsel %vm229, %v150, 0
  %v255 = vsel %vm229, %v151, 0
  %v258 = vsel %vm229, %v152, 0
  %v261 = vsel %vm229, %v153, 0
  %v264 = vsel %vm229, %v154, 0
  %v267 = vsel %vm229, %v155, 0
  %v270 = vsel %vm229, %v156, 0
  %v273 = vsel %vm229, %v157, 0
  %v276 = vsel %vm229, %v158, 0
  %v279 = vsel %vm229, %v159, 0
  %v282 = vsel %vm229, %v160, 0
  %v285 = vsel %vm229, %v161, 0
  %v288 = vsel %vm229, %v162, 0
  %v291 = vsel %vm229, %v163, 0
  %v294 = vsel %vm229, %v164, 0
  %v297 = vsel %vm229, %v165, 0
  %v300 = vsel %vm229, %v166, 0
  %v303 = vsel %vm229, %v167, 0
  %v306 = vsel %vm229, %v168, 0
  %v309 = vsel %vm229, %v169, 0
  %v312 = vsel %vm229, %v170, 0
  %v315 = vsel %vm229, %v171, 0
  %v318 = vsel %vm229, %v172, 0
  %v321 = vsel %vm229, %v173, 0
  %v324 = vsel %vm229, %v174, 0
  %v327 = vsel %vm229, %v175, 0
  %v330 = vsel %vm229, %v176, 0
  %v333 = vsel %vm229, %v177, 0
  %v336 = vsel %vm229, %v178, 0
  %v339 = vsel %vm229, %v179, 0
  %v342 = vsel %vm229, %v180, 0
  %v345 = vsel %vm229, %v181, 0
  %v348 = vsel %vm229, %v182, 0
  %v351 = vsel %vm229, %v183, 0
  %v354 = vsel %vm229, %v184, 0
  %v357 = vsel %vm229, %v185, 0
  %v360 = vsel %vm229, %v186, 0
  %v363 = vsel %vm229, %v187, 0
  %v366 = vsel %vm229, %v188, 0
  %v369 = vsel %vm229, %v189, 0
  %v372 = vsel %vm229, %v190, 0
  %v375 = vsel %vm229, %v191, 0
  %v378 = vsel %vm229, %v192, 0
  %v381 = vsel %vm229, %v193, 0
  %v384 = vsel %vm229, %v194, 0
  %v387 = vsel %vm229, %v195, 0
  %v390 = vsel %vm229, %v196, 0
  %v393 = vsel %vm229, %v197, 0
  %v396 = vsel %vm229, %v198, 0
  %v399 = vsel %vm229, %v199, 0
  %v402 = vsel %vm229, %v200, 0
  %v405 = vsel %vm229, %v201, 0
  %v408 = vsel %vm229, %v202, 0
  %v411 = vsel %vm229, %v203, 0
  %v414 = vsel %vm229, %v204, 0
  %v417 = vsel %vm229, %v205, 0
  %v420 = vsel %vm229, %v206, 0
  %vm422 = vcmask 1044480
  %vm423 = vcmask 1045504
  %v424 = vsel %vm422, 4294967295, 65535
  %v425 = vsel %vm423, %v424, 0
  %v427 = vand.u32 %v227, %v425
  %429 = vmatprep.subr.bf16.mxu0 0
  %430 = vmatpush1.bf16.msra.mxu0 0
  %431 = vmatprep.subr.bf16.mxu0 0
  %432 = vmatpush1.bf16.msra.mxu0 0
  %433 = vmatprep.subr.bf16.mxu0 0
  %434 = vmatpush1.bf16.msra.mxu0 0
  %435 = vmatprep.subr.bf16.mxu0 0
  %436 = vmatpush1.bf16.msra.mxu0 0
  %437 = vmatprep.subr.bf16.mxu0 0
  %438 = vmatpush1.bf16.msra.mxu0 0
  %439 = vmatprep.subr.bf16.mxu0 0
  %440 = vmatpush1.bf16.msra.mxu0 0
  %441 = vmatprep.subr.bf16.mxu0 0
  %442 = vmatpush1.bf16.msra.mxu0 %v427
  %443 = vmatprep.subr.bf16.mxu0 0
  %444 = vmatpush1.bf16.msra.mxu0 %v226
  %445 = vmatprep.subr.bf16.mxu0 0
  %446 = vmatpush2.bf16.msra.mxu0 0
  %447 = vmatprep.subr.bf16.mxu0 0
  %448 = vmatpush2.bf16.msra.mxu0 0
  %449 = vmatprep.subr.bf16.mxu0 0
  %450 = vmatpush2.bf16.msra.mxu0 0
  %451 = vmatprep.subr.bf16.mxu0 0
  %452 = vmatpush2.bf16.msra.mxu0 0
  %453 = vmatprep.subr.bf16.mxu0 0
  %454 = vmatpush2.bf16.msra.mxu0 0
  %455 = vmatprep.subr.bf16.mxu0 0
  %456 = vmatpush2.bf16.msra.mxu0 0
  %457 = vmatprep.subr.bf16.mxu0 0
  %458 = vmatpush2.bf16.msra.mxu0 0
  %459 = vmatprep.subr.bf16.mxu0 0
  %460 = vmatpush2.bf16.msra.mxu0 0
  %461 = vmatprep.mubr.bf16.mxu0 0
  %462 = vmatmul.mubr.bf16.gmra.mxu0 %v231
  %v463 = vpop.f32.mrf.mxu0
  %v464 = vadd.f32 %v216, %v463
  %v465 = vpop.f32.mrf.mxu0
  %v466 = vpop.f32.mrf.mxu0
  %v467 = vadd.f32 %v216, %v466
  %v468 = vpop.f32.mrf.mxu0
  %469 = vmatprep.mubr.bf16.mxu0 0
  %470 = vmatmul.mubr.bf16.gmra.mxu0 %v234
  %v471 = vpop.f32.mrf.mxu0
  %v472 = vadd.f32 %v216, %v471
  %v473 = vpop.f32.mrf.mxu0
  %v474 = vpop.f32.mrf.mxu0
  %v475 = vadd.f32 %v216, %v474
  %v476 = vpop.f32.mrf.mxu0
  %477 = vmatprep.mubr.bf16.mxu0 0
  %478 = vmatmul.mubr.bf16.gmra.mxu0 %v237
  %v479 = vpop.f32.mrf.mxu0
  %v480 = vadd.f32 %v216, %v479
  %v481 = vpop.f32.mrf.mxu0
  %v482 = vpop.f32.mrf.mxu0
  %v483 = vadd.f32 %v216, %v482
  %v484 = vpop.f32.mrf.mxu0
  %485 = vmatprep.mubr.bf16.mxu0 0
  %486 = vmatmul.mubr.bf16.gmra.mxu0 %v240
  %v487 = vpop.f32.mrf.mxu0
  %v488 = vadd.f32 %v216, %v487
  %v489 = vpop.f32.mrf.mxu0
  %v490 = vpop.f32.mrf.mxu0
  %v491 = vadd.f32 %v216, %v490
  %v492 = vpop.f32.mrf.mxu0
  %493 = vmatprep.mubr.bf16.mxu0 0
  %494 = vmatmul.mubr.bf16.gmra.mxu0 %v243
  %v495 = vpop.f32.mrf.mxu0
  %v496 = vadd.f32 %v216, %v495
  %v497 = vpop.f32.mrf.mxu0
  %v498 = vpop.f32.mrf.mxu0
  %v499 = vadd.f32 %v216, %v498
  %v500 = vpop.f32.mrf.mxu0
  %501 = vmatprep.mubr.bf16.mxu0 0
  %502 = vmatmul.mubr.bf16.gmra.mxu0 %v246
  %v503 = vpop.f32.mrf.mxu0
  %v504 = vadd.f32 %v216, %v503
  %v505 = vpop.f32.mrf.mxu0
  %v506 = vpop.f32.mrf.mxu0
  %v507 = vadd.f32 %v216, %v506
  %v508 = vpop.f32.mrf.mxu0
  %509 = vmatprep.mubr.bf16.mxu0 0
  %510 = vmatmul.mubr.bf16.gmra.mxu0 %v249
  %v511 = vpop.f32.mrf.mxu0
  %v512 = vadd.f32 %v216, %v511
  %v513 = vpop.f32.mrf.mxu0
  %v514 = vpop.f32.mrf.mxu0
  %v515 = vadd.f32 %v216, %v514
  %v516 = vpop.f32.mrf.mxu0
  %517 = vmatprep.mubr.bf16.mxu0 0
  %518 = vmatmul.mubr.bf16.gmra.mxu0 %v252
  %v519 = vpop.f32.mrf.mxu0
  %v520 = vadd.f32 %v216, %v519
  %v521 = vpop.f32.mrf.mxu0
  %v522 = vpop.f32.mrf.mxu0
  %v523 = vadd.f32 %v216, %v522
  %v524 = vpop.f32.mrf.mxu0
  %525 = vmatprep.mubr.bf16.mxu0 0
  %526 = vmatmul.mubr.bf16.gmra.mxu0 %v255
  %v527 = vpop.f32.mrf.mxu0
  %v528 = vadd.f32 %v216, %v527
  %v529 = vpop.f32.mrf.mxu0
  %v530 = vpop.f32.mrf.mxu0
  %v531 = vadd.f32 %v216, %v530
  %v532 = vpop.f32.mrf.mxu0
  %533 = vmatprep.mubr.bf16.mxu0 0
  %534 = vmatmul.mubr.bf16.gmra.mxu0 %v258
  %v535 = vpop.f32.mrf.mxu0
  %v536 = vadd.f32 %v216, %v535
  %v537 = vpop.f32.mrf.mxu0
  %v538 = vpop.f32.mrf.mxu0
  %v539 = vadd.f32 %v216, %v538
  %v540 = vpop.f32.mrf.mxu0
  %541 = vmatprep.mubr.bf16.mxu0 0
  %542 = vmatmul.mubr.bf16.gmra.mxu0 %v261
  %v543 = vpop.f32.mrf.mxu0
  %v544 = vadd.f32 %v216, %v543
  %v545 = vpop.f32.mrf.mxu0
  %v546 = vpop.f32.mrf.mxu0
  %v547 = vadd.f32 %v216, %v546
  %v548 = vpop.f32.mrf.mxu0
  %549 = vmatprep.mubr.bf16.mxu0 0
  %550 = vmatmul.mubr.bf16.gmra.mxu0 %v264
  %v551 = vpop.f32.mrf.mxu0
  %v552 = vadd.f32 %v216, %v551
  %v553 = vpop.f32.mrf.mxu0
  %v554 = vpop.f32.mrf.mxu0
  %v555 = vadd.f32 %v216, %v554
  %v556 = vpop.f32.mrf.mxu0
  %557 = vmatprep.mubr.bf16.mxu0 0
  %558 = vmatmul.mubr.bf16.gmra.mxu0 %v267
  %v559 = vpop.f32.mrf.mxu0
  %v560 = vadd.f32 %v216, %v559
  %v561 = vpop.f32.mrf.mxu0
  %v562 = vpop.f32.mrf.mxu0
  %v563 = vadd.f32 %v216, %v562
  %v564 = vpop.f32.mrf.mxu0
  %565 = vmatprep.mubr.bf16.mxu0 0
  %566 = vmatmul.mubr.bf16.gmra.mxu0 %v270
  %v567 = vpop.f32.mrf.mxu0
  %v568 = vadd.f32 %v216, %v567
  %v569 = vpop.f32.mrf.mxu0
  %v570 = vpop.f32.mrf.mxu0
  %v571 = vadd.f32 %v216, %v570
  %v572 = vpop.f32.mrf.mxu0
  %573 = vmatprep.mubr.bf16.mxu0 0
  %574 = vmatmul.mubr.bf16.gmra.mxu0 %v273
  %v575 = vpop.f32.mrf.mxu0
  %v576 = vadd.f32 %v216, %v575
  %v577 = vpop.f32.mrf.mxu0
  %v578 = vpop.f32.mrf.mxu0
  %v579 = vadd.f32 %v216, %v578
  %v580 = vpop.f32.mrf.mxu0
  %581 = vmatprep.mubr.bf16.mxu0 0
  %582 = vmatmul.mubr.bf16.gmra.mxu0 %v276
  %v583 = vpop.f32.mrf.mxu0
  %v584 = vadd.f32 %v216, %v583
  %v585 = vpop.f32.mrf.mxu0
  %v586 = vpop.f32.mrf.mxu0
  %v587 = vadd.f32 %v216, %v586
  %v588 = vpop.f32.mrf.mxu0
  %589 = vmatprep.mubr.bf16.mxu0 0
  %590 = vmatmul.mubr.bf16.gmra.mxu0 %v279
  %v591 = vpop.f32.mrf.mxu0
  %v592 = vadd.f32 %v216, %v591
  %v593 = vpop.f32.mrf.mxu0
  %v594 = vpop.f32.mrf.mxu0
  %v595 = vadd.f32 %v216, %v594
  %v596 = vpop.f32.mrf.mxu0
  %597 = vmatprep.mubr.bf16.mxu0 0
  %598 = vmatmul.mubr.bf16.gmra.mxu0 %v282
  %v599 = vpop.f32.mrf.mxu0
  %v600 = vadd.f32 %v216, %v599
  %v601 = vpop.f32.mrf.mxu0
  %v602 = vpop.f32.mrf.mxu0
  %v603 = vadd.f32 %v216, %v602
  %v604 = vpop.f32.mrf.mxu0
  %605 = vmatprep.mubr.bf16.mxu0 0
  %606 = vmatmul.mubr.bf16.gmra.mxu0 %v285
  %v607 = vpop.f32.mrf.mxu0
  %v608 = vadd.f32 %v216, %v607
  %v609 = vpop.f32.mrf.mxu0
  %v610 = vpop.f32.mrf.mxu0
  %v611 = vadd.f32 %v216, %v610
  %v612 = vpop.f32.mrf.mxu0
  %613 = vmatprep.mubr.bf16.mxu0 0
  %614 = vmatmul.mubr.bf16.gmra.mxu0 %v288
  %v615 = vpop.f32.mrf.mxu0
  %v616 = vadd.f32 %v216, %v615
  %v617 = vpop.f32.mrf.mxu0
  %v618 = vpop.f32.mrf.mxu0
  %v619 = vadd.f32 %v216, %v618
  %v620 = vpop.f32.mrf.mxu0
  %621 = vmatprep.mubr.bf16.mxu0 0
  %622 = vmatmul.mubr.bf16.gmra.mxu0 %v291
  %v623 = vpop.f32.mrf.mxu0
  %v624 = vadd.f32 %v216, %v623
  %v625 = vpop.f32.mrf.mxu0
  %v626 = vpop.f32.mrf.mxu0
  %v627 = vadd.f32 %v216, %v626
  %v628 = vpop.f32.mrf.mxu0
  %629 = vmatprep.mubr.bf16.mxu0 0
  %630 = vmatmul.mubr.bf16.gmra.mxu0 %v294
  %v631 = vpop.f32.mrf.mxu0
  %v632 = vadd.f32 %v216, %v631
  %v633 = vpop.f32.mrf.mxu0
  %v634 = vpop.f32.mrf.mxu0
  %v635 = vadd.f32 %v216, %v634
  %v636 = vpop.f32.mrf.mxu0
  %637 = vmatprep.mubr.bf16.mxu0 0
  %638 = vmatmul.mubr.bf16.gmra.mxu0 %v297
  %v639 = vpop.f32.mrf.mxu0
  %v640 = vadd.f32 %v216, %v639
  %v641 = vpop.f32.mrf.mxu0
  %v642 = vpop.f32.mrf.mxu0
  %v643 = vadd.f32 %v216, %v642
  %v644 = vpop.f32.mrf.mxu0
  %645 = vmatprep.mubr.bf16.mxu0 0
  %646 = vmatmul.mubr.bf16.gmra.mxu0 %v300
  %v647 = vpop.f32.mrf.mxu0
  %v648 = vadd.f32 %v216, %v647
  %v649 = vpop.f32.mrf.mxu0
  %v650 = vpop.f32.mrf.mxu0
  %v651 = vadd.f32 %v216, %v650
  %v652 = vpop.f32.mrf.mxu0
  %653 = vmatprep.mubr.bf16.mxu0 0
  %654 = vmatmul.mubr.bf16.gmra.mxu0 %v303
  %v655 = vpop.f32.mrf.mxu0
  %v656 = vadd.f32 %v216, %v655
  %v657 = vpop.f32.mrf.mxu0
  %v658 = vpop.f32.mrf.mxu0
  %v659 = vadd.f32 %v216, %v658
  %v660 = vpop.f32.mrf.mxu0
  %661 = vmatprep.mubr.bf16.mxu0 0
  %662 = vmatmul.mubr.bf16.gmra.mxu0 %v306
  %v663 = vpop.f32.mrf.mxu0
  %v664 = vadd.f32 %v216, %v663
  %v665 = vpop.f32.mrf.mxu0
  %v666 = vpop.f32.mrf.mxu0
  %v667 = vadd.f32 %v216, %v666
  %v668 = vpop.f32.mrf.mxu0
  %669 = vmatprep.mubr.bf16.mxu0 0
  %670 = vmatmul.mubr.bf16.gmra.mxu0 %v309
  %v671 = vpop.f32.mrf.mxu0
  %v672 = vadd.f32 %v216, %v671
  %v673 = vpop.f32.mrf.mxu0
  %v674 = vpop.f32.mrf.mxu0
  %v675 = vadd.f32 %v216, %v674
  %v676 = vpop.f32.mrf.mxu0
  %677 = vmatprep.mubr.bf16.mxu0 0
  %678 = vmatmul.mubr.bf16.gmra.mxu0 %v312
  %v679 = vpop.f32.mrf.mxu0
  %v680 = vadd.f32 %v216, %v679
  %v681 = vpop.f32.mrf.mxu0
  %v682 = vpop.f32.mrf.mxu0
  %v683 = vadd.f32 %v216, %v682
  %v684 = vpop.f32.mrf.mxu0
  %685 = vmatprep.mubr.bf16.mxu0 0
  %686 = vmatmul.mubr.bf16.gmra.mxu0 %v315
  %v687 = vpop.f32.mrf.mxu0
  %v688 = vadd.f32 %v216, %v687
  %v689 = vpop.f32.mrf.mxu0
  %v690 = vpop.f32.mrf.mxu0
  %v691 = vadd.f32 %v216, %v690
  %v692 = vpop.f32.mrf.mxu0
  %693 = vmatprep.mubr.bf16.mxu0 0
  %694 = vmatmul.mubr.bf16.gmra.mxu0 %v318
  %v695 = vpop.f32.mrf.mxu0
  %v696 = vadd.f32 %v216, %v695
  %v697 = vpop.f32.mrf.mxu0
  %v698 = vpop.f32.mrf.mxu0
  %v699 = vadd.f32 %v216, %v698
  %v700 = vpop.f32.mrf.mxu0
  %701 = vmatprep.mubr.bf16.mxu0 0
  %702 = vmatmul.mubr.bf16.gmra.mxu0 %v321
  %v703 = vpop.f32.mrf.mxu0
  %v704 = vadd.f32 %v216, %v703
  %v705 = vpop.f32.mrf.mxu0
  %v706 = vpop.f32.mrf.mxu0
  %v707 = vadd.f32 %v216, %v706
  %v708 = vpop.f32.mrf.mxu0
  %709 = vmatprep.mubr.bf16.mxu0 0
  %710 = vmatmul.mubr.bf16.gmra.mxu0 %v324
  %v711 = vpop.f32.mrf.mxu0
  %v712 = vadd.f32 %v216, %v711
  %v713 = vpop.f32.mrf.mxu0
  %v714 = vpop.f32.mrf.mxu0
  %v715 = vadd.f32 %v216, %v714
  %v716 = vpop.f32.mrf.mxu0
  %717 = vmatprep.mubr.bf16.mxu0 0
  %718 = vmatmul.mubr.bf16.gmra.mxu0 %v327
  %v719 = vpop.f32.mrf.mxu0
  %v720 = vadd.f32 %v216, %v719
  %v721 = vpop.f32.mrf.mxu0
  %v722 = vpop.f32.mrf.mxu0
  %v723 = vadd.f32 %v216, %v722
  %v724 = vpop.f32.mrf.mxu0
  %725 = vmatprep.mubr.bf16.mxu0 0
  %726 = vmatmul.mubr.bf16.gmra.mxu0 %v330
  %v727 = vpop.f32.mrf.mxu0
  %v728 = vadd.f32 %v216, %v727
  %v729 = vpop.f32.mrf.mxu0
  %v730 = vpop.f32.mrf.mxu0
  %v731 = vadd.f32 %v216, %v730
  %v732 = vpop.f32.mrf.mxu0
  %733 = vmatprep.mubr.bf16.mxu0 0
  %734 = vmatmul.mubr.bf16.gmra.mxu0 %v333
  %v735 = vpop.f32.mrf.mxu0
  %v736 = vadd.f32 %v216, %v735
  %v737 = vpop.f32.mrf.mxu0
  %v738 = vpop.f32.mrf.mxu0
  %v739 = vadd.f32 %v216, %v738
  %v740 = vpop.f32.mrf.mxu0
  %741 = vmatprep.mubr.bf16.mxu0 0
  %742 = vmatmul.mubr.bf16.gmra.mxu0 %v336
  %v743 = vpop.f32.mrf.mxu0
  %v744 = vadd.f32 %v216, %v743
  %v745 = vpop.f32.mrf.mxu0
  %v746 = vpop.f32.mrf.mxu0
  %v747 = vadd.f32 %v216, %v746
  %v748 = vpop.f32.mrf.mxu0
  %749 = vmatprep.mubr.bf16.mxu0 0
  %750 = vmatmul.mubr.bf16.gmra.mxu0 %v339
  %v751 = vpop.f32.mrf.mxu0
  %v752 = vadd.f32 %v216, %v751
  %v753 = vpop.f32.mrf.mxu0
  %v754 = vpop.f32.mrf.mxu0
  %v755 = vadd.f32 %v216, %v754
  %v756 = vpop.f32.mrf.mxu0
  %757 = vmatprep.mubr.bf16.mxu0 0
  %758 = vmatmul.mubr.bf16.gmra.mxu0 %v342
  %v759 = vpop.f32.mrf.mxu0
  %v760 = vadd.f32 %v216, %v759
  %v761 = vpop.f32.mrf.mxu0
  %v762 = vpop.f32.mrf.mxu0
  %v763 = vadd.f32 %v216, %v762
  %v764 = vpop.f32.mrf.mxu0
  %765 = vmatprep.mubr.bf16.mxu0 0
  %766 = vmatmul.mubr.bf16.gmra.mxu0 %v345
  %v767 = vpop.f32.mrf.mxu0
  %v768 = vadd.f32 %v216, %v767
  %v769 = vpop.f32.mrf.mxu0
  %v770 = vpop.f32.mrf.mxu0
  %v771 = vadd.f32 %v216, %v770
  %v772 = vpop.f32.mrf.mxu0
  %773 = vmatprep.mubr.bf16.mxu0 0
  %774 = vmatmul.mubr.bf16.gmra.mxu0 %v348
  %v775 = vpop.f32.mrf.mxu0
  %v776 = vadd.f32 %v216, %v775
  %v777 = vpop.f32.mrf.mxu0
  %v778 = vpop.f32.mrf.mxu0
  %v779 = vadd.f32 %v216, %v778
  %v780 = vpop.f32.mrf.mxu0
  %781 = vmatprep.mubr.bf16.mxu0 0
  %782 = vmatmul.mubr.bf16.gmra.mxu0 %v351
  %v783 = vpop.f32.mrf.mxu0
  %v784 = vadd.f32 %v216, %v783
  %v785 = vpop.f32.mrf.mxu0
  %v786 = vpop.f32.mrf.mxu0
  %v787 = vadd.f32 %v216, %v786
  %v788 = vpop.f32.mrf.mxu0
  %789 = vmatprep.mubr.bf16.mxu0 0
  %790 = vmatmul.mubr.bf16.gmra.mxu0 %v354
  %v791 = vpop.f32.mrf.mxu0
  %v792 = vadd.f32 %v216, %v791
  %v793 = vpop.f32.mrf.mxu0
  %v794 = vpop.f32.mrf.mxu0
  %v795 = vadd.f32 %v216, %v794
  %v796 = vpop.f32.mrf.mxu0
  %797 = vmatprep.mubr.bf16.mxu0 0
  %798 = vmatmul.mubr.bf16.gmra.mxu0 %v357
  %v799 = vpop.f32.mrf.mxu0
  %v800 = vadd.f32 %v216, %v799
  %v801 = vpop.f32.mrf.mxu0
  %v802 = vpop.f32.mrf.mxu0
  %v803 = vadd.f32 %v216, %v802
  %v804 = vpop.f32.mrf.mxu0
  %805 = vmatprep.mubr.bf16.mxu0 0
  %806 = vmatmul.mubr.bf16.gmra.mxu0 %v360
  %v807 = vpop.f32.mrf.mxu0
  %v808 = vadd.f32 %v216, %v807
  %v809 = vpop.f32.mrf.mxu0
  %v810 = vpop.f32.mrf.mxu0
  %v811 = vadd.f32 %v216, %v810
  %v812 = vpop.f32.mrf.mxu0
  %813 = vmatprep.mubr.bf16.mxu0 0
  %814 = vmatmul.mubr.bf16.gmra.mxu0 %v363
  %v815 = vpop.f32.mrf.mxu0
  %v816 = vadd.f32 %v216, %v815
  %v817 = vpop.f32.mrf.mxu0
  %v818 = vpop.f32.mrf.mxu0
  %v819 = vadd.f32 %v216, %v818
  %v820 = vpop.f32.mrf.mxu0
  %821 = vmatprep.mubr.bf16.mxu0 0
  %822 = vmatmul.mubr.bf16.gmra.mxu0 %v366
  %v823 = vpop.f32.mrf.mxu0
  %v824 = vadd.f32 %v216, %v823
  %v825 = vpop.f32.mrf.mxu0
  %v826 = vpop.f32.mrf.mxu0
  %v827 = vadd.f32 %v216, %v826
  %v828 = vpop.f32.mrf.mxu0
  %829 = vmatprep.mubr.bf16.mxu0 0
  %830 = vmatmul.mubr.bf16.gmra.mxu0 %v369
  %v831 = vpop.f32.mrf.mxu0
  %v832 = vadd.f32 %v216, %v831
  %v833 = vpop.f32.mrf.mxu0
  %v834 = vpop.f32.mrf.mxu0
  %v835 = vadd.f32 %v216, %v834
  %v836 = vpop.f32.mrf.mxu0
  %837 = vmatprep.mubr.bf16.mxu0 0
  %838 = vmatmul.mubr.bf16.gmra.mxu0 %v372
  %v839 = vpop.f32.mrf.mxu0
  %v840 = vadd.f32 %v216, %v839
  %v841 = vpop.f32.mrf.mxu0
  %v842 = vpop.f32.mrf.mxu0
  %v843 = vadd.f32 %v216, %v842
  %v844 = vpop.f32.mrf.mxu0
  %845 = vmatprep.mubr.bf16.mxu0 0
  %846 = vmatmul.mubr.bf16.gmra.mxu0 %v375
  %v847 = vpop.f32.mrf.mxu0
  %v848 = vadd.f32 %v216, %v847
  %v849 = vpop.f32.mrf.mxu0
  %v850 = vpop.f32.mrf.mxu0
  %v851 = vadd.f32 %v216, %v850
  %v852 = vpop.f32.mrf.mxu0
  %853 = vmatprep.mubr.bf16.mxu0 0
  %854 = vmatmul.mubr.bf16.gmra.mxu0 %v378
  %v855 = vpop.f32.mrf.mxu0
  %v856 = vadd.f32 %v216, %v855
  %v857 = vpop.f32.mrf.mxu0
  %v858 = vpop.f32.mrf.mxu0
  %v859 = vadd.f32 %v216, %v858
  %v860 = vpop.f32.mrf.mxu0
  %861 = vmatprep.mubr.bf16.mxu0 0
  %862 = vmatmul.mubr.bf16.gmra.mxu0 %v381
  %v863 = vpop.f32.mrf.mxu0
  %v864 = vadd.f32 %v216, %v863
  %v865 = vpop.f32.mrf.mxu0
  %v866 = vpop.f32.mrf.mxu0
  %v867 = vadd.f32 %v216, %v866
  %v868 = vpop.f32.mrf.mxu0
  %869 = vmatprep.mubr.bf16.mxu0 0
  %870 = vmatmul.mubr.bf16.gmra.mxu0 %v384
  %v871 = vpop.f32.mrf.mxu0
  %v872 = vadd.f32 %v216, %v871
  %v873 = vpop.f32.mrf.mxu0
  %v874 = vpop.f32.mrf.mxu0
  %v875 = vadd.f32 %v216, %v874
  %v876 = vpop.f32.mrf.mxu0
  %877 = vmatprep.mubr.bf16.mxu0 0
  %878 = vmatmul.mubr.bf16.gmra.mxu0 %v387
  %v879 = vpop.f32.mrf.mxu0
  %v880 = vadd.f32 %v216, %v879
  %v881 = vpop.f32.mrf.mxu0
  %v882 = vpop.f32.mrf.mxu0
  %v883 = vadd.f32 %v216, %v882
  %v884 = vpop.f32.mrf.mxu0
  %885 = vmatprep.mubr.bf16.mxu0 0
  %886 = vmatmul.mubr.bf16.gmra.mxu0 %v390
  %v887 = vpop.f32.mrf.mxu0
  %v888 = vadd.f32 %v216, %v887
  %v889 = vpop.f32.mrf.mxu0
  %v890 = vpop.f32.mrf.mxu0
  %v891 = vadd.f32 %v216, %v890
  %v892 = vpop.f32.mrf.mxu0
  %893 = vmatprep.mubr.bf16.mxu0 0
  %894 = vmatmul.mubr.bf16.gmra.mxu0 %v393
  %v895 = vpop.f32.mrf.mxu0
  %v896 = vadd.f32 %v216, %v895
  %v897 = vpop.f32.mrf.mxu0
  %v898 = vpop.f32.mrf.mxu0
  %v899 = vadd.f32 %v216, %v898
  %v900 = vpop.f32.mrf.mxu0
  %901 = vmatprep.mubr.bf16.mxu0 0
  %902 = vmatmul.mubr.bf16.gmra.mxu0 %v396
  %v903 = vpop.f32.mrf.mxu0
  %v904 = vadd.f32 %v216, %v903
  %v905 = vpop.f32.mrf.mxu0
  %v906 = vpop.f32.mrf.mxu0
  %v907 = vadd.f32 %v216, %v906
  %v908 = vpop.f32.mrf.mxu0
  %909 = vmatprep.mubr.bf16.mxu0 0
  %910 = vmatmul.mubr.bf16.gmra.mxu0 %v399
  %v911 = vpop.f32.mrf.mxu0
  %v912 = vadd.f32 %v216, %v911
  %v913 = vpop.f32.mrf.mxu0
  %v914 = vpop.f32.mrf.mxu0
  %v915 = vadd.f32 %v216, %v914
  %v916 = vpop.f32.mrf.mxu0
  %917 = vmatprep.mubr.bf16.mxu0 0
  %918 = vmatmul.mubr.bf16.gmra.mxu0 %v402
  %v919 = vpop.f32.mrf.mxu0
  %v920 = vadd.f32 %v216, %v919
  %v921 = vpop.f32.mrf.mxu0
  %v922 = vpop.f32.mrf.mxu0
  %v923 = vadd.f32 %v216, %v922
  %v924 = vpop.f32.mrf.mxu0
  %925 = vmatprep.mubr.bf16.mxu0 0
  %926 = vmatmul.mubr.bf16.gmra.mxu0 %v405
  %v927 = vpop.f32.mrf.mxu0
  %v928 = vadd.f32 %v216, %v927
  %v929 = vpop.f32.mrf.mxu0
  %v930 = vpop.f32.mrf.mxu0
  %v931 = vadd.f32 %v216, %v930
  %v932 = vpop.f32.mrf.mxu0
  %933 = vmatprep.mubr.bf16.mxu0 0
  %934 = vmatmul.mubr.bf16.gmra.mxu0 %v408
  %v935 = vpop.f32.mrf.mxu0
  %v936 = vadd.f32 %v216, %v935
  %v937 = vpop.f32.mrf.mxu0
  %v938 = vpop.f32.mrf.mxu0
  %v939 = vadd.f32 %v216, %v938
  %v940 = vpop.f32.mrf.mxu0
  %941 = vmatprep.mubr.bf16.mxu0 0
  %942 = vmatmul.mubr.bf16.gmra.mxu0 %v411
  %v943 = vpop.f32.mrf.mxu0
  %v944 = vadd.f32 %v216, %v943
  %v945 = vpop.f32.mrf.mxu0
  %v946 = vpop.f32.mrf.mxu0
  %v947 = vadd.f32 %v216, %v946
  %v948 = vpop.f32.mrf.mxu0
  %949 = vmatprep.mubr.bf16.mxu0 0
  %950 = vmatmul.mubr.bf16.gmra.mxu0 %v414
  %v951 = vpop.f32.mrf.mxu0
  %v952 = vadd.f32 %v216, %v951
  %v953 = vpop.f32.mrf.mxu0
  %v954 = vpop.f32.mrf.mxu0
  %v955 = vadd.f32 %v216, %v954
  %v956 = vpop.f32.mrf.mxu0
  %957 = vmatprep.mubr.bf16.mxu0 0
  %958 = vmatmul.mubr.bf16.gmra.mxu0 %v417
  %v959 = vpop.f32.mrf.mxu0
  %v960 = vadd.f32 %v216, %v959
  %v961 = vpop.f32.mrf.mxu0
  %v962 = vpop.f32.mrf.mxu0
  %v963 = vadd.f32 %v216, %v962
  %v964 = vpop.f32.mrf.mxu0
  %965 = vmatprep.mubr.bf16.mxu0 0
  %966 = vmatmul.mubr.bf16.gmra.mxu0 %v420
  %v967 = vpop.f32.mrf.mxu0
  %v968 = vadd.f32 %v216, %v967
  %v969 = vpop.f32.mrf.mxu0
  %v970 = vpop.f32.mrf.mxu0
  %v971 = vadd.f32 %v216, %v970
  %v972 = vpop.f32.mrf.mxu0
  %973 = vdwg.mxu0
  %v974 = vmax.f32 %v464, 0.0
  %v975 = vmax.f32 %v467, 0.0
  %v976 = vmax.f32 %v472, 0.0
  %v977 = vmax.f32 %v475, 0.0
  %v978 = vmax.f32 %v480, 0.0
  %v979 = vmax.f32 %v483, 0.0
  %v980 = vmax.f32 %v488, 0.0
  %v981 = vmax.f32 %v491, 0.0
  %v982 = vmax.f32 %v496, 0.0
  %v983 = vmax.f32 %v499, 0.0
  %v984 = vmax.f32 %v504, 0.0
  %v985 = vmax.f32 %v507, 0.0
  %v986 = vmax.f32 %v512, 0.0
  %v987 = vmax.f32 %v515, 0.0
  %v988 = vmax.f32 %v520, 0.0
  %v989 = vmax.f32 %v523, 0.0
  %v990 = vmax.f32 %v528, 0.0
  %v991 = vmax.f32 %v531, 0.0
  %v992 = vmax.f32 %v536, 0.0
  %v993 = vmax.f32 %v539, 0.0
  %v994 = vmax.f32 %v544, 0.0
  %v995 = vmax.f32 %v547, 0.0
  %v996 = vmax.f32 %v552, 0.0
  %v997 = vmax.f32 %v555, 0.0
  %v998 = vmax.f32 %v560, 0.0
  %v999 = vmax.f32 %v563, 0.0
  %v1000 = vmax.f32 %v568, 0.0
  %v1001 = vmax.f32 %v571, 0.0
  %v1002 = vmax.f32 %v576, 0.0
  %v1003 = vmax.f32 %v579, 0.0
  %v1004 = vmax.f32 %v584, 0.0
  %v1005 = vmax.f32 %v587, 0.0
  %v1006 = vmax.f32 %v592, 0.0
  %v1007 = vmax.f32 %v595, 0.0
  %v1008 = vmax.f32 %v600, 0.0
  %v1009 = vmax.f32 %v603, 0.0
  %v1010 = vmax.f32 %v608, 0.0
  %v1011 = vmax.f32 %v611, 0.0
  %v1012 = vmax.f32 %v616, 0.0
  %v1013 = vmax.f32 %v619, 0.0
  %v1014 = vmax.f32 %v624, 0.0
  %v1015 = vmax.f32 %v627, 0.0
  %v1016 = vmax.f32 %v632, 0.0
  %v1017 = vmax.f32 %v635, 0.0
  %v1018 = vmax.f32 %v640, 0.0
  %v1019 = vmax.f32 %v643, 0.0
  %v1020 = vmax.f32 %v648, 0.0
  %v1021 = vmax.f32 %v651, 0.0
  %v1022 = vmax.f32 %v656, 0.0
  %v1023 = vmax.f32 %v659, 0.0
  %v1024 = vmax.f32 %v664, 0.0
  %v1025 = vmax.f32 %v667, 0.0
  %v1026 = vmax.f32 %v672, 0.0
  %v1027 = vmax.f32 %v675, 0.0
  %v1028 = vmax.f32 %v680, 0.0
  %v1029 = vmax.f32 %v683, 0.0
  %v1030 = vmax.f32 %v688, 0.0
  %v1031 = vmax.f32 %v691, 0.0
  %v1032 = vmax.f32 %v696, 0.0
  %v1033 = vmax.f32 %v699, 0.0
  %v1034 = vmax.f32 %v704, 0.0
  %v1035 = vmax.f32 %v707, 0.0
  %v1036 = vmax.f32 %v712, 0.0
  %v1037 = vmax.f32 %v715, 0.0
  %v1038 = vmax.f32 %v720, 0.0
  %v1039 = vmax.f32 %v723, 0.0
  %v1040 = vmax.f32 %v728, 0.0
  %v1041 = vmax.f32 %v731, 0.0
  %v1042 = vmax.f32 %v736, 0.0
  %v1043 = vmax.f32 %v739, 0.0
  %v1044 = vmax.f32 %v744, 0.0
  %v1045 = vmax.f32 %v747, 0.0
  %v1046 = vmax.f32 %v752, 0.0
  %v1047 = vmax.f32 %v755, 0.0
  %v1048 = vmax.f32 %v760, 0.0
  %v1049 = vmax.f32 %v763, 0.0
  %v1050 = vmax.f32 %v768, 0.0
  %v1051 = vmax.f32 %v771, 0.0
  %v1052 = vmax.f32 %v776, 0.0
  %v1053 = vmax.f32 %v779, 0.0
  %v1054 = vmax.f32 %v784, 0.0
  %v1055 = vmax.f32 %v787, 0.0
  %v1056 = vmax.f32 %v792, 0.0
  %v1057 = vmax.f32 %v795, 0.0
  %v1058 = vmax.f32 %v800, 0.0
  %v1059 = vmax.f32 %v803, 0.0
  %v1060 = vmax.f32 %v808, 0.0
  %v1061 = vmax.f32 %v811, 0.0
  %v1062 = vmax.f32 %v816, 0.0
  %v1063 = vmax.f32 %v819, 0.0
  %v1064 = vmax.f32 %v824, 0.0
  %v1065 = vmax.f32 %v827, 0.0
  %v1066 = vmax.f32 %v832, 0.0
  %v1067 = vmax.f32 %v835, 0.0
  %v1068 = vmax.f32 %v840, 0.0
  %v1069 = vmax.f32 %v843, 0.0
  %v1070 = vmax.f32 %v848, 0.0
  %v1071 = vmax.f32 %v851, 0.0
  %v1072 = vmax.f32 %v856, 0.0
  %v1073 = vmax.f32 %v859, 0.0
  %v1074 = vmax.f32 %v864, 0.0
  %v1075 = vmax.f32 %v867, 0.0
  %v1076 = vmax.f32 %v872, 0.0
  %v1077 = vmax.f32 %v875, 0.0
  %v1078 = vmax.f32 %v880, 0.0
  %v1079 = vmax.f32 %v883, 0.0
  %v1080 = vmax.f32 %v888, 0.0
  %v1081 = vmax.f32 %v891, 0.0
  %v1082 = vmax.f32 %v896, 0.0
  %v1083 = vmax.f32 %v899, 0.0
  %v1084 = vmax.f32 %v904, 0.0
  %v1085 = vmax.f32 %v907, 0.0
  %v1086 = vmax.f32 %v912, 0.0
  %v1087 = vmax.f32 %v915, 0.0
  %v1088 = vmax.f32 %v920, 0.0
  %v1089 = vmax.f32 %v923, 0.0
  %v1090 = vmax.f32 %v928, 0.0
  %v1091 = vmax.f32 %v931, 0.0
  %v1092 = vmax.f32 %v936, 0.0
  %v1093 = vmax.f32 %v939, 0.0
  %v1094 = vmax.f32 %v944, 0.0
  %v1095 = vmax.f32 %v947, 0.0
  %v1096 = vmax.f32 %v952, 0.0
  %v1097 = vmax.f32 %v955, 0.0
  %v1098 = vmax.f32 %v960, 0.0
  %v1099 = vmax.f32 %v963, 0.0
  %v1100 = vmax.f32 %v968, 0.0
  %v1101 = vmax.f32 %v971, 0.0
  %1102 = vst [vmem:[%s3] sm:$0xff] %v974
  %1103 = vst [vmem:[%s3 + $0x8] sm:$0xff] %v975
  %1104 = vst [vmem:[%s3 + $0x10] sm:$0xff] %v976
  %1105 = vst [vmem:[%s3 + $0x18] sm:$0xff] %v977
  %1106 = vst [vmem:[%s3 + $0x20] sm:$0xff] %v978
  %1107 = vst [vmem:[%s3 + $0x28] sm:$0xff] %v979
  %1108 = vst [vmem:[%s3 + $0x30] sm:$0xff] %v980
  %1109 = vst [vmem:[%s3 + $0x38] sm:$0xff] %v981
  %1110 = vst [vmem:[%s3 + $0x40] sm:$0xff] %v982
  %1111 = vst [vmem:[%s3 + $0x48] sm:$0xff] %v983
  %1112 = vst [vmem:[%s3 + $0x50] sm:$0xff] %v984
  %1113 = vst [vmem:[%s3 + $0x58] sm:$0xff] %v985
  %1114 = vst [vmem:[%s3 + $0x60] sm:$0xff] %v986
  %1115 = vst [vmem:[%s3 + $0x68] sm:$0xff] %v987
  %1116 = vst [vmem:[%s3 + $0x70] sm:$0xff] %v988
  %1117 = vst [vmem:[%s3 + $0x78] sm:$0xff] %v989
  %1118 = vst [vmem:[%s3 + $0x80] sm:$0xff] %v990
  %1119 = vst [vmem:[%s3 + $0x88] sm:$0xff] %v991
  %1120 = vst [vmem:[%s3 + $0x90] sm:$0xff] %v992
  %1121 = vst [vmem:[%s3 + $0x98] sm:$0xff] %v993
  %1122 = vst [vmem:[%s3 + $0xa0] sm:$0xff] %v994
  %1123 = vst [vmem:[%s3 + $0xa8] sm:$0xff] %v995
  %1124 = vst [vmem:[%s3 + $0xb0] sm:$0xff] %v996
  %1125 = vst [vmem:[%s3 + $0xb8] sm:$0xff] %v997
  %1126 = vst [vmem:[%s3 + $0xc0] sm:$0xff] %v998
  %1127 = vst [vmem:[%s3 + $0xc8] sm:$0xff] %v999
  %1128 = vst [vmem:[%s3 + $0xd0] sm:$0xff] %v1000
  %1129 = vst [vmem:[%s3 + $0xd8] sm:$0xff] %v1001
  %1130 = vst [vmem:[%s3 + $0xe0] sm:$0xff] %v1002
  %1131 = vst [vmem:[%s3 + $0xe8] sm:$0xff] %v1003
  %1132 = vst [vmem:[%s3 + $0xf0] sm:$0xff] %v1004
  %1133 = vst [vmem:[%s3 + $0xf8] sm:$0xff] %v1005
  %1134 = vst [vmem:[%s3 + $0x100] sm:$0xff] %v1006
  %1135 = vst [vmem:[%s3 + $0x108] sm:$0xff] %v1007
  %1136 = vst [vmem:[%s3 + $0x110] sm:$0xff] %v1008
  %1137 = vst [vmem:[%s3 + $0x118] sm:$0xff] %v1009
  %1138 = vst [vmem:[%s3 + $0x120] sm:$0xff] %v1010
  %1139 = vst [vmem:[%s3 + $0x128] sm:$0xff] %v1011
  %1140 = vst [vmem:[%s3 + $0x130] sm:$0xff] %v1012
  %1141 = vst [vmem:[%s3 + $0x138] sm:$0xff] %v1013
  %1142 = vst [vmem:[%s3 + $0x140] sm:$0xff] %v1014
  %1143 = vst [vmem:[%s3 + $0x148] sm:$0xff] %v1015
  %1144 = vst [vmem:[%s3 + $0x150] sm:$0xff] %v1016
  %1145 = vst [vmem:[%s3 + $0x158] sm:$0xff] %v1017
  %1146 = vst [vmem:[%s3 + $0x160] sm:$0xff] %v1018
  %1147 = vst [vmem:[%s3 + $0x168] sm:$0xff] %v1019
  %1148 = vst [vmem:[%s3 + $0x170] sm:$0xff] %v1020
  %1149 = vst [vmem:[%s3 + $0x178] sm:$0xff] %v1021
  %1150 = vst [vmem:[%s3 + $0x180] sm:$0xff] %v1022
  %1151 = vst [vmem:[%s3 + $0x188] sm:$0xff] %v1023
  %1152 = vst [vmem:[%s3 + $0x190] sm:$0xff] %v1024
  %1153 = vst [vmem:[%s3 + $0x198] sm:$0xff] %v1025
  %1154 = vst [vmem:[%s3 + $0x1a0] sm:$0xff] %v1026
  %1155 = vst [vmem:[%s3 + $0x1a8] sm:$0xff] %v1027
  %1156 = vst [vmem:[%s3 + $0x1b0] sm:$0xff] %v1028
  %1157 = vst [vmem:[%s3 + $0x1b8] sm:$0xff] %v1029
  %1158 = vst [vmem:[%s3 + $0x1c0] sm:$0xff] %v1030
  %1159 = vst [vmem:[%s3 + $0x1c8] sm:$0xff] %v1031
  %1160 = vst [vmem:[%s3 + $0x1d0] sm:$0xff] %v1032
  %1161 = vst [vmem:[%s3 + $0x1d8] sm:$0xff] %v1033
  %1162 = vst [vmem:[%s3 + $0x1e0] sm:$0xff] %v1034
  %1163 = vst [vmem:[%s3 + $0x1e8] sm:$0xff] %v1035
  %1164 = vst [vmem:[%s3 + $0x1f0] sm:$0xff] %v1036
  %1165 = vst [vmem:[%s3 + $0x1f8] sm:$0xff] %v1037
  %1166 = vst [vmem:[%s3 + $0x200] sm:$0xff] %v1038
  %1167 = vst [vmem:[%s3 + $0x208] sm:$0xff] %v1039
  %1168 = vst [vmem:[%s3 + $0x210] sm:$0xff] %v1040
  %1169 = vst [vmem:[%s3 + $0x218] sm:$0xff] %v1041
  %1170 = vst [vmem:[%s3 + $0x220] sm:$0xff] %v1042
  %1171 = vst [vmem:[%s3 + $0x228] sm:$0xff] %v1043
  %1172 = vst [vmem:[%s3 + $0x230] sm:$0xff] %v1044
  %1173 = vst [vmem:[%s3 + $0x238] sm:$0xff] %v1045
  %1174 = vst [vmem:[%s3 + $0x240] sm:$0xff] %v1046
  %1175 = vst [vmem:[%s3 + $0x248] sm:$0xff] %v1047
  %1176 = vst [vmem:[%s3 + $0x250] sm:$0xff] %v1048
  %1177 = vst [vmem:[%s3 + $0x258] sm:$0xff] %v1049
  %1178 = vst [vmem:[%s3 + $0x260] sm:$0xff] %v1050
  %1179 = vst [vmem:[%s3 + $0x268] sm:$0xff] %v1051
  %1180 = vst [vmem:[%s3 + $0x270] sm:$0xff] %v1052
  %1181 = vst [vmem:[%s3 + $0x278] sm:$0xff] %v1053
  %1182 = vst [vmem:[%s3 + $0x280] sm:$0xff] %v1054
  %1183 = vst [vmem:[%s3 + $0x288] sm:$0xff] %v1055
  %1184 = vst [vmem:[%s3 + $0x290] sm:$0xff] %v1056
  %1185 = vst [vmem:[%s3 + $0x298] sm:$0xff] %v1057
  %1186 = vst [vmem:[%s3 + $0x2a0] sm:$0xff] %v1058
  %1187 = vst [vmem:[%s3 + $0x2a8] sm:$0xff] %v1059
  %1188 = vst [vmem:[%s3 + $0x2b0] sm:$0xff] %v1060
  %1189 = vst [vmem:[%s3 + $0x2b8] sm:$0xff] %v1061
  %1190 = vst [vmem:[%s3 + $0x2c0] sm:$0xff] %v1062
  %1191 = vst [vmem:[%s3 + $0x2c8] sm:$0xff] %v1063
  %1192 = vst [vmem:[%s3 + $0x2d0] sm:$0xff] %v1064
  %1193 = vst [vmem:[%s3 + $0x2d8] sm:$0xff] %v1065
  %1194 = vst [vmem:[%s3 + $0x2e0] sm:$0xff] %v1066
  %1195 = vst [vmem:[%s3 + $0x2e8] sm:$0xff] %v1067
  %1196 = vst [vmem:[%s3 + $0x2f0] sm:$0xff] %v1068
  %1197 = vst [vmem:[%s3 + $0x2f8] sm:$0xff] %v1069
  %1198 = vst [vmem:[%s3 + $0x300] sm:$0xff] %v1070
  %1199 = vst [vmem:[%s3 + $0x308] sm:$0xff] %v1071
  %1200 = vst [vmem:[%s3 + $0x310] sm:$0xff] %v1072
  %1201 = vst [vmem:[%s3 + $0x318] sm:$0xff] %v1073
  %1202 = vst [vmem:[%s3 + $0x320] sm:$0xff] %v1074
  %1203 = vst [vmem:[%s3 + $0x328] sm:$0xff] %v1075
  %1204 = vst [vmem:[%s3 + $0x330] sm:$0xff] %v1076
  %1205 = vst [vmem:[%s3 + $0x338] sm:$0xff] %v1077
  %1206 = vst [vmem:[%s3 + $0x340] sm:$0xff] %v1078
  %1207 = vst [vmem:[%s3 + $0x348] sm:$0xff] %v1079
  %1208 = vst [vmem:[%s3 + $0x350] sm:$0xff] %v1080
  %1209 = vst [vmem:[%s3 + $0x358] sm:$0xff] %v1081
  %1210 = vst [vmem:[%s3 + $0x360] sm:$0xff] %v1082
  %1211 = vst [vmem:[%s3 + $0x368] sm:$0xff] %v1083
  %1212 = vst [vmem:[%s3 + $0x370] sm:$0xff] %v1084
  %1213 = vst [vmem:[%s3 + $0x378] sm:$0xff] %v1085
  %1214 = vst [vmem:[%s3 + $0x380] sm:$0xff] %v1086
  %1215 = vst [vmem:[%s3 + $0x388] sm:$0xff] %v1087
  %1216 = vst [vmem:[%s3 + $0x390] sm:$0xff] %v1088
  %1217 = vst [vmem:[%s3 + $0x398] sm:$0xff] %v1089
  %1218 = vst [vmem:[%s3 + $0x3a0] sm:$0xff] %v1090
  %1219 = vst [vmem:[%s3 + $0x3a8] sm:$0xff] %v1091
  %1220 = vst [vmem:[%s3 + $0x3b0] sm:$0xff] %v1092
  %1221 = vst [vmem:[%s3 + $0x3b8] sm:$0xff] %v1093
  %1222 = vst [vmem:[%s3 + $0x3c0] sm:$0xff] %v1094
  %1223 = vst [vmem:[%s3 + $0x3c8] sm:$0xff] %v1095
  %1224 = vst [vmem:[%s3 + $0x3d0] sm:$0xff] %v1096
  %1225 = vst [vmem:[%s3 + $0x3d8] sm:$0xff] %v1097
  %1226 = vst [vmem:[%s3 + $0x3e0] sm:$0xff] %v1098
  %1227 = vst [vmem:[%s3 + $0x3e8] sm:$0xff] %v1099
  %1228 = vst [vmem:[%s3 + $0x3f0] sm:$0xff] %v1100
  %1229 = vst [vmem:[%s3 + $0x3f8] sm:$0xff] %v1101
  // Predicated region
  $region14: #{forward.7} parent=0 // pred_check
    _
  $region15: #{forward.7} parent=0 // pred_check_branch
    %1231 = sbr.rel (0) target = $region17
  $region16: #{forward.7} parent=0 // pred_region
    _
  $region17: #{forward.7} parent=0 // pred_fallthru
    _
  // Predicated region
  $region18: #{forward.7} parent=0 // pred_check
    _
  $region19: #{forward.7} parent=0 // pred_check_branch
    %1233 = sbr.rel (0) target = $region21
  $region20: #{forward.7} parent=0 // pred_region
    _
  $region21: #{forward.7} parent=0 // pred_fallthru
    _

// kernel: forward.9
$region0: #{forward.9}
  #allocation0 [shape = 'u32[]', space=smem, size = 0x4, offset = 0x4, fixed_abs, tag = 'smem constant byte address 0x4 - core index']
  #allocation1 [shape = 'u32[144,128]{1,0:T(1,128)}', space=vmem, size = 0x12000, scoped, tag = 'internal scratch']
  %s0 = inlined_call_operand.vmem [shape: f32[16,256], index: 0, kind: input, shape index: {}]
  %s1 = inlined_call_operand.vmem [shape: bf16[256,512], index: 1, kind: input, shape index: {}]
  %s2 = inlined_call_operand.vmem [shape: f32[1,512], index: 2, kind: input, shape index: {}]
  %s3 = inlined_call_operand.vmem [shape: bf16[512,128], index: 3, kind: input, shape index: {}]
  %s4 = inlined_call_operand.vmem [shape: f32[1,128], index: 4, kind: input, shape index: {}]
  %s5 = inlined_call_operand.vmem [shape: bf16[128,512], index: 5, kind: input, shape index: {}]
  %s6 = inlined_call_operand.vmem [shape: f32[1,512], index: 6, kind: input, shape index: {}]
  %s7 = inlined_call_operand.vmem [shape: bf16[512,256], index: 7, kind: input, shape index: {}]
  %s8 = inlined_call_operand.vmem [shape: f32[1,256], index: 8, kind: input, shape index: {}]
  %s9 = inlined_call_operand.vmem [shape: bf16[128,768], index: 9, kind: input, shape index: {}]
  %s10 = inlined_call_operand.vmem [shape: f32[1,768], index: 10, kind: input, shape index: {}]
  %s11 = inlined_call_operand.hbm [shape: f32[16,128], index: 11, kind: output, shape index: {0}]
  %s12 = inlined_call_operand.hbm [shape: f32[16,256], index: 12, kind: output, shape index: {1}]
  %s13 = inlined_call_operand.vmem [shape: f32[16,768], index: 13, kind: output, shape index: {2}]
  %14 = xla_tuple %s11, %s12, %s13
  %s15 = sld [smem:[#allocation0]]
  $region70: #{forward.9} parent=0
    _
  %s17 = ssub.s32 1, %s15
  %s18 = scalar_select 0, %s17, %s15
  $region1: #{forward.9} parent=0
    #allocation2 [shape = 'u8[8192]{0}', space=vmem, size = 0x2000, scoped, tag = 'output window, operand 0, single buffered']
    #allocation3 [shape = 's32[1]{0}', space=sflag, size = 0x4, scoped, tag = 'scoped memory for forward.9']
    #allocation4 [shape = 'u8[16384]{0}', space=vmem, size = 0x4000, scoped, tag = 'output window, operand 1, single buffered']
    #allocation5 [shape = 's32[1]{0}', space=sflag, size = 0x4, scoped, tag = 'scoped memory for forward.9']
    %19 = vsyncpa [#allocation3], 0
    %20 = vsyncpa [#allocation5], 0
    // Predicated region
    $region2: #{forward.9} parent=1 // pred_check
      _
    $region3: #{forward.9} parent=1 // pred_check_branch
      %22 = sbr.rel (0) target = $region5
    $region4: #{forward.9} parent=1 // pred_region
      _
    $region5: #{forward.9} parent=1 // pred_fallthru
      _
    // Predicated region
    $region6: #{forward.9} parent=1 // pred_check
      _
    $region7: #{forward.9} parent=1 // pred_check_branch
      %24 = sbr.rel (0) target = $region9
    $region8: #{forward.9} parent=1 // pred_region
      _
    $region9: #{forward.9} parent=1 // pred_fallthru
      _
    // Predicated region
    $region10: #{forward.9} parent=1 // pred_check
      _
    $region11: #{forward.9} parent=1 // pred_check_branch
      %26 = sbr.rel (0) target = $region13
    $region12: #{forward.9} parent=1 // pred_region
      _
    $region13: #{forward.9} parent=1 // pred_fallthru
      _
    // Predicated region
    $region14: #{forward.9} parent=1 // pred_check
      _
    $region15: #{forward.9} parent=1 // pred_check_branch
      %28 = sbr.rel (0) target = $region17
    $region16: #{forward.9} parent=1 // pred_region
      _
    $region17: #{forward.9} parent=1 // pred_fallthru
      _
    // Predicated region
    $region18: #{forward.9} parent=1 // pred_check
      _
    $region19: #{forward.9} parent=1 // pred_check_branch
      %30 = sbr.rel (0) target = $region21
    $region20: #{forward.9} parent=1 // pred_region
      _
    $region21: #{forward.9} parent=1 // pred_fallthru
      _
    // Predicated region
    $region22: #{forward.9} parent=1 // pred_check
      _
    $region23: #{forward.9} parent=1 // pred_check_branch
      %32 = sbr.rel (0) target = $region25
    $region24: #{forward.9} parent=1 // pred_region
      _
    $region25: #{forward.9} parent=1 // pred_fallthru
      _
    // Predicated region
    $region26: #{forward.9} parent=1 // pred_check
      _
    $region27: #{forward.9} parent=1 // pred_check_branch
      %34 = sbr.rel (0) target = $region29
    $region28: #{forward.9} parent=1 // pred_region
      _
    $region29: #{forward.9} parent=1 // pred_fallthru
      _
    // Predicated region
    $region30: #{forward.9} parent=1 // pred_check
      _
    $region31: #{forward.9} parent=1 // pred_check_branch
      %36 = sbr.rel (0) target = $region33
    $region32: #{forward.9} parent=1 // pred_region
      _
    $region33: #{forward.9} parent=1 // pred_fallthru
      _
    // Predicated region
    $region34: #{forward.9} parent=1 // pred_check
      _
    $region35: #{forward.9} parent=1 // pred_check_branch
      %38 = sbr.rel (0) target = $region37
    $region36: #{forward.9} parent=1 // pred_region
      _
    $region37: #{forward.9} parent=1 // pred_fallthru
      _
    // Predicated region
    $region38: #{forward.9} parent=1 // pred_check
      _
    $region39: #{forward.9} parent=1 // pred_check_branch
      %40 = sbr.rel (0) target = $region41
    $region40: #{forward.9} parent=1 // pred_region
      _
    $region41: #{forward.9} parent=1 // pred_fallthru
      _
    // Predicated region
    $region42: #{forward.9} parent=1 // pred_check
      _
    $region43: #{forward.9} parent=1 // pred_check_branch
      %42 = sbr.rel (0) target = $region45
    $region44: #{forward.9} parent=1 // pred_region
      _
    $region45: #{forward.9} parent=1 // pred_fallthru
      _
    %v44 = vld [vmem:[%s0] sm:$0xff]
    %v45 = vld [vmem:[%s0 + $0x8] sm:$0xff]
    %v46 = vld [vmem:[%s0 + $0x10] sm:$0xff]
    %v47 = vld [vmem:[%s0 + $0x18] sm:$0xff]
    %v48 = vpack.c.bf16 %v46, %v44
    %v49 = vpack.c.bf16 %v47, %v45
    %v50 = vld [vmem:[%s1] sm:$0xff]
    %v51 = vld [vmem:[%s1 + $0x8] sm:$0xff]
    %v52 = vld [vmem:[%s1 + $0x10] sm:$0xff]
    %v53 = vld [vmem:[%s1 + $0x18] sm:$0xff]
    %v54 = vld [vmem:[%s1 + $0x20] sm:$0xff]
    %v55 = vld [vmem:[%s1 + $0x28] sm:$0xff]
    %v56 = vld [vmem:[%s1 + $0x30] sm:$0xff]
    %v57 = vld [vmem:[%s1 + $0x38] sm:$0xff]
    %v58 = vld [vmem:[%s1 + $0x40] sm:$0xff]
    %v59 = vld [vmem:[%s1 + $0x48] sm:$0xff]
    %v60 = vld [vmem:[%s1 + $0x50] sm:$0xff]
    %v61 = vld [vmem:[%s1 + $0x58] sm:$0xff]
    %v62 = vld [vmem:[%s1 + $0x60] sm:$0xff]
    %v63 = vld [vmem:[%s1 + $0x68] sm:$0xff]
    %v64 = vld [vmem:[%s1 + $0x70] sm:$0xff]
    %v65 = vld [vmem:[%s1 + $0x78] sm:$0xff]
    %v66 = vld [vmem:[%s1 + $0x80] sm:$0xff]
    %v67 = vld [vmem:[%s1 + $0x88] sm:$0xff]
    %v68 = vld [vmem:[%s1 + $0x90] sm:$0xff]
    %v69 = vld [vmem:[%s1 + $0x98] sm:$0xff]
    %v70 = vld [vmem:[%s1 + $0xa0] sm:$0xff]
    %v71 = vld [vmem:[%s1 + $0xa8] sm:$0xff]
    %v72 = vld [vmem:[%s1 + $0xb0] sm:$0xff]
    %v73 = vld [vmem:[%s1 + $0xb8] sm:$0xff]
    %v74 = vld [vmem:[%s1 + $0xc0] sm:$0xff]
    %v75 = vld [vmem:[%s1 + $0xc8] sm:$0xff]
    %v76 = vld [vmem:[%s1 + $0xd0] sm:$0xff]
    %v77 = vld [vmem:[%s1 + $0xd8] sm:$0xff]
    %v78 = vld [vmem:[%s1 + $0xe0] sm:$0xff]
    %v79 = vld [vmem:[%s1 + $0xe8] sm:$0xff]
    %v80 = vld [vmem:[%s1 + $0xf0] sm:$0xff]
    %v81 = vld [vmem:[%s1 + $0xf8] sm:$0xff]
    %v82 = vld [vmem:[%s1 + $0x100] sm:$0xff]
    %v83 = vld [vmem:[%s1 + $0x108] sm:$0xff]
    %v84 = vld [vmem:[%s1 + $0x110] sm:$0xff]
    %v85 = vld [vmem:[%s1 + $0x118] sm:$0xff]
    %v86 = vld [vmem:[%s1 + $0x120] sm:$0xff]
    %v87 = vld [vmem:[%s1 + $0x128] sm:$0xff]
    %v88 = vld [vmem:[%s1 + $0x130] sm:$0xff]
    %v89 = vld [vmem:[%s1 + $0x138] sm:$0xff]
    %v90 = vld [vmem:[%s1 + $0x140] sm:$0xff]
    %v91 = vld [vmem:[%s1 + $0x148] sm:$0xff]
    %v92 = vld [vmem:[%s1 + $0x150] sm:$0xff]
    %v93 = vld [vmem:[%s1 + $0x158] sm:$0xff]
    %v94 = vld [vmem:[%s1 + $0x160] sm:$0xff]
    %v95 = vld [vmem:[%s1 + $0x168] sm:$0xff]
    %v96 = vld [vmem:[%s1 + $0x170] sm:$0xff]
    %v97 = vld [vmem:[%s1 + $0x178] sm:$0xff]
    %v98 = vld [vmem:[%s1 + $0x180] sm:$0xff]
    %v99 = vld [vmem:[%s1 + $0x188] sm:$0xff]
    %v100 = vld [vmem:[%s1 + $0x190] sm:$0xff]
    %v101 = vld [vmem:[%s1 + $0x198] sm:$0xff]
    %v102 = vld [vmem:[%s1 + $0x1a0] sm:$0xff]
    %v103 = vld [vmem:[%s1 + $0x1a8] sm:$0xff]
    %v104 = vld [vmem:[%s1 + $0x1b0] sm:$0xff]
    %v105 = vld [vmem:[%s1 + $0x1b8] sm:$0xff]
    %v106 = vld [vmem:[%s1 + $0x1c0] sm:$0xff]
    %v107 = vld [vmem:[%s1 + $0x1c8] sm:$0xff]
    %v108 = vld [vmem:[%s1 + $0x1d0] sm:$0xff]
    %v109 = vld [vmem:[%s1 + $0x1d8] sm:$0xff]
    %v110 = vld [vmem:[%s1 + $0x1e0] sm:$0xff]
    %v111 = vld [vmem:[%s1 + $0x1e8] sm:$0xff]
    %v112 = vld [vmem:[%s1 + $0x1f0] sm:$0xff]
    %v113 = vld [vmem:[%s1 + $0x1f8] sm:$0xff]
    %v114 = vld [vmem:[%s2] sm:$0xf]
    %v116 = vlaneseq
    %v117 = vshrl.u32 %v116, 7
    %v118 = vsub.s32 0, %v117
    %v119 = vrot.slane %v114, %v118
    %v120 = vlaneseq
    %v121 = vshrl.u32 %v120, 7
    %v122 = vsub.s32 1, %v121
    %v123 = vrot.slane %v114, %v122
    %v124 = vlaneseq
    %v125 = vshrl.u32 %v124, 7
    %v126 = vsub.s32 2, %v125
    %v127 = vrot.slane %v114, %v126
    %v128 = vlaneseq
    %v129 = vshrl.u32 %v128, 7
    %v130 = vsub.s32 3, %v129
    %v131 = vrot.slane %v114, %v130
    %v200 = vunpack.c.l.b16 %v50
    %v201 = vunpack.c.h.b16 %v50
    %v202 = vunpack.c.l.b16 %v51
    %v203 = vunpack.c.h.b16 %v51
    %v204 = vunpack.c.l.b16 %v52
    %v205 = vunpack.c.h.b16 %v52
    %v206 = vunpack.c.l.b16 %v53
    %v207 = vunpack.c.h.b16 %v53
    %v208 = vunpack.c.l.b16 %v54
    %v209 = vunpack.c.h.b16 %v54
    %v210 = vunpack.c.l.b16 %v55
    %v211 = vunpack.c.h.b16 %v55
    %v212 = vunpack.c.l.b16 %v56
    %v213 = vunpack.c.h.b16 %v56
    %v214 = vunpack.c.l.b16 %v57
    %v215 = vunpack.c.h.b16 %v57
    %v216 = vunpack.c.l.b16 %v58
    %v217 = vunpack.c.h.b16 %v58
    %v218 = vunpack.c.l.b16 %v59
    %v219 = vunpack.c.h.b16 %v59
    %v220 = vunpack.c.l.b16 %v60
    %v221 = vunpack.c.h.b16 %v60
    %v222 = vunpack.c.l.b16 %v61
    %v223 = vunpack.c.h.b16 %v61
    %v224 = vunpack.c.l.b16 %v62
    %v225 = vunpack.c.h.b16 %v62
    %v226 = vunpack.c.l.b16 %v63
    %v227 = vunpack.c.h.b16 %v63
    %v228 = vunpack.c.l.b16 %v64
    %v229 = vunpack.c.h.b16 %v64
    %v230 = vunpack.c.l.b16 %v65
    %v231 = vunpack.c.h.b16 %v65
    %v232 = vunpack.c.l.b16 %v66
    %v233 = vunpack.c.h.b16 %v66
    %v234 = vunpack.c.l.b16 %v67
    %v235 = vunpack.c.h.b16 %v67
    %v236 = vunpack.c.l.b16 %v68
    %v237 = vunpack.c.h.b16 %v68
    %v238 = vunpack.c.l.b16 %v69
    %v239 = vunpack.c.h.b16 %v69
    %v240 = vunpack.c.l.b16 %v70
    %v241 = vunpack.c.h.b16 %v70
    %v242 = vunpack.c.l.b16 %v71
    %v243 = vunpack.c.h.b16 %v71
    %v244 = vunpack.c.l.b16 %v72
    %v245 = vunpack.c.h.b16 %v72
    %v246 = vunpack.c.l.b16 %v73
    %v247 = vunpack.c.h.b16 %v73
    %v248 = vunpack.c.l.b16 %v74
    %v249 = vunpack.c.h.b16 %v74
    %v250 = vunpack.c.l.b16 %v75
    %v251 = vunpack.c.h.b16 %v75
    %v252 = vunpack.c.l.b16 %v76
    %v253 = vunpack.c.h.b16 %v76
    %v254 = vunpack.c.l.b16 %v77
    %v255 = vunpack.c.h.b16 %v77
    %v256 = vunpack.c.l.b16 %v78
    %v257 = vunpack.c.h.b16 %v78
    %v258 = vunpack.c.l.b16 %v79
    %v259 = vunpack.c.h.b16 %v79
    %v260 = vunpack.c.l.b16 %v80
    %v261 = vunpack.c.h.b16 %v80
    %v262 = vunpack.c.l.b16 %v81
    %v263 = vunpack.c.h.b16 %v81
    %v264 = vunpack.c.l.b16 %v82
    %v265 = vunpack.c.h.b16 %v82
    %v266 = vunpack.c.l.b16 %v83
    %v267 = vunpack.c.h.b16 %v83
    %v268 = vunpack.c.l.b16 %v84
    %v269 = vunpack.c.h.b16 %v84
    %v270 = vunpack.c.l.b16 %v85
    %v271 = vunpack.c.h.b16 %v85
    %v272 = vunpack.c.l.b16 %v86
    %v273 = vunpack.c.h.b16 %v86
    %v274 = vunpack.c.l.b16 %v87
    %v275 = vunpack.c.h.b16 %v87
    %v276 = vunpack.c.l.b16 %v88
    %v277 = vunpack.c.h.b16 %v88
    %v278 = vunpack.c.l.b16 %v89
    %v279 = vunpack.c.h.b16 %v89
    %v280 = vunpack.c.l.b16 %v90
    %v281 = vunpack.c.h.b16 %v90
    %v282 = vunpack.c.l.b16 %v91
    %v283 = vunpack.c.h.b16 %v91
    %v284 = vunpack.c.l.b16 %v92
    %v285 = vunpack.c.h.b16 %v92
    %v286 = vunpack.c.l.b16 %v93
    %v287 = vunpack.c.h.b16 %v93
    %v288 = vunpack.c.l.b16 %v94
    %v289 = vunpack.c.h.b16 %v94
    %v290 = vunpack.c.l.b16 %v95
    %v291 = vunpack.c.h.b16 %v95
    %v292 = vunpack.c.l.b16 %v96
    %v293 = vunpack.c.h.b16 %v96
    %v294 = vunpack.c.l.b16 %v97
    %v295 = vunpack.c.h.b16 %v97
    %v296 = vunpack.c.l.b16 %v98
    %v297 = vunpack.c.h.b16 %v98
    %v298 = vunpack.c.l.b16 %v99
    %v299 = vunpack.c.h.b16 %v99
    %v300 = vunpack.c.l.b16 %v100
    %v301 = vunpack.c.h.b16 %v100
    %v302 = vunpack.c.l.b16 %v101
    %v303 = vunpack.c.h.b16 %v101
    %v304 = vunpack.c.l.b16 %v102
    %v305 = vunpack.c.h.b16 %v102
    %v306 = vunpack.c.l.b16 %v103
    %v307 = vunpack.c.h.b16 %v103
    %v308 = vunpack.c.l.b16 %v104
    %v309 = vunpack.c.h.b16 %v104
    %v310 = vunpack.c.l.b16 %v105
    %v311 = vunpack.c.h.b16 %v105
    %v312 = vunpack.c.l.b16 %v106
    %v313 = vunpack.c.h.b16 %v106
    %v314 = vunpack.c.l.b16 %v107
    %v315 = vunpack.c.h.b16 %v107
    %v316 = vunpack.c.l.b16 %v108
    %v317 = vunpack.c.h.b16 %v108
    %v318 = vunpack.c.l.b16 %v109
    %v319 = vunpack.c.h.b16 %v109
    %v320 = vunpack.c.l.b16 %v110
    %v321 = vunpack.c.h.b16 %v110
    %v322 = vunpack.c.l.b16 %v111
    %v323 = vunpack.c.h.b16 %v111
    %v324 = vunpack.c.l.b16 %v112
    %v325 = vunpack.c.h.b16 %v112
    %v326 = vunpack.c.l.b16 %v113
    %v327 = vunpack.c.h.b16 %v113
    %v328 = vpack.c.b16 %v204, %v200
    %v329 = vpack.c.b16 %v205, %v201
    %v330 = vpack.c.b16 %v206, %v202
    %v331 = vpack.c.b16 %v207, %v203
    %v332 = vpack.c.b16 %v212, %v208
    %v333 = vpack.c.b16 %v213, %v209
    %v334 = vpack.c.b16 %v214, %v210
    %v335 = vpack.c.b16 %v215, %v211
    %v336 = vpack.c.b16 %v220, %v216
    %v337 = vpack.c.b16 %v221, %v217
    %v338 = vpack.c.b16 %v222, %v218
    %v339 = vpack.c.b16 %v223, %v219
    %v340 = vpack.c.b16 %v228, %v224
    %v341 = vpack.c.b16 %v229, %v225
    %v342 = vpack.c.b16 %v230, %v226
    %v343 = vpack.c.b16 %v231, %v227
    %v344 = vpack.c.b16 %v236, %v232
    %v345 = vpack.c.b16 %v237, %v233
    %v346 = vpack.c.b16 %v238, %v234
    %v347 = vpack.c.b16 %v239, %v235
    %v348 = vpack.c.b16 %v244, %v240
    %v349 = vpack.c.b16 %v245, %v241
    %v350 = vpack.c.b16 %v246, %v242
    %v351 = vpack.c.b16 %v247, %v243
    %v352 = vpack.c.b16 %v252, %v248
    %v353 = vpack.c.b16 %v253, %v249
    %v354 = vpack.c.b16 %v254, %v250
    %v355 = vpack.c.b16 %v255, %v251
    %v356 = vpack.c.b16 %v260, %v256
    %v357 = vpack.c.b16 %v261, %v257
    %v358 = vpack.c.b16 %v262, %v258
    %v359 = vpack.c.b16 %v263, %v259
    %v360 = vpack.c.b16 %v268, %v264
    %v361 = vpack.c.b16 %v269, %v265
    %v362 = vpack.c.b16 %v270, %v266
    %v363 = vpack.c.b16 %v271, %v267
    %v364 = vpack.c.b16 %v276, %v272
    %v365 = vpack.c.b16 %v277, %v273
    %v366 = vpack.c.b16 %v278, %v274
    %v367 = vpack.c.b16 %v279, %v275
    %v368 = vpack.c.b16 %v284, %v280
    %v369 = vpack.c.b16 %v285, %v281
    %v370 = vpack.c.b16 %v286, %v282
    %v371 = vpack.c.b16 %v287, %v283
    %v372 = vpack.c.b16 %v292, %v288
    %v373 = vpack.c.b16 %v293, %v289
    %v374 = vpack.c.b16 %v294, %v290
    %v375 = vpack.c.b16 %v295, %v291
    %v376 = vpack.c.b16 %v300, %v296
    %v377 = vpack.c.b16 %v301, %v297
    %v378 = vpack.c.b16 %v302, %v298
    %v379 = vpack.c.b16 %v303, %v299
    %v380 = vpack.c.b16 %v308, %v304
    %v381 = vpack.c.b16 %v309, %v305
    %v382 = vpack.c.b16 %v310, %v306
    %v383 = vpack.c.b16 %v311, %v307
    %v384 = vpack.c.b16 %v316, %v312
    %v385 = vpack.c.b16 %v317, %v313
    %v386 = vpack.c.b16 %v318, %v314
    %v387 = vpack.c.b16 %v319, %v315
    %v388 = vpack.c.b16 %v324, %v320
    %v389 = vpack.c.b16 %v325, %v321
    %v390 = vpack.c.b16 %v326, %v322
    %v391 = vpack.c.b16 %v327, %v323
    %456 = vmatprep.subr.bf16.mxu0 %v357
    %457 = vmatpush1.bf16.msra.mxu0 %v356
    %458 = vmatprep.subr.bf16.mxu0 %v353
    %459 = vmatpush1.bf16.msra.mxu0 %v352
    %460 = vmatprep.subr.bf16.mxu0 %v349
    %461 = vmatpush1.bf16.msra.mxu0 %v348
    %462 = vmatprep.subr.bf16.mxu0 %v345
    %463 = vmatpush1.bf16.msra.mxu0 %v344
    %464 = vmatprep.subr.bf16.mxu0 %v341
    %465 = vmatpush1.bf16.msra.mxu0 %v340
    %466 = vmatprep.subr.bf16.mxu0 %v337
    %467 = vmatpush1.bf16.msra.mxu0 %v336
    %468 = vmatprep.subr.bf16.mxu0 %v333
    %469 = vmatpush1.bf16.msra.mxu0 %v332
    %470 = vmatprep.subr.bf16.mxu0 %v329
    %471 = vmatpush1.bf16.msra.mxu0 %v328
    %472 = vmatprep.subr.bf16.mxu0 %v389
    %473 = vmatpush2.bf16.msra.mxu0 %v388
    %474 = vmatprep.subr.bf16.mxu0 %v385
    %475 = vmatpush2.bf16.msra.mxu0 %v384
    %476 = vmatprep.subr.bf16.mxu0 %v381
    %477 = vmatpush2.bf16.msra.mxu0 %v380
    %478 = vmatprep.subr.bf16.mxu0 %v377
    %479 = vmatpush2.bf16.msra.mxu0 %v376
    %480 = vmatprep.subr.bf16.mxu0 %v373
    %481 = vmatpush2.bf16.msra.mxu0 %v372
    %482 = vmatprep.subr.bf16.mxu0 %v369
    %483 = vmatpush2.bf16.msra.mxu0 %v368
    %484 = vmatprep.subr.bf16.mxu0 %v365
    %485 = vmatpush2.bf16.msra.mxu0 %v364
    %486 = vmatprep.subr.bf16.mxu0 %v361
    %487 = vmatpush2.bf16.msra.mxu0 %v360
    %488 = vmatprep.mubr.bf16.mxu0 %v49
    %489 = vmatmul.mubr.bf16.gmra.mxu0 %v48
    %v490 = vpop.f32.mrf.mxu0
    %v491 = vadd.f32 %v119, %v490
    %v492 = vpop.f32.mrf.mxu0
    %v493 = vadd.f32 %v123, %v492
    %v494 = vpop.f32.mrf.mxu0
    %v495 = vadd.f32 %v119, %v494
    %v496 = vpop.f32.mrf.mxu0
    %v497 = vadd.f32 %v123, %v496
    %498 = vdwg.mxu0
    %499 = vmatprep.subr.bf16.mxu0 %v359
    %500 = vmatpush1.bf16.msra.mxu0 %v358
    %501 = vmatprep.subr.bf16.mxu0 %v355
    %502 = vmatpush1.bf16.msra.mxu0 %v354
    %503 = vmatprep.subr.bf16.mxu0 %v351
    %504 = vmatpush1.bf16.msra.mxu0 %v350
    %505 = vmatprep.subr.bf16.mxu0 %v347
    %506 = vmatpush1.bf16.msra.mxu0 %v346
    %507 = vmatprep.subr.bf16.mxu0 %v343
    %508 = vmatpush1.bf16.msra.mxu0 %v342
    %509 = vmatprep.subr.bf16.mxu0 %v339
    %510 = vmatpush1.bf16.msra.mxu0 %v338
    %511 = vmatprep.subr.bf16.mxu0 %v335
    %512 = vmatpush1.bf16.msra.mxu0 %v334
    %513 = vmatprep.subr.bf16.mxu0 %v331
    %514 = vmatpush1.bf16.msra.mxu0 %v330
    %515 = vmatprep.subr.bf16.mxu0 %v391
    %516 = vmatpush2.bf16.msra.mxu0 %v390
    %517 = vmatprep.subr.bf16.mxu0 %v387
    %518 = vmatpush2.bf16.msra.mxu0 %v386
    %519 = vmatprep.subr.bf16.mxu0 %v383
    %520 = vmatpush2.bf16.msra.mxu0 %v382
    %521 = vmatprep.subr.bf16.mxu0 %v379
    %522 = vmatpush2.bf16.msra.mxu0 %v378
    %523 = vmatprep.subr.bf16.mxu0 %v375
    %524 = vmatpush2.bf16.msra.mxu0 %v374
    %525 = vmatprep.subr.bf16.mxu0 %v371
    %526 = vmatpush2.bf16.msra.mxu0 %v370
    %527 = vmatprep.subr.bf16.mxu0 %v367
    %528 = vmatpush2.bf16.msra.mxu0 %v366
    %529 = vmatprep.subr.bf16.mxu0 %v363
    %530 = vmatpush2.bf16.msra.mxu0 %v362
    %531 = vmatprep.mubr.bf16.mxu0 %v49
    %532 = vmatmul.mubr.bf16.gmra.mxu0 %v48
    %v533 = vpop.f32.mrf.mxu0
    %v534 = vadd.f32 %v127, %v533
    %v535 = vpop.f32.mrf.mxu0
    %v536 = vadd.f32 %v131, %v535
    %v537 = vpop.f32.mrf.mxu0
    %v538 = vadd.f32 %v127, %v537
    %v539 = vpop.f32.mrf.mxu0
    %v540 = vadd.f32 %v131, %v539
    %541 = vdwg.mxu0
    %v542 = vmax.f32 %v491, 0.0
    %v543 = vmax.f32 %v493, 0.0
    %v544 = vmax.f32 %v534, 0.0
    %v545 = vmax.f32 %v536, 0.0
    %v546 = vmax.f32 %v495, 0.0
    %v547 = vmax.f32 %v497, 0.0
    %v548 = vmax.f32 %v538, 0.0
    %v549 = vmax.f32 %v540, 0.0
    %v550 = vpack.c.bf16 %v546, %v542
    %v551 = vpack.c.bf16 %v547, %v543
    %v552 = vpack.c.bf16 %v548, %v544
    %v553 = vpack.c.bf16 %v549, %v545
    %v554 = vld [vmem:[%s3] sm:$0xf]
    %v555 = vld [vmem:[%s3 + $0x4] sm:$0xf]
    %v556 = vld [vmem:[%s3 + $0x8] sm:$0xf]
    %v557 = vld [vmem:[%s3 + $0xc] sm:$0xf]
    %v558 = vld [vmem:[%s3 + $0x10] sm:$0xf]
    %v559 = vld [vmem:[%s3 + $0x14] sm:$0xf]
    %v560 = vld [vmem:[%s3 + $0x18] sm:$0xf]
    %v561 = vld [vmem:[%s3 + $0x1c] sm:$0xf]
    %v562 = vld [vmem:[%s3 + $0x20] sm:$0xf]
    %v563 = vld [vmem:[%s3 + $0x24] sm:$0xf]
    %v564 = vld [vmem:[%s3 + $0x28] sm:$0xf]
    %v565 = vld [vmem:[%s3 + $0x2c] sm:$0xf]
    %v566 = vld [vmem:[%s3 + $0x30] sm:$0xf]
    %v567 = vld [vmem:[%s3 + $0x34] sm:$0xf]
    %v568 = vld [vmem:[%s3 + $0x38] sm:$0xf]
    %v569 = vld [vmem:[%s3 + $0x3c] sm:$0xf]
    %v570 = vld [vmem:[%s3 + $0x40] sm:$0xf]
    %v571 = vld [vmem:[%s3 + $0x44] sm:$0xf]
    %v572 = vld [vmem:[%s3 + $0x48] sm:$0xf]
    %v573 = vld [vmem:[%s3 + $0x4c] sm:$0xf]
    %v574 = vld [vmem:[%s3 + $0x50] sm:$0xf]
    %v575 = vld [vmem:[%s3 + $0x54] sm:$0xf]
    %v576 = vld [vmem:[%s3 + $0x58] sm:$0xf]
    %v577 = vld [vmem:[%s3 + $0x5c] sm:$0xf]
    %v578 = vld [vmem:[%s3 + $0x60] sm:$0xf]
    %v579 = vld [vmem:[%s3 + $0x64] sm:$0xf]
    %v580 = vld [vmem:[%s3 + $0x68] sm:$0xf]
    %v581 = vld [vmem:[%s3 + $0x6c] sm:$0xf]
    %v582 = vld [vmem:[%s3 + $0x70] sm:$0xf]
    %v583 = vld [vmem:[%s3 + $0x74] sm:$0xf]
    %v584 = vld [vmem:[%s3 + $0x78] sm:$0xf]
    %v585 = vld [vmem:[%s3 + $0x7c] sm:$0xf]
    %v586 = vld [vmem:[%s3 + $0x80] sm:$0xf]
    %v587 = vld [vmem:[%s3 + $0x84] sm:$0xf]
    %v588 = vld [vmem:[%s3 + $0x88] sm:$0xf]
    %v589 = vld [vmem:[%s3 + $0x8c] sm:$0xf]
    %v590 = vld [vmem:[%s3 + $0x90] sm:$0xf]
    %v591 = vld [vmem:[%s3 + $0x94] sm:$0xf]
    %v592 = vld [vmem:[%s3 + $0x98] sm:$0xf]
    %v593 = vld [vmem:[%s3 + $0x9c] sm:$0xf]
    %v594 = vld [vmem:[%s3 + $0xa0] sm:$0xf]
    %v595 = vld [vmem:[%s3 + $0xa4] sm:$0xf]
    %v596 = vld [vmem:[%s3 + $0xa8] sm:$0xf]
    %v597 = vld [vmem:[%s3 + $0xac] sm:$0xf]
    %v598 = vld [vmem:[%s3 + $0xb0] sm:$0xf]
    %v599 = vld [vmem:[%s3 + $0xb4] sm:$0xf]
    %v600 = vld [vmem:[%s3 + $0xb8] sm:$0xf]
    %v601 = vld [vmem:[%s3 + $0xbc] sm:$0xf]
    %v602 = vld [vmem:[%s3 + $0xc0] sm:$0xf]
    %v603 = vld [vmem:[%s3 + $0xc4] sm:$0xf]
    %v604 = vld [vmem:[%s3 + $0xc8] sm:$0xf]
    %v605 = vld [vmem:[%s3 + $0xcc] sm:$0xf]
    %v606 = vld [vmem:[%s3 + $0xd0] sm:$0xf]
    %v607 = vld [vmem:[%s3 + $0xd4] sm:$0xf]
    %v608 = vld [vmem:[%s3 + $0xd8] sm:$0xf]
    %v609 = vld [vmem:[%s3 + $0xdc] sm:$0xf]
    %v610 = vld [vmem:[%s3 + $0xe0] sm:$0xf]
    %v611 = vld [vmem:[%s3 + $0xe4] sm:$0xf]
    %v612 = vld [vmem:[%s3 + $0xe8] sm:$0xf]
    %v613 = vld [vmem:[%s3 + $0xec] sm:$0xf]
    %v614 = vld [vmem:[%s3 + $0xf0] sm:$0xf]
    %v615 = vld [vmem:[%s3 + $0xf4] sm:$0xf]
    %v616 = vld [vmem:[%s3 + $0xf8] sm:$0xf]
    %v617 = vld [vmem:[%s3 + $0xfc] sm:$0xf]
    %v618 = vld [vmem:[%s4] sm:$0x1]
    %v620 = vlaneseq
    %v621 = vshrl.u32 %v620, 7
    %v622 = vsub.s32 0, %v621
    %v623 = vrot.slane %v618, %v622
    %v689 = vunpack.c.l.b16 %v554
    %v690 = vunpack.c.l.b16 %v555
    %v691 = vunpack.c.l.b16 %v556
    %v692 = vunpack.c.l.b16 %v557
    %v693 = vunpack.c.l.b16 %v558
    %v694 = vunpack.c.l.b16 %v559
    %v695 = vunpack.c.l.b16 %v560
    %v696 = vunpack.c.l.b16 %v561
    %v697 = vunpack.c.l.b16 %v562
    %v698 = vunpack.c.l.b16 %v563
    %v699 = vunpack.c.l.b16 %v564
    %v700 = vunpack.c.l.b16 %v565
    %v701 = vunpack.c.l.b16 %v566
    %v702 = vunpack.c.l.b16 %v567
    %v703 = vunpack.c.l.b16 %v568
    %v704 = vunpack.c.l.b16 %v569
    %v705 = vunpack.c.l.b16 %v570
    %v706 = vunpack.c.l.b16 %v571
    %v707 = vunpack.c.l.b16 %v572
    %v708 = vunpack.c.l.b16 %v573
    %v709 = vunpack.c.l.b16 %v574
    %v710 = vunpack.c.l.b16 %v575
    %v711 = vunpack.c.l.b16 %v576
    %v712 = vunpack.c.l.b16 %v577
    %v713 = vunpack.c.l.b16 %v578
    %v714 = vunpack.c.l.b16 %v579
    %v715 = vunpack.c.l.b16 %v580
    %v716 = vunpack.c.l.b16 %v581
    %v717 = vunpack.c.l.b16 %v582
    %v718 = vunpack.c.l.b16 %v583
    %v719 = vunpack.c.l.b16 %v584
    %v720 = vunpack.c.l.b16 %v585
    %v721 = vunpack.c.l.b16 %v586
    %v722 = vunpack.c.l.b16 %v587
    %v723 = vunpack.c.l.b16 %v588
    %v724 = vunpack.c.l.b16 %v589
    %v725 = vunpack.c.l.b16 %v590
    %v726 = vunpack.c.l.b16 %v591
    %v727 = vunpack.c.l.b16 %v592
    %v728 = vunpack.c.l.b16 %v593
    %v729 = vunpack.c.l.b16 %v594
    %v730 = vunpack.c.l.b16 %v595
    %v731 = vunpack.c.l.b16 %v596
    %v732 = vunpack.c.l.b16 %v597
    %v733 = vunpack.c.l.b16 %v598
    %v734 = vunpack.c.l.b16 %v599
    %v735 = vunpack.c.l.b16 %v600
    %v736 = vunpack.c.l.b16 %v601
    %v737 = vunpack.c.l.b16 %v602
    %v738 = vunpack.c.l.b16 %v603
    %v739 = vunpack.c.l.b16 %v604
    %v740 = vunpack.c.l.b16 %v605
    %v741 = vunpack.c.l.b16 %v606
    %v742 = vunpack.c.l.b16 %v607
    %v743 = vunpack.c.l.b16 %v608
    %v744 = vunpack.c.l.b16 %v609
    %v745 = vunpack.c.l.b16 %v610
    %v746 = vunpack.c.l.b16 %v611
    %v747 = vunpack.c.l.b16 %v612
    %v748 = vunpack.c.l.b16 %v613
    %v749 = vunpack.c.l.b16 %v614
    %v750 = vunpack.c.l.b16 %v615
    %v751 = vunpack.c.l.b16 %v616
    %v752 = vunpack.c.l.b16 %v617
    %v753 = vpack.c.b16 %v690, %v689
    %v754 = vpack.c.b16 %v692, %v691
    %v755 = vpack.c.b16 %v694, %v693
    %v756 = vpack.c.b16 %v696, %v695
    %v757 = vpack.c.b16 %v698, %v697
    %v758 = vpack.c.b16 %v700, %v699
    %v759 = vpack.c.b16 %v702, %v701
    %v760 = vpack.c.b16 %v704, %v703
    %v761 = vpack.c.b16 %v706, %v705
    %v762 = vpack.c.b16 %v708, %v707
    %v763 = vpack.c.b16 %v710, %v709
    %v764 = vpack.c.b16 %v712, %v711
    %v765 = vpack.c.b16 %v714, %v713
    %v766 = vpack.c.b16 %v716, %v715
    %v767 = vpack.c.b16 %v718, %v717
    %v768 = vpack.c.b16 %v720, %v719
    %v769 = vpack.c.b16 %v722, %v721
    %v770 = vpack.c.b16 %v724, %v723
    %v771 = vpack.c.b16 %v726, %v725
    %v772 = vpack.c.b16 %v728, %v727
    %v773 = vpack.c.b16 %v730, %v729
    %v774 = vpack.c.b16 %v732, %v731
    %v775 = vpack.c.b16 %v734, %v733
    %v776 = vpack.c.b16 %v736, %v735
    %v777 = vpack.c.b16 %v738, %v737
    %v778 = vpack.c.b16 %v740, %v739
    %v779 = vpack.c.b16 %v742, %v741
    %v780 = vpack.c.b16 %v744, %v743
    %v781 = vpack.c.b16 %v746, %v745
    %v782 = vpack.c.b16 %v748, %v747
    %v783 = vpack.c.b16 %v750, %v749
    %v784 = vpack.c.b16 %v752, %v751
    %817 = vmatprep.subr.bf16.mxu0 0
    %818 = vmatpush1.bf16.msra.mxu0 %v760
    %819 = vmatprep.subr.bf16.mxu0 0
    %820 = vmatpush1.bf16.msra.mxu0 %v759
    %821 = vmatprep.subr.bf16.mxu0 0
    %822 = vmatpush1.bf16.msra.mxu0 %v758
    %823 = vmatprep.subr.bf16.mxu0 0
    %824 = vmatpush1.bf16.msra.mxu0 %v757
    %825 = vmatprep.subr.bf16.mxu0 0
    %826 = vmatpush1.bf16.msra.mxu0 %v756
    %827 = vmatprep.subr.bf16.mxu0 0
    %828 = vmatpush1.bf16.msra.mxu0 %v755
    %829 = vmatprep.subr.bf16.mxu0 0
    %830 = vmatpush1.bf16.msra.mxu0 %v754
    %831 = vmatprep.subr.bf16.mxu0 0
    %832 = vmatpush1.bf16.msra.mxu0 %v753
    %833 = vmatprep.subr.bf16.mxu0 0
    %834 = vmatpush2.bf16.msra.mxu0 %v768
    %835 = vmatprep.subr.bf16.mxu0 0
    %836 = vmatpush2.bf16.msra.mxu0 %v767
    %837 = vmatprep.subr.bf16.mxu0 0
    %838 = vmatpush2.bf16.msra.mxu0 %v766
    %839 = vmatprep.subr.bf16.mxu0 0
    %840 = vmatpush2.bf16.msra.mxu0 %v765
    %841 = vmatprep.subr.bf16.mxu0 0
    %842 = vmatpush2.bf16.msra.mxu0 %v764
    %843 = vmatprep.subr.bf16.mxu0 0
    %844 = vmatpush2.bf16.msra.mxu0 %v763
    %845 = vmatprep.subr.bf16.mxu0 0
    %846 = vmatpush2.bf16.msra.mxu0 %v762
    %847 = vmatprep.subr.bf16.mxu0 0
    %848 = vmatpush2.bf16.msra.mxu0 %v761
    %849 = vmatprep.mubr.bf16.mxu0 %v551
    %850 = vmatmul.mubr.bf16.gmra.mxu0 %v550
    %v851 = vpop.f32.mrf.mxu0
    %v852 = vadd.f32 %v623, %v851
    %v853 = vpop.f32.mrf.mxu0
    %v854 = vpop.f32.mrf.mxu0
    %v855 = vadd.f32 %v623, %v854
    %v856 = vpop.f32.mrf.mxu0
    %857 = vdwg.mxu0
    %858 = vmatprep.subr.bf16.mxu0 0
    %859 = vmatpush1.bf16.msra.mxu0 %v776
    %860 = vmatprep.subr.bf16.mxu0 0
    %861 = vmatpush1.bf16.msra.mxu0 %v775
    %862 = vmatprep.subr.bf16.mxu0 0
    %863 = vmatpush1.bf16.msra.mxu0 %v774
    %864 = vmatprep.subr.bf16.mxu0 0
    %865 = vmatpush1.bf16.msra.mxu0 %v773
    %866 = vmatprep.subr.bf16.mxu0 0
    %867 = vmatpush1.bf16.msra.mxu0 %v772
    %868 = vmatprep.subr.bf16.mxu0 0
    %869 = vmatpush1.bf16.msra.mxu0 %v771
    %870 = vmatprep.subr.bf16.mxu0 0
    %871 = vmatpush1.bf16.msra.mxu0 %v770
    %872 = vmatprep.subr.bf16.mxu0 0
    %873 = vmatpush1.bf16.msra.mxu0 %v769
    %874 = vmatprep.subr.bf16.mxu0 0
    %875 = vmatpush2.bf16.msra.mxu0 %v784
    %876 = vmatprep.subr.bf16.mxu0 0
    %877 = vmatpush2.bf16.msra.mxu0 %v783
    %878 = vmatprep.subr.bf16.mxu0 0
    %879 = vmatpush2.bf16.msra.mxu0 %v782
    %880 = vmatprep.subr.bf16.mxu0 0
    %881 = vmatpush2.bf16.msra.mxu0 %v781
    %882 = vmatprep.subr.bf16.mxu0 0
    %883 = vmatpush2.bf16.msra.mxu0 %v780
    %884 = vmatprep.subr.bf16.mxu0 0
    %885 = vmatpush2.bf16.msra.mxu0 %v779
    %886 = vmatprep.subr.bf16.mxu0 0
    %887 = vmatpush2.bf16.msra.mxu0 %v778
    %888 = vmatprep.subr.bf16.mxu0 0
    %889 = vmatpush2.bf16.msra.mxu0 %v777
    %890 = vmatprep.mubr.bf16.mxu0 %v553
    %891 = vmatmul.mubr.bf16.gmra.mxu0 %v552
    %v892 = vpop.f32.mrf.mxu0
    %v893 = vadd.f32 %v852, %v892
    %v894 = vpop.f32.mrf.mxu0
    %v895 = vpop.f32.mrf.mxu0
    %v896 = vadd.f32 %v855, %v895
    %v897 = vpop.f32.mrf.mxu0
    %898 = vdwg.mxu0
    %v899 = vmax.f32 %v893, 0.0
    %v900 = vmax.f32 %v896, 0.0
    %901 = vst [vmem:[#allocation2] sm:$0xff] %v899
    %902 = vst [vmem:[#allocation2 + $0x8] sm:$0xff] %v900
    %v903 = vpack.c.bf16 %v900, %v899
    %v904 = vld [vmem:[%s5] sm:$0xff]
    %v905 = vld [vmem:[%s5 + $0x8] sm:$0xff]
    %v906 = vld [vmem:[%s5 + $0x10] sm:$0xff]
    %v907 = vld [vmem:[%s5 + $0x18] sm:$0xff]
    %v908 = vld [vmem:[%s5 + $0x20] sm:$0xff]
    %v909 = vld [vmem:[%s5 + $0x28] sm:$0xff]
    %v910 = vld [vmem:[%s5 + $0x30] sm:$0xff]
    %v911 = vld [vmem:[%s5 + $0x38] sm:$0xff]
    %v912 = vld [vmem:[%s5 + $0x40] sm:$0xff]
    %v913 = vld [vmem:[%s5 + $0x48] sm:$0xff]
    %v914 = vld [vmem:[%s5 + $0x50] sm:$0xff]
    %v915 = vld [vmem:[%s5 + $0x58] sm:$0xff]
    %v916 = vld [vmem:[%s5 + $0x60] sm:$0xff]
    %v917 = vld [vmem:[%s5 + $0x68] sm:$0xff]
    %v918 = vld [vmem:[%s5 + $0x70] sm:$0xff]
    %v919 = vld [vmem:[%s5 + $0x78] sm:$0xff]
    %v920 = vld [vmem:[%s5 + $0x80] sm:$0xff]
    %v921 = vld [vmem:[%s5 + $0x88] sm:$0xff]
    %v922 = vld [vmem:[%s5 + $0x90] sm:$0xff]
    %v923 = vld [vmem:[%s5 + $0x98] sm:$0xff]
    %v924 = vld [vmem:[%s5 + $0xa0] sm:$0xff]
    %v925 = vld [vmem:[%s5 + $0xa8] sm:$0xff]
    %v926 = vld [vmem:[%s5 + $0xb0] sm:$0xff]
    %v927 = vld [vmem:[%s5 + $0xb8] sm:$0xff]
    %v928 = vld [vmem:[%s5 + $0xc0] sm:$0xff]
    %v929 = vld [vmem:[%s5 + $0xc8] sm:$0xff]
    %v930 = vld [vmem:[%s5 + $0xd0] sm:$0xff]
    %v931 = vld [vmem:[%s5 + $0xd8] sm:$0xff]
    %v932 = vld [vmem:[%s5 + $0xe0] sm:$0xff]
    %v933 = vld [vmem:[%s5 + $0xe8] sm:$0xff]
    %v934 = vld [vmem:[%s5 + $0xf0] sm:$0xff]
    %v935 = vld [vmem:[%s5 + $0xf8] sm:$0xff]
    %v936 = vld [vmem:[%s6] sm:$0xf]
    %v938 = vlaneseq
    %v939 = vshrl.u32 %v938, 7
    %v940 = vsub.s32 0, %v939
    %v941 = vrot.slane %v936, %v940
    %v942 = vlaneseq
    %v943 = vshrl.u32 %v942, 7
    %v944 = vsub.s32 1, %v943
    %v945 = vrot.slane %v936, %v944
    %v946 = vlaneseq
    %v947 = vshrl.u32 %v946, 7
    %v948 = vsub.s32 2, %v947
    %v949 = vrot.slane %v936, %v948
    %v950 = vlaneseq
    %v951 = vshrl.u32 %v950, 7
    %v952 = vsub.s32 3, %v951
    %v953 = vrot.slane %v936, %v952
    %v990 = vunpack.c.l.b16 %v904
    %v991 = vunpack.c.h.b16 %v904
    %v992 = vunpack.c.l.b16 %v905
    %v993 = vunpack.c.h.b16 %v905
    %v994 = vunpack.c.l.b16 %v906
    %v995 = vunpack.c.h.b16 %v906
    %v996 = vunpack.c.l.b16 %v907
    %v997 = vunpack.c.h.b16 %v907
    %v998 = vunpack.c.l.b16 %v908
    %v999 = vunpack.c.h.b16 %v908
    %v1000 = vunpack.c.l.b16 %v909
    %v1001 = vunpack.c.h.b16 %v909
    %v1002 = vunpack.c.l.b16 %v910
    %v1003 = vunpack.c.h.b16 %v910
    %v1004 = vunpack.c.l.b16 %v911
    %v1005 = vunpack.c.h.b16 %v911
    %v1006 = vunpack.c.l.b16 %v912
    %v1007 = vunpack.c.h.b16 %v912
    %v1008 = vunpack.c.l.b16 %v913
    %v1009 = vunpack.c.h.b16 %v913
    %v1010 = vunpack.c.l.b16 %v914
    %v1011 = vunpack.c.h.b16 %v914
    %v1012 = vunpack.c.l.b16 %v915
    %v1013 = vunpack.c.h.b16 %v915
    %v1014 = vunpack.c.l.b16 %v916
    %v1015 = vunpack.c.h.b16 %v916
    %v1016 = vunpack.c.l.b16 %v917
    %v1017 = vunpack.c.h.b16 %v917
    %v1018 = vunpack.c.l.b16 %v918
    %v1019 = vunpack.c.h.b16 %v918
    %v1020 = vunpack.c.l.b16 %v919
    %v1021 = vunpack.c.h.b16 %v919
    %v1022 = vunpack.c.l.b16 %v920
    %v1023 = vunpack.c.h.b16 %v920
    %v1024 = vunpack.c.l.b16 %v921
    %v1025 = vunpack.c.h.b16 %v921
    %v1026 = vunpack.c.l.b16 %v922
    %v1027 = vunpack.c.h.b16 %v922
    %v1028 = vunpack.c.l.b16 %v923
    %v1029 = vunpack.c.h.b16 %v923
    %v1030 = vunpack.c.l.b16 %v924
    %v1031 = vunpack.c.h.b16 %v924
    %v1032 = vunpack.c.l.b16 %v925
    %v1033 = vunpack.c.h.b16 %v925
    %v1034 = vunpack.c.l.b16 %v926
    %v1035 = vunpack.c.h.b16 %v926
    %v1036 = vunpack.c.l.b16 %v927
    %v1037 = vunpack.c.h.b16 %v927
    %v1038 = vunpack.c.l.b16 %v928
    %v1039 = vunpack.c.h.b16 %v928
    %v1040 = vunpack.c.l.b16 %v929
    %v1041 = vunpack.c.h.b16 %v929
    %v1042 = vunpack.c.l.b16 %v930
    %v1043 = vunpack.c.h.b16 %v930
    %v1044 = vunpack.c.l.b16 %v931
    %v1045 = vunpack.c.h.b16 %v931
    %v1046 = vunpack.c.l.b16 %v932
    %v1047 = vunpack.c.h.b16 %v932
    %v1048 = vunpack.c.l.b16 %v933
    %v1049 = vunpack.c.h.b16 %v933
    %v1050 = vunpack.c.l.b16 %v934
    %v1051 = vunpack.c.h.b16 %v934
    %v1052 = vunpack.c.l.b16 %v935
    %v1053 = vunpack.c.h.b16 %v935
    %v1054 = vpack.c.b16 %v994, %v990
    %v1055 = vpack.c.b16 %v995, %v991
    %v1056 = vpack.c.b16 %v996, %v992
    %v1057 = vpack.c.b16 %v997, %v993
    %v1058 = vpack.c.b16 %v1002, %v998
    %v1059 = vpack.c.b16 %v1003, %v999
    %v1060 = vpack.c.b16 %v1004, %v1000
    %v1061 = vpack.c.b16 %v1005, %v1001
    %v1062 = vpack.c.b16 %v1010, %v1006
    %v1063 = vpack.c.b16 %v1011, %v1007
    %v1064 = vpack.c.b16 %v1012, %v1008
    %v1065 = vpack.c.b16 %v1013, %v1009
    %v1066 = vpack.c.b16 %v1018, %v1014
    %v1067 = vpack.c.b16 %v1019, %v1015
    %v1068 = vpack.c.b16 %v1020, %v1016
    %v1069 = vpack.c.b16 %v1021, %v1017
    %v1070 = vpack.c.b16 %v1026, %v1022
    %v1071 = vpack.c.b16 %v1027, %v1023
    %v1072 = vpack.c.b16 %v1028, %v1024
    %v1073 = vpack.c.b16 %v1029, %v1025
    %v1074 = vpack.c.b16 %v1034, %v1030
    %v1075 = vpack.c.b16 %v1035, %v1031
    %v1076 = vpack.c.b16 %v1036, %v1032
    %v1077 = vpack.c.b16 %v1037, %v1033
    %v1078 = vpack.c.b16 %v1042, %v1038
    %v1079 = vpack.c.b16 %v1043, %v1039
    %v1080 = vpack.c.b16 %v1044, %v1040
    %v1081 = vpack.c.b16 %v1045, %v1041
    %v1082 = vpack.c.b16 %v1050, %v1046
    %v1083 = vpack.c.b16 %v1051, %v1047
    %v1084 = vpack.c.b16 %v1052, %v1048
    %v1085 = vpack.c.b16 %v1053, %v1049
    %1118 = vmatprep.subr.bf16.mxu0 %v1083
    %1119 = vmatpush1.bf16.msra.mxu0 %v1082
    %1120 = vmatprep.subr.bf16.mxu0 %v1079
    %1121 = vmatpush1.bf16.msra.mxu0 %v1078
    %1122 = vmatprep.subr.bf16.mxu0 %v1075
    %1123 = vmatpush1.bf16.msra.mxu0 %v1074
    %1124 = vmatprep.subr.bf16.mxu0 %v1071
    %1125 = vmatpush1.bf16.msra.mxu0 %v1070
    %1126 = vmatprep.subr.bf16.mxu0 %v1067
    %1127 = vmatpush1.bf16.msra.mxu0 %v1066
    %1128 = vmatprep.subr.bf16.mxu0 %v1063
    %1129 = vmatpush1.bf16.msra.mxu0 %v1062
    %1130 = vmatprep.subr.bf16.mxu0 %v1059
    %1131 = vmatpush1.bf16.msra.mxu0 %v1058
    %1132 = vmatprep.subr.bf16.mxu0 %v1055
    %1133 = vmatpush1.bf16.msra.mxu0 %v1054
    %1134 = vmatprep.subr.bf16.mxu0 0
    %1135 = vmatpush2.bf16.msra.mxu0 0
    %1136 = vmatprep.subr.bf16.mxu0 0
    %1137 = vmatpush2.bf16.msra.mxu0 0
    %1138 = vmatprep.subr.bf16.mxu0 0
    %1139 = vmatpush2.bf16.msra.mxu0 0
    %1140 = vmatprep.subr.bf16.mxu0 0
    %1141 = vmatpush2.bf16.msra.mxu0 0
    %1142 = vmatprep.subr.bf16.mxu0 0
    %1143 = vmatpush2.bf16.msra.mxu0 0
    %1144 = vmatprep.subr.bf16.mxu0 0
    %1145 = vmatpush2.bf16.msra.mxu0 0
    %1146 = vmatprep.subr.bf16.mxu0 0
    %1147 = vmatpush2.bf16.msra.mxu0 0
    %1148 = vmatprep.subr.bf16.mxu0 0
    %1149 = vmatpush2.bf16.msra.mxu0 0
    %1150 = vmatprep.mubr.bf16.mxu0 0
    %1151 = vmatmul.mubr.bf16.gmra.mxu0 %v903
    %v1152 = vpop.f32.mrf.mxu0
    %v1153 = vadd.f32 %v941, %v1152
    %v1154 = vpop.f32.mrf.mxu0
    %v1155 = vadd.f32 %v945, %v1154
    %v1156 = vpop.f32.mrf.mxu0
    %v1157 = vadd.f32 %v941, %v1156
    %v1158 = vpop.f32.mrf.mxu0
    %v1159 = vadd.f32 %v945, %v1158
    %1160 = vdwg.mxu0
    %1161 = vmatprep.subr.bf16.mxu0 %v1085
    %1162 = vmatpush1.bf16.msra.mxu0 %v1084
    %1163 = vmatprep.subr.bf16.mxu0 %v1081
    %1164 = vmatpush1.bf16.msra.mxu0 %v1080
    %1165 = vmatprep.subr.bf16.mxu0 %v1077
    %1166 = vmatpush1.bf16.msra.mxu0 %v1076
    %1167 = vmatprep.subr.bf16.mxu0 %v1073
    %1168 = vmatpush1.bf16.msra.mxu0 %v1072
    %1169 = vmatprep.subr.bf16.mxu0 %v1069
    %1170 = vmatpush1.bf16.msra.mxu0 %v1068
    %1171 = vmatprep.subr.bf16.mxu0 %v1065
    %1172 = vmatpush1.bf16.msra.mxu0 %v1064
    %1173 = vmatprep.subr.bf16.mxu0 %v1061
    %1174 = vmatpush1.bf16.msra.mxu0 %v1060
    %1175 = vmatprep.subr.bf16.mxu0 %v1057
    %1176 = vmatpush1.bf16.msra.mxu0 %v1056
    %1177 = vmatprep.subr.bf16.mxu0 0
    %1178 = vmatpush2.bf16.msra.mxu0 0
    %1179 = vmatprep.subr.bf16.mxu0 0
    %1180 = vmatpush2.bf16.msra.mxu0 0
    %1181 = vmatprep.subr.bf16.mxu0 0
    %1182 = vmatpush2.bf16.msra.mxu0 0
    %1183 = vmatprep.subr.bf16.mxu0 0
    %1184 = vmatpush2.bf16.msra.mxu0 0
    %1185 = vmatprep.subr.bf16.mxu0 0
    %1186 = vmatpush2.bf16.msra.mxu0 0
    %1187 = vmatprep.subr.bf16.mxu0 0
    %1188 = vmatpush2.bf16.msra.mxu0 0
    %1189 = vmatprep.subr.bf16.mxu0 0
    %1190 = vmatpush2.bf16.msra.mxu0 0
    %1191 = vmatprep.subr.bf16.mxu0 0
    %1192 = vmatpush2.bf16.msra.mxu0 0
    %1193 = vmatprep.mubr.bf16.mxu0 0
    %1194 = vmatmul.mubr.bf16.gmra.mxu0 %v903
    %v1195 = vpop.f32.mrf.mxu0
    %v1196 = vadd.f32 %v949, %v1195
    %v1197 = vpop.f32.mrf.mxu0
    %v1198 = vadd.f32 %v953, %v1197
    %v1199 = vpop.f32.mrf.mxu0
    %v1200 = vadd.f32 %v949, %v1199
    %v1201 = vpop.f32.mrf.mxu0
    %v1202 = vadd.f32 %v953, %v1201
    %1203 = vdwg.mxu0
    %v1204 = vmax.f32 %v1153, 0.0
    %v1205 = vmax.f32 %v1155, 0.0
    %v1206 = vmax.f32 %v1196, 0.0
    %v1207 = vmax.f32 %v1198, 0.0
    %v1208 = vmax.f32 %v1157, 0.0
    %v1209 = vmax.f32 %v1159, 0.0
    %v1210 = vmax.f32 %v1200, 0.0
    %v1211 = vmax.f32 %v1202, 0.0
    %v1212 = vpack.c.bf16 %v1208, %v1204
    %v1213 = vpack.c.bf16 %v1209, %v1205
    %v1214 = vpack.c.bf16 %v1210, %v1206
    %v1215 = vpack.c.bf16 %v1211, %v1207
    %v1216 = vld [vmem:[%s7] sm:$0xff]
    %v1217 = vld [vmem:[%s7 + $0x8] sm:$0xff]
    %v1218 = vld [vmem:[%s7 + $0x10] sm:$0xff]
    %v1219 = vld [vmem:[%s7 + $0x18] sm:$0xff]
    %v1220 = vld [vmem:[%s7 + $0x20] sm:$0xff]
    %v1221 = vld [vmem:[%s7 + $0x28] sm:$0xff]
    %v1222 = vld [vmem:[%s7 + $0x30] sm:$0xff]
    %v1223 = vld [vmem:[%s7 + $0x38] sm:$0xff]
    %v1224 = vld [vmem:[%s7 + $0x40] sm:$0xff]
    %v1225 = vld [vmem:[%s7 + $0x48] sm:$0xff]
    %v1226 = vld [vmem:[%s7 + $0x50] sm:$0xff]
    %v1227 = vld [vmem:[%s7 + $0x58] sm:$0xff]
    %v1228 = vld [vmem:[%s7 + $0x60] sm:$0xff]
    %v1229 = vld [vmem:[%s7 + $0x68] sm:$0xff]
    %v1230 = vld [vmem:[%s7 + $0x70] sm:$0xff]
    %v1231 = vld [vmem:[%s7 + $0x78] sm:$0xff]
    %v1232 = vld [vmem:[%s7 + $0x80] sm:$0xff]
    %v1233 = vld [vmem:[%s7 + $0x88] sm:$0xff]
    %v1234 = vld [vmem:[%s7 + $0x90] sm:$0xff]
    %v1235 = vld [vmem:[%s7 + $0x98] sm:$0xff]
    %v1236 = vld [vmem:[%s7 + $0xa0] sm:$0xff]
    %v1237 = vld [vmem:[%s7 + $0xa8] sm:$0xff]
    %v1238 = vld [vmem:[%s7 + $0xb0] sm:$0xff]
    %v1239 = vld [vmem:[%s7 + $0xb8] sm:$0xff]
    %v1240 = vld [vmem:[%s7 + $0xc0] sm:$0xff]
    %v1241 = vld [vmem:[%s7 + $0xc8] sm:$0xff]
    %v1242 = vld [vmem:[%s7 + $0xd0] sm:$0xff]
    %v1243 = vld [vmem:[%s7 + $0xd8] sm:$0xff]
    %v1244 = vld [vmem:[%s7 + $0xe0] sm:$0xff]
    %v1245 = vld [vmem:[%s7 + $0xe8] sm:$0xff]
    %v1246 = vld [vmem:[%s7 + $0xf0] sm:$0xff]
    %v1247 = vld [vmem:[%s7 + $0xf8] sm:$0xff]
    %v1248 = vld [vmem:[%s7 + $0x100] sm:$0xff]
    %v1249 = vld [vmem:[%s7 + $0x108] sm:$0xff]
    %v1250 = vld [vmem:[%s7 + $0x110] sm:$0xff]
    %v1251 = vld [vmem:[%s7 + $0x118] sm:$0xff]
    %v1252 = vld [vmem:[%s7 + $0x120] sm:$0xff]
    %v1253 = vld [vmem:[%s7 + $0x128] sm:$0xff]
    %v1254 = vld [vmem:[%s7 + $0x130] sm:$0xff]
    %v1255 = vld [vmem:[%s7 + $0x138] sm:$0xff]
    %v1256 = vld [vmem:[%s7 + $0x140] sm:$0xff]
    %v1257 = vld [vmem:[%s7 + $0x148] sm:$0xff]
    %v1258 = vld [vmem:[%s7 + $0x150] sm:$0xff]
    %v1259 = vld [vmem:[%s7 + $0x158] sm:$0xff]
    %v1260 = vld [vmem:[%s7 + $0x160] sm:$0xff]
    %v1261 = vld [vmem:[%s7 + $0x168] sm:$0xff]
    %v1262 = vld [vmem:[%s7 + $0x170] sm:$0xff]
    %v1263 = vld [vmem:[%s7 + $0x178] sm:$0xff]
    %v1264 = vld [vmem:[%s7 + $0x180] sm:$0xff]
    %v1265 = vld [vmem:[%s7 + $0x188] sm:$0xff]
    %v1266 = vld [vmem:[%s7 + $0x190] sm:$0xff]
    %v1267 = vld [vmem:[%s7 + $0x198] sm:$0xff]
    %v1268 = vld [vmem:[%s7 + $0x1a0] sm:$0xff]
    %v1269 = vld [vmem:[%s7 + $0x1a8] sm:$0xff]
    %v1270 = vld [vmem:[%s7 + $0x1b0] sm:$0xff]
    %v1271 = vld [vmem:[%s7 + $0x1b8] sm:$0xff]
    %v1272 = vld [vmem:[%s7 + $0x1c0] sm:$0xff]
    %v1273 = vld [vmem:[%s7 + $0x1c8] sm:$0xff]
    %v1274 = vld [vmem:[%s7 + $0x1d0] sm:$0xff]
    %v1275 = vld [vmem:[%s7 + $0x1d8] sm:$0xff]
    %v1276 = vld [vmem:[%s7 + $0x1e0] sm:$0xff]
    %v1277 = vld [vmem:[%s7 + $0x1e8] sm:$0xff]
    %v1278 = vld [vmem:[%s7 + $0x1f0] sm:$0xff]
    %v1279 = vld [vmem:[%s7 + $0x1f8] sm:$0xff]
    %v1280 = vld [vmem:[%s8] sm:$0x3]
    %v1282 = vlaneseq
    %v1283 = vshrl.u32 %v1282, 7
    %v1284 = vsub.s32 0, %v1283
    %v1285 = vrot.slane %v1280, %v1284
    %v1286 = vlaneseq
    %v1287 = vshrl.u32 %v1286, 7
    %v1288 = vsub.s32 1, %v1287
    %v1289 = vrot.slane %v1280, %v1288
    %v1356 = vunpack.c.l.b16 %v1216
    %v1357 = vunpack.c.h.b16 %v1216
    %v1358 = vunpack.c.l.b16 %v1217
    %v1359 = vunpack.c.h.b16 %v1217
    %v1360 = vunpack.c.l.b16 %v1218
    %v1361 = vunpack.c.h.b16 %v1218
    %v1362 = vunpack.c.l.b16 %v1219
    %v1363 = vunpack.c.h.b16 %v1219
    %v1364 = vunpack.c.l.b16 %v1220
    %v1365 = vunpack.c.h.b16 %v1220
    %v1366 = vunpack.c.l.b16 %v1221
    %v1367 = vunpack.c.h.b16 %v1221
    %v1368 = vunpack.c.l.b16 %v1222
    %v1369 = vunpack.c.h.b16 %v1222
    %v1370 = vunpack.c.l.b16 %v1223
    %v1371 = vunpack.c.h.b16 %v1223
    %v1372 = vunpack.c.l.b16 %v1224
    %v1373 = vunpack.c.h.b16 %v1224
    %v1374 = vunpack.c.l.b16 %v1225
    %v1375 = vunpack.c.h.b16 %v1225
    %v1376 = vunpack.c.l.b16 %v1226
    %v1377 = vunpack.c.h.b16 %v1226
    %v1378 = vunpack.c.l.b16 %v1227
    %v1379 = vunpack.c.h.b16 %v1227
    %v1380 = vunpack.c.l.b16 %v1228
    %v1381 = vunpack.c.h.b16 %v1228
    %v1382 = vunpack.c.l.b16 %v1229
    %v1383 = vunpack.c.h.b16 %v1229
    %v1384 = vunpack.c.l.b16 %v1230
    %v1385 = vunpack.c.h.b16 %v1230
    %v1386 = vunpack.c.l.b16 %v1231
    %v1387 = vunpack.c.h.b16 %v1231
    %v1388 = vunpack.c.l.b16 %v1232
    %v1389 = vunpack.c.h.b16 %v1232
    %v1390 = vunpack.c.l.b16 %v1233
    %v1391 = vunpack.c.h.b16 %v1233
    %v1392 = vunpack.c.l.b16 %v1234
    %v1393 = vunpack.c.h.b16 %v1234
    %v1394 = vunpack.c.l.b16 %v1235
    %v1395 = vunpack.c.h.b16 %v1235
    %v1396 = vunpack.c.l.b16 %v1236
    %v1397 = vunpack.c.h.b16 %v1236
    %v1398 = vunpack.c.l.b16 %v1237
    %v1399 = vunpack.c.h.b16 %v1237
    %v1400 = vunpack.c.l.b16 %v1238
    %v1401 = vunpack.c.h.b16 %v1238
    %v1402 = vunpack.c.l.b16 %v1239
    %v1403 = vunpack.c.h.b16 %v1239
    %v1404 = vunpack.c.l.b16 %v1240
    %v1405 = vunpack.c.h.b16 %v1240
    %v1406 = vunpack.c.l.b16 %v1241
    %v1407 = vunpack.c.h.b16 %v1241
    %v1408 = vunpack.c.l.b16 %v1242
    %v1409 = vunpack.c.h.b16 %v1242
    %v1410 = vunpack.c.l.b16 %v1243
    %v1411 = vunpack.c.h.b16 %v1243
    %v1412 = vunpack.c.l.b16 %v1244
    %v1413 = vunpack.c.h.b16 %v1244
    %v1414 = vunpack.c.l.b16 %v1245
    %v1415 = vunpack.c.h.b16 %v1245
    %v1416 = vunpack.c.l.b16 %v1246
    %v1417 = vunpack.c.h.b16 %v1246
    %v1418 = vunpack.c.l.b16 %v1247
    %v1419 = vunpack.c.h.b16 %v1247
    %v1420 = vunpack.c.l.b16 %v1248
    %v1421 = vunpack.c.h.b16 %v1248
    %v1422 = vunpack.c.l.b16 %v1249
    %v1423 = vunpack.c.h.b16 %v1249
    %v1424 = vunpack.c.l.b16 %v1250
    %v1425 = vunpack.c.h.b16 %v1250
    %v1426 = vunpack.c.l.b16 %v1251
    %v1427 = vunpack.c.h.b16 %v1251
    %v1428 = vunpack.c.l.b16 %v1252
    %v1429 = vunpack.c.h.b16 %v1252
    %v1430 = vunpack.c.l.b16 %v1253
    %v1431 = vunpack.c.h.b16 %v1253
    %v1432 = vunpack.c.l.b16 %v1254
    %v1433 = vunpack.c.h.b16 %v1254
    %v1434 = vunpack.c.l.b16 %v1255
    %v1435 = vunpack.c.h.b16 %v1255
    %v1436 = vunpack.c.l.b16 %v1256
    %v1437 = vunpack.c.h.b16 %v1256
    %v1438 = vunpack.c.l.b16 %v1257
    %v1439 = vunpack.c.h.b16 %v1257
    %v1440 = vunpack.c.l.b16 %v1258
    %v1441 = vunpack.c.h.b16 %v1258
    %v1442 = vunpack.c.l.b16 %v1259
    %v1443 = vunpack.c.h.b16 %v1259
    %v1444 = vunpack.c.l.b16 %v1260
    %v1445 = vunpack.c.h.b16 %v1260
    %v1446 = vunpack.c.l.b16 %v1261
    %v1447 = vunpack.c.h.b16 %v1261
    %v1448 = vunpack.c.l.b16 %v1262
    %v1449 = vunpack.c.h.b16 %v1262
    %v1450 = vunpack.c.l.b16 %v1263
    %v1451 = vunpack.c.h.b16 %v1263
    %v1452 = vunpack.c.l.b16 %v1264
    %v1453 = vunpack.c.h.b16 %v1264
    %v1454 = vunpack.c.l.b16 %v1265
    %v1455 = vunpack.c.h.b16 %v1265
    %v1456 = vunpack.c.l.b16 %v1266
    %v1457 = vunpack.c.h.b16 %v1266
    %v1458 = vunpack.c.l.b16 %v1267
    %v1459 = vunpack.c.h.b16 %v1267
    %v1460 = vunpack.c.l.b16 %v1268
    %v1461 = vunpack.c.h.b16 %v1268
    %v1462 = vunpack.c.l.b16 %v1269
    %v1463 = vunpack.c.h.b16 %v1269
    %v1464 = vunpack.c.l.b16 %v1270
    %v1465 = vunpack.c.h.b16 %v1270
    %v1466 = vunpack.c.l.b16 %v1271
    %v1467 = vunpack.c.h.b16 %v1271
    %v1468 = vunpack.c.l.b16 %v1272
    %v1469 = vunpack.c.h.b16 %v1272
    %v1470 = vunpack.c.l.b16 %v1273
    %v1471 = vunpack.c.h.b16 %v1273
    %v1472 = vunpack.c.l.b16 %v1274
    %v1473 = vunpack.c.h.b16 %v1274
    %v1474 = vunpack.c.l.b16 %v1275
    %v1475 = vunpack.c.h.b16 %v1275
    %v1476 = vunpack.c.l.b16 %v1276
    %v1477 = vunpack.c.h.b16 %v1276
    %v1478 = vunpack.c.l.b16 %v1277
    %v1479 = vunpack.c.h.b16 %v1277
    %v1480 = vunpack.c.l.b16 %v1278
    %v1481 = vunpack.c.h.b16 %v1278
    %v1482 = vunpack.c.l.b16 %v1279
    %v1483 = vunpack.c.h.b16 %v1279
    %v1484 = vpack.c.b16 %v1358, %v1356
    %v1485 = vpack.c.b16 %v1359, %v1357
    %v1486 = vpack.c.b16 %v1362, %v1360
    %v1487 = vpack.c.b16 %v1363, %v1361
    %v1488 = vpack.c.b16 %v1366, %v1364
    %v1489 = vpack.c.b16 %v1367, %v1365
    %v1490 = vpack.c.b16 %v1370, %v1368
    %v1491 = vpack.c.b16 %v1371, %v1369
    %v1492 = vpack.c.b16 %v1374, %v1372
    %v1493 = vpack.c.b16 %v1375, %v1373
    %v1494 = vpack.c.b16 %v1378, %v1376
    %v1495 = vpack.c.b16 %v1379, %v1377
    %v1496 = vpack.c.b16 %v1382, %v1380
    %v1497 = vpack.c.b16 %v1383, %v1381
    %v1498 = vpack.c.b16 %v1386, %v1384
    %v1499 = vpack.c.b16 %v1387, %v1385
    %v1500 = vpack.c.b16 %v1390, %v1388
    %v1501 = vpack.c.b16 %v1391, %v1389
    %v1502 = vpack.c.b16 %v1394, %v1392
    %v1503 = vpack.c.b16 %v1395, %v1393
    %v1504 = vpack.c.b16 %v1398, %v1396
    %v1505 = vpack.c.b16 %v1399, %v1397
    %v1506 = vpack.c.b16 %v1402, %v1400
    %v1507 = vpack.c.b16 %v1403, %v1401
    %v1508 = vpack.c.b16 %v1406, %v1404
    %v1509 = vpack.c.b16 %v1407, %v1405
    %v1510 = vpack.c.b16 %v1410, %v1408
    %v1511 = vpack.c.b16 %v1411, %v1409
    %v1512 = vpack.c.b16 %v1414, %v1412
    %v1513 = vpack.c.b16 %v1415, %v1413
    %v1514 = vpack.c.b16 %v1418, %v1416
    %v1515 = vpack.c.b16 %v1419, %v1417
    %v1516 = vpack.c.b16 %v1422, %v1420
    %v1517 = vpack.c.b16 %v1423, %v1421
    %v1518 = vpack.c.b16 %v1426, %v1424
    %v1519 = vpack.c.b16 %v1427, %v1425
    %v1520 = vpack.c.b16 %v1430, %v1428
    %v1521 = vpack.c.b16 %v1431, %v1429
    %v1522 = vpack.c.b16 %v1434, %v1432
    %v1523 = vpack.c.b16 %v1435, %v1433
    %v1524 = vpack.c.b16 %v1438, %v1436
    %v1525 = vpack.c.b16 %v1439, %v1437
    %v1526 = vpack.c.b16 %v1442, %v1440
    %v1527 = vpack.c.b16 %v1443, %v1441
    %v1528 = vpack.c.b16 %v1446, %v1444
    %v1529 = vpack.c.b16 %v1447, %v1445
    %v1530 = vpack.c.b16 %v1450, %v1448
    %v1531 = vpack.c.b16 %v1451, %v1449
    %v1532 = vpack.c.b16 %v1454, %v1452
    %v1533 = vpack.c.b16 %v1455, %v1453
    %v1534 = vpack.c.b16 %v1458, %v1456
    %v1535 = vpack.c.b16 %v1459, %v1457
    %v1536 = vpack.c.b16 %v1462, %v1460
    %v1537 = vpack.c.b16 %v1463, %v1461
    %v1538 = vpack.c.b16 %v1466, %v1464
    %v1539 = vpack.c.b16 %v1467, %v1465
    %v1540 = vpack.c.b16 %v1470, %v1468
    %v1541 = vpack.c.b16 %v1471, %v1469
    %v1542 = vpack.c.b16 %v1474, %v1472
    %v1543 = vpack.c.b16 %v1475, %v1473
    %v1544 = vpack.c.b16 %v1478, %v1476
    %v1545 = vpack.c.b16 %v1479, %v1477
    %v1546 = vpack.c.b16 %v1482, %v1480
    %v1547 = vpack.c.b16 %v1483, %v1481
    %1612 = vmatprep.subr.bf16.mxu0 %v1499
    %1613 = vmatpush1.bf16.msra.mxu0 %v1498
    %1614 = vmatprep.subr.bf16.mxu0 %v1497
    %1615 = vmatpush1.bf16.msra.mxu0 %v1496
    %1616 = vmatprep.subr.bf16.mxu0 %v1495
    %1617 = vmatpush1.bf16.msra.mxu0 %v1494
    %1618 = vmatprep.subr.bf16.mxu0 %v1493
    %1619 = vmatpush1.bf16.msra.mxu0 %v1492
    %1620 = vmatprep.subr.bf16.mxu0 %v1491
    %1621 = vmatpush1.bf16.msra.mxu0 %v1490
    %1622 = vmatprep.subr.bf16.mxu0 %v1489
    %1623 = vmatpush1.bf16.msra.mxu0 %v1488
    %1624 = vmatprep.subr.bf16.mxu0 %v1487
    %1625 = vmatpush1.bf16.msra.mxu0 %v1486
    %1626 = vmatprep.subr.bf16.mxu0 %v1485
    %1627 = vmatpush1.bf16.msra.mxu0 %v1484
    %1628 = vmatprep.subr.bf16.mxu0 %v1515
    %1629 = vmatpush2.bf16.msra.mxu0 %v1514
    %1630 = vmatprep.subr.bf16.mxu0 %v1513
    %1631 = vmatpush2.bf16.msra.mxu0 %v1512
    %1632 = vmatprep.subr.bf16.mxu0 %v1511
    %1633 = vmatpush2.bf16.msra.mxu0 %v1510
    %1634 = vmatprep.subr.bf16.mxu0 %v1509
    %1635 = vmatpush2.bf16.msra.mxu0 %v1508
    %1636 = vmatprep.subr.bf16.mxu0 %v1507
    %1637 = vmatpush2.bf16.msra.mxu0 %v1506
    %1638 = vmatprep.subr.bf16.mxu0 %v1505
    %1639 = vmatpush2.bf16.msra.mxu0 %v1504
    %1640 = vmatprep.subr.bf16.mxu0 %v1503
    %1641 = vmatpush2.bf16.msra.mxu0 %v1502
    %1642 = vmatprep.subr.bf16.mxu0 %v1501
    %1643 = vmatpush2.bf16.msra.mxu0 %v1500
    %1644 = vmatprep.mubr.bf16.mxu0 %v1213
    %1645 = vmatmul.mubr.bf16.gmra.mxu0 %v1212
    %v1646 = vpop.f32.mrf.mxu0
    %v1647 = vadd.f32 %v1285, %v1646
    %v1648 = vpop.f32.mrf.mxu0
    %v1649 = vadd.f32 %v1289, %v1648
    %v1650 = vpop.f32.mrf.mxu0
    %v1651 = vadd.f32 %v1285, %v1650
    %v1652 = vpop.f32.mrf.mxu0
    %v1653 = vadd.f32 %v1289, %v1652
    %1654 = vdwg.mxu0
    %1655 = vmatprep.subr.bf16.mxu0 %v1531
    %1656 = vmatpush1.bf16.msra.mxu0 %v1530
    %1657 = vmatprep.subr.bf16.mxu0 %v1529
    %1658 = vmatpush1.bf16.msra.mxu0 %v1528
    %1659 = vmatprep.subr.bf16.mxu0 %v1527
    %1660 = vmatpush1.bf16.msra.mxu0 %v1526
    %1661 = vmatprep.subr.bf16.mxu0 %v1525
    %1662 = vmatpush1.bf16.msra.mxu0 %v1524
    %1663 = vmatprep.subr.bf16.mxu0 %v1523
    %1664 = vmatpush1.bf16.msra.mxu0 %v1522
    %1665 = vmatprep.subr.bf16.mxu0 %v1521
    %1666 = vmatpush1.bf16.msra.mxu0 %v1520
    %1667 = vmatprep.subr.bf16.mxu0 %v1519
    %1668 = vmatpush1.bf16.msra.mxu0 %v1518
    %1669 = vmatprep.subr.bf16.mxu0 %v1517
    %1670 = vmatpush1.bf16.msra.mxu0 %v1516
    %1671 = vmatprep.subr.bf16.mxu0 %v1547
    %1672 = vmatpush2.bf16.msra.mxu0 %v1546
    %1673 = vmatprep.subr.bf16.mxu0 %v1545
    %1674 = vmatpush2.bf16.msra.mxu0 %v1544
    %1675 = vmatprep.subr.bf16.mxu0 %v1543
    %1676 = vmatpush2.bf16.msra.mxu0 %v1542
    %1677 = vmatprep.subr.bf16.mxu0 %v1541
    %1678 = vmatpush2.bf16.msra.mxu0 %v1540
    %1679 = vmatprep.subr.bf16.mxu0 %v1539
    %1680 = vmatpush2.bf16.msra.mxu0 %v1538
    %1681 = vmatprep.subr.bf16.mxu0 %v1537
    %1682 = vmatpush2.bf16.msra.mxu0 %v1536
    %1683 = vmatprep.subr.bf16.mxu0 %v1535
    %1684 = vmatpush2.bf16.msra.mxu0 %v1534
    %1685 = vmatprep.subr.bf16.mxu0 %v1533
    %1686 = vmatpush2.bf16.msra.mxu0 %v1532
    %1687 = vmatprep.mubr.bf16.mxu0 %v1215
    %1688 = vmatmul.mubr.bf16.gmra.mxu0 %v1214
    %v1689 = vpop.f32.mrf.mxu0
    %v1690 = vadd.f32 %v1647, %v1689
    %v1691 = vpop.f32.mrf.mxu0
    %v1692 = vadd.f32 %v1649, %v1691
    %v1693 = vpop.f32.mrf.mxu0
    %v1694 = vadd.f32 %v1651, %v1693
    %v1695 = vpop.f32.mrf.mxu0
    %v1696 = vadd.f32 %v1653, %v1695
    %1697 = vdwg.mxu0
    %1698 = vst [vmem:[#allocation4] sm:$0xff] %v1690
    %1699 = vst [vmem:[#allocation4 + $0x8] sm:$0xff] %v1692
    %1700 = vst [vmem:[#allocation4 + $0x10] sm:$0xff] %v1694
    %1701 = vst [vmem:[#allocation4 + $0x18] sm:$0xff] %v1696
    %v1702 = vld [vmem:[%s9] sm:$0xff]
    %v1703 = vld [vmem:[%s9 + $0x8] sm:$0xff]
    %v1704 = vld [vmem:[%s9 + $0x10] sm:$0xff]
    %v1705 = vld [vmem:[%s9 + $0x18] sm:$0xff]
    %v1706 = vld [vmem:[%s9 + $0x20] sm:$0xff]
    %v1707 = vld [vmem:[%s9 + $0x28] sm:$0xff]
    %v1708 = vld [vmem:[%s9 + $0x30] sm:$0xff]
    %v1709 = vld [vmem:[%s9 + $0x38] sm:$0xff]
    %v1710 = vld [vmem:[%s9 + $0x40] sm:$0xff]
    %v1711 = vld [vmem:[%s9 + $0x48] sm:$0xff]
    %v1712 = vld [vmem:[%s9 + $0x50] sm:$0xff]
    %v1713 = vld [vmem:[%s9 + $0x58] sm:$0xff]
    %v1714 = vld [vmem:[%s9 + $0x60] sm:$0xff]
    %v1715 = vld [vmem:[%s9 + $0x68] sm:$0xff]
    %v1716 = vld [vmem:[%s9 + $0x70] sm:$0xff]
    %v1717 = vld [vmem:[%s9 + $0x78] sm:$0xff]
    %v1718 = vld [vmem:[%s9 + $0x80] sm:$0xff]
    %v1719 = vld [vmem:[%s9 + $0x88] sm:$0xff]
    %v1720 = vld [vmem:[%s9 + $0x90] sm:$0xff]
    %v1721 = vld [vmem:[%s9 + $0x98] sm:$0xff]
    %v1722 = vld [vmem:[%s9 + $0xa0] sm:$0xff]
    %v1723 = vld [vmem:[%s9 + $0xa8] sm:$0xff]
    %v1724 = vld [vmem:[%s9 + $0xb0] sm:$0xff]
    %v1725 = vld [vmem:[%s9 + $0xb8] sm:$0xff]
    %v1726 = vld [vmem:[%s9 + $0xc0] sm:$0xff]
    %v1727 = vld [vmem:[%s9 + $0xc8] sm:$0xff]
    %v1728 = vld [vmem:[%s9 + $0xd0] sm:$0xff]
    %v1729 = vld [vmem:[%s9 + $0xd8] sm:$0xff]
    %v1730 = vld [vmem:[%s9 + $0xe0] sm:$0xff]
    %v1731 = vld [vmem:[%s9 + $0xe8] sm:$0xff]
    %v1732 = vld [vmem:[%s9 + $0xf0] sm:$0xff]
    %v1733 = vld [vmem:[%s9 + $0xf8] sm:$0xff]
    %v1734 = vld [vmem:[%s9 + $0x100] sm:$0xff]
    %v1735 = vld [vmem:[%s9 + $0x108] sm:$0xff]
    %v1736 = vld [vmem:[%s9 + $0x110] sm:$0xff]
    %v1737 = vld [vmem:[%s9 + $0x118] sm:$0xff]
    %v1738 = vld [vmem:[%s9 + $0x120] sm:$0xff]
    %v1739 = vld [vmem:[%s9 + $0x128] sm:$0xff]
    %v1740 = vld [vmem:[%s9 + $0x130] sm:$0xff]
    %v1741 = vld [vmem:[%s9 + $0x138] sm:$0xff]
    %v1742 = vld [vmem:[%s9 + $0x140] sm:$0xff]
    %v1743 = vld [vmem:[%s9 + $0x148] sm:$0xff]
    %v1744 = vld [vmem:[%s9 + $0x150] sm:$0xff]
    %v1745 = vld [vmem:[%s9 + $0x158] sm:$0xff]
    %v1746 = vld [vmem:[%s9 + $0x160] sm:$0xff]
    %v1747 = vld [vmem:[%s9 + $0x168] sm:$0xff]
    %v1748 = vld [vmem:[%s9 + $0x170] sm:$0xff]
    %v1749 = vld [vmem:[%s9 + $0x178] sm:$0xff]
    %v1750 = vld [vmem:[%s10] sm:$0x3f]
    %v1752 = vlaneseq
    %v1753 = vshrl.u32 %v1752, 7
    %v1754 = vsub.s32 0, %v1753
    %v1755 = vrot.slane %v1750, %v1754
    %v1756 = vlaneseq
    %v1757 = vshrl.u32 %v1756, 7
    %v1758 = vsub.s32 1, %v1757
    %v1759 = vrot.slane %v1750, %v1758
    %v1760 = vlaneseq
    %v1761 = vshrl.u32 %v1760, 7
    %v1762 = vsub.s32 2, %v1761
    %v1763 = vrot.slane %v1750, %v1762
    %v1764 = vlaneseq
    %v1765 = vshrl.u32 %v1764, 7
    %v1766 = vsub.s32 3, %v1765
    %v1767 = vrot.slane %v1750, %v1766
    %v1768 = vlaneseq
    %v1769 = vshrl.u32 %v1768, 7
    %v1770 = vsub.s32 4, %v1769
    %v1771 = vrot.slane %v1750, %v1770
    %v1772 = vlaneseq
    %v1773 = vshrl.u32 %v1772, 7
    %v1774 = vsub.s32 5, %v1773
    %v1775 = vrot.slane %v1750, %v1774
    %v1830 = vunpack.c.l.b16 %v1702
    %v1831 = vunpack.c.h.b16 %v1702
    %v1832 = vunpack.c.l.b16 %v1703
    %v1833 = vunpack.c.h.b16 %v1703
    %v1834 = vunpack.c.l.b16 %v1704
    %v1835 = vunpack.c.h.b16 %v1704
    %v1836 = vunpack.c.l.b16 %v1705
    %v1837 = vunpack.c.h.b16 %v1705
    %v1838 = vunpack.c.l.b16 %v1706
    %v1839 = vunpack.c.h.b16 %v1706
    %v1840 = vunpack.c.l.b16 %v1707
    %v1841 = vunpack.c.h.b16 %v1707
    %v1842 = vunpack.c.l.b16 %v1708
    %v1843 = vunpack.c.h.b16 %v1708
    %v1844 = vunpack.c.l.b16 %v1709
    %v1845 = vunpack.c.h.b16 %v1709
    %v1846 = vunpack.c.l.b16 %v1710
    %v1847 = vunpack.c.h.b16 %v1710
    %v1848 = vunpack.c.l.b16 %v1711
    %v1849 = vunpack.c.h.b16 %v1711
    %v1850 = vunpack.c.l.b16 %v1712
    %v1851 = vunpack.c.h.b16 %v1712
    %v1852 = vunpack.c.l.b16 %v1713
    %v1853 = vunpack.c.h.b16 %v1713
    %v1854 = vunpack.c.l.b16 %v1714
    %v1855 = vunpack.c.h.b16 %v1714
    %v1856 = vunpack.c.l.b16 %v1715
    %v1857 = vunpack.c.h.b16 %v1715
    %v1858 = vunpack.c.l.b16 %v1716
    %v1859 = vunpack.c.h.b16 %v1716
    %v1860 = vunpack.c.l.b16 %v1717
    %v1861 = vunpack.c.h.b16 %v1717
    %v1862 = vunpack.c.l.b16 %v1718
    %v1863 = vunpack.c.h.b16 %v1718
    %v1864 = vunpack.c.l.b16 %v1719
    %v1865 = vunpack.c.h.b16 %v1719
    %v1866 = vunpack.c.l.b16 %v1720
    %v1867 = vunpack.c.h.b16 %v1720
    %v1868 = vunpack.c.l.b16 %v1721
    %v1869 = vunpack.c.h.b16 %v1721
    %v1870 = vunpack.c.l.b16 %v1722
    %v1871 = vunpack.c.h.b16 %v1722
    %v1872 = vunpack.c.l.b16 %v1723
    %v1873 = vunpack.c.h.b16 %v1723
    %v1874 = vunpack.c.l.b16 %v1724
    %v1875 = vunpack.c.h.b16 %v1724
    %v1876 = vunpack.c.l.b16 %v1725
    %v1877 = vunpack.c.h.b16 %v1725
    %v1878 = vunpack.c.l.b16 %v1726
    %v1879 = vunpack.c.h.b16 %v1726
    %v1880 = vunpack.c.l.b16 %v1727
    %v1881 = vunpack.c.h.b16 %v1727
    %v1882 = vunpack.c.l.b16 %v1728
    %v1883 = vunpack.c.h.b16 %v1728
    %v1884 = vunpack.c.l.b16 %v1729
    %v1885 = vunpack.c.h.b16 %v1729
    %v1886 = vunpack.c.l.b16 %v1730
    %v1887 = vunpack.c.h.b16 %v1730
    %v1888 = vunpack.c.l.b16 %v1731
    %v1889 = vunpack.c.h.b16 %v1731
    %v1890 = vunpack.c.l.b16 %v1732
    %v1891 = vunpack.c.h.b16 %v1732
    %v1892 = vunpack.c.l.b16 %v1733
    %v1893 = vunpack.c.h.b16 %v1733
    %v1894 = vunpack.c.l.b16 %v1734
    %v1895 = vunpack.c.h.b16 %v1734
    %v1896 = vunpack.c.l.b16 %v1735
    %v1897 = vunpack.c.h.b16 %v1735
    %v1898 = vunpack.c.l.b16 %v1736
    %v1899 = vunpack.c.h.b16 %v1736
    %v1900 = vunpack.c.l.b16 %v1737
    %v1901 = vunpack.c.h.b16 %v1737
    %v1902 = vunpack.c.l.b16 %v1738
    %v1903 = vunpack.c.h.b16 %v1738
    %v1904 = vunpack.c.l.b16 %v1739
    %v1905 = vunpack.c.h.b16 %v1739
    %v1906 = vunpack.c.l.b16 %v1740
    %v1907 = vunpack.c.h.b16 %v1740
    %v1908 = vunpack.c.l.b16 %v1741
    %v1909 = vunpack.c.h.b16 %v1741
    %v1910 = vunpack.c.l.b16 %v1742
    %v1911 = vunpack.c.h.b16 %v1742
    %v1912 = vunpack.c.l.b16 %v1743
    %v1913 = vunpack.c.h.b16 %v1743
    %v1914 = vunpack.c.l.b16 %v1744
    %v1915 = vunpack.c.h.b16 %v1744
    %v1916 = vunpack.c.l.b16 %v1745
    %v1917 = vunpack.c.h.b16 %v1745
    %v1918 = vunpack.c.l.b16 %v1746
    %v1919 = vunpack.c.h.b16 %v1746
    %v1920 = vunpack.c.l.b16 %v1747
    %v1921 = vunpack.c.h.b16 %v1747
    %v1922 = vunpack.c.l.b16 %v1748
    %v1923 = vunpack.c.h.b16 %v1748
    %v1924 = vunpack.c.l.b16 %v1749
    %v1925 = vunpack.c.h.b16 %v1749
    %v1926 = vpack.c.b16 %v1836, %v1830
    %v1927 = vpack.c.b16 %v1837, %v1831
    %v1928 = vpack.c.b16 %v1838, %v1832
    %v1929 = vpack.c.b16 %v1839, %v1833
    %v1930 = vpack.c.b16 %v1840, %v1834
    %v1931 = vpack.c.b16 %v1841, %v1835
    %v1932 = vpack.c.b16 %v1848, %v1842
    %v1933 = vpack.c.b16 %v1849, %v1843
    %v1934 = vpack.c.b16 %v1850, %v1844
    %v1935 = vpack.c.b16 %v1851, %v1845
    %v1936 = vpack.c.b16 %v1852, %v1846
    %v1937 = vpack.c.b16 %v1853, %v1847
    %v1938 = vpack.c.b16 %v1860, %v1854
    %v1939 = vpack.c.b16 %v1861, %v1855
    %v1940 = vpack.c.b16 %v1862, %v1856
    %v1941 = vpack.c.b16 %v1863, %v1857
    %v1942 = vpack.c.b16 %v1864, %v1858
    %v1943 = vpack.c.b16 %v1865, %v1859
    %v1944 = vpack.c.b16 %v1872, %v1866
    %v1945 = vpack.c.b16 %v1873, %v1867
    %v1946 = vpack.c.b16 %v1874, %v1868
    %v1947 = vpack.c.b16 %v1875, %v1869
    %v1948 = vpack.c.b16 %v1876, %v1870
    %v1949 = vpack.c.b16 %v1877, %v1871
    %v1950 = vpack.c.b16 %v1884, %v1878
    %v1951 = vpack.c.b16 %v1885, %v1879
    %v1952 = vpack.c.b16 %v1886, %v1880
    %v1953 = vpack.c.b16 %v1887, %v1881
    %v1954 = vpack.c.b16 %v1888, %v1882
    %v1955 = vpack.c.b16 %v1889, %v1883
    %v1956 = vpack.c.b16 %v1896, %v1890
    %v1957 = vpack.c.b16 %v1897, %v1891
    %v1958 = vpack.c.b16 %v1898, %v1892
    %v1959 = vpack.c.b16 %v1899, %v1893
    %v1960 = vpack.c.b16 %v1900, %v1894
    %v1961 = vpack.c.b16 %v1901, %v1895
    %v1962 = vpack.c.b16 %v1908, %v1902
    %v1963 = vpack.c.b16 %v1909, %v1903
    %v1964 = vpack.c.b16 %v1910, %v1904
    %v1965 = vpack.c.b16 %v1911, %v1905
    %v1966 = vpack.c.b16 %v1912, %v1906
    %v1967 = vpack.c.b16 %v1913, %v1907
    %v1968 = vpack.c.b16 %v1920, %v1914
    %v1969 = vpack.c.b16 %v1921, %v1915
    %v1970 = vpack.c.b16 %v1922, %v1916
    %v1971 = vpack.c.b16 %v1923, %v1917
    %v1972 = vpack.c.b16 %v1924, %v1918
    %v1973 = vpack.c.b16 %v1925, %v1919
    %2022 = vmatprep.subr.bf16.mxu0 %v1969
    %2023 = vmatpush1.bf16.msra.mxu0 %v1968
    %2024 = vmatprep.subr.bf16.mxu0 %v1963
    %2025 = vmatpush1.bf16.msra.mxu0 %v1962
    %2026 = vmatprep.subr.bf16.mxu0 %v1957
    %2027 = vmatpush1.bf16.msra.mxu0 %v1956
    %2028 = vmatprep.subr.bf16.mxu0 %v1951
    %2029 = vmatpush1.bf16.msra.mxu0 %v1950
    %2030 = vmatprep.subr.bf16.mxu0 %v1945
    %2031 = vmatpush1.bf16.msra.mxu0 %v1944
    %2032 = vmatprep.subr.bf16.mxu0 %v1939
    %2033 = vmatpush1.bf16.msra.mxu0 %v1938
    %2034 = vmatprep.subr.bf16.mxu0 %v1933
    %2035 = vmatpush1.bf16.msra.mxu0 %v1932
    %2036 = vmatprep.subr.bf16.mxu0 %v1927
    %2037 = vmatpush1.bf16.msra.mxu0 %v1926
    %2038 = vmatprep.subr.bf16.mxu0 0
    %2039 = vmatpush2.bf16.msra.mxu0 0
    %2040 = vmatprep.subr.bf16.mxu0 0
    %2041 = vmatpush2.bf16.msra.mxu0 0
    %2042 = vmatprep.subr.bf16.mxu0 0
    %2043 = vmatpush2.bf16.msra.mxu0 0
    %2044 = vmatprep.subr.bf16.mxu0 0
    %2045 = vmatpush2.bf16.msra.mxu0 0
    %2046 = vmatprep.subr.bf16.mxu0 0
    %2047 = vmatpush2.bf16.msra.mxu0 0
    %2048 = vmatprep.subr.bf16.mxu0 0
    %2049 = vmatpush2.bf16.msra.mxu0 0
    %2050 = vmatprep.subr.bf16.mxu0 0
    %2051 = vmatpush2.bf16.msra.mxu0 0
    %2052 = vmatprep.subr.bf16.mxu0 0
    %2053 = vmatpush2.bf16.msra.mxu0 0
    %2054 = vmatprep.mubr.bf16.mxu0 0
    %2055 = vmatmul.mubr.bf16.gmra.mxu0 %v903
    %v2056 = vpop.f32.mrf.mxu0
    %v2057 = vadd.f32 %v1755, %v2056
    %v2058 = vpop.f32.mrf.mxu0
    %v2059 = vadd.f32 %v1759, %v2058
    %v2060 = vpop.f32.mrf.mxu0
    %v2061 = vadd.f32 %v1755, %v2060
    %v2062 = vpop.f32.mrf.mxu0
    %v2063 = vadd.f32 %v1759, %v2062
    %2064 = vdwg.mxu0
    %2065 = vmatprep.subr.bf16.mxu0 %v1971
    %2066 = vmatpush1.bf16.msra.mxu0 %v1970
    %2067 = vmatprep.subr.bf16.mxu0 %v1965
    %2068 = vmatpush1.bf16.msra.mxu0 %v1964
    %2069 = vmatprep.subr.bf16.mxu0 %v1959
    %2070 = vmatpush1.bf16.msra.mxu0 %v1958
    %2071 = vmatprep.subr.bf16.mxu0 %v1953
    %2072 = vmatpush1.bf16.msra.mxu0 %v1952
    %2073 = vmatprep.subr.bf16.mxu0 %v1947
    %2074 = vmatpush1.bf16.msra.mxu0 %v1946
    %2075 = vmatprep.subr.bf16.mxu0 %v1941
    %2076 = vmatpush1.bf16.msra.mxu0 %v1940
    %2077 = vmatprep.subr.bf16.mxu0 %v1935
    %2078 = vmatpush1.bf16.msra.mxu0 %v1934
    %2079 = vmatprep.subr.bf16.mxu0 %v1929
    %2080 = vmatpush1.bf16.msra.mxu0 %v1928
    %2081 = vmatprep.subr.bf16.mxu0 0
    %2082 = vmatpush2.bf16.msra.mxu0 0
    %2083 = vmatprep.subr.bf16.mxu0 0
    %2084 = vmatpush2.bf16.msra.mxu0 0
    %2085 = vmatprep.subr.bf16.mxu0 0
    %2086 = vmatpush2.bf16.msra.mxu0 0
    %2087 = vmatprep.subr.bf16.mxu0 0
    %2088 = vmatpush2.bf16.msra.mxu0 0
    %2089 = vmatprep.subr.bf16.mxu0 0
    %2090 = vmatpush2.bf16.msra.mxu0 0
    %2091 = vmatprep.subr.bf16.mxu0 0
    %2092 = vmatpush2.bf16.msra.mxu0 0
    %2093 = vmatprep.subr.bf16.mxu0 0
    %2094 = vmatpush2.bf16.msra.mxu0 0
    %2095 = vmatprep.subr.bf16.mxu0 0
    %2096 = vmatpush2.bf16.msra.mxu0 0
    %2097 = vmatprep.mubr.bf16.mxu0 0
    %2098 = vmatmul.mubr.bf16.gmra.mxu0 %v903
    %v2099 = vpop.f32.mrf.mxu0
    %v2100 = vadd.f32 %v1763, %v2099
    %v2101 = vpop.f32.mrf.mxu0
    %v2102 = vadd.f32 %v1767, %v2101
    %v2103 = vpop.f32.mrf.mxu0
    %v2104 = vadd.f32 %v1763, %v2103
    %v2105 = vpop.f32.mrf.mxu0
    %v2106 = vadd.f32 %v1767, %v2105
    %2107 = vdwg.mxu0
    %2108 = vmatprep.subr.bf16.mxu0 %v1973
    %2109 = vmatpush1.bf16.msra.mxu0 %v1972
    %2110 = vmatprep.subr.bf16.mxu0 %v1967
    %2111 = vmatpush1.bf16.msra.mxu0 %v1966
    %2112 = vmatprep.subr.bf16.mxu0 %v1961
    %2113 = vmatpush1.bf16.msra.mxu0 %v1960
    %2114 = vmatprep.subr.bf16.mxu0 %v1955
    %2115 = vmatpush1.bf16.msra.mxu0 %v1954
    %2116 = vmatprep.subr.bf16.mxu0 %v1949
    %2117 = vmatpush1.bf16.msra.mxu0 %v1948
    %2118 = vmatprep.subr.bf16.mxu0 %v1943
    %2119 = vmatpush1.bf16.msra.mxu0 %v1942
    %2120 = vmatprep.subr.bf16.mxu0 %v1937
    %2121 = vmatpush1.bf16.msra.mxu0 %v1936
    %2122 = vmatprep.subr.bf16.mxu0 %v1931
    %2123 = vmatpush1.bf16.msra.mxu0 %v1930
    %2124 = vmatprep.subr.bf16.mxu0 0
    %2125 = vmatpush2.bf16.msra.mxu0 0
    %2126 = vmatprep.subr.bf16.mxu0 0
    %2127 = vmatpush2.bf16.msra.mxu0 0
    %2128 = vmatprep.subr.bf16.mxu0 0
    %2129 = vmatpush2.bf16.msra.mxu0 0
    %2130 = vmatprep.subr.bf16.mxu0 0
    %2131 = vmatpush2.bf16.msra.mxu0 0
    %2132 = vmatprep.subr.bf16.mxu0 0
    %2133 = vmatpush2.bf16.msra.mxu0 0
    %2134 = vmatprep.subr.bf16.mxu0 0
    %2135 = vmatpush2.bf16.msra.mxu0 0
    %2136 = vmatprep.subr.bf16.mxu0 0
    %2137 = vmatpush2.bf16.msra.mxu0 0
    %2138 = vmatprep.subr.bf16.mxu0 0
    %2139 = vmatpush2.bf16.msra.mxu0 0
    %2140 = vmatprep.mubr.bf16.mxu0 0
    %2141 = vmatmul.mubr.bf16.gmra.mxu0 %v903
    %v2142 = vpop.f32.mrf.mxu0
    %v2143 = vadd.f32 %v1771, %v2142
    %v2144 = vpop.f32.mrf.mxu0
    %v2145 = vadd.f32 %v1775, %v2144
    %v2146 = vpop.f32.mrf.mxu0
    %v2147 = vadd.f32 %v1771, %v2146
    %v2148 = vpop.f32.mrf.mxu0
    %v2149 = vadd.f32 %v1775, %v2148
    %2150 = vdwg.mxu0
    %2151 = vst [vmem:[%s13] sm:$0xff] %v2057
    %2152 = vst [vmem:[%s13 + $0x8] sm:$0xff] %v2059
    %2153 = vst [vmem:[%s13 + $0x10] sm:$0xff] %v2100
    %2154 = vst [vmem:[%s13 + $0x18] sm:$0xff] %v2102
    %2155 = vst [vmem:[%s13 + $0x20] sm:$0xff] %v2143
    %2156 = vst [vmem:[%s13 + $0x28] sm:$0xff] %v2145
    %2157 = vst [vmem:[%s13 + $0x30] sm:$0xff] %v2061
    %2158 = vst [vmem:[%s13 + $0x38] sm:$0xff] %v2063
    %2159 = vst [vmem:[%s13 + $0x40] sm:$0xff] %v2104
    %2160 = vst [vmem:[%s13 + $0x48] sm:$0xff] %v2106
    %2161 = vst [vmem:[%s13 + $0x50] sm:$0xff] %v2147
    %2162 = vst [vmem:[%s13 + $0x58] sm:$0xff] %v2149
    // Predicated region
    $region46: #{forward.9} parent=1 // pred_check
      _
    $region47: #{forward.9} parent=1 // pred_check_branch
      %2164 = sbr.rel (0) target = $region49
    $region48: #{forward.9} parent=1 // pred_region
      %s2166 = ssub.s32 256, 256
      %2167 = vsyncadd [#allocation3], %s2166
      %s2168 = sshll.u32 [#allocation2], 4
      %s2169 = int_to_ptr.vmem [resolvable:$true] %s2168
      %2174 = dma.vmem_to_hbm [thread:$0]  %s2169, 256, %s11, [#allocation3], 128, 128, 8
    $region49: #{forward.9} parent=1 // pred_fallthru
      _
    // Predicated region
    $region50: #{forward.9} parent=1 // pred_check
      _
    $region51: #{forward.9} parent=1 // pred_check_branch
      %2176 = sbr.rel (0) target = $region53
    $region52: #{forward.9} parent=1 // pred_region
      %s2178 = ssub.s32 512, 512
      %2179 = vsyncadd [#allocation5], %s2178
      %s2180 = sshll.u32 [#allocation4], 4
      %s2181 = int_to_ptr.vmem [resolvable:$true] %s2180
      %2186 = dma.vmem_to_hbm [thread:$0]  %s2181, 512, %s12, [#allocation5], 256, 256, 16
    $region53: #{forward.9} parent=1 // pred_fallthru
      _
    // Predicated region
    $region54: #{forward.9} parent=1 // pred_check
      _
    $region55: #{forward.9} parent=1 // pred_check_branch
      %2188 = sbr.rel (0) target = $region57
    $region56: #{forward.9} parent=1 // pred_region
      _
    $region57: #{forward.9} parent=1 // pred_fallthru
      _
    // Predicated region
    $region58: #{forward.9} parent=1 // pred_check
      _
    $region59: #{forward.9} parent=1 // pred_check_branch
      %2190 = sbr.rel (0) target = $region61
    $region60: #{forward.9} parent=1 // pred_region
      %2191 = dma.done [#allocation3], 256
    $region61: #{forward.9} parent=1 // pred_fallthru
      _
    // Predicated region
    $region62: #{forward.9} parent=1 // pred_check
      _
    $region63: #{forward.9} parent=1 // pred_check_branch
      %2193 = sbr.rel (0) target = $region65
    $region64: #{forward.9} parent=1 // pred_region
      %2194 = dma.done [#allocation5], 512
    $region65: #{forward.9} parent=1 // pred_fallthru
      _
    // Predicated region
    $region66: #{forward.9} parent=1 // pred_check
      _
    $region67: #{forward.9} parent=1 // pred_check_branch
      %2196 = sbr.rel (0) target = $region69
    $region68: #{forward.9} parent=1 // pred_region
      _
    $region69: #{forward.9} parent=1 // pred_fallthru
      _
    %2197 = vsyncpa [#allocation3], 1
    %2198 = vsyncpa [#allocation5], 1

// kernel: forward.8
$region0: #{forward.8}
  #allocation0 [shape = 'u32[]', space=smem, size = 0x4, offset = 0x4, fixed_abs, tag = 'smem constant byte address 0x4 - core index']
  #allocation1 [shape = 'u32[144,128]{1,0:T(1,128)}', space=vmem, size = 0x12000, scoped, tag = 'internal scratch']
  %s0 = inlined_call_operand.vmem [shape: bf16[256,1152], index: 0, kind: input, shape index: {}]
  %s1 = inlined_call_operand.vmem [shape: bf16[1152,128], index: 1, kind: input, shape index: {}]
  %s2 = inlined_call_operand.vmem [shape: f32[1,128], index: 2, kind: input, shape index: {}]
  %s3 = inlined_call_operand.vmem [shape: bf16[128,256], index: 3, kind: input, shape index: {}]
  %s4 = inlined_call_operand.vmem [shape: f32[1,256], index: 4, kind: input, shape index: {}]
  %s5 = inlined_call_operand.vmem [shape: f32[16,256], index: 5, kind: output, shape index: {}]
  %s6 = sld [smem:[#allocation0]]
  $region30: #{forward.8} parent=0
    _
  %s8 = ssub.s32 1, %s6
  %s9 = scalar_select 0, %s8, %s6
  // Predicated region
  $region2: #{forward.8} parent=0 // pred_check
    _
  $region3: #{forward.8} parent=0 // pred_check_branch
    %11 = sbr.rel (0) target = $region5
  $region4: #{forward.8} parent=0 // pred_region
    _
  $region5: #{forward.8} parent=0 // pred_fallthru
    _
  // Predicated region
  $region6: #{forward.8} parent=0 // pred_check
    _
  $region7: #{forward.8} parent=0 // pred_check_branch
    %13 = sbr.rel (0) target = $region9
  $region8: #{forward.8} parent=0 // pred_region
    _
  $region9: #{forward.8} parent=0 // pred_fallthru
    _
  // Predicated region
  $region10: #{forward.8} parent=0 // pred_check
    _
  $region11: #{forward.8} parent=0 // pred_check_branch
    %15 = sbr.rel (0) target = $region13
  $region12: #{forward.8} parent=0 // pred_region
    _
  $region13: #{forward.8} parent=0 // pred_fallthru
    _
  // Predicated region
  $region14: #{forward.8} parent=0 // pred_check
    _
  $region15: #{forward.8} parent=0 // pred_check_branch
    %17 = sbr.rel (0) target = $region17
  $region16: #{forward.8} parent=0 // pred_region
    _
  $region17: #{forward.8} parent=0 // pred_fallthru
    _
  // Predicated region
  $region18: #{forward.8} parent=0 // pred_check
    _
  $region19: #{forward.8} parent=0 // pred_check_branch
    %19 = sbr.rel (0) target = $region21
  $region20: #{forward.8} parent=0 // pred_region
    _
  $region21: #{forward.8} parent=0 // pred_fallthru
    _
  %v21 = vld [vmem:[%s0] sm:$0xff]
  %v22 = vld [vmem:[%s0 + $0x8] sm:$0xff]
  %v23 = vld [vmem:[%s0 + $0x10] sm:$0xff]
  %v24 = vld [vmem:[%s0 + $0x18] sm:$0xff]
  %v25 = vld [vmem:[%s0 + $0x20] sm:$0xf]
  %v26 = vld [vmem:[%s0 + $0x24] sm:$0xff]
  %v27 = vld [vmem:[%s0 + $0x2c] sm:$0xff]
  %v28 = vld [vmem:[%s0 + $0x34] sm:$0xff]
  %v29 = vld [vmem:[%s0 + $0x3c] sm:$0xff]
  %v30 = vld [vmem:[%s0 + $0x44] sm:$0xf]
  %v31 = vld [vmem:[%s0 + $0x48] sm:$0xff]
  %v32 = vld [vmem:[%s0 + $0x50] sm:$0xff]
  %v33 = vld [vmem:[%s0 + $0x58] sm:$0xff]
  %v34 = vld [vmem:[%s0 + $0x60] sm:$0xff]
  %v35 = vld [vmem:[%s0 + $0x68] sm:$0xf]
  %v36 = vld [vmem:[%s0 + $0x6c] sm:$0xff]
  %v37 = vld [vmem:[%s0 + $0x74] sm:$0xff]
  %v38 = vld [vmem:[%s0 + $0x7c] sm:$0xff]
  %v39 = vld [vmem:[%s0 + $0x84] sm:$0xff]
  %v40 = vld [vmem:[%s0 + $0x8c] sm:$0xf]
  %v41 = vld [vmem:[%s0 + $0x90] sm:$0xff]
  %v42 = vld [vmem:[%s0 + $0x98] sm:$0xff]
  %v43 = vld [vmem:[%s0 + $0xa0] sm:$0xff]
  %v44 = vld [vmem:[%s0 + $0xa8] sm:$0xff]
  %v45 = vld [vmem:[%s0 + $0xb0] sm:$0xf]
  %v46 = vld [vmem:[%s0 + $0xb4] sm:$0xff]
  %v47 = vld [vmem:[%s0 + $0xbc] sm:$0xff]
  %v48 = vld [vmem:[%s0 + $0xc4] sm:$0xff]
  %v49 = vld [vmem:[%s0 + $0xcc] sm:$0xff]
  %v50 = vld [vmem:[%s0 + $0xd4] sm:$0xf]
  %v51 = vld [vmem:[%s0 + $0xd8] sm:$0xff]
  %v52 = vld [vmem:[%s0 + $0xe0] sm:$0xff]
  %v53 = vld [vmem:[%s0 + $0xe8] sm:$0xff]
  %v54 = vld [vmem:[%s0 + $0xf0] sm:$0xff]
  %v55 = vld [vmem:[%s0 + $0xf8] sm:$0xf]
  %v56 = vld [vmem:[%s0 + $0xfc] sm:$0xff]
  %v57 = vld [vmem:[%s0 + $0x104] sm:$0xff]
  %v58 = vld [vmem:[%s0 + $0x10c] sm:$0xff]
  %v59 = vld [vmem:[%s0 + $0x114] sm:$0xff]
  %v60 = vld [vmem:[%s0 + $0x11c] sm:$0xf]
  %v61 = vld [vmem:[%s0 + $0x120] sm:$0xff]
  %v62 = vld [vmem:[%s0 + $0x128] sm:$0xff]
  %v63 = vld [vmem:[%s0 + $0x130] sm:$0xff]
  %v64 = vld [vmem:[%s0 + $0x138] sm:$0xff]
  %v65 = vld [vmem:[%s0 + $0x140] sm:$0xf]
  %v66 = vld [vmem:[%s0 + $0x144] sm:$0xff]
  %v67 = vld [vmem:[%s0 + $0x14c] sm:$0xff]
  %v68 = vld [vmem:[%s0 + $0x154] sm:$0xff]
  %v69 = vld [vmem:[%s0 + $0x15c] sm:$0xff]
  %v70 = vld [vmem:[%s0 + $0x164] sm:$0xf]
  %v71 = vld [vmem:[%s0 + $0x168] sm:$0xff]
  %v72 = vld [vmem:[%s0 + $0x170] sm:$0xff]
  %v73 = vld [vmem:[%s0 + $0x178] sm:$0xff]
  %v74 = vld [vmem:[%s0 + $0x180] sm:$0xff]
  %v75 = vld [vmem:[%s0 + $0x188] sm:$0xf]
  %v76 = vld [vmem:[%s0 + $0x18c] sm:$0xff]
  %v77 = vld [vmem:[%s0 + $0x194] sm:$0xff]
  %v78 = vld [vmem:[%s0 + $0x19c] sm:$0xff]
  %v79 = vld [vmem:[%s0 + $0x1a4] sm:$0xff]
  %v80 = vld [vmem:[%s0 + $0x1ac] sm:$0xf]
  %v81 = vld [vmem:[%s0 + $0x1b0] sm:$0xff]
  %v82 = vld [vmem:[%s0 + $0x1b8] sm:$0xff]
  %v83 = vld [vmem:[%s0 + $0x1c0] sm:$0xff]
  %v84 = vld [vmem:[%s0 + $0x1c8] sm:$0xff]
  %v85 = vld [vmem:[%s0 + $0x1d0] sm:$0xf]
  %v86 = vld [vmem:[%s0 + $0x1d4] sm:$0xff]
  %v87 = vld [vmem:[%s0 + $0x1dc] sm:$0xff]
  %v88 = vld [vmem:[%s0 + $0x1e4] sm:$0xff]
  %v89 = vld [vmem:[%s0 + $0x1ec] sm:$0xff]
  %v90 = vld [vmem:[%s0 + $0x1f4] sm:$0xf]
  %v91 = vld [vmem:[%s0 + $0x1f8] sm:$0xff]
  %v92 = vld [vmem:[%s0 + $0x200] sm:$0xff]
  %v93 = vld [vmem:[%s0 + $0x208] sm:$0xff]
  %v94 = vld [vmem:[%s0 + $0x210] sm:$0xff]
  %v95 = vld [vmem:[%s0 + $0x218] sm:$0xf]
  %v96 = vld [vmem:[%s0 + $0x21c] sm:$0xff]
  %v97 = vld [vmem:[%s0 + $0x224] sm:$0xff]
  %v98 = vld [vmem:[%s0 + $0x22c] sm:$0xff]
  %v99 = vld [vmem:[%s0 + $0x234] sm:$0xff]
  %v100 = vld [vmem:[%s0 + $0x23c] sm:$0xf]
  %v101 = vld [vmem:[%s0 + $0x240] sm:$0xff]
  %v102 = vld [vmem:[%s0 + $0x248] sm:$0xff]
  %v103 = vld [vmem:[%s0 + $0x250] sm:$0xff]
  %v104 = vld [vmem:[%s0 + $0x258] sm:$0xff]
  %v105 = vld [vmem:[%s0 + $0x260] sm:$0xf]
  %v106 = vld [vmem:[%s0 + $0x264] sm:$0xff]
  %v107 = vld [vmem:[%s0 + $0x26c] sm:$0xff]
  %v108 = vld [vmem:[%s0 + $0x274] sm:$0xff]
  %v109 = vld [vmem:[%s0 + $0x27c] sm:$0xff]
  %v110 = vld [vmem:[%s0 + $0x284] sm:$0xf]
  %v111 = vld [vmem:[%s0 + $0x288] sm:$0xff]
  %v112 = vld [vmem:[%s0 + $0x290] sm:$0xff]
  %v113 = vld [vmem:[%s0 + $0x298] sm:$0xff]
  %v114 = vld [vmem:[%s0 + $0x2a0] sm:$0xff]
  %v115 = vld [vmem:[%s0 + $0x2a8] sm:$0xf]
  %v116 = vld [vmem:[%s0 + $0x2ac] sm:$0xff]
  %v117 = vld [vmem:[%s0 + $0x2b4] sm:$0xff]
  %v118 = vld [vmem:[%s0 + $0x2bc] sm:$0xff]
  %v119 = vld [vmem:[%s0 + $0x2c4] sm:$0xff]
  %v120 = vld [vmem:[%s0 + $0x2cc] sm:$0xf]
  %v121 = vld [vmem:[%s0 + $0x2d0] sm:$0xff]
  %v122 = vld [vmem:[%s0 + $0x2d8] sm:$0xff]
  %v123 = vld [vmem:[%s0 + $0x2e0] sm:$0xff]
  %v124 = vld [vmem:[%s0 + $0x2e8] sm:$0xff]
  %v125 = vld [vmem:[%s0 + $0x2f0] sm:$0xf]
  %v126 = vld [vmem:[%s0 + $0x2f4] sm:$0xff]
  %v127 = vld [vmem:[%s0 + $0x2fc] sm:$0xff]
  %v128 = vld [vmem:[%s0 + $0x304] sm:$0xff]
  %v129 = vld [vmem:[%s0 + $0x30c] sm:$0xff]
  %v130 = vld [vmem:[%s0 + $0x314] sm:$0xf]
  %v131 = vld [vmem:[%s0 + $0x318] sm:$0xff]
  %v132 = vld [vmem:[%s0 + $0x320] sm:$0xff]
  %v133 = vld [vmem:[%s0 + $0x328] sm:$0xff]
  %v134 = vld [vmem:[%s0 + $0x330] sm:$0xff]
  %v135 = vld [vmem:[%s0 + $0x338] sm:$0xf]
  %v136 = vld [vmem:[%s0 + $0x33c] sm:$0xff]
  %v137 = vld [vmem:[%s0 + $0x344] sm:$0xff]
  %v138 = vld [vmem:[%s0 + $0x34c] sm:$0xff]
  %v139 = vld [vmem:[%s0 + $0x354] sm:$0xff]
  %v140 = vld [vmem:[%s0 + $0x35c] sm:$0xf]
  %v141 = vld [vmem:[%s0 + $0x360] sm:$0xff]
  %v142 = vld [vmem:[%s0 + $0x368] sm:$0xff]
  %v143 = vld [vmem:[%s0 + $0x370] sm:$0xff]
  %v144 = vld [vmem:[%s0 + $0x378] sm:$0xff]
  %v145 = vld [vmem:[%s0 + $0x380] sm:$0xf]
  %v146 = vld [vmem:[%s0 + $0x384] sm:$0xff]
  %v147 = vld [vmem:[%s0 + $0x38c] sm:$0xff]
  %v148 = vld [vmem:[%s0 + $0x394] sm:$0xff]
  %v149 = vld [vmem:[%s0 + $0x39c] sm:$0xff]
  %v150 = vld [vmem:[%s0 + $0x3a4] sm:$0xf]
  %v151 = vld [vmem:[%s0 + $0x3a8] sm:$0xff]
  %v152 = vld [vmem:[%s0 + $0x3b0] sm:$0xff]
  %v153 = vld [vmem:[%s0 + $0x3b8] sm:$0xff]
  %v154 = vld [vmem:[%s0 + $0x3c0] sm:$0xff]
  %v155 = vld [vmem:[%s0 + $0x3c8] sm:$0xf]
  %v156 = vld [vmem:[%s0 + $0x3cc] sm:$0xff]
  %v157 = vld [vmem:[%s0 + $0x3d4] sm:$0xff]
  %v158 = vld [vmem:[%s0 + $0x3dc] sm:$0xff]
  %v159 = vld [vmem:[%s0 + $0x3e4] sm:$0xff]
  %v160 = vld [vmem:[%s0 + $0x3ec] sm:$0xf]
  %v161 = vld [vmem:[%s0 + $0x3f0] sm:$0xff]
  %v162 = vld [vmem:[%s0 + $0x3f8] sm:$0xff]
  %v163 = vld [vmem:[%s0 + $0x400] sm:$0xff]
  %v164 = vld [vmem:[%s0 + $0x408] sm:$0xff]
  %v165 = vld [vmem:[%s0 + $0x410] sm:$0xf]
  %v166 = vld [vmem:[%s0 + $0x414] sm:$0xff]
  %v167 = vld [vmem:[%s0 + $0x41c] sm:$0xff]
  %v168 = vld [vmem:[%s0 + $0x424] sm:$0xff]
  %v169 = vld [vmem:[%s0 + $0x42c] sm:$0xff]
  %v170 = vld [vmem:[%s0 + $0x434] sm:$0xf]
  %v171 = vld [vmem:[%s0 + $0x438] sm:$0xff]
  %v172 = vld [vmem:[%s0 + $0x440] sm:$0xff]
  %v173 = vld [vmem:[%s0 + $0x448] sm:$0xff]
  %v174 = vld [vmem:[%s0 + $0x450] sm:$0xff]
  %v175 = vld [vmem:[%s0 + $0x458] sm:$0xf]
  %v176 = vld [vmem:[%s0 + $0x45c] sm:$0xff]
  %v177 = vld [vmem:[%s0 + $0x464] sm:$0xff]
  %v178 = vld [vmem:[%s0 + $0x46c] sm:$0xff]
  %v179 = vld [vmem:[%s0 + $0x474] sm:$0xff]
  %v180 = vld [vmem:[%s0 + $0x47c] sm:$0xf]
  %v181 = vld [vmem:[%s1] sm:$0xf]
  %v182 = vld [vmem:[%s1 + $0x4] sm:$0xf]
  %v183 = vld [vmem:[%s1 + $0x8] sm:$0xf]
  %v184 = vld [vmem:[%s1 + $0xc] sm:$0xf]
  %v185 = vld [vmem:[%s1 + $0x10] sm:$0xf]
  %v186 = vld [vmem:[%s1 + $0x14] sm:$0xf]
  %v187 = vld [vmem:[%s1 + $0x18] sm:$0xf]
  %v188 = vld [vmem:[%s1 + $0x1c] sm:$0xf]
  %v189 = vld [vmem:[%s1 + $0x20] sm:$0xf]
  %v190 = vld [vmem:[%s1 + $0x24] sm:$0xf]
  %v191 = vld [vmem:[%s1 + $0x28] sm:$0xf]
  %v192 = vld [vmem:[%s1 + $0x2c] sm:$0xf]
  %v193 = vld [vmem:[%s1 + $0x30] sm:$0xf]
  %v194 = vld [vmem:[%s1 + $0x34] sm:$0xf]
  %v195 = vld [vmem:[%s1 + $0x38] sm:$0xf]
  %v196 = vld [vmem:[%s1 + $0x3c] sm:$0xf]
  %v197 = vld [vmem:[%s1 + $0x40] sm:$0xf]
  %v198 = vld [vmem:[%s1 + $0x44] sm:$0xf]
  %v199 = vld [vmem:[%s1 + $0x48] sm:$0xf]
  %v200 = vld [vmem:[%s1 + $0x4c] sm:$0xf]
  %v201 = vld [vmem:[%s1 + $0x50] sm:$0xf]
  %v202 = vld [vmem:[%s1 + $0x54] sm:$0xf]
  %v203 = vld [vmem:[%s1 + $0x58] sm:$0xf]
  %v204 = vld [vmem:[%s1 + $0x5c] sm:$0xf]
  %v205 = vld [vmem:[%s1 + $0x60] sm:$0xf]
  %v206 = vld [vmem:[%s1 + $0x64] sm:$0xf]
  %v207 = vld [vmem:[%s1 + $0x68] sm:$0xf]
  %v208 = vld [vmem:[%s1 + $0x6c] sm:$0xf]
  %v209 = vld [vmem:[%s1 + $0x70] sm:$0xf]
  %v210 = vld [vmem:[%s1 + $0x74] sm:$0xf]
  %v211 = vld [vmem:[%s1 + $0x78] sm:$0xf]
  %v212 = vld [vmem:[%s1 + $0x7c] sm:$0xf]
  %v213 = vld [vmem:[%s1 + $0x80] sm:$0xf]
  %v214 = vld [vmem:[%s1 + $0x84] sm:$0xf]
  %v215 = vld [vmem:[%s1 + $0x88] sm:$0xf]
  %v216 = vld [vmem:[%s1 + $0x8c] sm:$0xf]
  %v217 = vld [vmem:[%s1 + $0x90] sm:$0xf]
  %v218 = vld [vmem:[%s1 + $0x94] sm:$0xf]
  %v219 = vld [vmem:[%s1 + $0x98] sm:$0xf]
  %v220 = vld [vmem:[%s1 + $0x9c] sm:$0xf]
  %v221 = vld [vmem:[%s1 + $0xa0] sm:$0xf]
  %v222 = vld [vmem:[%s1 + $0xa4] sm:$0xf]
  %v223 = vld [vmem:[%s1 + $0xa8] sm:$0xf]
  %v224 = vld [vmem:[%s1 + $0xac] sm:$0xf]
  %v225 = vld [vmem:[%s1 + $0xb0] sm:$0xf]
  %v226 = vld [vmem:[%s1 + $0xb4] sm:$0xf]
  %v227 = vld [vmem:[%s1 + $0xb8] sm:$0xf]
  %v228 = vld [vmem:[%s1 + $0xbc] sm:$0xf]
  %v229 = vld [vmem:[%s1 + $0xc0] sm:$0xf]
  %v230 = vld [vmem:[%s1 + $0xc4] sm:$0xf]
  %v231 = vld [vmem:[%s1 + $0xc8] sm:$0xf]
  %v232 = vld [vmem:[%s1 + $0xcc] sm:$0xf]
  %v233 = vld [vmem:[%s1 + $0xd0] sm:$0xf]
  %v234 = vld [vmem:[%s1 + $0xd4] sm:$0xf]
  %v235 = vld [vmem:[%s1 + $0xd8] sm:$0xf]
  %v236 = vld [vmem:[%s1 + $0xdc] sm:$0xf]
  %v237 = vld [vmem:[%s1 + $0xe0] sm:$0xf]
  %v238 = vld [vmem:[%s1 + $0xe4] sm:$0xf]
  %v239 = vld [vmem:[%s1 + $0xe8] sm:$0xf]
  %v240 = vld [vmem:[%s1 + $0xec] sm:$0xf]
  %v241 = vld [vmem:[%s1 + $0xf0] sm:$0xf]
  %v242 = vld [vmem:[%s1 + $0xf4] sm:$0xf]
  %v243 = vld [vmem:[%s1 + $0xf8] sm:$0xf]
  %v244 = vld [vmem:[%s1 + $0xfc] sm:$0xf]
  %v245 = vld [vmem:[%s1 + $0x100] sm:$0xf]
  %v246 = vld [vmem:[%s1 + $0x104] sm:$0xf]
  %v247 = vld [vmem:[%s1 + $0x108] sm:$0xf]
  %v248 = vld [vmem:[%s1 + $0x10c] sm:$0xf]
  %v249 = vld [vmem:[%s1 + $0x110] sm:$0xf]
  %v250 = vld [vmem:[%s1 + $0x114] sm:$0xf]
  %v251 = vld [vmem:[%s1 + $0x118] sm:$0xf]
  %v252 = vld [vmem:[%s1 + $0x11c] sm:$0xf]
  %v253 = vld [vmem:[%s1 + $0x120] sm:$0xf]
  %v254 = vld [vmem:[%s1 + $0x124] sm:$0xf]
  %v255 = vld [vmem:[%s1 + $0x128] sm:$0xf]
  %v256 = vld [vmem:[%s1 + $0x12c] sm:$0xf]
  %v257 = vld [vmem:[%s1 + $0x130] sm:$0xf]
  %v258 = vld [vmem:[%s1 + $0x134] sm:$0xf]
  %v259 = vld [vmem:[%s1 + $0x138] sm:$0xf]
  %v260 = vld [vmem:[%s1 + $0x13c] sm:$0xf]
  %v261 = vld [vmem:[%s1 + $0x140] sm:$0xf]
  %v262 = vld [vmem:[%s1 + $0x144] sm:$0xf]
  %v263 = vld [vmem:[%s1 + $0x148] sm:$0xf]
  %v264 = vld [vmem:[%s1 + $0x14c] sm:$0xf]
  %v265 = vld [vmem:[%s1 + $0x150] sm:$0xf]
  %v266 = vld [vmem:[%s1 + $0x154] sm:$0xf]
  %v267 = vld [vmem:[%s1 + $0x158] sm:$0xf]
  %v268 = vld [vmem:[%s1 + $0x15c] sm:$0xf]
  %v269 = vld [vmem:[%s1 + $0x160] sm:$0xf]
  %v270 = vld [vmem:[%s1 + $0x164] sm:$0xf]
  %v271 = vld [vmem:[%s1 + $0x168] sm:$0xf]
  %v272 = vld [vmem:[%s1 + $0x16c] sm:$0xf]
  %v273 = vld [vmem:[%s1 + $0x170] sm:$0xf]
  %v274 = vld [vmem:[%s1 + $0x174] sm:$0xf]
  %v275 = vld [vmem:[%s1 + $0x178] sm:$0xf]
  %v276 = vld [vmem:[%s1 + $0x17c] sm:$0xf]
  %v277 = vld [vmem:[%s1 + $0x180] sm:$0xf]
  %v278 = vld [vmem:[%s1 + $0x184] sm:$0xf]
  %v279 = vld [vmem:[%s1 + $0x188] sm:$0xf]
  %v280 = vld [vmem:[%s1 + $0x18c] sm:$0xf]
  %v281 = vld [vmem:[%s1 + $0x190] sm:$0xf]
  %v282 = vld [vmem:[%s1 + $0x194] sm:$0xf]
  %v283 = vld [vmem:[%s1 + $0x198] sm:$0xf]
  %v284 = vld [vmem:[%s1 + $0x19c] sm:$0xf]
  %v285 = vld [vmem:[%s1 + $0x1a0] sm:$0xf]
  %v286 = vld [vmem:[%s1 + $0x1a4] sm:$0xf]
  %v287 = vld [vmem:[%s1 + $0x1a8] sm:$0xf]
  %v288 = vld [vmem:[%s1 + $0x1ac] sm:$0xf]
  %v289 = vld [vmem:[%s1 + $0x1b0] sm:$0xf]
  %v290 = vld [vmem:[%s1 + $0x1b4] sm:$0xf]
  %v291 = vld [vmem:[%s1 + $0x1b8] sm:$0xf]
  %v292 = vld [vmem:[%s1 + $0x1bc] sm:$0xf]
  %v293 = vld [vmem:[%s1 + $0x1c0] sm:$0xf]
  %v294 = vld [vmem:[%s1 + $0x1c4] sm:$0xf]
  %v295 = vld [vmem:[%s1 + $0x1c8] sm:$0xf]
  %v296 = vld [vmem:[%s1 + $0x1cc] sm:$0xf]
  %v297 = vld [vmem:[%s1 + $0x1d0] sm:$0xf]
  %v298 = vld [vmem:[%s1 + $0x1d4] sm:$0xf]
  %v299 = vld [vmem:[%s1 + $0x1d8] sm:$0xf]
  %v300 = vld [vmem:[%s1 + $0x1dc] sm:$0xf]
  %v301 = vld [vmem:[%s1 + $0x1e0] sm:$0xf]
  %v302 = vld [vmem:[%s1 + $0x1e4] sm:$0xf]
  %v303 = vld [vmem:[%s1 + $0x1e8] sm:$0xf]
  %v304 = vld [vmem:[%s1 + $0x1ec] sm:$0xf]
  %v305 = vld [vmem:[%s1 + $0x1f0] sm:$0xf]
  %v306 = vld [vmem:[%s1 + $0x1f4] sm:$0xf]
  %v307 = vld [vmem:[%s1 + $0x1f8] sm:$0xf]
  %v308 = vld [vmem:[%s1 + $0x1fc] sm:$0xf]
  %v309 = vld [vmem:[%s1 + $0x200] sm:$0xf]
  %v310 = vld [vmem:[%s1 + $0x204] sm:$0xf]
  %v311 = vld [vmem:[%s1 + $0x208] sm:$0xf]
  %v312 = vld [vmem:[%s1 + $0x20c] sm:$0xf]
  %v313 = vld [vmem:[%s1 + $0x210] sm:$0xf]
  %v314 = vld [vmem:[%s1 + $0x214] sm:$0xf]
  %v315 = vld [vmem:[%s1 + $0x218] sm:$0xf]
  %v316 = vld [vmem:[%s1 + $0x21c] sm:$0xf]
  %v317 = vld [vmem:[%s1 + $0x220] sm:$0xf]
  %v318 = vld [vmem:[%s1 + $0x224] sm:$0xf]
  %v319 = vld [vmem:[%s1 + $0x228] sm:$0xf]
  %v320 = vld [vmem:[%s1 + $0x22c] sm:$0xf]
  %v321 = vld [vmem:[%s1 + $0x230] sm:$0xf]
  %v322 = vld [vmem:[%s1 + $0x234] sm:$0xf]
  %v323 = vld [vmem:[%s1 + $0x238] sm:$0xf]
  %v324 = vld [vmem:[%s1 + $0x23c] sm:$0xf]
  %v325 = vld [vmem:[%s2] sm:$0x1]
  %v327 = vlaneseq
  %v328 = vshrl.u32 %v327, 7
  %v329 = vsub.s32 0, %v328
  %v330 = vrot.slane %v325, %v329
  %v492 = vunpack.c.l.b16 %v21
  %v493 = vunpack.c.h.b16 %v21
  %v494 = vunpack.c.l.b16 %v22
  %v495 = vunpack.c.h.b16 %v22
  %v496 = vunpack.c.l.b16 %v23
  %v497 = vunpack.c.h.b16 %v23
  %v498 = vunpack.c.l.b16 %v24
  %v499 = vunpack.c.h.b16 %v24
  %v500 = vunpack.c.l.b16 %v25
  %v501 = vunpack.c.l.b16 %v26
  %v502 = vunpack.c.h.b16 %v26
  %v503 = vunpack.c.l.b16 %v27
  %v504 = vunpack.c.h.b16 %v27
  %v505 = vunpack.c.l.b16 %v28
  %v506 = vunpack.c.h.b16 %v28
  %v507 = vunpack.c.l.b16 %v29
  %v508 = vunpack.c.h.b16 %v29
  %v509 = vunpack.c.l.b16 %v30
  %v510 = vunpack.c.l.b16 %v31
  %v511 = vunpack.c.h.b16 %v31
  %v512 = vunpack.c.l.b16 %v32
  %v513 = vunpack.c.h.b16 %v32
  %v514 = vunpack.c.l.b16 %v33
  %v515 = vunpack.c.h.b16 %v33
  %v516 = vunpack.c.l.b16 %v34
  %v517 = vunpack.c.h.b16 %v34
  %v518 = vunpack.c.l.b16 %v35
  %v519 = vunpack.c.l.b16 %v36
  %v520 = vunpack.c.h.b16 %v36
  %v521 = vunpack.c.l.b16 %v37
  %v522 = vunpack.c.h.b16 %v37
  %v523 = vunpack.c.l.b16 %v38
  %v524 = vunpack.c.h.b16 %v38
  %v525 = vunpack.c.l.b16 %v39
  %v526 = vunpack.c.h.b16 %v39
  %v527 = vunpack.c.l.b16 %v40
  %v528 = vunpack.c.l.b16 %v41
  %v529 = vunpack.c.h.b16 %v41
  %v530 = vunpack.c.l.b16 %v42
  %v531 = vunpack.c.h.b16 %v42
  %v532 = vunpack.c.l.b16 %v43
  %v533 = vunpack.c.h.b16 %v43
  %v534 = vunpack.c.l.b16 %v44
  %v535 = vunpack.c.h.b16 %v44
  %v536 = vunpack.c.l.b16 %v45
  %v537 = vunpack.c.l.b16 %v46
  %v538 = vunpack.c.h.b16 %v46
  %v539 = vunpack.c.l.b16 %v47
  %v540 = vunpack.c.h.b16 %v47
  %v541 = vunpack.c.l.b16 %v48
  %v542 = vunpack.c.h.b16 %v48
  %v543 = vunpack.c.l.b16 %v49
  %v544 = vunpack.c.h.b16 %v49
  %v545 = vunpack.c.l.b16 %v50
  %v546 = vunpack.c.l.b16 %v51
  %v547 = vunpack.c.h.b16 %v51
  %v548 = vunpack.c.l.b16 %v52
  %v549 = vunpack.c.h.b16 %v52
  %v550 = vunpack.c.l.b16 %v53
  %v551 = vunpack.c.h.b16 %v53
  %v552 = vunpack.c.l.b16 %v54
  %v553 = vunpack.c.h.b16 %v54
  %v554 = vunpack.c.l.b16 %v55
  %v555 = vunpack.c.l.b16 %v56
  %v556 = vunpack.c.h.b16 %v56
  %v557 = vunpack.c.l.b16 %v57
  %v558 = vunpack.c.h.b16 %v57
  %v559 = vunpack.c.l.b16 %v58
  %v560 = vunpack.c.h.b16 %v58
  %v561 = vunpack.c.l.b16 %v59
  %v562 = vunpack.c.h.b16 %v59
  %v563 = vunpack.c.l.b16 %v60
  %v564 = vunpack.c.l.b16 %v61
  %v565 = vunpack.c.h.b16 %v61
  %v566 = vunpack.c.l.b16 %v62
  %v567 = vunpack.c.h.b16 %v62
  %v568 = vunpack.c.l.b16 %v63
  %v569 = vunpack.c.h.b16 %v63
  %v570 = vunpack.c.l.b16 %v64
  %v571 = vunpack.c.h.b16 %v64
  %v572 = vunpack.c.l.b16 %v65
  %v573 = vunpack.c.l.b16 %v66
  %v574 = vunpack.c.h.b16 %v66
  %v575 = vunpack.c.l.b16 %v67
  %v576 = vunpack.c.h.b16 %v67
  %v577 = vunpack.c.l.b16 %v68
  %v578 = vunpack.c.h.b16 %v68
  %v579 = vunpack.c.l.b16 %v69
  %v580 = vunpack.c.h.b16 %v69
  %v581 = vunpack.c.l.b16 %v70
  %v582 = vunpack.c.l.b16 %v71
  %v583 = vunpack.c.h.b16 %v71
  %v584 = vunpack.c.l.b16 %v72
  %v585 = vunpack.c.h.b16 %v72
  %v586 = vunpack.c.l.b16 %v73
  %v587 = vunpack.c.h.b16 %v73
  %v588 = vunpack.c.l.b16 %v74
  %v589 = vunpack.c.h.b16 %v74
  %v590 = vunpack.c.l.b16 %v75
  %v591 = vunpack.c.l.b16 %v76
  %v592 = vunpack.c.h.b16 %v76
  %v593 = vunpack.c.l.b16 %v77
  %v594 = vunpack.c.h.b16 %v77
  %v595 = vunpack.c.l.b16 %v78
  %v596 = vunpack.c.h.b16 %v78
  %v597 = vunpack.c.l.b16 %v79
  %v598 = vunpack.c.h.b16 %v79
  %v599 = vunpack.c.l.b16 %v80
  %v600 = vunpack.c.l.b16 %v81
  %v601 = vunpack.c.h.b16 %v81
  %v602 = vunpack.c.l.b16 %v82
  %v603 = vunpack.c.h.b16 %v82
  %v604 = vunpack.c.l.b16 %v83
  %v605 = vunpack.c.h.b16 %v83
  %v606 = vunpack.c.l.b16 %v84
  %v607 = vunpack.c.h.b16 %v84
  %v608 = vunpack.c.l.b16 %v85
  %v609 = vunpack.c.l.b16 %v86
  %v610 = vunpack.c.h.b16 %v86
  %v611 = vunpack.c.l.b16 %v87
  %v612 = vunpack.c.h.b16 %v87
  %v613 = vunpack.c.l.b16 %v88
  %v614 = vunpack.c.h.b16 %v88
  %v615 = vunpack.c.l.b16 %v89
  %v616 = vunpack.c.h.b16 %v89
  %v617 = vunpack.c.l.b16 %v90
  %v618 = vunpack.c.l.b16 %v91
  %v619 = vunpack.c.h.b16 %v91
  %v620 = vunpack.c.l.b16 %v92
  %v621 = vunpack.c.h.b16 %v92
  %v622 = vunpack.c.l.b16 %v93
  %v623 = vunpack.c.h.b16 %v93
  %v624 = vunpack.c.l.b16 %v94
  %v625 = vunpack.c.h.b16 %v94
  %v626 = vunpack.c.l.b16 %v95
  %v627 = vunpack.c.l.b16 %v96
  %v628 = vunpack.c.h.b16 %v96
  %v629 = vunpack.c.l.b16 %v97
  %v630 = vunpack.c.h.b16 %v97
  %v631 = vunpack.c.l.b16 %v98
  %v632 = vunpack.c.h.b16 %v98
  %v633 = vunpack.c.l.b16 %v99
  %v634 = vunpack.c.h.b16 %v99
  %v635 = vunpack.c.l.b16 %v100
  %v636 = vunpack.c.l.b16 %v101
  %v637 = vunpack.c.h.b16 %v101
  %v638 = vunpack.c.l.b16 %v102
  %v639 = vunpack.c.h.b16 %v102
  %v640 = vunpack.c.l.b16 %v103
  %v641 = vunpack.c.h.b16 %v103
  %v642 = vunpack.c.l.b16 %v104
  %v643 = vunpack.c.h.b16 %v104
  %v644 = vunpack.c.l.b16 %v105
  %v645 = vunpack.c.l.b16 %v106
  %v646 = vunpack.c.h.b16 %v106
  %v647 = vunpack.c.l.b16 %v107
  %v648 = vunpack.c.h.b16 %v107
  %v649 = vunpack.c.l.b16 %v108
  %v650 = vunpack.c.h.b16 %v108
  %v651 = vunpack.c.l.b16 %v109
  %v652 = vunpack.c.h.b16 %v109
  %v653 = vunpack.c.l.b16 %v110
  %v654 = vunpack.c.l.b16 %v111
  %v655 = vunpack.c.h.b16 %v111
  %v656 = vunpack.c.l.b16 %v112
  %v657 = vunpack.c.h.b16 %v112
  %v658 = vunpack.c.l.b16 %v113
  %v659 = vunpack.c.h.b16 %v113
  %v660 = vunpack.c.l.b16 %v114
  %v661 = vunpack.c.h.b16 %v114
  %v662 = vunpack.c.l.b16 %v115
  %v663 = vunpack.c.l.b16 %v116
  %v664 = vunpack.c.h.b16 %v116
  %v665 = vunpack.c.l.b16 %v117
  %v666 = vunpack.c.h.b16 %v117
  %v667 = vunpack.c.l.b16 %v118
  %v668 = vunpack.c.h.b16 %v118
  %v669 = vunpack.c.l.b16 %v119
  %v670 = vunpack.c.h.b16 %v119
  %v671 = vunpack.c.l.b16 %v120
  %v672 = vunpack.c.l.b16 %v121
  %v673 = vunpack.c.h.b16 %v121
  %v674 = vunpack.c.l.b16 %v122
  %v675 = vunpack.c.h.b16 %v122
  %v676 = vunpack.c.l.b16 %v123
  %v677 = vunpack.c.h.b16 %v123
  %v678 = vunpack.c.l.b16 %v124
  %v679 = vunpack.c.h.b16 %v124
  %v680 = vunpack.c.l.b16 %v125
  %v681 = vunpack.c.l.b16 %v126
  %v682 = vunpack.c.h.b16 %v126
  %v683 = vunpack.c.l.b16 %v127
  %v684 = vunpack.c.h.b16 %v127
  %v685 = vunpack.c.l.b16 %v128
  %v686 = vunpack.c.h.b16 %v128
  %v687 = vunpack.c.l.b16 %v129
  %v688 = vunpack.c.h.b16 %v129
  %v689 = vunpack.c.l.b16 %v130
  %v690 = vunpack.c.l.b16 %v131
  %v691 = vunpack.c.h.b16 %v131
  %v692 = vunpack.c.l.b16 %v132
  %v693 = vunpack.c.h.b16 %v132
  %v694 = vunpack.c.l.b16 %v133
  %v695 = vunpack.c.h.b16 %v133
  %v696 = vunpack.c.l.b16 %v134
  %v697 = vunpack.c.h.b16 %v134
  %v698 = vunpack.c.l.b16 %v135
  %v699 = vunpack.c.l.b16 %v136
  %v700 = vunpack.c.h.b16 %v136
  %v701 = vunpack.c.l.b16 %v137
  %v702 = vunpack.c.h.b16 %v137
  %v703 = vunpack.c.l.b16 %v138
  %v704 = vunpack.c.h.b16 %v138
  %v705 = vunpack.c.l.b16 %v139
  %v706 = vunpack.c.h.b16 %v139
  %v707 = vunpack.c.l.b16 %v140
  %v708 = vunpack.c.l.b16 %v141
  %v709 = vunpack.c.h.b16 %v141
  %v710 = vunpack.c.l.b16 %v142
  %v711 = vunpack.c.h.b16 %v142
  %v712 = vunpack.c.l.b16 %v143
  %v713 = vunpack.c.h.b16 %v143
  %v714 = vunpack.c.l.b16 %v144
  %v715 = vunpack.c.h.b16 %v144
  %v716 = vunpack.c.l.b16 %v145
  %v717 = vunpack.c.l.b16 %v146
  %v718 = vunpack.c.h.b16 %v146
  %v719 = vunpack.c.l.b16 %v147
  %v720 = vunpack.c.h.b16 %v147
  %v721 = vunpack.c.l.b16 %v148
  %v722 = vunpack.c.h.b16 %v148
  %v723 = vunpack.c.l.b16 %v149
  %v724 = vunpack.c.h.b16 %v149
  %v725 = vunpack.c.l.b16 %v150
  %v726 = vunpack.c.l.b16 %v151
  %v727 = vunpack.c.h.b16 %v151
  %v728 = vunpack.c.l.b16 %v152
  %v729 = vunpack.c.h.b16 %v152
  %v730 = vunpack.c.l.b16 %v153
  %v731 = vunpack.c.h.b16 %v153
  %v732 = vunpack.c.l.b16 %v154
  %v733 = vunpack.c.h.b16 %v154
  %v734 = vunpack.c.l.b16 %v155
  %v735 = vunpack.c.l.b16 %v156
  %v736 = vunpack.c.h.b16 %v156
  %v737 = vunpack.c.l.b16 %v157
  %v738 = vunpack.c.h.b16 %v157
  %v739 = vunpack.c.l.b16 %v158
  %v740 = vunpack.c.h.b16 %v158
  %v741 = vunpack.c.l.b16 %v159
  %v742 = vunpack.c.h.b16 %v159
  %v743 = vunpack.c.l.b16 %v160
  %v744 = vunpack.c.l.b16 %v161
  %v745 = vunpack.c.h.b16 %v161
  %v746 = vunpack.c.l.b16 %v162
  %v747 = vunpack.c.h.b16 %v162
  %v748 = vunpack.c.l.b16 %v163
  %v749 = vunpack.c.h.b16 %v163
  %v750 = vunpack.c.l.b16 %v164
  %v751 = vunpack.c.h.b16 %v164
  %v752 = vunpack.c.l.b16 %v165
  %v753 = vunpack.c.l.b16 %v166
  %v754 = vunpack.c.h.b16 %v166
  %v755 = vunpack.c.l.b16 %v167
  %v756 = vunpack.c.h.b16 %v167
  %v757 = vunpack.c.l.b16 %v168
  %v758 = vunpack.c.h.b16 %v168
  %v759 = vunpack.c.l.b16 %v169
  %v760 = vunpack.c.h.b16 %v169
  %v761 = vunpack.c.l.b16 %v170
  %v762 = vunpack.c.l.b16 %v171
  %v763 = vunpack.c.h.b16 %v171
  %v764 = vunpack.c.l.b16 %v172
  %v765 = vunpack.c.h.b16 %v172
  %v766 = vunpack.c.l.b16 %v173
  %v767 = vunpack.c.h.b16 %v173
  %v768 = vunpack.c.l.b16 %v174
  %v769 = vunpack.c.h.b16 %v174
  %v770 = vunpack.c.l.b16 %v175
  %v771 = vunpack.c.l.b16 %v176
  %v772 = vunpack.c.h.b16 %v176
  %v773 = vunpack.c.l.b16 %v177
  %v774 = vunpack.c.h.b16 %v177
  %v775 = vunpack.c.l.b16 %v178
  %v776 = vunpack.c.h.b16 %v178
  %v777 = vunpack.c.l.b16 %v179
  %v778 = vunpack.c.h.b16 %v179
  %v779 = vunpack.c.l.b16 %v180
  %v780 = vpack.c.b16 %v501, %v492
  %v781 = vpack.c.b16 %v502, %v493
  %v782 = vpack.c.b16 %v503, %v494
  %v783 = vpack.c.b16 %v504, %v495
  %v784 = vpack.c.b16 %v505, %v496
  %v785 = vpack.c.b16 %v506, %v497
  %v786 = vpack.c.b16 %v507, %v498
  %v787 = vpack.c.b16 %v508, %v499
  %v788 = vpack.c.b16 %v509, %v500
  %v789 = vpack.c.b16 %v519, %v510
  %v790 = vpack.c.b16 %v520, %v511
  %v791 = vpack.c.b16 %v521, %v512
  %v792 = vpack.c.b16 %v522, %v513
  %v793 = vpack.c.b16 %v523, %v514
  %v794 = vpack.c.b16 %v524, %v515
  %v795 = vpack.c.b16 %v525, %v516
  %v796 = vpack.c.b16 %v526, %v517
  %v797 = vpack.c.b16 %v527, %v518
  %v798 = vpack.c.b16 %v537, %v528
  %v799 = vpack.c.b16 %v538, %v529
  %v800 = vpack.c.b16 %v539, %v530
  %v801 = vpack.c.b16 %v540, %v531
  %v802 = vpack.c.b16 %v541, %v532
  %v803 = vpack.c.b16 %v542, %v533
  %v804 = vpack.c.b16 %v543, %v534
  %v805 = vpack.c.b16 %v544, %v535
  %v806 = vpack.c.b16 %v545, %v536
  %v807 = vpack.c.b16 %v555, %v546
  %v808 = vpack.c.b16 %v556, %v547
  %v809 = vpack.c.b16 %v557, %v548
  %v810 = vpack.c.b16 %v558, %v549
  %v811 = vpack.c.b16 %v559, %v550
  %v812 = vpack.c.b16 %v560, %v551
  %v813 = vpack.c.b16 %v561, %v552
  %v814 = vpack.c.b16 %v562, %v553
  %v815 = vpack.c.b16 %v563, %v554
  %v816 = vpack.c.b16 %v573, %v564
  %v817 = vpack.c.b16 %v574, %v565
  %v818 = vpack.c.b16 %v575, %v566
  %v819 = vpack.c.b16 %v576, %v567
  %v820 = vpack.c.b16 %v577, %v568
  %v821 = vpack.c.b16 %v578, %v569
  %v822 = vpack.c.b16 %v579, %v570
  %v823 = vpack.c.b16 %v580, %v571
  %v824 = vpack.c.b16 %v581, %v572
  %v825 = vpack.c.b16 %v591, %v582
  %v826 = vpack.c.b16 %v592, %v583
  %v827 = vpack.c.b16 %v593, %v584
  %v828 = vpack.c.b16 %v594, %v585
  %v829 = vpack.c.b16 %v595, %v586
  %v830 = vpack.c.b16 %v596, %v587
  %v831 = vpack.c.b16 %v597, %v588
  %v832 = vpack.c.b16 %v598, %v589
  %v833 = vpack.c.b16 %v599, %v590
  %v834 = vpack.c.b16 %v609, %v600
  %v835 = vpack.c.b16 %v610, %v601
  %v836 = vpack.c.b16 %v611, %v602
  %v837 = vpack.c.b16 %v612, %v603
  %v838 = vpack.c.b16 %v613, %v604
  %v839 = vpack.c.b16 %v614, %v605
  %v840 = vpack.c.b16 %v615, %v606
  %v841 = vpack.c.b16 %v616, %v607
  %v842 = vpack.c.b16 %v617, %v608
  %v843 = vpack.c.b16 %v627, %v618
  %v844 = vpack.c.b16 %v628, %v619
  %v845 = vpack.c.b16 %v629, %v620
  %v846 = vpack.c.b16 %v630, %v621
  %v847 = vpack.c.b16 %v631, %v622
  %v848 = vpack.c.b16 %v632, %v623
  %v849 = vpack.c.b16 %v633, %v624
  %v850 = vpack.c.b16 %v634, %v625
  %v851 = vpack.c.b16 %v635, %v626
  %v852 = vpack.c.b16 %v645, %v636
  %v853 = vpack.c.b16 %v646, %v637
  %v854 = vpack.c.b16 %v647, %v638
  %v855 = vpack.c.b16 %v648, %v639
  %v856 = vpack.c.b16 %v649, %v640
  %v857 = vpack.c.b16 %v650, %v641
  %v858 = vpack.c.b16 %v651, %v642
  %v859 = vpack.c.b16 %v652, %v643
  %v860 = vpack.c.b16 %v653, %v644
  %v861 = vpack.c.b16 %v663, %v654
  %v862 = vpack.c.b16 %v664, %v655
  %v863 = vpack.c.b16 %v665, %v656
  %v864 = vpack.c.b16 %v666, %v657
  %v865 = vpack.c.b16 %v667, %v658
  %v866 = vpack.c.b16 %v668, %v659
  %v867 = vpack.c.b16 %v669, %v660
  %v868 = vpack.c.b16 %v670, %v661
  %v869 = vpack.c.b16 %v671, %v662
  %v870 = vpack.c.b16 %v681, %v672
  %v871 = vpack.c.b16 %v682, %v673
  %v872 = vpack.c.b16 %v683, %v674
  %v873 = vpack.c.b16 %v684, %v675
  %v874 = vpack.c.b16 %v685, %v676
  %v875 = vpack.c.b16 %v686, %v677
  %v876 = vpack.c.b16 %v687, %v678
  %v877 = vpack.c.b16 %v688, %v679
  %v878 = vpack.c.b16 %v689, %v680
  %v879 = vpack.c.b16 %v699, %v690
  %v880 = vpack.c.b16 %v700, %v691
  %v881 = vpack.c.b16 %v701, %v692
  %v882 = vpack.c.b16 %v702, %v693
  %v883 = vpack.c.b16 %v703, %v694
  %v884 = vpack.c.b16 %v704, %v695
  %v885 = vpack.c.b16 %v705, %v696
  %v886 = vpack.c.b16 %v706, %v697
  %v887 = vpack.c.b16 %v707, %v698
  %v888 = vpack.c.b16 %v717, %v708
  %v889 = vpack.c.b16 %v718, %v709
  %v890 = vpack.c.b16 %v719, %v710
  %v891 = vpack.c.b16 %v720, %v711
  %v892 = vpack.c.b16 %v721, %v712
  %v893 = vpack.c.b16 %v722, %v713
  %v894 = vpack.c.b16 %v723, %v714
  %v895 = vpack.c.b16 %v724, %v715
  %v896 = vpack.c.b16 %v725, %v716
  %v897 = vpack.c.b16 %v735, %v726
  %v898 = vpack.c.b16 %v736, %v727
  %v899 = vpack.c.b16 %v737, %v728
  %v900 = vpack.c.b16 %v738, %v729
  %v901 = vpack.c.b16 %v739, %v730
  %v902 = vpack.c.b16 %v740, %v731
  %v903 = vpack.c.b16 %v741, %v732
  %v904 = vpack.c.b16 %v742, %v733
  %v905 = vpack.c.b16 %v743, %v734
  %v906 = vpack.c.b16 %v753, %v744
  %v907 = vpack.c.b16 %v754, %v745
  %v908 = vpack.c.b16 %v755, %v746
  %v909 = vpack.c.b16 %v756, %v747
  %v910 = vpack.c.b16 %v757, %v748
  %v911 = vpack.c.b16 %v758, %v749
  %v912 = vpack.c.b16 %v759, %v750
  %v913 = vpack.c.b16 %v760, %v751
  %v914 = vpack.c.b16 %v761, %v752
  %v915 = vpack.c.b16 %v771, %v762
  %v916 = vpack.c.b16 %v772, %v763
  %v917 = vpack.c.b16 %v773, %v764
  %v918 = vpack.c.b16 %v774, %v765
  %v919 = vpack.c.b16 %v775, %v766
  %v920 = vpack.c.b16 %v776, %v767
  %v921 = vpack.c.b16 %v777, %v768
  %v922 = vpack.c.b16 %v778, %v769
  %v923 = vpack.c.b16 %v779, %v770
  %v1212 = vunpack.c.l.b16 %v181
  %v1213 = vunpack.c.l.b16 %v182
  %v1214 = vunpack.c.l.b16 %v183
  %v1215 = vunpack.c.l.b16 %v184
  %v1216 = vunpack.c.l.b16 %v185
  %v1217 = vunpack.c.l.b16 %v186
  %v1218 = vunpack.c.l.b16 %v187
  %v1219 = vunpack.c.l.b16 %v188
  %v1220 = vunpack.c.l.b16 %v189
  %v1221 = vunpack.c.l.b16 %v190
  %v1222 = vunpack.c.l.b16 %v191
  %v1223 = vunpack.c.l.b16 %v192
  %v1224 = vunpack.c.l.b16 %v193
  %v1225 = vunpack.c.l.b16 %v194
  %v1226 = vunpack.c.l.b16 %v195
  %v1227 = vunpack.c.l.b16 %v196
  %v1228 = vunpack.c.l.b16 %v197
  %v1229 = vunpack.c.l.b16 %v198
  %v1230 = vunpack.c.l.b16 %v199
  %v1231 = vunpack.c.l.b16 %v200
  %v1232 = vunpack.c.l.b16 %v201
  %v1233 = vunpack.c.l.b16 %v202
  %v1234 = vunpack.c.l.b16 %v203
  %v1235 = vunpack.c.l.b16 %v204
  %v1236 = vunpack.c.l.b16 %v205
  %v1237 = vunpack.c.l.b16 %v206
  %v1238 = vunpack.c.l.b16 %v207
  %v1239 = vunpack.c.l.b16 %v208
  %v1240 = vunpack.c.l.b16 %v209
  %v1241 = vunpack.c.l.b16 %v210
  %v1242 = vunpack.c.l.b16 %v211
  %v1243 = vunpack.c.l.b16 %v212
  %v1244 = vunpack.c.l.b16 %v213
  %v1245 = vunpack.c.l.b16 %v214
  %v1246 = vunpack.c.l.b16 %v215
  %v1247 = vunpack.c.l.b16 %v216
  %v1248 = vunpack.c.l.b16 %v217
  %v1249 = vunpack.c.l.b16 %v218
  %v1250 = vunpack.c.l.b16 %v219
  %v1251 = vunpack.c.l.b16 %v220
  %v1252 = vunpack.c.l.b16 %v221
  %v1253 = vunpack.c.l.b16 %v222
  %v1254 = vunpack.c.l.b16 %v223
  %v1255 = vunpack.c.l.b16 %v224
  %v1256 = vunpack.c.l.b16 %v225
  %v1257 = vunpack.c.l.b16 %v226
  %v1258 = vunpack.c.l.b16 %v227
  %v1259 = vunpack.c.l.b16 %v228
  %v1260 = vunpack.c.l.b16 %v229
  %v1261 = vunpack.c.l.b16 %v230
  %v1262 = vunpack.c.l.b16 %v231
  %v1263 = vunpack.c.l.b16 %v232
  %v1264 = vunpack.c.l.b16 %v233
  %v1265 = vunpack.c.l.b16 %v234
  %v1266 = vunpack.c.l.b16 %v235
  %v1267 = vunpack.c.l.b16 %v236
  %v1268 = vunpack.c.l.b16 %v237
  %v1269 = vunpack.c.l.b16 %v238
  %v1270 = vunpack.c.l.b16 %v239
  %v1271 = vunpack.c.l.b16 %v240
  %v1272 = vunpack.c.l.b16 %v241
  %v1273 = vunpack.c.l.b16 %v242
  %v1274 = vunpack.c.l.b16 %v243
  %v1275 = vunpack.c.l.b16 %v244
  %v1276 = vunpack.c.l.b16 %v245
  %v1277 = vunpack.c.l.b16 %v246
  %v1278 = vunpack.c.l.b16 %v247
  %v1279 = vunpack.c.l.b16 %v248
  %v1280 = vunpack.c.l.b16 %v249
  %v1281 = vunpack.c.l.b16 %v250
  %v1282 = vunpack.c.l.b16 %v251
  %v1283 = vunpack.c.l.b16 %v252
  %v1284 = vunpack.c.l.b16 %v253
  %v1285 = vunpack.c.l.b16 %v254
  %v1286 = vunpack.c.l.b16 %v255
  %v1287 = vunpack.c.l.b16 %v256
  %v1288 = vunpack.c.l.b16 %v257
  %v1289 = vunpack.c.l.b16 %v258
  %v1290 = vunpack.c.l.b16 %v259
  %v1291 = vunpack.c.l.b16 %v260
  %v1292 = vunpack.c.l.b16 %v261
  %v1293 = vunpack.c.l.b16 %v262
  %v1294 = vunpack.c.l.b16 %v263
  %v1295 = vunpack.c.l.b16 %v264
  %v1296 = vunpack.c.l.b16 %v265
  %v1297 = vunpack.c.l.b16 %v266
  %v1298 = vunpack.c.l.b16 %v267
  %v1299 = vunpack.c.l.b16 %v268
  %v1300 = vunpack.c.l.b16 %v269
  %v1301 = vunpack.c.l.b16 %v270
  %v1302 = vunpack.c.l.b16 %v271
  %v1303 = vunpack.c.l.b16 %v272
  %v1304 = vunpack.c.l.b16 %v273
  %v1305 = vunpack.c.l.b16 %v274
  %v1306 = vunpack.c.l.b16 %v275
  %v1307 = vunpack.c.l.b16 %v276
  %v1308 = vunpack.c.l.b16 %v277
  %v1309 = vunpack.c.l.b16 %v278
  %v1310 = vunpack.c.l.b16 %v279
  %v1311 = vunpack.c.l.b16 %v280
  %v1312 = vunpack.c.l.b16 %v281
  %v1313 = vunpack.c.l.b16 %v282
  %v1314 = vunpack.c.l.b16 %v283
  %v1315 = vunpack.c.l.b16 %v284
  %v1316 = vunpack.c.l.b16 %v285
  %v1317 = vunpack.c.l.b16 %v286
  %v1318 = vunpack.c.l.b16 %v287
  %v1319 = vunpack.c.l.b16 %v288
  %v1320 = vunpack.c.l.b16 %v289
  %v1321 = vunpack.c.l.b16 %v290
  %v1322 = vunpack.c.l.b16 %v291
  %v1323 = vunpack.c.l.b16 %v292
  %v1324 = vunpack.c.l.b16 %v293
  %v1325 = vunpack.c.l.b16 %v294
  %v1326 = vunpack.c.l.b16 %v295
  %v1327 = vunpack.c.l.b16 %v296
  %v1328 = vunpack.c.l.b16 %v297
  %v1329 = vunpack.c.l.b16 %v298
  %v1330 = vunpack.c.l.b16 %v299
  %v1331 = vunpack.c.l.b16 %v300
  %v1332 = vunpack.c.l.b16 %v301
  %v1333 = vunpack.c.l.b16 %v302
  %v1334 = vunpack.c.l.b16 %v303
  %v1335 = vunpack.c.l.b16 %v304
  %v1336 = vunpack.c.l.b16 %v305
  %v1337 = vunpack.c.l.b16 %v306
  %v1338 = vunpack.c.l.b16 %v307
  %v1339 = vunpack.c.l.b16 %v308
  %v1340 = vunpack.c.l.b16 %v309
  %v1341 = vunpack.c.l.b16 %v310
  %v1342 = vunpack.c.l.b16 %v311
  %v1343 = vunpack.c.l.b16 %v312
  %v1344 = vunpack.c.l.b16 %v313
  %v1345 = vunpack.c.l.b16 %v314
  %v1346 = vunpack.c.l.b16 %v315
  %v1347 = vunpack.c.l.b16 %v316
  %v1348 = vunpack.c.l.b16 %v317
  %v1349 = vunpack.c.l.b16 %v318
  %v1350 = vunpack.c.l.b16 %v319
  %v1351 = vunpack.c.l.b16 %v320
  %v1352 = vunpack.c.l.b16 %v321
  %v1353 = vunpack.c.l.b16 %v322
  %v1354 = vunpack.c.l.b16 %v323
  %v1355 = vunpack.c.l.b16 %v324
  %v1356 = vpack.c.b16 %v1213, %v1212
  %v1357 = vpack.c.b16 %v1215, %v1214
  %v1358 = vpack.c.b16 %v1217, %v1216
  %v1359 = vpack.c.b16 %v1219, %v1218
  %v1360 = vpack.c.b16 %v1221, %v1220
  %v1361 = vpack.c.b16 %v1223, %v1222
  %v1362 = vpack.c.b16 %v1225, %v1224
  %v1363 = vpack.c.b16 %v1227, %v1226
  %v1364 = vpack.c.b16 %v1229, %v1228
  %v1365 = vpack.c.b16 %v1231, %v1230
  %v1366 = vpack.c.b16 %v1233, %v1232
  %v1367 = vpack.c.b16 %v1235, %v1234
  %v1368 = vpack.c.b16 %v1237, %v1236
  %v1369 = vpack.c.b16 %v1239, %v1238
  %v1370 = vpack.c.b16 %v1241, %v1240
  %v1371 = vpack.c.b16 %v1243, %v1242
  %v1372 = vpack.c.b16 %v1245, %v1244
  %v1373 = vpack.c.b16 %v1247, %v1246
  %v1374 = vpack.c.b16 %v1249, %v1248
  %v1375 = vpack.c.b16 %v1251, %v1250
  %v1376 = vpack.c.b16 %v1253, %v1252
  %v1377 = vpack.c.b16 %v1255, %v1254
  %v1378 = vpack.c.b16 %v1257, %v1256
  %v1379 = vpack.c.b16 %v1259, %v1258
  %v1380 = vpack.c.b16 %v1261, %v1260
  %v1381 = vpack.c.b16 %v1263, %v1262
  %v1382 = vpack.c.b16 %v1265, %v1264
  %v1383 = vpack.c.b16 %v1267, %v1266
  %v1384 = vpack.c.b16 %v1269, %v1268
  %v1385 = vpack.c.b16 %v1271, %v1270
  %v1386 = vpack.c.b16 %v1273, %v1272
  %v1387 = vpack.c.b16 %v1275, %v1274
  %v1388 = vpack.c.b16 %v1277, %v1276
  %v1389 = vpack.c.b16 %v1279, %v1278
  %v1390 = vpack.c.b16 %v1281, %v1280
  %v1391 = vpack.c.b16 %v1283, %v1282
  %v1392 = vpack.c.b16 %v1285, %v1284
  %v1393 = vpack.c.b16 %v1287, %v1286
  %v1394 = vpack.c.b16 %v1289, %v1288
  %v1395 = vpack.c.b16 %v1291, %v1290
  %v1396 = vpack.c.b16 %v1293, %v1292
  %v1397 = vpack.c.b16 %v1295, %v1294
  %v1398 = vpack.c.b16 %v1297, %v1296
  %v1399 = vpack.c.b16 %v1299, %v1298
  %v1400 = vpack.c.b16 %v1301, %v1300
  %v1401 = vpack.c.b16 %v1303, %v1302
  %v1402 = vpack.c.b16 %v1305, %v1304
  %v1403 = vpack.c.b16 %v1307, %v1306
  %v1404 = vpack.c.b16 %v1309, %v1308
  %v1405 = vpack.c.b16 %v1311, %v1310
  %v1406 = vpack.c.b16 %v1313, %v1312
  %v1407 = vpack.c.b16 %v1315, %v1314
  %v1408 = vpack.c.b16 %v1317, %v1316
  %v1409 = vpack.c.b16 %v1319, %v1318
  %v1410 = vpack.c.b16 %v1321, %v1320
  %v1411 = vpack.c.b16 %v1323, %v1322
  %v1412 = vpack.c.b16 %v1325, %v1324
  %v1413 = vpack.c.b16 %v1327, %v1326
  %v1414 = vpack.c.b16 %v1329, %v1328
  %v1415 = vpack.c.b16 %v1331, %v1330
  %v1416 = vpack.c.b16 %v1333, %v1332
  %v1417 = vpack.c.b16 %v1335, %v1334
  %v1418 = vpack.c.b16 %v1337, %v1336
  %v1419 = vpack.c.b16 %v1339, %v1338
  %v1420 = vpack.c.b16 %v1341, %v1340
  %v1421 = vpack.c.b16 %v1343, %v1342
  %v1422 = vpack.c.b16 %v1345, %v1344
  %v1423 = vpack.c.b16 %v1347, %v1346
  %v1424 = vpack.c.b16 %v1349, %v1348
  %v1425 = vpack.c.b16 %v1351, %v1350
  %v1426 = vpack.c.b16 %v1353, %v1352
  %v1427 = vpack.c.b16 %v1355, %v1354
  %1500 = vmatprep.subr.bf16.mxu0 0
  %1501 = vmatpush1.bf16.msra.mxu0 %v1363
  %1502 = vmatprep.subr.bf16.mxu0 0
  %1503 = vmatpush1.bf16.msra.mxu0 %v1362
  %1504 = vmatprep.subr.bf16.mxu0 0
  %1505 = vmatpush1.bf16.msra.mxu0 %v1361
  %1506 = vmatprep.subr.bf16.mxu0 0
  %1507 = vmatpush1.bf16.msra.mxu0 %v1360
  %1508 = vmatprep.subr.bf16.mxu0 0
  %1509 = vmatpush1.bf16.msra.mxu0 %v1359
  %1510 = vmatprep.subr.bf16.mxu0 0
  %1511 = vmatpush1.bf16.msra.mxu0 %v1358
  %1512 = vmatprep.subr.bf16.mxu0 0
  %1513 = vmatpush1.bf16.msra.mxu0 %v1357
  %1514 = vmatprep.subr.bf16.mxu0 0
  %1515 = vmatpush1.bf16.msra.mxu0 %v1356
  %1516 = vmatprep.subr.bf16.mxu0 0
  %1517 = vmatpush2.bf16.msra.mxu0 %v1371
  %1518 = vmatprep.subr.bf16.mxu0 0
  %1519 = vmatpush2.bf16.msra.mxu0 %v1370
  %1520 = vmatprep.subr.bf16.mxu0 0
  %1521 = vmatpush2.bf16.msra.mxu0 %v1369
  %1522 = vmatprep.subr.bf16.mxu0 0
  %1523 = vmatpush2.bf16.msra.mxu0 %v1368
  %1524 = vmatprep.subr.bf16.mxu0 0
  %1525 = vmatpush2.bf16.msra.mxu0 %v1367
  %1526 = vmatprep.subr.bf16.mxu0 0
  %1527 = vmatpush2.bf16.msra.mxu0 %v1366
  %1528 = vmatprep.subr.bf16.mxu0 0
  %1529 = vmatpush2.bf16.msra.mxu0 %v1365
  %1530 = vmatprep.subr.bf16.mxu0 0
  %1531 = vmatpush2.bf16.msra.mxu0 %v1364
  %1532 = vmatprep.mubr.bf16.mxu0 %v781
  %1533 = vmatmul.mubr.bf16.gmra.mxu0 %v780
  %v1534 = vpop.f32.mrf.mxu0
  %v1535 = vadd.f32 %v330, %v1534
  %v1536 = vpop.f32.mrf.mxu0
  %v1537 = vpop.f32.mrf.mxu0
  %v1538 = vadd.f32 %v330, %v1537
  %v1539 = vpop.f32.mrf.mxu0
  %1540 = vmatprep.mubr.bf16.mxu0 %v790
  %1541 = vmatmul.mubr.bf16.gmra.mxu0 %v789
  %v1542 = vpop.f32.mrf.mxu0
  %v1543 = vadd.f32 %v330, %v1542
  %v1544 = vpop.f32.mrf.mxu0
  %v1545 = vpop.f32.mrf.mxu0
  %v1546 = vadd.f32 %v330, %v1545
  %v1547 = vpop.f32.mrf.mxu0
  %1548 = vmatprep.mubr.bf16.mxu0 %v799
  %1549 = vmatmul.mubr.bf16.gmra.mxu0 %v798
  %v1550 = vpop.f32.mrf.mxu0
  %v1551 = vadd.f32 %v330, %v1550
  %v1552 = vpop.f32.mrf.mxu0
  %v1553 = vpop.f32.mrf.mxu0
  %v1554 = vadd.f32 %v330, %v1553
  %v1555 = vpop.f32.mrf.mxu0
  %1556 = vmatprep.mubr.bf16.mxu0 %v808
  %1557 = vmatmul.mubr.bf16.gmra.mxu0 %v807
  %v1558 = vpop.f32.mrf.mxu0
  %v1559 = vadd.f32 %v330, %v1558
  %v1560 = vpop.f32.mrf.mxu0
  %v1561 = vpop.f32.mrf.mxu0
  %v1562 = vadd.f32 %v330, %v1561
  %v1563 = vpop.f32.mrf.mxu0
  %1564 = vmatprep.mubr.bf16.mxu0 %v817
  %1565 = vmatmul.mubr.bf16.gmra.mxu0 %v816
  %v1566 = vpop.f32.mrf.mxu0
  %v1567 = vadd.f32 %v330, %v1566
  %v1568 = vpop.f32.mrf.mxu0
  %v1569 = vpop.f32.mrf.mxu0
  %v1570 = vadd.f32 %v330, %v1569
  %v1571 = vpop.f32.mrf.mxu0
  %1572 = vmatprep.mubr.bf16.mxu0 %v826
  %1573 = vmatmul.mubr.bf16.gmra.mxu0 %v825
  %v1574 = vpop.f32.mrf.mxu0
  %v1575 = vadd.f32 %v330, %v1574
  %v1576 = vpop.f32.mrf.mxu0
  %v1577 = vpop.f32.mrf.mxu0
  %v1578 = vadd.f32 %v330, %v1577
  %v1579 = vpop.f32.mrf.mxu0
  %1580 = vmatprep.mubr.bf16.mxu0 %v835
  %1581 = vmatmul.mubr.bf16.gmra.mxu0 %v834
  %v1582 = vpop.f32.mrf.mxu0
  %v1583 = vadd.f32 %v330, %v1582
  %v1584 = vpop.f32.mrf.mxu0
  %v1585 = vpop.f32.mrf.mxu0
  %v1586 = vadd.f32 %v330, %v1585
  %v1587 = vpop.f32.mrf.mxu0
  %1588 = vmatprep.mubr.bf16.mxu0 %v844
  %1589 = vmatmul.mubr.bf16.gmra.mxu0 %v843
  %v1590 = vpop.f32.mrf.mxu0
  %v1591 = vadd.f32 %v330, %v1590
  %v1592 = vpop.f32.mrf.mxu0
  %v1593 = vpop.f32.mrf.mxu0
  %v1594 = vadd.f32 %v330, %v1593
  %v1595 = vpop.f32.mrf.mxu0
  %1596 = vmatprep.mubr.bf16.mxu0 %v853
  %1597 = vmatmul.mubr.bf16.gmra.mxu0 %v852
  %v1598 = vpop.f32.mrf.mxu0
  %v1599 = vadd.f32 %v330, %v1598
  %v1600 = vpop.f32.mrf.mxu0
  %v1601 = vpop.f32.mrf.mxu0
  %v1602 = vadd.f32 %v330, %v1601
  %v1603 = vpop.f32.mrf.mxu0
  %1604 = vmatprep.mubr.bf16.mxu0 %v862
  %1605 = vmatmul.mubr.bf16.gmra.mxu0 %v861
  %v1606 = vpop.f32.mrf.mxu0
  %v1607 = vadd.f32 %v330, %v1606
  %v1608 = vpop.f32.mrf.mxu0
  %v1609 = vpop.f32.mrf.mxu0
  %v1610 = vadd.f32 %v330, %v1609
  %v1611 = vpop.f32.mrf.mxu0
  %1612 = vmatprep.mubr.bf16.mxu0 %v871
  %1613 = vmatmul.mubr.bf16.gmra.mxu0 %v870
  %v1614 = vpop.f32.mrf.mxu0
  %v1615 = vadd.f32 %v330, %v1614
  %v1616 = vpop.f32.mrf.mxu0
  %v1617 = vpop.f32.mrf.mxu0
  %v1618 = vadd.f32 %v330, %v1617
  %v1619 = vpop.f32.mrf.mxu0
  %1620 = vmatprep.mubr.bf16.mxu0 %v880
  %1621 = vmatmul.mubr.bf16.gmra.mxu0 %v879
  %v1622 = vpop.f32.mrf.mxu0
  %v1623 = vadd.f32 %v330, %v1622
  %v1624 = vpop.f32.mrf.mxu0
  %v1625 = vpop.f32.mrf.mxu0
  %v1626 = vadd.f32 %v330, %v1625
  %v1627 = vpop.f32.mrf.mxu0
  %1628 = vmatprep.mubr.bf16.mxu0 %v889
  %1629 = vmatmul.mubr.bf16.gmra.mxu0 %v888
  %v1630 = vpop.f32.mrf.mxu0
  %v1631 = vadd.f32 %v330, %v1630
  %v1632 = vpop.f32.mrf.mxu0
  %v1633 = vpop.f32.mrf.mxu0
  %v1634 = vadd.f32 %v330, %v1633
  %v1635 = vpop.f32.mrf.mxu0
  %1636 = vmatprep.mubr.bf16.mxu0 %v898
  %1637 = vmatmul.mubr.bf16.gmra.mxu0 %v897
  %v1638 = vpop.f32.mrf.mxu0
  %v1639 = vadd.f32 %v330, %v1638
  %v1640 = vpop.f32.mrf.mxu0
  %v1641 = vpop.f32.mrf.mxu0
  %v1642 = vadd.f32 %v330, %v1641
  %v1643 = vpop.f32.mrf.mxu0
  %1644 = vmatprep.mubr.bf16.mxu0 %v907
  %1645 = vmatmul.mubr.bf16.gmra.mxu0 %v906
  %v1646 = vpop.f32.mrf.mxu0
  %v1647 = vadd.f32 %v330, %v1646
  %v1648 = vpop.f32.mrf.mxu0
  %v1649 = vpop.f32.mrf.mxu0
  %v1650 = vadd.f32 %v330, %v1649
  %v1651 = vpop.f32.mrf.mxu0
  %1652 = vmatprep.mubr.bf16.mxu0 %v916
  %1653 = vmatmul.mubr.bf16.gmra.mxu0 %v915
  %v1654 = vpop.f32.mrf.mxu0
  %v1655 = vadd.f32 %v330, %v1654
  %v1656 = vpop.f32.mrf.mxu0
  %v1657 = vpop.f32.mrf.mxu0
  %v1658 = vadd.f32 %v330, %v1657
  %v1659 = vpop.f32.mrf.mxu0
  %1660 = vdwg.mxu0
  %1661 = vmatprep.subr.bf16.mxu0 0
  %1662 = vmatpush1.bf16.msra.mxu0 %v1379
  %1663 = vmatprep.subr.bf16.mxu0 0
  %1664 = vmatpush1.bf16.msra.mxu0 %v1378
  %1665 = vmatprep.subr.bf16.mxu0 0
  %1666 = vmatpush1.bf16.msra.mxu0 %v1377
  %1667 = vmatprep.subr.bf16.mxu0 0
  %1668 = vmatpush1.bf16.msra.mxu0 %v1376
  %1669 = vmatprep.subr.bf16.mxu0 0
  %1670 = vmatpush1.bf16.msra.mxu0 %v1375
  %1671 = vmatprep.subr.bf16.mxu0 0
  %1672 = vmatpush1.bf16.msra.mxu0 %v1374
  %1673 = vmatprep.subr.bf16.mxu0 0
  %1674 = vmatpush1.bf16.msra.mxu0 %v1373
  %1675 = vmatprep.subr.bf16.mxu0 0
  %1676 = vmatpush1.bf16.msra.mxu0 %v1372
  %1677 = vmatprep.subr.bf16.mxu0 0
  %1678 = vmatpush2.bf16.msra.mxu0 %v1387
  %1679 = vmatprep.subr.bf16.mxu0 0
  %1680 = vmatpush2.bf16.msra.mxu0 %v1386
  %1681 = vmatprep.subr.bf16.mxu0 0
  %1682 = vmatpush2.bf16.msra.mxu0 %v1385
  %1683 = vmatprep.subr.bf16.mxu0 0
  %1684 = vmatpush2.bf16.msra.mxu0 %v1384
  %1685 = vmatprep.subr.bf16.mxu0 0
  %1686 = vmatpush2.bf16.msra.mxu0 %v1383
  %1687 = vmatprep.subr.bf16.mxu0 0
  %1688 = vmatpush2.bf16.msra.mxu0 %v1382
  %1689 = vmatprep.subr.bf16.mxu0 0
  %1690 = vmatpush2.bf16.msra.mxu0 %v1381
  %1691 = vmatprep.subr.bf16.mxu0 0
  %1692 = vmatpush2.bf16.msra.mxu0 %v1380
  %1693 = vmatprep.mubr.bf16.mxu0 %v783
  %1694 = vmatmul.mubr.bf16.gmra.mxu0 %v782
  %v1695 = vpop.f32.mrf.mxu0
  %v1696 = vadd.f32 %v1535, %v1695
  %v1697 = vpop.f32.mrf.mxu0
  %v1698 = vpop.f32.mrf.mxu0
  %v1699 = vadd.f32 %v1538, %v1698
  %v1700 = vpop.f32.mrf.mxu0
  %1701 = vmatprep.mubr.bf16.mxu0 %v792
  %1702 = vmatmul.mubr.bf16.gmra.mxu0 %v791
  %v1703 = vpop.f32.mrf.mxu0
  %v1704 = vadd.f32 %v1543, %v1703
  %v1705 = vpop.f32.mrf.mxu0
  %v1706 = vpop.f32.mrf.mxu0
  %v1707 = vadd.f32 %v1546, %v1706
  %v1708 = vpop.f32.mrf.mxu0
  %1709 = vmatprep.mubr.bf16.mxu0 %v801
  %1710 = vmatmul.mubr.bf16.gmra.mxu0 %v800
  %v1711 = vpop.f32.mrf.mxu0
  %v1712 = vadd.f32 %v1551, %v1711
  %v1713 = vpop.f32.mrf.mxu0
  %v1714 = vpop.f32.mrf.mxu0
  %v1715 = vadd.f32 %v1554, %v1714
  %v1716 = vpop.f32.mrf.mxu0
  %1717 = vmatprep.mubr.bf16.mxu0 %v810
  %1718 = vmatmul.mubr.bf16.gmra.mxu0 %v809
  %v1719 = vpop.f32.mrf.mxu0
  %v1720 = vadd.f32 %v1559, %v1719
  %v1721 = vpop.f32.mrf.mxu0
  %v1722 = vpop.f32.mrf.mxu0
  %v1723 = vadd.f32 %v1562, %v1722
  %v1724 = vpop.f32.mrf.mxu0
  %1725 = vmatprep.mubr.bf16.mxu0 %v819
  %1726 = vmatmul.mubr.bf16.gmra.mxu0 %v818
  %v1727 = vpop.f32.mrf.mxu0
  %v1728 = vadd.f32 %v1567, %v1727
  %v1729 = vpop.f32.mrf.mxu0
  %v1730 = vpop.f32.mrf.mxu0
  %v1731 = vadd.f32 %v1570, %v1730
  %v1732 = vpop.f32.mrf.mxu0
  %1733 = vmatprep.mubr.bf16.mxu0 %v828
  %1734 = vmatmul.mubr.bf16.gmra.mxu0 %v827
  %v1735 = vpop.f32.mrf.mxu0
  %v1736 = vadd.f32 %v1575, %v1735
  %v1737 = vpop.f32.mrf.mxu0
  %v1738 = vpop.f32.mrf.mxu0
  %v1739 = vadd.f32 %v1578, %v1738
  %v1740 = vpop.f32.mrf.mxu0
  %1741 = vmatprep.mubr.bf16.mxu0 %v837
  %1742 = vmatmul.mubr.bf16.gmra.mxu0 %v836
  %v1743 = vpop.f32.mrf.mxu0
  %v1744 = vadd.f32 %v1583, %v1743
  %v1745 = vpop.f32.mrf.mxu0
  %v1746 = vpop.f32.mrf.mxu0
  %v1747 = vadd.f32 %v1586, %v1746
  %v1748 = vpop.f32.mrf.mxu0
  %1749 = vmatprep.mubr.bf16.mxu0 %v846
  %1750 = vmatmul.mubr.bf16.gmra.mxu0 %v845
  %v1751 = vpop.f32.mrf.mxu0
  %v1752 = vadd.f32 %v1591, %v1751
  %v1753 = vpop.f32.mrf.mxu0
  %v1754 = vpop.f32.mrf.mxu0
  %v1755 = vadd.f32 %v1594, %v1754
  %v1756 = vpop.f32.mrf.mxu0
  %1757 = vmatprep.mubr.bf16.mxu0 %v855
  %1758 = vmatmul.mubr.bf16.gmra.mxu0 %v854
  %v1759 = vpop.f32.mrf.mxu0
  %v1760 = vadd.f32 %v1599, %v1759
  %v1761 = vpop.f32.mrf.mxu0
  %v1762 = vpop.f32.mrf.mxu0
  %v1763 = vadd.f32 %v1602, %v1762
  %v1764 = vpop.f32.mrf.mxu0
  %1765 = vmatprep.mubr.bf16.mxu0 %v864
  %1766 = vmatmul.mubr.bf16.gmra.mxu0 %v863
  %v1767 = vpop.f32.mrf.mxu0
  %v1768 = vadd.f32 %v1607, %v1767
  %v1769 = vpop.f32.mrf.mxu0
  %v1770 = vpop.f32.mrf.mxu0
  %v1771 = vadd.f32 %v1610, %v1770
  %v1772 = vpop.f32.mrf.mxu0
  %1773 = vmatprep.mubr.bf16.mxu0 %v873
  %1774 = vmatmul.mubr.bf16.gmra.mxu0 %v872
  %v1775 = vpop.f32.mrf.mxu0
  %v1776 = vadd.f32 %v1615, %v1775
  %v1777 = vpop.f32.mrf.mxu0
  %v1778 = vpop.f32.mrf.mxu0
  %v1779 = vadd.f32 %v1618, %v1778
  %v1780 = vpop.f32.mrf.mxu0
  %1781 = vmatprep.mubr.bf16.mxu0 %v882
  %1782 = vmatmul.mubr.bf16.gmra.mxu0 %v881
  %v1783 = vpop.f32.mrf.mxu0
  %v1784 = vadd.f32 %v1623, %v1783
  %v1785 = vpop.f32.mrf.mxu0
  %v1786 = vpop.f32.mrf.mxu0
  %v1787 = vadd.f32 %v1626, %v1786
  %v1788 = vpop.f32.mrf.mxu0
  %1789 = vmatprep.mubr.bf16.mxu0 %v891
  %1790 = vmatmul.mubr.bf16.gmra.mxu0 %v890
  %v1791 = vpop.f32.mrf.mxu0
  %v1792 = vadd.f32 %v1631, %v1791
  %v1793 = vpop.f32.mrf.mxu0
  %v1794 = vpop.f32.mrf.mxu0
  %v1795 = vadd.f32 %v1634, %v1794
  %v1796 = vpop.f32.mrf.mxu0
  %1797 = vmatprep.mubr.bf16.mxu0 %v900
  %1798 = vmatmul.mubr.bf16.gmra.mxu0 %v899
  %v1799 = vpop.f32.mrf.mxu0
  %v1800 = vadd.f32 %v1639, %v1799
  %v1801 = vpop.f32.mrf.mxu0
  %v1802 = vpop.f32.mrf.mxu0
  %v1803 = vadd.f32 %v1642, %v1802
  %v1804 = vpop.f32.mrf.mxu0
  %1805 = vmatprep.mubr.bf16.mxu0 %v909
  %1806 = vmatmul.mubr.bf16.gmra.mxu0 %v908
  %v1807 = vpop.f32.mrf.mxu0
  %v1808 = vadd.f32 %v1647, %v1807
  %v1809 = vpop.f32.mrf.mxu0
  %v1810 = vpop.f32.mrf.mxu0
  %v1811 = vadd.f32 %v1650, %v1810
  %v1812 = vpop.f32.mrf.mxu0
  %1813 = vmatprep.mubr.bf16.mxu0 %v918
  %1814 = vmatmul.mubr.bf16.gmra.mxu0 %v917
  %v1815 = vpop.f32.mrf.mxu0
  %v1816 = vadd.f32 %v1655, %v1815
  %v1817 = vpop.f32.mrf.mxu0
  %v1818 = vpop.f32.mrf.mxu0
  %v1819 = vadd.f32 %v1658, %v1818
  %v1820 = vpop.f32.mrf.mxu0
  %1821 = vdwg.mxu0
  %1822 = vmatprep.subr.bf16.mxu0 0
  %1823 = vmatpush1.bf16.msra.mxu0 %v1395
  %1824 = vmatprep.subr.bf16.mxu0 0
  %1825 = vmatpush1.bf16.msra.mxu0 %v1394
  %1826 = vmatprep.subr.bf16.mxu0 0
  %1827 = vmatpush1.bf16.msra.mxu0 %v1393
  %1828 = vmatprep.subr.bf16.mxu0 0
  %1829 = vmatpush1.bf16.msra.mxu0 %v1392
  %1830 = vmatprep.subr.bf16.mxu0 0
  %1831 = vmatpush1.bf16.msra.mxu0 %v1391
  %1832 = vmatprep.subr.bf16.mxu0 0
  %1833 = vmatpush1.bf16.msra.mxu0 %v1390
  %1834 = vmatprep.subr.bf16.mxu0 0
  %1835 = vmatpush1.bf16.msra.mxu0 %v1389
  %1836 = vmatprep.subr.bf16.mxu0 0
  %1837 = vmatpush1.bf16.msra.mxu0 %v1388
  %1838 = vmatprep.subr.bf16.mxu0 0
  %1839 = vmatpush2.bf16.msra.mxu0 %v1403
  %1840 = vmatprep.subr.bf16.mxu0 0
  %1841 = vmatpush2.bf16.msra.mxu0 %v1402
  %1842 = vmatprep.subr.bf16.mxu0 0
  %1843 = vmatpush2.bf16.msra.mxu0 %v1401
  %1844 = vmatprep.subr.bf16.mxu0 0
  %1845 = vmatpush2.bf16.msra.mxu0 %v1400
  %1846 = vmatprep.subr.bf16.mxu0 0
  %1847 = vmatpush2.bf16.msra.mxu0 %v1399
  %1848 = vmatprep.subr.bf16.mxu0 0
  %1849 = vmatpush2.bf16.msra.mxu0 %v1398
  %1850 = vmatprep.subr.bf16.mxu0 0
  %1851 = vmatpush2.bf16.msra.mxu0 %v1397
  %1852 = vmatprep.subr.bf16.mxu0 0
  %1853 = vmatpush2.bf16.msra.mxu0 %v1396
  %1854 = vmatprep.mubr.bf16.mxu0 %v785
  %1855 = vmatmul.mubr.bf16.gmra.mxu0 %v784
  %v1856 = vpop.f32.mrf.mxu0
  %v1857 = vadd.f32 %v1696, %v1856
  %v1858 = vpop.f32.mrf.mxu0
  %v1859 = vpop.f32.mrf.mxu0
  %v1860 = vadd.f32 %v1699, %v1859
  %v1861 = vpop.f32.mrf.mxu0
  %1862 = vmatprep.mubr.bf16.mxu0 %v794
  %1863 = vmatmul.mubr.bf16.gmra.mxu0 %v793
  %v1864 = vpop.f32.mrf.mxu0
  %v1865 = vadd.f32 %v1704, %v1864
  %v1866 = vpop.f32.mrf.mxu0
  %v1867 = vpop.f32.mrf.mxu0
  %v1868 = vadd.f32 %v1707, %v1867
  %v1869 = vpop.f32.mrf.mxu0
  %1870 = vmatprep.mubr.bf16.mxu0 %v803
  %1871 = vmatmul.mubr.bf16.gmra.mxu0 %v802
  %v1872 = vpop.f32.mrf.mxu0
  %v1873 = vadd.f32 %v1712, %v1872
  %v1874 = vpop.f32.mrf.mxu0
  %v1875 = vpop.f32.mrf.mxu0
  %v1876 = vadd.f32 %v1715, %v1875
  %v1877 = vpop.f32.mrf.mxu0
  %1878 = vmatprep.mubr.bf16.mxu0 %v812
  %1879 = vmatmul.mubr.bf16.gmra.mxu0 %v811
  %v1880 = vpop.f32.mrf.mxu0
  %v1881 = vadd.f32 %v1720, %v1880
  %v1882 = vpop.f32.mrf.mxu0
  %v1883 = vpop.f32.mrf.mxu0
  %v1884 = vadd.f32 %v1723, %v1883
  %v1885 = vpop.f32.mrf.mxu0
  %1886 = vmatprep.mubr.bf16.mxu0 %v821
  %1887 = vmatmul.mubr.bf16.gmra.mxu0 %v820
  %v1888 = vpop.f32.mrf.mxu0
  %v1889 = vadd.f32 %v1728, %v1888
  %v1890 = vpop.f32.mrf.mxu0
  %v1891 = vpop.f32.mrf.mxu0
  %v1892 = vadd.f32 %v1731, %v1891
  %v1893 = vpop.f32.mrf.mxu0
  %1894 = vmatprep.mubr.bf16.mxu0 %v830
  %1895 = vmatmul.mubr.bf16.gmra.mxu0 %v829
  %v1896 = vpop.f32.mrf.mxu0
  %v1897 = vadd.f32 %v1736, %v1896
  %v1898 = vpop.f32.mrf.mxu0
  %v1899 = vpop.f32.mrf.mxu0
  %v1900 = vadd.f32 %v1739, %v1899
  %v1901 = vpop.f32.mrf.mxu0
  %1902 = vmatprep.mubr.bf16.mxu0 %v839
  %1903 = vmatmul.mubr.bf16.gmra.mxu0 %v838
  %v1904 = vpop.f32.mrf.mxu0
  %v1905 = vadd.f32 %v1744, %v1904
  %v1906 = vpop.f32.mrf.mxu0
  %v1907 = vpop.f32.mrf.mxu0
  %v1908 = vadd.f32 %v1747, %v1907
  %v1909 = vpop.f32.mrf.mxu0
  %1910 = vmatprep.mubr.bf16.mxu0 %v848
  %1911 = vmatmul.mubr.bf16.gmra.mxu0 %v847
  %v1912 = vpop.f32.mrf.mxu0
  %v1913 = vadd.f32 %v1752, %v1912
  %v1914 = vpop.f32.mrf.mxu0
  %v1915 = vpop.f32.mrf.mxu0
  %v1916 = vadd.f32 %v1755, %v1915
  %v1917 = vpop.f32.mrf.mxu0
  %1918 = vmatprep.mubr.bf16.mxu0 %v857
  %1919 = vmatmul.mubr.bf16.gmra.mxu0 %v856
  %v1920 = vpop.f32.mrf.mxu0
  %v1921 = vadd.f32 %v1760, %v1920
  %v1922 = vpop.f32.mrf.mxu0
  %v1923 = vpop.f32.mrf.mxu0
  %v1924 = vadd.f32 %v1763, %v1923
  %v1925 = vpop.f32.mrf.mxu0
  %1926 = vmatprep.mubr.bf16.mxu0 %v866
  %1927 = vmatmul.mubr.bf16.gmra.mxu0 %v865
  %v1928 = vpop.f32.mrf.mxu0
  %v1929 = vadd.f32 %v1768, %v1928
  %v1930 = vpop.f32.mrf.mxu0
  %v1931 = vpop.f32.mrf.mxu0
  %v1932 = vadd.f32 %v1771, %v1931
  %v1933 = vpop.f32.mrf.mxu0
  %1934 = vmatprep.mubr.bf16.mxu0 %v875
  %1935 = vmatmul.mubr.bf16.gmra.mxu0 %v874
  %v1936 = vpop.f32.mrf.mxu0
  %v1937 = vadd.f32 %v1776, %v1936
  %v1938 = vpop.f32.mrf.mxu0
  %v1939 = vpop.f32.mrf.mxu0
  %v1940 = vadd.f32 %v1779, %v1939
  %v1941 = vpop.f32.mrf.mxu0
  %1942 = vmatprep.mubr.bf16.mxu0 %v884
  %1943 = vmatmul.mubr.bf16.gmra.mxu0 %v883
  %v1944 = vpop.f32.mrf.mxu0
  %v1945 = vadd.f32 %v1784, %v1944
  %v1946 = vpop.f32.mrf.mxu0
  %v1947 = vpop.f32.mrf.mxu0
  %v1948 = vadd.f32 %v1787, %v1947
  %v1949 = vpop.f32.mrf.mxu0
  %1950 = vmatprep.mubr.bf16.mxu0 %v893
  %1951 = vmatmul.mubr.bf16.gmra.mxu0 %v892
  %v1952 = vpop.f32.mrf.mxu0
  %v1953 = vadd.f32 %v1792, %v1952
  %v1954 = vpop.f32.mrf.mxu0
  %v1955 = vpop.f32.mrf.mxu0
  %v1956 = vadd.f32 %v1795, %v1955
  %v1957 = vpop.f32.mrf.mxu0
  %1958 = vmatprep.mubr.bf16.mxu0 %v902
  %1959 = vmatmul.mubr.bf16.gmra.mxu0 %v901
  %v1960 = vpop.f32.mrf.mxu0
  %v1961 = vadd.f32 %v1800, %v1960
  %v1962 = vpop.f32.mrf.mxu0
  %v1963 = vpop.f32.mrf.mxu0
  %v1964 = vadd.f32 %v1803, %v1963
  %v1965 = vpop.f32.mrf.mxu0
  %1966 = vmatprep.mubr.bf16.mxu0 %v911
  %1967 = vmatmul.mubr.bf16.gmra.mxu0 %v910
  %v1968 = vpop.f32.mrf.mxu0
  %v1969 = vadd.f32 %v1808, %v1968
  %v1970 = vpop.f32.mrf.mxu0
  %v1971 = vpop.f32.mrf.mxu0
  %v1972 = vadd.f32 %v1811, %v1971
  %v1973 = vpop.f32.mrf.mxu0
  %1974 = vmatprep.mubr.bf16.mxu0 %v920
  %1975 = vmatmul.mubr.bf16.gmra.mxu0 %v919
  %v1976 = vpop.f32.mrf.mxu0
  %v1977 = vadd.f32 %v1816, %v1976
  %v1978 = vpop.f32.mrf.mxu0
  %v1979 = vpop.f32.mrf.mxu0
  %v1980 = vadd.f32 %v1819, %v1979
  %v1981 = vpop.f32.mrf.mxu0
  %1982 = vdwg.mxu0
  %1983 = vmatprep.subr.bf16.mxu0 0
  %1984 = vmatpush1.bf16.msra.mxu0 %v1411
  %1985 = vmatprep.subr.bf16.mxu0 0
  %1986 = vmatpush1.bf16.msra.mxu0 %v1410
  %1987 = vmatprep.subr.bf16.mxu0 0
  %1988 = vmatpush1.bf16.msra.mxu0 %v1409
  %1989 = vmatprep.subr.bf16.mxu0 0
  %1990 = vmatpush1.bf16.msra.mxu0 %v1408
  %1991 = vmatprep.subr.bf16.mxu0 0
  %1992 = vmatpush1.bf16.msra.mxu0 %v1407
  %1993 = vmatprep.subr.bf16.mxu0 0
  %1994 = vmatpush1.bf16.msra.mxu0 %v1406
  %1995 = vmatprep.subr.bf16.mxu0 0
  %1996 = vmatpush1.bf16.msra.mxu0 %v1405
  %1997 = vmatprep.subr.bf16.mxu0 0
  %1998 = vmatpush1.bf16.msra.mxu0 %v1404
  %1999 = vmatprep.subr.bf16.mxu0 0
  %2000 = vmatpush2.bf16.msra.mxu0 %v1419
  %2001 = vmatprep.subr.bf16.mxu0 0
  %2002 = vmatpush2.bf16.msra.mxu0 %v1418
  %2003 = vmatprep.subr.bf16.mxu0 0
  %2004 = vmatpush2.bf16.msra.mxu0 %v1417
  %2005 = vmatprep.subr.bf16.mxu0 0
  %2006 = vmatpush2.bf16.msra.mxu0 %v1416
  %2007 = vmatprep.subr.bf16.mxu0 0
  %2008 = vmatpush2.bf16.msra.mxu0 %v1415
  %2009 = vmatprep.subr.bf16.mxu0 0
  %2010 = vmatpush2.bf16.msra.mxu0 %v1414
  %2011 = vmatprep.subr.bf16.mxu0 0
  %2012 = vmatpush2.bf16.msra.mxu0 %v1413
  %2013 = vmatprep.subr.bf16.mxu0 0
  %2014 = vmatpush2.bf16.msra.mxu0 %v1412
  %2015 = vmatprep.mubr.bf16.mxu0 %v787
  %2016 = vmatmul.mubr.bf16.gmra.mxu0 %v786
  %v2017 = vpop.f32.mrf.mxu0
  %v2018 = vadd.f32 %v1857, %v2017
  %v2019 = vpop.f32.mrf.mxu0
  %v2020 = vpop.f32.mrf.mxu0
  %v2021 = vadd.f32 %v1860, %v2020
  %v2022 = vpop.f32.mrf.mxu0
  %2023 = vmatprep.mubr.bf16.mxu0 %v796
  %2024 = vmatmul.mubr.bf16.gmra.mxu0 %v795
  %v2025 = vpop.f32.mrf.mxu0
  %v2026 = vadd.f32 %v1865, %v2025
  %v2027 = vpop.f32.mrf.mxu0
  %v2028 = vpop.f32.mrf.mxu0
  %v2029 = vadd.f32 %v1868, %v2028
  %v2030 = vpop.f32.mrf.mxu0
  %2031 = vmatprep.mubr.bf16.mxu0 %v805
  %2032 = vmatmul.mubr.bf16.gmra.mxu0 %v804
  %v2033 = vpop.f32.mrf.mxu0
  %v2034 = vadd.f32 %v1873, %v2033
  %v2035 = vpop.f32.mrf.mxu0
  %v2036 = vpop.f32.mrf.mxu0
  %v2037 = vadd.f32 %v1876, %v2036
  %v2038 = vpop.f32.mrf.mxu0
  %2039 = vmatprep.mubr.bf16.mxu0 %v814
  %2040 = vmatmul.mubr.bf16.gmra.mxu0 %v813
  %v2041 = vpop.f32.mrf.mxu0
  %v2042 = vadd.f32 %v1881, %v2041
  %v2043 = vpop.f32.mrf.mxu0
  %v2044 = vpop.f32.mrf.mxu0
  %v2045 = vadd.f32 %v1884, %v2044
  %v2046 = vpop.f32.mrf.mxu0
  %2047 = vmatprep.mubr.bf16.mxu0 %v823
  %2048 = vmatmul.mubr.bf16.gmra.mxu0 %v822
  %v2049 = vpop.f32.mrf.mxu0
  %v2050 = vadd.f32 %v1889, %v2049
  %v2051 = vpop.f32.mrf.mxu0
  %v2052 = vpop.f32.mrf.mxu0
  %v2053 = vadd.f32 %v1892, %v2052
  %v2054 = vpop.f32.mrf.mxu0
  %2055 = vmatprep.mubr.bf16.mxu0 %v832
  %2056 = vmatmul.mubr.bf16.gmra.mxu0 %v831
  %v2057 = vpop.f32.mrf.mxu0
  %v2058 = vadd.f32 %v1897, %v2057
  %v2059 = vpop.f32.mrf.mxu0
  %v2060 = vpop.f32.mrf.mxu0
  %v2061 = vadd.f32 %v1900, %v2060
  %v2062 = vpop.f32.mrf.mxu0
  %2063 = vmatprep.mubr.bf16.mxu0 %v841
  %2064 = vmatmul.mubr.bf16.gmra.mxu0 %v840
  %v2065 = vpop.f32.mrf.mxu0
  %v2066 = vadd.f32 %v1905, %v2065
  %v2067 = vpop.f32.mrf.mxu0
  %v2068 = vpop.f32.mrf.mxu0
  %v2069 = vadd.f32 %v1908, %v2068
  %v2070 = vpop.f32.mrf.mxu0
  %2071 = vmatprep.mubr.bf16.mxu0 %v850
  %2072 = vmatmul.mubr.bf16.gmra.mxu0 %v849
  %v2073 = vpop.f32.mrf.mxu0
  %v2074 = vadd.f32 %v1913, %v2073
  %v2075 = vpop.f32.mrf.mxu0
  %v2076 = vpop.f32.mrf.mxu0
  %v2077 = vadd.f32 %v1916, %v2076
  %v2078 = vpop.f32.mrf.mxu0
  %2079 = vmatprep.mubr.bf16.mxu0 %v859
  %2080 = vmatmul.mubr.bf16.gmra.mxu0 %v858
  %v2081 = vpop.f32.mrf.mxu0
  %v2082 = vadd.f32 %v1921, %v2081
  %v2083 = vpop.f32.mrf.mxu0
  %v2084 = vpop.f32.mrf.mxu0
  %v2085 = vadd.f32 %v1924, %v2084
  %v2086 = vpop.f32.mrf.mxu0
  %2087 = vmatprep.mubr.bf16.mxu0 %v868
  %2088 = vmatmul.mubr.bf16.gmra.mxu0 %v867
  %v2089 = vpop.f32.mrf.mxu0
  %v2090 = vadd.f32 %v1929, %v2089
  %v2091 = vpop.f32.mrf.mxu0
  %v2092 = vpop.f32.mrf.mxu0
  %v2093 = vadd.f32 %v1932, %v2092
  %v2094 = vpop.f32.mrf.mxu0
  %2095 = vmatprep.mubr.bf16.mxu0 %v877
  %2096 = vmatmul.mubr.bf16.gmra.mxu0 %v876
  %v2097 = vpop.f32.mrf.mxu0
  %v2098 = vadd.f32 %v1937, %v2097
  %v2099 = vpop.f32.mrf.mxu0
  %v2100 = vpop.f32.mrf.mxu0
  %v2101 = vadd.f32 %v1940, %v2100
  %v2102 = vpop.f32.mrf.mxu0
  %2103 = vmatprep.mubr.bf16.mxu0 %v886
  %2104 = vmatmul.mubr.bf16.gmra.mxu0 %v885
  %v2105 = vpop.f32.mrf.mxu0
  %v2106 = vadd.f32 %v1945, %v2105
  %v2107 = vpop.f32.mrf.mxu0
  %v2108 = vpop.f32.mrf.mxu0
  %v2109 = vadd.f32 %v1948, %v2108
  %v2110 = vpop.f32.mrf.mxu0
  %2111 = vmatprep.mubr.bf16.mxu0 %v895
  %2112 = vmatmul.mubr.bf16.gmra.mxu0 %v894
  %v2113 = vpop.f32.mrf.mxu0
  %v2114 = vadd.f32 %v1953, %v2113
  %v2115 = vpop.f32.mrf.mxu0
  %v2116 = vpop.f32.mrf.mxu0
  %v2117 = vadd.f32 %v1956, %v2116
  %v2118 = vpop.f32.mrf.mxu0
  %2119 = vmatprep.mubr.bf16.mxu0 %v904
  %2120 = vmatmul.mubr.bf16.gmra.mxu0 %v903
  %v2121 = vpop.f32.mrf.mxu0
  %v2122 = vadd.f32 %v1961, %v2121
  %v2123 = vpop.f32.mrf.mxu0
  %v2124 = vpop.f32.mrf.mxu0
  %v2125 = vadd.f32 %v1964, %v2124
  %v2126 = vpop.f32.mrf.mxu0
  %2127 = vmatprep.mubr.bf16.mxu0 %v913
  %2128 = vmatmul.mubr.bf16.gmra.mxu0 %v912
  %v2129 = vpop.f32.mrf.mxu0
  %v2130 = vadd.f32 %v1969, %v2129
  %v2131 = vpop.f32.mrf.mxu0
  %v2132 = vpop.f32.mrf.mxu0
  %v2133 = vadd.f32 %v1972, %v2132
  %v2134 = vpop.f32.mrf.mxu0
  %2135 = vmatprep.mubr.bf16.mxu0 %v922
  %2136 = vmatmul.mubr.bf16.gmra.mxu0 %v921
  %v2137 = vpop.f32.mrf.mxu0
  %v2138 = vadd.f32 %v1977, %v2137
  %v2139 = vpop.f32.mrf.mxu0
  %v2140 = vpop.f32.mrf.mxu0
  %v2141 = vadd.f32 %v1980, %v2140
  %v2142 = vpop.f32.mrf.mxu0
  %2143 = vdwg.mxu0
  %2144 = vmatprep.subr.bf16.mxu0 0
  %2145 = vmatpush1.bf16.msra.mxu0 %v1427
  %2146 = vmatprep.subr.bf16.mxu0 0
  %2147 = vmatpush1.bf16.msra.mxu0 %v1426
  %2148 = vmatprep.subr.bf16.mxu0 0
  %2149 = vmatpush1.bf16.msra.mxu0 %v1425
  %2150 = vmatprep.subr.bf16.mxu0 0
  %2151 = vmatpush1.bf16.msra.mxu0 %v1424
  %2152 = vmatprep.subr.bf16.mxu0 0
  %2153 = vmatpush1.bf16.msra.mxu0 %v1423
  %2154 = vmatprep.subr.bf16.mxu0 0
  %2155 = vmatpush1.bf16.msra.mxu0 %v1422
  %2156 = vmatprep.subr.bf16.mxu0 0
  %2157 = vmatpush1.bf16.msra.mxu0 %v1421
  %2158 = vmatprep.subr.bf16.mxu0 0
  %2159 = vmatpush1.bf16.msra.mxu0 %v1420
  %2160 = vmatprep.subr.bf16.mxu0 0
  %2161 = vmatpush2.bf16.msra.mxu0 0
  %2162 = vmatprep.subr.bf16.mxu0 0
  %2163 = vmatpush2.bf16.msra.mxu0 0
  %2164 = vmatprep.subr.bf16.mxu0 0
  %2165 = vmatpush2.bf16.msra.mxu0 0
  %2166 = vmatprep.subr.bf16.mxu0 0
  %2167 = vmatpush2.bf16.msra.mxu0 0
  %2168 = vmatprep.subr.bf16.mxu0 0
  %2169 = vmatpush2.bf16.msra.mxu0 0
  %2170 = vmatprep.subr.bf16.mxu0 0
  %2171 = vmatpush2.bf16.msra.mxu0 0
  %2172 = vmatprep.subr.bf16.mxu0 0
  %2173 = vmatpush2.bf16.msra.mxu0 0
  %2174 = vmatprep.subr.bf16.mxu0 0
  %2175 = vmatpush2.bf16.msra.mxu0 0
  %2176 = vmatprep.mubr.bf16.mxu0 0
  %2177 = vmatmul.mubr.bf16.gmra.mxu0 %v788
  %v2178 = vpop.f32.mrf.mxu0
  %v2179 = vadd.f32 %v2018, %v2178
  %v2180 = vpop.f32.mrf.mxu0
  %v2181 = vpop.f32.mrf.mxu0
  %v2182 = vadd.f32 %v2021, %v2181
  %v2183 = vpop.f32.mrf.mxu0
  %2184 = vmatprep.mubr.bf16.mxu0 0
  %2185 = vmatmul.mubr.bf16.gmra.mxu0 %v797
  %v2186 = vpop.f32.mrf.mxu0
  %v2187 = vadd.f32 %v2026, %v2186
  %v2188 = vpop.f32.mrf.mxu0
  %v2189 = vpop.f32.mrf.mxu0
  %v2190 = vadd.f32 %v2029, %v2189
  %v2191 = vpop.f32.mrf.mxu0
  %2192 = vmatprep.mubr.bf16.mxu0 0
  %2193 = vmatmul.mubr.bf16.gmra.mxu0 %v806
  %v2194 = vpop.f32.mrf.mxu0
  %v2195 = vadd.f32 %v2034, %v2194
  %v2196 = vpop.f32.mrf.mxu0
  %v2197 = vpop.f32.mrf.mxu0
  %v2198 = vadd.f32 %v2037, %v2197
  %v2199 = vpop.f32.mrf.mxu0
  %2200 = vmatprep.mubr.bf16.mxu0 0
  %2201 = vmatmul.mubr.bf16.gmra.mxu0 %v815
  %v2202 = vpop.f32.mrf.mxu0
  %v2203 = vadd.f32 %v2042, %v2202
  %v2204 = vpop.f32.mrf.mxu0
  %v2205 = vpop.f32.mrf.mxu0
  %v2206 = vadd.f32 %v2045, %v2205
  %v2207 = vpop.f32.mrf.mxu0
  %2208 = vmatprep.mubr.bf16.mxu0 0
  %2209 = vmatmul.mubr.bf16.gmra.mxu0 %v824
  %v2210 = vpop.f32.mrf.mxu0
  %v2211 = vadd.f32 %v2050, %v2210
  %v2212 = vpop.f32.mrf.mxu0
  %v2213 = vpop.f32.mrf.mxu0
  %v2214 = vadd.f32 %v2053, %v2213
  %v2215 = vpop.f32.mrf.mxu0
  %2216 = vmatprep.mubr.bf16.mxu0 0
  %2217 = vmatmul.mubr.bf16.gmra.mxu0 %v833
  %v2218 = vpop.f32.mrf.mxu0
  %v2219 = vadd.f32 %v2058, %v2218
  %v2220 = vpop.f32.mrf.mxu0
  %v2221 = vpop.f32.mrf.mxu0
  %v2222 = vadd.f32 %v2061, %v2221
  %v2223 = vpop.f32.mrf.mxu0
  %2224 = vmatprep.mubr.bf16.mxu0 0
  %2225 = vmatmul.mubr.bf16.gmra.mxu0 %v842
  %v2226 = vpop.f32.mrf.mxu0
  %v2227 = vadd.f32 %v2066, %v2226
  %v2228 = vpop.f32.mrf.mxu0
  %v2229 = vpop.f32.mrf.mxu0
  %v2230 = vadd.f32 %v2069, %v2229
  %v2231 = vpop.f32.mrf.mxu0
  %2232 = vmatprep.mubr.bf16.mxu0 0
  %2233 = vmatmul.mubr.bf16.gmra.mxu0 %v851
  %v2234 = vpop.f32.mrf.mxu0
  %v2235 = vadd.f32 %v2074, %v2234
  %v2236 = vpop.f32.mrf.mxu0
  %v2237 = vpop.f32.mrf.mxu0
  %v2238 = vadd.f32 %v2077, %v2237
  %v2239 = vpop.f32.mrf.mxu0
  %2240 = vmatprep.mubr.bf16.mxu0 0
  %2241 = vmatmul.mubr.bf16.gmra.mxu0 %v860
  %v2242 = vpop.f32.mrf.mxu0
  %v2243 = vadd.f32 %v2082, %v2242
  %v2244 = vpop.f32.mrf.mxu0
  %v2245 = vpop.f32.mrf.mxu0
  %v2246 = vadd.f32 %v2085, %v2245
  %v2247 = vpop.f32.mrf.mxu0
  %2248 = vmatprep.mubr.bf16.mxu0 0
  %2249 = vmatmul.mubr.bf16.gmra.mxu0 %v869
  %v2250 = vpop.f32.mrf.mxu0
  %v2251 = vadd.f32 %v2090, %v2250
  %v2252 = vpop.f32.mrf.mxu0
  %v2253 = vpop.f32.mrf.mxu0
  %v2254 = vadd.f32 %v2093, %v2253
  %v2255 = vpop.f32.mrf.mxu0
  %2256 = vmatprep.mubr.bf16.mxu0 0
  %2257 = vmatmul.mubr.bf16.gmra.mxu0 %v878
  %v2258 = vpop.f32.mrf.mxu0
  %v2259 = vadd.f32 %v2098, %v2258
  %v2260 = vpop.f32.mrf.mxu0
  %v2261 = vpop.f32.mrf.mxu0
  %v2262 = vadd.f32 %v2101, %v2261
  %v2263 = vpop.f32.mrf.mxu0
  %2264 = vmatprep.mubr.bf16.mxu0 0
  %2265 = vmatmul.mubr.bf16.gmra.mxu0 %v887
  %v2266 = vpop.f32.mrf.mxu0
  %v2267 = vadd.f32 %v2106, %v2266
  %v2268 = vpop.f32.mrf.mxu0
  %v2269 = vpop.f32.mrf.mxu0
  %v2270 = vadd.f32 %v2109, %v2269
  %v2271 = vpop.f32.mrf.mxu0
  %2272 = vmatprep.mubr.bf16.mxu0 0
  %2273 = vmatmul.mubr.bf16.gmra.mxu0 %v896
  %v2274 = vpop.f32.mrf.mxu0
  %v2275 = vadd.f32 %v2114, %v2274
  %v2276 = vpop.f32.mrf.mxu0
  %v2277 = vpop.f32.mrf.mxu0
  %v2278 = vadd.f32 %v2117, %v2277
  %v2279 = vpop.f32.mrf.mxu0
  %2280 = vmatprep.mubr.bf16.mxu0 0
  %2281 = vmatmul.mubr.bf16.gmra.mxu0 %v905
  %v2282 = vpop.f32.mrf.mxu0
  %v2283 = vadd.f32 %v2122, %v2282
  %v2284 = vpop.f32.mrf.mxu0
  %v2285 = vpop.f32.mrf.mxu0
  %v2286 = vadd.f32 %v2125, %v2285
  %v2287 = vpop.f32.mrf.mxu0
  %2288 = vmatprep.mubr.bf16.mxu0 0
  %2289 = vmatmul.mubr.bf16.gmra.mxu0 %v914
  %v2290 = vpop.f32.mrf.mxu0
  %v2291 = vadd.f32 %v2130, %v2290
  %v2292 = vpop.f32.mrf.mxu0
  %v2293 = vpop.f32.mrf.mxu0
  %v2294 = vadd.f32 %v2133, %v2293
  %v2295 = vpop.f32.mrf.mxu0
  %2296 = vmatprep.mubr.bf16.mxu0 0
  %2297 = vmatmul.mubr.bf16.gmra.mxu0 %v923
  %v2298 = vpop.f32.mrf.mxu0
  %v2299 = vadd.f32 %v2138, %v2298
  %v2300 = vpop.f32.mrf.mxu0
  %v2301 = vpop.f32.mrf.mxu0
  %v2302 = vadd.f32 %v2141, %v2301
  %v2303 = vpop.f32.mrf.mxu0
  %2304 = vdwg.mxu0
  %v2305 = vmax.f32 %v2179, 0.0
  %v2306 = vmax.f32 %v2182, 0.0
  %v2307 = vmax.f32 %v2187, 0.0
  %v2308 = vmax.f32 %v2190, 0.0
  %v2309 = vmax.f32 %v2195, 0.0
  %v2310 = vmax.f32 %v2198, 0.0
  %v2311 = vmax.f32 %v2203, 0.0
  %v2312 = vmax.f32 %v2206, 0.0
  %v2313 = vmax.f32 %v2211, 0.0
  %v2314 = vmax.f32 %v2214, 0.0
  %v2315 = vmax.f32 %v2219, 0.0
  %v2316 = vmax.f32 %v2222, 0.0
  %v2317 = vmax.f32 %v2227, 0.0
  %v2318 = vmax.f32 %v2230, 0.0
  %v2319 = vmax.f32 %v2235, 0.0
  %v2320 = vmax.f32 %v2238, 0.0
  %v2321 = vmax.f32 %v2243, 0.0
  %v2322 = vmax.f32 %v2246, 0.0
  %v2323 = vmax.f32 %v2251, 0.0
  %v2324 = vmax.f32 %v2254, 0.0
  %v2325 = vmax.f32 %v2259, 0.0
  %v2326 = vmax.f32 %v2262, 0.0
  %v2327 = vmax.f32 %v2267, 0.0
  %v2328 = vmax.f32 %v2270, 0.0
  %v2329 = vmax.f32 %v2275, 0.0
  %v2330 = vmax.f32 %v2278, 0.0
  %v2331 = vmax.f32 %v2283, 0.0
  %v2332 = vmax.f32 %v2286, 0.0
  %v2333 = vmax.f32 %v2291, 0.0
  %v2334 = vmax.f32 %v2294, 0.0
  %v2335 = vmax.f32 %v2299, 0.0
  %v2336 = vmax.f32 %v2302, 0.0
  %v2337 = vadd.f32 %v2305, %v2306
  %v2338 = vrot.slane %v2337, 4
  %v2339 = vadd.f32 %v2337, %v2338
  %v2340 = vrot.slane %v2339, 2
  %v2341 = vadd.f32 %v2339, %v2340
  %v2342 = vrot.slane %v2341, 1
  %v2343 = vadd.f32 %v2341, %v2342
  %v2344 = vadd.f32 %v2307, %v2308
  %v2345 = vrot.slane %v2344, 4
  %v2346 = vadd.f32 %v2344, %v2345
  %v2347 = vrot.slane %v2346, 2
  %v2348 = vadd.f32 %v2346, %v2347
  %v2349 = vrot.slane %v2348, 1
  %v2350 = vadd.f32 %v2348, %v2349
  %v2351 = vadd.f32 %v2309, %v2310
  %v2352 = vrot.slane %v2351, 4
  %v2353 = vadd.f32 %v2351, %v2352
  %v2354 = vrot.slane %v2353, 2
  %v2355 = vadd.f32 %v2353, %v2354
  %v2356 = vrot.slane %v2355, 1
  %v2357 = vadd.f32 %v2355, %v2356
  %v2358 = vadd.f32 %v2311, %v2312
  %v2359 = vrot.slane %v2358, 4
  %v2360 = vadd.f32 %v2358, %v2359
  %v2361 = vrot.slane %v2360, 2
  %v2362 = vadd.f32 %v2360, %v2361
  %v2363 = vrot.slane %v2362, 1
  %v2364 = vadd.f32 %v2362, %v2363
  %v2365 = vadd.f32 %v2313, %v2314
  %v2366 = vrot.slane %v2365, 4
  %v2367 = vadd.f32 %v2365, %v2366
  %v2368 = vrot.slane %v2367, 2
  %v2369 = vadd.f32 %v2367, %v2368
  %v2370 = vrot.slane %v2369, 1
  %v2371 = vadd.f32 %v2369, %v2370
  %v2372 = vadd.f32 %v2315, %v2316
  %v2373 = vrot.slane %v2372, 4
  %v2374 = vadd.f32 %v2372, %v2373
  %v2375 = vrot.slane %v2374, 2
  %v2376 = vadd.f32 %v2374, %v2375
  %v2377 = vrot.slane %v2376, 1
  %v2378 = vadd.f32 %v2376, %v2377
  %v2379 = vadd.f32 %v2317, %v2318
  %v2380 = vrot.slane %v2379, 4
  %v2381 = vadd.f32 %v2379, %v2380
  %v2382 = vrot.slane %v2381, 2
  %v2383 = vadd.f32 %v2381, %v2382
  %v2384 = vrot.slane %v2383, 1
  %v2385 = vadd.f32 %v2383, %v2384
  %v2386 = vadd.f32 %v2319, %v2320
  %v2387 = vrot.slane %v2386, 4
  %v2388 = vadd.f32 %v2386, %v2387
  %v2389 = vrot.slane %v2388, 2
  %v2390 = vadd.f32 %v2388, %v2389
  %v2391 = vrot.slane %v2390, 1
  %v2392 = vadd.f32 %v2390, %v2391
  %v2393 = vadd.f32 %v2321, %v2322
  %v2394 = vrot.slane %v2393, 4
  %v2395 = vadd.f32 %v2393, %v2394
  %v2396 = vrot.slane %v2395, 2
  %v2397 = vadd.f32 %v2395, %v2396
  %v2398 = vrot.slane %v2397, 1
  %v2399 = vadd.f32 %v2397, %v2398
  %v2400 = vadd.f32 %v2323, %v2324
  %v2401 = vrot.slane %v2400, 4
  %v2402 = vadd.f32 %v2400, %v2401
  %v2403 = vrot.slane %v2402, 2
  %v2404 = vadd.f32 %v2402, %v2403
  %v2405 = vrot.slane %v2404, 1
  %v2406 = vadd.f32 %v2404, %v2405
  %v2407 = vadd.f32 %v2325, %v2326
  %v2408 = vrot.slane %v2407, 4
  %v2409 = vadd.f32 %v2407, %v2408
  %v2410 = vrot.slane %v2409, 2
  %v2411 = vadd.f32 %v2409, %v2410
  %v2412 = vrot.slane %v2411, 1
  %v2413 = vadd.f32 %v2411, %v2412
  %v2414 = vadd.f32 %v2327, %v2328
  %v2415 = vrot.slane %v2414, 4
  %v2416 = vadd.f32 %v2414, %v2415
  %v2417 = vrot.slane %v2416, 2
  %v2418 = vadd.f32 %v2416, %v2417
  %v2419 = vrot.slane %v2418, 1
  %v2420 = vadd.f32 %v2418, %v2419
  %v2421 = vadd.f32 %v2329, %v2330
  %v2422 = vrot.slane %v2421, 4
  %v2423 = vadd.f32 %v2421, %v2422
  %v2424 = vrot.slane %v2423, 2
  %v2425 = vadd.f32 %v2423, %v2424
  %v2426 = vrot.slane %v2425, 1
  %v2427 = vadd.f32 %v2425, %v2426
  %v2428 = vadd.f32 %v2331, %v2332
  %v2429 = vrot.slane %v2428, 4
  %v2430 = vadd.f32 %v2428, %v2429
  %v2431 = vrot.slane %v2430, 2
  %v2432 = vadd.f32 %v2430, %v2431
  %v2433 = vrot.slane %v2432, 1
  %v2434 = vadd.f32 %v2432, %v2433
  %v2435 = vadd.f32 %v2333, %v2334
  %v2436 = vrot.slane %v2435, 4
  %v2437 = vadd.f32 %v2435, %v2436
  %v2438 = vrot.slane %v2437, 2
  %v2439 = vadd.f32 %v2437, %v2438
  %v2440 = vrot.slane %v2439, 1
  %v2441 = vadd.f32 %v2439, %v2440
  %v2442 = vadd.f32 %v2335, %v2336
  %v2443 = vrot.slane %v2442, 4
  %v2444 = vadd.f32 %v2442, %v2443
  %v2445 = vrot.slane %v2444, 2
  %v2446 = vadd.f32 %v2444, %v2445
  %v2447 = vrot.slane %v2446, 1
  %v2448 = vadd.f32 %v2446, %v2447
  %v2449 = vrcp.pop 16.0
  %v2450 = vmul.f32 %v2343, %v2449
  %v2451 = vmul.f32 %v2350, %v2449
  %v2452 = vmul.f32 %v2357, %v2449
  %v2453 = vmul.f32 %v2364, %v2449
  %v2454 = vmul.f32 %v2371, %v2449
  %v2455 = vmul.f32 %v2378, %v2449
  %v2456 = vmul.f32 %v2385, %v2449
  %v2457 = vmul.f32 %v2392, %v2449
  %v2458 = vmul.f32 %v2399, %v2449
  %v2459 = vmul.f32 %v2406, %v2449
  %v2460 = vmul.f32 %v2413, %v2449
  %v2461 = vmul.f32 %v2420, %v2449
  %v2462 = vmul.f32 %v2427, %v2449
  %v2463 = vmul.f32 %v2434, %v2449
  %v2464 = vmul.f32 %v2441, %v2449
  %v2465 = vmul.f32 %v2448, %v2449
  %v2466 = vpack.c.bf16 %v2450, %v2450
  %v2467 = vpack.c.bf16 %v2451, %v2451
  %v2468 = vpack.c.bf16 %v2452, %v2452
  %v2469 = vpack.c.bf16 %v2453, %v2453
  %v2470 = vpack.c.bf16 %v2454, %v2454
  %v2471 = vpack.c.bf16 %v2455, %v2455
  %v2472 = vpack.c.bf16 %v2456, %v2456
  %v2473 = vpack.c.bf16 %v2457, %v2457
  %v2474 = vpack.c.bf16 %v2458, %v2458
  %v2475 = vpack.c.bf16 %v2459, %v2459
  %v2476 = vpack.c.bf16 %v2460, %v2460
  %v2477 = vpack.c.bf16 %v2461, %v2461
  %v2478 = vpack.c.bf16 %v2462, %v2462
  %v2479 = vpack.c.bf16 %v2463, %v2463
  %v2480 = vpack.c.bf16 %v2464, %v2464
  %v2481 = vpack.c.bf16 %v2465, %v2465
  %v2482 = vld [vmem:[%s3] sm:$0xff]
  %v2483 = vld [vmem:[%s3 + $0x8] sm:$0xff]
  %v2484 = vld [vmem:[%s3 + $0x10] sm:$0xff]
  %v2485 = vld [vmem:[%s3 + $0x18] sm:$0xff]
  %v2486 = vld [vmem:[%s3 + $0x20] sm:$0xff]
  %v2487 = vld [vmem:[%s3 + $0x28] sm:$0xff]
  %v2488 = vld [vmem:[%s3 + $0x30] sm:$0xff]
  %v2489 = vld [vmem:[%s3 + $0x38] sm:$0xff]
  %v2490 = vld [vmem:[%s3 + $0x40] sm:$0xff]
  %v2491 = vld [vmem:[%s3 + $0x48] sm:$0xff]
  %v2492 = vld [vmem:[%s3 + $0x50] sm:$0xff]
  %v2493 = vld [vmem:[%s3 + $0x58] sm:$0xff]
  %v2494 = vld [vmem:[%s3 + $0x60] sm:$0xff]
  %v2495 = vld [vmem:[%s3 + $0x68] sm:$0xff]
  %v2496 = vld [vmem:[%s3 + $0x70] sm:$0xff]
  %v2497 = vld [vmem:[%s3 + $0x78] sm:$0xff]
  %v2498 = vld [vmem:[%s4] sm:$0x3]
  %v2500 = vlaneseq
  %v2501 = vshrl.u32 %v2500, 7
  %v2502 = vsub.s32 0, %v2501
  %v2503 = vrot.slane %v2498, %v2502
  %v2504 = vlaneseq
  %v2505 = vshrl.u32 %v2504, 7
  %v2506 = vsub.s32 1, %v2505
  %v2507 = vrot.slane %v2498, %v2506
  %v2526 = vunpack.c.l.b16 %v2466
  %v2527 = vunpack.c.l.b16 %v2467
  %v2528 = vunpack.c.l.b16 %v2468
  %v2529 = vunpack.c.l.b16 %v2469
  %v2530 = vunpack.c.l.b16 %v2470
  %v2531 = vunpack.c.l.b16 %v2471
  %v2532 = vunpack.c.l.b16 %v2472
  %v2533 = vunpack.c.l.b16 %v2473
  %v2534 = vunpack.c.l.b16 %v2474
  %v2535 = vunpack.c.l.b16 %v2475
  %v2536 = vunpack.c.l.b16 %v2476
  %v2537 = vunpack.c.l.b16 %v2477
  %v2538 = vunpack.c.l.b16 %v2478
  %v2539 = vunpack.c.l.b16 %v2479
  %v2540 = vunpack.c.l.b16 %v2480
  %v2541 = vunpack.c.l.b16 %v2481
  %vm2542 = vcmask 1041409
  %v2543 = vsel %vm2542, %v2527, %v2526
  %vm2544 = vcmask 1042434
  %v2545 = vsel %vm2544, %v2528, %v2543
  %vm2546 = vcmask 1043459
  %v2547 = vsel %vm2546, %v2529, %v2545
  %vm2548 = vcmask 1044484
  %v2549 = vsel %vm2548, %v2530, %v2547
  %vm2550 = vcmask 1045509
  %v2551 = vsel %vm2550, %v2531, %v2549
  %vm2552 = vcmask 1046534
  %v2553 = vsel %vm2552, %v2532, %v2551
  %vm2554 = vcmask 1047559
  %v2555 = vsel %vm2554, %v2533, %v2553
  %v2556 = vsel %vm2542, %v2535, %v2534
  %v2557 = vsel %vm2544, %v2536, %v2556
  %v2558 = vsel %vm2546, %v2537, %v2557
  %v2559 = vsel %vm2548, %v2538, %v2558
  %v2560 = vsel %vm2550, %v2539, %v2559
  %v2561 = vsel %vm2552, %v2540, %v2560
  %v2562 = vsel %vm2554, %v2541, %v2561
  %v2563 = vpack.c.b16 %v2562, %v2555
  %v2581 = vunpack.c.l.b16 %v2482
  %v2582 = vunpack.c.h.b16 %v2482
  %v2583 = vunpack.c.l.b16 %v2483
  %v2584 = vunpack.c.h.b16 %v2483
  %v2585 = vunpack.c.l.b16 %v2484
  %v2586 = vunpack.c.h.b16 %v2484
  %v2587 = vunpack.c.l.b16 %v2485
  %v2588 = vunpack.c.h.b16 %v2485
  %v2589 = vunpack.c.l.b16 %v2486
  %v2590 = vunpack.c.h.b16 %v2486
  %v2591 = vunpack.c.l.b16 %v2487
  %v2592 = vunpack.c.h.b16 %v2487
  %v2593 = vunpack.c.l.b16 %v2488
  %v2594 = vunpack.c.h.b16 %v2488
  %v2595 = vunpack.c.l.b16 %v2489
  %v2596 = vunpack.c.h.b16 %v2489
  %v2597 = vunpack.c.l.b16 %v2490
  %v2598 = vunpack.c.h.b16 %v2490
  %v2599 = vunpack.c.l.b16 %v2491
  %v2600 = vunpack.c.h.b16 %v2491
  %v2601 = vunpack.c.l.b16 %v2492
  %v2602 = vunpack.c.h.b16 %v2492
  %v2603 = vunpack.c.l.b16 %v2493
  %v2604 = vunpack.c.h.b16 %v2493
  %v2605 = vunpack.c.l.b16 %v2494
  %v2606 = vunpack.c.h.b16 %v2494
  %v2607 = vunpack.c.l.b16 %v2495
  %v2608 = vunpack.c.h.b16 %v2495
  %v2609 = vunpack.c.l.b16 %v2496
  %v2610 = vunpack.c.h.b16 %v2496
  %v2611 = vunpack.c.l.b16 %v2497
  %v2612 = vunpack.c.h.b16 %v2497
  %v2613 = vpack.c.b16 %v2583, %v2581
  %v2614 = vpack.c.b16 %v2584, %v2582
  %v2615 = vpack.c.b16 %v2587, %v2585
  %v2616 = vpack.c.b16 %v2588, %v2586
  %v2617 = vpack.c.b16 %v2591, %v2589
  %v2618 = vpack.c.b16 %v2592, %v2590
  %v2619 = vpack.c.b16 %v2595, %v2593
  %v2620 = vpack.c.b16 %v2596, %v2594
  %v2621 = vpack.c.b16 %v2599, %v2597
  %v2622 = vpack.c.b16 %v2600, %v2598
  %v2623 = vpack.c.b16 %v2603, %v2601
  %v2624 = vpack.c.b16 %v2604, %v2602
  %v2625 = vpack.c.b16 %v2607, %v2605
  %v2626 = vpack.c.b16 %v2608, %v2606
  %v2627 = vpack.c.b16 %v2611, %v2609
  %v2628 = vpack.c.b16 %v2612, %v2610
  %2645 = vmatprep.subr.bf16.mxu0 %v2628
  %2646 = vmatpush1.bf16.msra.mxu0 %v2627
  %2647 = vmatprep.subr.bf16.mxu0 %v2626
  %2648 = vmatpush1.bf16.msra.mxu0 %v2625
  %2649 = vmatprep.subr.bf16.mxu0 %v2624
  %2650 = vmatpush1.bf16.msra.mxu0 %v2623
  %2651 = vmatprep.subr.bf16.mxu0 %v2622
  %2652 = vmatpush1.bf16.msra.mxu0 %v2621
  %2653 = vmatprep.subr.bf16.mxu0 %v2620
  %2654 = vmatpush1.bf16.msra.mxu0 %v2619
  %2655 = vmatprep.subr.bf16.mxu0 %v2618
  %2656 = vmatpush1.bf16.msra.mxu0 %v2617
  %2657 = vmatprep.subr.bf16.mxu0 %v2616
  %2658 = vmatpush1.bf16.msra.mxu0 %v2615
  %2659 = vmatprep.subr.bf16.mxu0 %v2614
  %2660 = vmatpush1.bf16.msra.mxu0 %v2613
  %2661 = vmatprep.subr.bf16.mxu0 0
  %2662 = vmatpush2.bf16.msra.mxu0 0
  %2663 = vmatprep.subr.bf16.mxu0 0
  %2664 = vmatpush2.bf16.msra.mxu0 0
  %2665 = vmatprep.subr.bf16.mxu0 0
  %2666 = vmatpush2.bf16.msra.mxu0 0
  %2667 = vmatprep.subr.bf16.mxu0 0
  %2668 = vmatpush2.bf16.msra.mxu0 0
  %2669 = vmatprep.subr.bf16.mxu0 0
  %2670 = vmatpush2.bf16.msra.mxu0 0
  %2671 = vmatprep.subr.bf16.mxu0 0
  %2672 = vmatpush2.bf16.msra.mxu0 0
  %2673 = vmatprep.subr.bf16.mxu0 0
  %2674 = vmatpush2.bf16.msra.mxu0 0
  %2675 = vmatprep.subr.bf16.mxu0 0
  %2676 = vmatpush2.bf16.msra.mxu0 0
  %2677 = vmatprep.mubr.bf16.mxu0 0
  %2678 = vmatmul.mubr.bf16.gmra.mxu0 %v2563
  %v2679 = vpop.f32.mrf.mxu0
  %v2680 = vadd.f32 %v2503, %v2679
  %v2681 = vpop.f32.mrf.mxu0
  %v2682 = vadd.f32 %v2507, %v2681
  %v2683 = vpop.f32.mrf.mxu0
  %v2684 = vadd.f32 %v2503, %v2683
  %v2685 = vpop.f32.mrf.mxu0
  %v2686 = vadd.f32 %v2507, %v2685
  %2687 = vdwg.mxu0
  %2688 = vst [vmem:[%s5] sm:$0xff] %v2680
  %2689 = vst [vmem:[%s5 + $0x8] sm:$0xff] %v2682
  %2690 = vst [vmem:[%s5 + $0x10] sm:$0xff] %v2684
  %2691 = vst [vmem:[%s5 + $0x18] sm:$0xff] %v2686
  // Predicated region
  $region22: #{forward.8} parent=0 // pred_check
    _
  $region23: #{forward.8} parent=0 // pred_check_branch
    %2693 = sbr.rel (0) target = $region25
  $region24: #{forward.8} parent=0 // pred_region
    _
  $region25: #{forward.8} parent=0 // pred_fallthru
    _
  // Predicated region
  $region26: #{forward.8} parent=0 // pred_check
    _
  $region27: #{forward.8} parent=0 // pred_check_branch
    %2695 = sbr.rel (0) target = $region29
  $region28: #{forward.8} parent=0 // pred_region
    _
  $region29: #{forward.8} parent=0 // pred_fallthru
    _

// kernel: forward.10
$region0: #{forward.10}
  #allocation0 [shape = 'u32[]', space=smem, size = 0x4, offset = 0x4, fixed_abs, tag = 'smem constant byte address 0x4 - core index']
  #allocation1 [shape = 'u32[144,128]{1,0:T(1,128)}', space=vmem, size = 0x12000, scoped, tag = 'internal scratch']
  #allocation2 [shape = 'f32[2,256]{1,0:T(2,128)}', space=vmem, size = 0x800, scoped, tag = 'scratch operand']
  %s0 = inlined_call_operand.vmem [shape: f32[8,2,768], index: 0, kind: input, shape index: {}]
  %s1 = inlined_call_operand.vmem [shape: bf16[256,768], index: 1, kind: input, shape index: {}]
  %s2 = inlined_call_operand.vmem [shape: f32[1,768], index: 2, kind: input, shape index: {}]
  %s3 = inlined_call_operand.vmem [shape: f32[8,2,256], index: 3, kind: output, shape index: {}]
  %s4 = sld [smem:[#allocation0]]
  $region29: #{forward.10} parent=0
    _
  %s6 = ssub.s32 1, %s4
  %s7 = scalar_select 0, %s6, %s4
  // Predicated region
  $region2: #{forward.10} parent=0 // pred_check
    _
  $region3: #{forward.10} parent=0 // pred_check_branch
    %9 = sbr.rel (0) target = $region5
  $region4: #{forward.10} parent=0 // pred_region
    _
  $region5: #{forward.10} parent=0 // pred_fallthru
    _
  // Predicated region
  $region6: #{forward.10} parent=0 // pred_check
    _
  $region7: #{forward.10} parent=0 // pred_check_branch
    %11 = sbr.rel (0) target = $region9
  $region8: #{forward.10} parent=0 // pred_region
    _
  $region9: #{forward.10} parent=0 // pred_fallthru
    _
  // Predicated region
  $region10: #{forward.10} parent=0 // pred_check
    _
  $region11: #{forward.10} parent=0 // pred_check_branch
    %13 = sbr.rel (0) target = $region13
  $region12: #{forward.10} parent=0 // pred_region
    _
  $region13: #{forward.10} parent=0 // pred_fallthru
    _
  %14 = vst [vmem:[#allocation2] sm:$0xf] 0.0
  loop: start=0, step=1, limit=8
  $region14: #{forward.10} parent=0 // loop_pre_header
    _
  $region15: #{forward.10} parent=0 // loop_header
    %s16 = sphi 0, %s20
    %p17 = scmp.ge.s32.totalorder %s16, 8
  $region16: #{forward.10} parent=0 // loop_header_branch
    %19 = sbr.rel (%p17) target = $region20
  $region17: #{forward.10} parent=0 // loop_body
    %v21 = vld [vmem:[#allocation2] sm:$0xf]
    %v24 = vunpack.c.l.s4 1983009808
    %v25 = vunpack.c.0.s8 %v24
    %v26 = vlaneseq
    %v27 = vshrl.u32 %v26, 7
    %v28 = vsub.s32 %v25, %v27
    %v29 = vrot.slane %v21, %v28
    %v30 = vcombine.high %v29, %v29
    %v33 = vpack.c.bf16 %v29, %v29
    %v34 = vpack.c.bf16 %v30, %v30
    %v35 = vld [vmem:[%s1] sm:$0xff]
    %v36 = vld [vmem:[%s1 + $0x8] sm:$0xff]
    %v37 = vld [vmem:[%s1 + $0x10] sm:$0xff]
    %v38 = vld [vmem:[%s1 + $0x18] sm:$0xff]
    %v39 = vld [vmem:[%s1 + $0x20] sm:$0xff]
    %v40 = vld [vmem:[%s1 + $0x28] sm:$0xff]
    %v41 = vld [vmem:[%s1 + $0x30] sm:$0xff]
    %v42 = vld [vmem:[%s1 + $0x38] sm:$0xff]
    %v43 = vld [vmem:[%s1 + $0x40] sm:$0xff]
    %v44 = vld [vmem:[%s1 + $0x48] sm:$0xff]
    %v45 = vld [vmem:[%s1 + $0x50] sm:$0xff]
    %v46 = vld [vmem:[%s1 + $0x58] sm:$0xff]
    %v47 = vld [vmem:[%s1 + $0x60] sm:$0xff]
    %v48 = vld [vmem:[%s1 + $0x68] sm:$0xff]
    %v49 = vld [vmem:[%s1 + $0x70] sm:$0xff]
    %v50 = vld [vmem:[%s1 + $0x78] sm:$0xff]
    %v51 = vld [vmem:[%s1 + $0x80] sm:$0xff]
    %v52 = vld [vmem:[%s1 + $0x88] sm:$0xff]
    %v53 = vld [vmem:[%s1 + $0x90] sm:$0xff]
    %v54 = vld [vmem:[%s1 + $0x98] sm:$0xff]
    %v55 = vld [vmem:[%s1 + $0xa0] sm:$0xff]
    %v56 = vld [vmem:[%s1 + $0xa8] sm:$0xff]
    %v57 = vld [vmem:[%s1 + $0xb0] sm:$0xff]
    %v58 = vld [vmem:[%s1 + $0xb8] sm:$0xff]
    %v59 = vld [vmem:[%s1 + $0xc0] sm:$0xff]
    %v60 = vld [vmem:[%s1 + $0xc8] sm:$0xff]
    %v61 = vld [vmem:[%s1 + $0xd0] sm:$0xff]
    %v62 = vld [vmem:[%s1 + $0xd8] sm:$0xff]
    %v63 = vld [vmem:[%s1 + $0xe0] sm:$0xff]
    %v64 = vld [vmem:[%s1 + $0xe8] sm:$0xff]
    %v65 = vld [vmem:[%s1 + $0xf0] sm:$0xff]
    %v66 = vld [vmem:[%s1 + $0xf8] sm:$0xff]
    %v67 = vld [vmem:[%s1 + $0x100] sm:$0xff]
    %v68 = vld [vmem:[%s1 + $0x108] sm:$0xff]
    %v69 = vld [vmem:[%s1 + $0x110] sm:$0xff]
    %v70 = vld [vmem:[%s1 + $0x118] sm:$0xff]
    %v71 = vld [vmem:[%s1 + $0x120] sm:$0xff]
    %v72 = vld [vmem:[%s1 + $0x128] sm:$0xff]
    %v73 = vld [vmem:[%s1 + $0x130] sm:$0xff]
    %v74 = vld [vmem:[%s1 + $0x138] sm:$0xff]
    %v75 = vld [vmem:[%s1 + $0x140] sm:$0xff]
    %v76 = vld [vmem:[%s1 + $0x148] sm:$0xff]
    %v77 = vld [vmem:[%s1 + $0x150] sm:$0xff]
    %v78 = vld [vmem:[%s1 + $0x158] sm:$0xff]
    %v79 = vld [vmem:[%s1 + $0x160] sm:$0xff]
    %v80 = vld [vmem:[%s1 + $0x168] sm:$0xff]
    %v81 = vld [vmem:[%s1 + $0x170] sm:$0xff]
    %v82 = vld [vmem:[%s1 + $0x178] sm:$0xff]
    %v83 = vld [vmem:[%s1 + $0x180] sm:$0xff]
    %v84 = vld [vmem:[%s1 + $0x188] sm:$0xff]
    %v85 = vld [vmem:[%s1 + $0x190] sm:$0xff]
    %v86 = vld [vmem:[%s1 + $0x198] sm:$0xff]
    %v87 = vld [vmem:[%s1 + $0x1a0] sm:$0xff]
    %v88 = vld [vmem:[%s1 + $0x1a8] sm:$0xff]
    %v89 = vld [vmem:[%s1 + $0x1b0] sm:$0xff]
    %v90 = vld [vmem:[%s1 + $0x1b8] sm:$0xff]
    %v91 = vld [vmem:[%s1 + $0x1c0] sm:$0xff]
    %v92 = vld [vmem:[%s1 + $0x1c8] sm:$0xff]
    %v93 = vld [vmem:[%s1 + $0x1d0] sm:$0xff]
    %v94 = vld [vmem:[%s1 + $0x1d8] sm:$0xff]
    %v95 = vld [vmem:[%s1 + $0x1e0] sm:$0xff]
    %v96 = vld [vmem:[%s1 + $0x1e8] sm:$0xff]
    %v97 = vld [vmem:[%s1 + $0x1f0] sm:$0xff]
    %v98 = vld [vmem:[%s1 + $0x1f8] sm:$0xff]
    %v99 = vld [vmem:[%s1 + $0x200] sm:$0xff]
    %v100 = vld [vmem:[%s1 + $0x208] sm:$0xff]
    %v101 = vld [vmem:[%s1 + $0x210] sm:$0xff]
    %v102 = vld [vmem:[%s1 + $0x218] sm:$0xff]
    %v103 = vld [vmem:[%s1 + $0x220] sm:$0xff]
    %v104 = vld [vmem:[%s1 + $0x228] sm:$0xff]
    %v105 = vld [vmem:[%s1 + $0x230] sm:$0xff]
    %v106 = vld [vmem:[%s1 + $0x238] sm:$0xff]
    %v107 = vld [vmem:[%s1 + $0x240] sm:$0xff]
    %v108 = vld [vmem:[%s1 + $0x248] sm:$0xff]
    %v109 = vld [vmem:[%s1 + $0x250] sm:$0xff]
    %v110 = vld [vmem:[%s1 + $0x258] sm:$0xff]
    %v111 = vld [vmem:[%s1 + $0x260] sm:$0xff]
    %v112 = vld [vmem:[%s1 + $0x268] sm:$0xff]
    %v113 = vld [vmem:[%s1 + $0x270] sm:$0xff]
    %v114 = vld [vmem:[%s1 + $0x278] sm:$0xff]
    %v115 = vld [vmem:[%s1 + $0x280] sm:$0xff]
    %v116 = vld [vmem:[%s1 + $0x288] sm:$0xff]
    %v117 = vld [vmem:[%s1 + $0x290] sm:$0xff]
    %v118 = vld [vmem:[%s1 + $0x298] sm:$0xff]
    %v119 = vld [vmem:[%s1 + $0x2a0] sm:$0xff]
    %v120 = vld [vmem:[%s1 + $0x2a8] sm:$0xff]
    %v121 = vld [vmem:[%s1 + $0x2b0] sm:$0xff]
    %v122 = vld [vmem:[%s1 + $0x2b8] sm:$0xff]
    %v123 = vld [vmem:[%s1 + $0x2c0] sm:$0xff]
    %v124 = vld [vmem:[%s1 + $0x2c8] sm:$0xff]
    %v125 = vld [vmem:[%s1 + $0x2d0] sm:$0xff]
    %v126 = vld [vmem:[%s1 + $0x2d8] sm:$0xff]
    %v127 = vld [vmem:[%s1 + $0x2e0] sm:$0xff]
    %v128 = vld [vmem:[%s1 + $0x2e8] sm:$0xff]
    %v129 = vld [vmem:[%s1 + $0x2f0] sm:$0xff]
    %v130 = vld [vmem:[%s1 + $0x2f8] sm:$0xff]
    %v131 = vld [vmem:[%s2] sm:$0x3f]
    %v133 = vlaneseq
    %v134 = vshrl.u32 %v133, 7
    %v135 = vsub.s32 0, %v134
    %v136 = vrot.slane %v131, %v135
    %v137 = vlaneseq
    %v138 = vshrl.u32 %v137, 7
    %v139 = vsub.s32 1, %v138
    %v140 = vrot.slane %v131, %v139
    %v141 = vlaneseq
    %v142 = vshrl.u32 %v141, 7
    %v143 = vsub.s32 2, %v142
    %v144 = vrot.slane %v131, %v143
    %v145 = vlaneseq
    %v146 = vshrl.u32 %v145, 7
    %v147 = vsub.s32 3, %v146
    %v148 = vrot.slane %v131, %v147
    %v149 = vlaneseq
    %v150 = vshrl.u32 %v149, 7
    %v151 = vsub.s32 4, %v150
    %v152 = vrot.slane %v131, %v151
    %v153 = vlaneseq
    %v154 = vshrl.u32 %v153, 7
    %v155 = vsub.s32 5, %v154
    %v156 = vrot.slane %v131, %v155
    %v259 = vunpack.c.l.b16 %v35
    %v260 = vunpack.c.h.b16 %v35
    %v261 = vunpack.c.l.b16 %v36
    %v262 = vunpack.c.h.b16 %v36
    %v263 = vunpack.c.l.b16 %v37
    %v264 = vunpack.c.h.b16 %v37
    %v265 = vunpack.c.l.b16 %v38
    %v266 = vunpack.c.h.b16 %v38
    %v267 = vunpack.c.l.b16 %v39
    %v268 = vunpack.c.h.b16 %v39
    %v269 = vunpack.c.l.b16 %v40
    %v270 = vunpack.c.h.b16 %v40
    %v271 = vunpack.c.l.b16 %v41
    %v272 = vunpack.c.h.b16 %v41
    %v273 = vunpack.c.l.b16 %v42
    %v274 = vunpack.c.h.b16 %v42
    %v275 = vunpack.c.l.b16 %v43
    %v276 = vunpack.c.h.b16 %v43
    %v277 = vunpack.c.l.b16 %v44
    %v278 = vunpack.c.h.b16 %v44
    %v279 = vunpack.c.l.b16 %v45
    %v280 = vunpack.c.h.b16 %v45
    %v281 = vunpack.c.l.b16 %v46
    %v282 = vunpack.c.h.b16 %v46
    %v283 = vunpack.c.l.b16 %v47
    %v284 = vunpack.c.h.b16 %v47
    %v285 = vunpack.c.l.b16 %v48
    %v286 = vunpack.c.h.b16 %v48
    %v287 = vunpack.c.l.b16 %v49
    %v288 = vunpack.c.h.b16 %v49
    %v289 = vunpack.c.l.b16 %v50
    %v290 = vunpack.c.h.b16 %v50
    %v291 = vunpack.c.l.b16 %v51
    %v292 = vunpack.c.h.b16 %v51
    %v293 = vunpack.c.l.b16 %v52
    %v294 = vunpack.c.h.b16 %v52
    %v295 = vunpack.c.l.b16 %v53
    %v296 = vunpack.c.h.b16 %v53
    %v297 = vunpack.c.l.b16 %v54
    %v298 = vunpack.c.h.b16 %v54
    %v299 = vunpack.c.l.b16 %v55
    %v300 = vunpack.c.h.b16 %v55
    %v301 = vunpack.c.l.b16 %v56
    %v302 = vunpack.c.h.b16 %v56
    %v303 = vunpack.c.l.b16 %v57
    %v304 = vunpack.c.h.b16 %v57
    %v305 = vunpack.c.l.b16 %v58
    %v306 = vunpack.c.h.b16 %v58
    %v307 = vunpack.c.l.b16 %v59
    %v308 = vunpack.c.h.b16 %v59
    %v309 = vunpack.c.l.b16 %v60
    %v310 = vunpack.c.h.b16 %v60
    %v311 = vunpack.c.l.b16 %v61
    %v312 = vunpack.c.h.b16 %v61
    %v313 = vunpack.c.l.b16 %v62
    %v314 = vunpack.c.h.b16 %v62
    %v315 = vunpack.c.l.b16 %v63
    %v316 = vunpack.c.h.b16 %v63
    %v317 = vunpack.c.l.b16 %v64
    %v318 = vunpack.c.h.b16 %v64
    %v319 = vunpack.c.l.b16 %v65
    %v320 = vunpack.c.h.b16 %v65
    %v321 = vunpack.c.l.b16 %v66
    %v322 = vunpack.c.h.b16 %v66
    %v323 = vunpack.c.l.b16 %v67
    %v324 = vunpack.c.h.b16 %v67
    %v325 = vunpack.c.l.b16 %v68
    %v326 = vunpack.c.h.b16 %v68
    %v327 = vunpack.c.l.b16 %v69
    %v328 = vunpack.c.h.b16 %v69
    %v329 = vunpack.c.l.b16 %v70
    %v330 = vunpack.c.h.b16 %v70
    %v331 = vunpack.c.l.b16 %v71
    %v332 = vunpack.c.h.b16 %v71
    %v333 = vunpack.c.l.b16 %v72
    %v334 = vunpack.c.h.b16 %v72
    %v335 = vunpack.c.l.b16 %v73
    %v336 = vunpack.c.h.b16 %v73
    %v337 = vunpack.c.l.b16 %v74
    %v338 = vunpack.c.h.b16 %v74
    %v339 = vunpack.c.l.b16 %v75
    %v340 = vunpack.c.h.b16 %v75
    %v341 = vunpack.c.l.b16 %v76
    %v342 = vunpack.c.h.b16 %v76
    %v343 = vunpack.c.l.b16 %v77
    %v344 = vunpack.c.h.b16 %v77
    %v345 = vunpack.c.l.b16 %v78
    %v346 = vunpack.c.h.b16 %v78
    %v347 = vunpack.c.l.b16 %v79
    %v348 = vunpack.c.h.b16 %v79
    %v349 = vunpack.c.l.b16 %v80
    %v350 = vunpack.c.h.b16 %v80
    %v351 = vunpack.c.l.b16 %v81
    %v352 = vunpack.c.h.b16 %v81
    %v353 = vunpack.c.l.b16 %v82
    %v354 = vunpack.c.h.b16 %v82
    %v355 = vunpack.c.l.b16 %v83
    %v356 = vunpack.c.h.b16 %v83
    %v357 = vunpack.c.l.b16 %v84
    %v358 = vunpack.c.h.b16 %v84
    %v359 = vunpack.c.l.b16 %v85
    %v360 = vunpack.c.h.b16 %v85
    %v361 = vunpack.c.l.b16 %v86
    %v362 = vunpack.c.h.b16 %v86
    %v363 = vunpack.c.l.b16 %v87
    %v364 = vunpack.c.h.b16 %v87
    %v365 = vunpack.c.l.b16 %v88
    %v366 = vunpack.c.h.b16 %v88
    %v367 = vunpack.c.l.b16 %v89
    %v368 = vunpack.c.h.b16 %v89
    %v369 = vunpack.c.l.b16 %v90
    %v370 = vunpack.c.h.b16 %v90
    %v371 = vunpack.c.l.b16 %v91
    %v372 = vunpack.c.h.b16 %v91
    %v373 = vunpack.c.l.b16 %v92
    %v374 = vunpack.c.h.b16 %v92
    %v375 = vunpack.c.l.b16 %v93
    %v376 = vunpack.c.h.b16 %v93
    %v377 = vunpack.c.l.b16 %v94
    %v378 = vunpack.c.h.b16 %v94
    %v379 = vunpack.c.l.b16 %v95
    %v380 = vunpack.c.h.b16 %v95
    %v381 = vunpack.c.l.b16 %v96
    %v382 = vunpack.c.h.b16 %v96
    %v383 = vunpack.c.l.b16 %v97
    %v384 = vunpack.c.h.b16 %v97
    %v385 = vunpack.c.l.b16 %v98
    %v386 = vunpack.c.h.b16 %v98
    %v387 = vunpack.c.l.b16 %v99
    %v388 = vunpack.c.h.b16 %v99
    %v389 = vunpack.c.l.b16 %v100
    %v390 = vunpack.c.h.b16 %v100
    %v391 = vunpack.c.l.b16 %v101
    %v392 = vunpack.c.h.b16 %v101
    %v393 = vunpack.c.l.b16 %v102
    %v394 = vunpack.c.h.b16 %v102
    %v395 = vunpack.c.l.b16 %v103
    %v396 = vunpack.c.h.b16 %v103
    %v397 = vunpack.c.l.b16 %v104
    %v398 = vunpack.c.h.b16 %v104
    %v399 = vunpack.c.l.b16 %v105
    %v400 = vunpack.c.h.b16 %v105
    %v401 = vunpack.c.l.b16 %v106
    %v402 = vunpack.c.h.b16 %v106
    %v403 = vunpack.c.l.b16 %v107
    %v404 = vunpack.c.h.b16 %v107
    %v405 = vunpack.c.l.b16 %v108
    %v406 = vunpack.c.h.b16 %v108
    %v407 = vunpack.c.l.b16 %v109
    %v408 = vunpack.c.h.b16 %v109
    %v409 = vunpack.c.l.b16 %v110
    %v410 = vunpack.c.h.b16 %v110
    %v411 = vunpack.c.l.b16 %v111
    %v412 = vunpack.c.h.b16 %v111
    %v413 = vunpack.c.l.b16 %v112
    %v414 = vunpack.c.h.b16 %v112
    %v415 = vunpack.c.l.b16 %v113
    %v416 = vunpack.c.h.b16 %v113
    %v417 = vunpack.c.l.b16 %v114
    %v418 = vunpack.c.h.b16 %v114
    %v419 = vunpack.c.l.b16 %v115
    %v420 = vunpack.c.h.b16 %v115
    %v421 = vunpack.c.l.b16 %v116
    %v422 = vunpack.c.h.b16 %v116
    %v423 = vunpack.c.l.b16 %v117
    %v424 = vunpack.c.h.b16 %v117
    %v425 = vunpack.c.l.b16 %v118
    %v426 = vunpack.c.h.b16 %v118
    %v427 = vunpack.c.l.b16 %v119
    %v428 = vunpack.c.h.b16 %v119
    %v429 = vunpack.c.l.b16 %v120
    %v430 = vunpack.c.h.b16 %v120
    %v431 = vunpack.c.l.b16 %v121
    %v432 = vunpack.c.h.b16 %v121
    %v433 = vunpack.c.l.b16 %v122
    %v434 = vunpack.c.h.b16 %v122
    %v435 = vunpack.c.l.b16 %v123
    %v436 = vunpack.c.h.b16 %v123
    %v437 = vunpack.c.l.b16 %v124
    %v438 = vunpack.c.h.b16 %v124
    %v439 = vunpack.c.l.b16 %v125
    %v440 = vunpack.c.h.b16 %v125
    %v441 = vunpack.c.l.b16 %v126
    %v442 = vunpack.c.h.b16 %v126
    %v443 = vunpack.c.l.b16 %v127
    %v444 = vunpack.c.h.b16 %v127
    %v445 = vunpack.c.l.b16 %v128
    %v446 = vunpack.c.h.b16 %v128
    %v447 = vunpack.c.l.b16 %v129
    %v448 = vunpack.c.h.b16 %v129
    %v449 = vunpack.c.l.b16 %v130
    %v450 = vunpack.c.h.b16 %v130
    %v451 = vpack.c.b16 %v265, %v259
    %v452 = vpack.c.b16 %v266, %v260
    %v453 = vpack.c.b16 %v267, %v261
    %v454 = vpack.c.b16 %v268, %v262
    %v455 = vpack.c.b16 %v269, %v263
    %v456 = vpack.c.b16 %v270, %v264
    %v457 = vpack.c.b16 %v277, %v271
    %v458 = vpack.c.b16 %v278, %v272
    %v459 = vpack.c.b16 %v279, %v273
    %v460 = vpack.c.b16 %v280, %v274
    %v461 = vpack.c.b16 %v281, %v275
    %v462 = vpack.c.b16 %v282, %v276
    %v463 = vpack.c.b16 %v289, %v283
    %v464 = vpack.c.b16 %v290, %v284
    %v465 = vpack.c.b16 %v291, %v285
    %v466 = vpack.c.b16 %v292, %v286
    %v467 = vpack.c.b16 %v293, %v287
    %v468 = vpack.c.b16 %v294, %v288
    %v469 = vpack.c.b16 %v301, %v295
    %v470 = vpack.c.b16 %v302, %v296
    %v471 = vpack.c.b16 %v303, %v297
    %v472 = vpack.c.b16 %v304, %v298
    %v473 = vpack.c.b16 %v305, %v299
    %v474 = vpack.c.b16 %v306, %v300
    %v475 = vpack.c.b16 %v313, %v307
    %v476 = vpack.c.b16 %v314, %v308
    %v477 = vpack.c.b16 %v315, %v309
    %v478 = vpack.c.b16 %v316, %v310
    %v479 = vpack.c.b16 %v317, %v311
    %v480 = vpack.c.b16 %v318, %v312
    %v481 = vpack.c.b16 %v325, %v319
    %v482 = vpack.c.b16 %v326, %v320
    %v483 = vpack.c.b16 %v327, %v321
    %v484 = vpack.c.b16 %v328, %v322
    %v485 = vpack.c.b16 %v329, %v323
    %v486 = vpack.c.b16 %v330, %v324
    %v487 = vpack.c.b16 %v337, %v331
    %v488 = vpack.c.b16 %v338, %v332
    %v489 = vpack.c.b16 %v339, %v333
    %v490 = vpack.c.b16 %v340, %v334
    %v491 = vpack.c.b16 %v341, %v335
    %v492 = vpack.c.b16 %v342, %v336
    %v493 = vpack.c.b16 %v349, %v343
    %v494 = vpack.c.b16 %v350, %v344
    %v495 = vpack.c.b16 %v351, %v345
    %v496 = vpack.c.b16 %v352, %v346
    %v497 = vpack.c.b16 %v353, %v347
    %v498 = vpack.c.b16 %v354, %v348
    %v499 = vpack.c.b16 %v361, %v355
    %v500 = vpack.c.b16 %v362, %v356
    %v501 = vpack.c.b16 %v363, %v357
    %v502 = vpack.c.b16 %v364, %v358
    %v503 = vpack.c.b16 %v365, %v359
    %v504 = vpack.c.b16 %v366, %v360
    %v505 = vpack.c.b16 %v373, %v367
    %v506 = vpack.c.b16 %v374, %v368
    %v507 = vpack.c.b16 %v375, %v369
    %v508 = vpack.c.b16 %v376, %v370
    %v509 = vpack.c.b16 %v377, %v371
    %v510 = vpack.c.b16 %v378, %v372
    %v511 = vpack.c.b16 %v385, %v379
    %v512 = vpack.c.b16 %v386, %v380
    %v513 = vpack.c.b16 %v387, %v381
    %v514 = vpack.c.b16 %v388, %v382
    %v515 = vpack.c.b16 %v389, %v383
    %v516 = vpack.c.b16 %v390, %v384
    %v517 = vpack.c.b16 %v397, %v391
    %v518 = vpack.c.b16 %v398, %v392
    %v519 = vpack.c.b16 %v399, %v393
    %v520 = vpack.c.b16 %v400, %v394
    %v521 = vpack.c.b16 %v401, %v395
    %v522 = vpack.c.b16 %v402, %v396
    %v523 = vpack.c.b16 %v409, %v403
    %v524 = vpack.c.b16 %v410, %v404
    %v525 = vpack.c.b16 %v411, %v405
    %v526 = vpack.c.b16 %v412, %v406
    %v527 = vpack.c.b16 %v413, %v407
    %v528 = vpack.c.b16 %v414, %v408
    %v529 = vpack.c.b16 %v421, %v415
    %v530 = vpack.c.b16 %v422, %v416
    %v531 = vpack.c.b16 %v423, %v417
    %v532 = vpack.c.b16 %v424, %v418
    %v533 = vpack.c.b16 %v425, %v419
    %v534 = vpack.c.b16 %v426, %v420
    %v535 = vpack.c.b16 %v433, %v427
    %v536 = vpack.c.b16 %v434, %v428
    %v537 = vpack.c.b16 %v435, %v429
    %v538 = vpack.c.b16 %v436, %v430
    %v539 = vpack.c.b16 %v437, %v431
    %v540 = vpack.c.b16 %v438, %v432
    %v541 = vpack.c.b16 %v445, %v439
    %v542 = vpack.c.b16 %v446, %v440
    %v543 = vpack.c.b16 %v447, %v441
    %v544 = vpack.c.b16 %v448, %v442
    %v545 = vpack.c.b16 %v449, %v443
    %v546 = vpack.c.b16 %v450, %v444
    %643 = vmatprep.subr.bf16.mxu0 %v494
    %644 = vmatpush1.bf16.msra.mxu0 %v493
    %645 = vmatprep.subr.bf16.mxu0 %v488
    %646 = vmatpush1.bf16.msra.mxu0 %v487
    %647 = vmatprep.subr.bf16.mxu0 %v482
    %648 = vmatpush1.bf16.msra.mxu0 %v481
    %649 = vmatprep.subr.bf16.mxu0 %v476
    %650 = vmatpush1.bf16.msra.mxu0 %v475
    %651 = vmatprep.subr.bf16.mxu0 %v470
    %652 = vmatpush1.bf16.msra.mxu0 %v469
    %653 = vmatprep.subr.bf16.mxu0 %v464
    %654 = vmatpush1.bf16.msra.mxu0 %v463
    %655 = vmatprep.subr.bf16.mxu0 %v458
    %656 = vmatpush1.bf16.msra.mxu0 %v457
    %657 = vmatprep.subr.bf16.mxu0 %v452
    %658 = vmatpush1.bf16.msra.mxu0 %v451
    %659 = vmatprep.subr.bf16.mxu0 %v542
    %660 = vmatpush2.bf16.msra.mxu0 %v541
    %661 = vmatprep.subr.bf16.mxu0 %v536
    %662 = vmatpush2.bf16.msra.mxu0 %v535
    %663 = vmatprep.subr.bf16.mxu0 %v530
    %664 = vmatpush2.bf16.msra.mxu0 %v529
    %665 = vmatprep.subr.bf16.mxu0 %v524
    %666 = vmatpush2.bf16.msra.mxu0 %v523
    %667 = vmatprep.subr.bf16.mxu0 %v518
    %668 = vmatpush2.bf16.msra.mxu0 %v517
    %669 = vmatprep.subr.bf16.mxu0 %v512
    %670 = vmatpush2.bf16.msra.mxu0 %v511
    %671 = vmatprep.subr.bf16.mxu0 %v506
    %672 = vmatpush2.bf16.msra.mxu0 %v505
    %673 = vmatprep.subr.bf16.mxu0 %v500
    %674 = vmatpush2.bf16.msra.mxu0 %v499
    %675 = vmatprep.mubr.bf16.mxu0 %v34
    %676 = vmatmul.mubr.bf16.gmra.mxu0 %v33
    %v677 = vpop.f32.mrf.mxu0
    %v678 = vadd.f32 %v136, %v677
    %v679 = vpop.f32.mrf.mxu0
    %v680 = vadd.f32 %v140, %v679
    %v681 = vpop.f32.mrf.mxu0
    %v682 = vpop.f32.mrf.mxu0
    %683 = vdwg.mxu0
    %684 = vmatprep.subr.bf16.mxu0 %v496
    %685 = vmatpush1.bf16.msra.mxu0 %v495
    %686 = vmatprep.subr.bf16.mxu0 %v490
    %687 = vmatpush1.bf16.msra.mxu0 %v489
    %688 = vmatprep.subr.bf16.mxu0 %v484
    %689 = vmatpush1.bf16.msra.mxu0 %v483
    %690 = vmatprep.subr.bf16.mxu0 %v478
    %691 = vmatpush1.bf16.msra.mxu0 %v477
    %692 = vmatprep.subr.bf16.mxu0 %v472
    %693 = vmatpush1.bf16.msra.mxu0 %v471
    %694 = vmatprep.subr.bf16.mxu0 %v466
    %695 = vmatpush1.bf16.msra.mxu0 %v465
    %696 = vmatprep.subr.bf16.mxu0 %v460
    %697 = vmatpush1.bf16.msra.mxu0 %v459
    %698 = vmatprep.subr.bf16.mxu0 %v454
    %699 = vmatpush1.bf16.msra.mxu0 %v453
    %700 = vmatprep.subr.bf16.mxu0 %v544
    %701 = vmatpush2.bf16.msra.mxu0 %v543
    %702 = vmatprep.subr.bf16.mxu0 %v538
    %703 = vmatpush2.bf16.msra.mxu0 %v537
    %704 = vmatprep.subr.bf16.mxu0 %v532
    %705 = vmatpush2.bf16.msra.mxu0 %v531
    %706 = vmatprep.subr.bf16.mxu0 %v526
    %707 = vmatpush2.bf16.msra.mxu0 %v525
    %708 = vmatprep.subr.bf16.mxu0 %v520
    %709 = vmatpush2.bf16.msra.mxu0 %v519
    %710 = vmatprep.subr.bf16.mxu0 %v514
    %711 = vmatpush2.bf16.msra.mxu0 %v513
    %712 = vmatprep.subr.bf16.mxu0 %v508
    %713 = vmatpush2.bf16.msra.mxu0 %v507
    %714 = vmatprep.subr.bf16.mxu0 %v502
    %715 = vmatpush2.bf16.msra.mxu0 %v501
    %716 = vmatprep.mubr.bf16.mxu0 %v34
    %717 = vmatmul.mubr.bf16.gmra.mxu0 %v33
    %v718 = vpop.f32.mrf.mxu0
    %v719 = vadd.f32 %v144, %v718
    %v720 = vpop.f32.mrf.mxu0
    %v721 = vadd.f32 %v148, %v720
    %v722 = vpop.f32.mrf.mxu0
    %v723 = vpop.f32.mrf.mxu0
    %724 = vdwg.mxu0
    %725 = vmatprep.subr.bf16.mxu0 %v498
    %726 = vmatpush1.bf16.msra.mxu0 %v497
    %727 = vmatprep.subr.bf16.mxu0 %v492
    %728 = vmatpush1.bf16.msra.mxu0 %v491
    %729 = vmatprep.subr.bf16.mxu0 %v486
    %730 = vmatpush1.bf16.msra.mxu0 %v485
    %731 = vmatprep.subr.bf16.mxu0 %v480
    %732 = vmatpush1.bf16.msra.mxu0 %v479
    %733 = vmatprep.subr.bf16.mxu0 %v474
    %734 = vmatpush1.bf16.msra.mxu0 %v473
    %735 = vmatprep.subr.bf16.mxu0 %v468
    %736 = vmatpush1.bf16.msra.mxu0 %v467
    %737 = vmatprep.subr.bf16.mxu0 %v462
    %738 = vmatpush1.bf16.msra.mxu0 %v461
    %739 = vmatprep.subr.bf16.mxu0 %v456
    %740 = vmatpush1.bf16.msra.mxu0 %v455
    %741 = vmatprep.subr.bf16.mxu0 %v546
    %742 = vmatpush2.bf16.msra.mxu0 %v545
    %743 = vmatprep.subr.bf16.mxu0 %v540
    %744 = vmatpush2.bf16.msra.mxu0 %v539
    %745 = vmatprep.subr.bf16.mxu0 %v534
    %746 = vmatpush2.bf16.msra.mxu0 %v533
    %747 = vmatprep.subr.bf16.mxu0 %v528
    %748 = vmatpush2.bf16.msra.mxu0 %v527
    %749 = vmatprep.subr.bf16.mxu0 %v522
    %750 = vmatpush2.bf16.msra.mxu0 %v521
    %751 = vmatprep.subr.bf16.mxu0 %v516
    %752 = vmatpush2.bf16.msra.mxu0 %v515
    %753 = vmatprep.subr.bf16.mxu0 %v510
    %754 = vmatpush2.bf16.msra.mxu0 %v509
    %755 = vmatprep.subr.bf16.mxu0 %v504
    %756 = vmatpush2.bf16.msra.mxu0 %v503
    %757 = vmatprep.mubr.bf16.mxu0 %v34
    %758 = vmatmul.mubr.bf16.gmra.mxu0 %v33
    %v759 = vpop.f32.mrf.mxu0
    %v760 = vadd.f32 %v152, %v759
    %v761 = vpop.f32.mrf.mxu0
    %v762 = vadd.f32 %v156, %v761
    %v763 = vpop.f32.mrf.mxu0
    %v764 = vpop.f32.mrf.mxu0
    %765 = vdwg.mxu0
    %s766 = smul.u32 %s16, 6
    %s767 = smul.addr %s766, 2
    %s768 = scalar_lea.vmem %s0, %s767
    %v769 = vld [vmem:[%s768] sm:$0xff]
    %v770 = vld [vmem:[%s768 + $0x8] sm:$0xf]
    %v773 = vcombine.low %v678, %v680
    %v775 = vunpack.c.l.s4 1983009808
    %v776 = vunpack.c.0.s8 %v775
    %v777 = vlaneseq
    %v778 = vshrl.u32 %v777, 7
    %v779 = vsub.s32 %v776, %v778
    %v780 = vrot.slane %v773, %v779
    %v782 = vadd.f32 %v769, %v780
    %v783 = vxor.u32 %v782, 2147483648
    %v784 = vmul.f32 %v783, 1.442695
    %v785 = vpow.pop %v784
    %v786 = vadd.f32 %v785, 1.0
    %v787 = vrcp.pop %v786
    %v788 = vmul.f32 1.0, %v787
    %v790 = vrot.slane %v769, 4
    %v794 = vcombine.low %v719, %v721
    %v796 = vunpack.c.l.s4 1983009808
    %v797 = vunpack.c.0.s8 %v796
    %v798 = vlaneseq
    %v799 = vshrl.u32 %v798, 7
    %v800 = vsub.s32 %v797, %v799
    %v801 = vrot.slane %v794, %v800
    %v803 = vadd.f32 %v790, %v801
    %v804 = vxor.u32 %v803, 2147483648
    %v805 = vmul.f32 %v804, 1.442695
    %v806 = vpow.pop %v805
    %v807 = vadd.f32 %v806, 1.0
    %v808 = vrcp.pop %v807
    %v809 = vmul.f32 1.0, %v808
    %v812 = vcombine.low %v760, %v762
    %v814 = vunpack.c.l.s4 1983009808
    %v815 = vunpack.c.0.s8 %v814
    %v816 = vlaneseq
    %v817 = vshrl.u32 %v816, 7
    %v818 = vsub.s32 %v815, %v817
    %v819 = vrot.slane %v812, %v818
    %v821 = vmul.f32 %v788, %v819
    %v822 = vadd.f32 %v770, %v821
    %v823 = vtanh.pop %v822
    %v824 = vsub.f32 1.0, %v809
    %v825 = vmul.f32 %v824, %v823
    %v826 = vmul.f32 %v809, %v21
    %v827 = vadd.f32 %v825, %v826
    %828 = vst [vmem:[#allocation2] sm:$0xf] %v827
    %s829 = smul.u32 %s16, 2
    %s830 = smul.addr %s829, 2
    %s831 = scalar_lea.vmem %s3, %s830
    %832 = vst [vmem:[%s831] sm:$0xf] %v827
  $region18: #{forward.10} parent=0 // loop_footer
    %s20 = sadd.s32 1, %s16
  $region19: #{forward.10} parent=0 // loop_footer_branch
    %15 = sbr.rel target = $region15
  $region20: #{forward.10} parent=0 // loop_exit
    _
  // Predicated region
  $region21: #{forward.10} parent=0 // pred_check
    _
  $region22: #{forward.10} parent=0 // pred_check_branch
    %834 = sbr.rel (0) target = $region24
  $region23: #{forward.10} parent=0 // pred_region
    _
  $region24: #{forward.10} parent=0 // pred_fallthru
    _
  // Predicated region
  $region25: #{forward.10} parent=0 // pred_check
    _
  $region26: #{forward.10} parent=0 // pred_check_branch
    %836 = sbr.rel (0) target = $region28
  $region27: #{forward.10} parent=0 // pred_region
    _
  $region28: #{forward.10} parent=0 // pred_fallthru
    _

// kernel: forward.11
$region0: #{forward.11}
  #allocation0 [shape = 'u32[]', space=smem, size = 0x4, offset = 0x4, fixed_abs, tag = 'smem constant byte address 0x4 - core index']
  #allocation1 [shape = 'u32[144,128]{1,0:T(1,128)}', space=vmem, size = 0x12000, scoped, tag = 'internal scratch']
  %s0 = inlined_call_operand.vmem [shape: f32[16,256], index: 0, kind: input, shape index: {}]
  %s1 = inlined_call_operand.vmem [shape: bf16[256,768], index: 1, kind: input, shape index: {}]
  %s2 = inlined_call_operand.vmem [shape: f32[1,768], index: 2, kind: input, shape index: {}]
  %s3 = inlined_call_operand.vmem [shape: f32[16,768], index: 3, kind: output, shape index: {}]
  %s4 = sld [smem:[#allocation0]]
  $region22: #{forward.11} parent=0
    _
  %s6 = ssub.s32 1, %s4
  %s7 = scalar_select 0, %s6, %s4
  // Predicated region
  $region2: #{forward.11} parent=0 // pred_check
    _
  $region3: #{forward.11} parent=0 // pred_check_branch
    %9 = sbr.rel (0) target = $region5
  $region4: #{forward.11} parent=0 // pred_region
    _
  $region5: #{forward.11} parent=0 // pred_fallthru
    _
  // Predicated region
  $region6: #{forward.11} parent=0 // pred_check
    _
  $region7: #{forward.11} parent=0 // pred_check_branch
    %11 = sbr.rel (0) target = $region9
  $region8: #{forward.11} parent=0 // pred_region
    _
  $region9: #{forward.11} parent=0 // pred_fallthru
    _
  // Predicated region
  $region10: #{forward.11} parent=0 // pred_check
    _
  $region11: #{forward.11} parent=0 // pred_check_branch
    %13 = sbr.rel (0) target = $region13
  $region12: #{forward.11} parent=0 // pred_region
    _
  $region13: #{forward.11} parent=0 // pred_fallthru
    _
  %v14 = vld [vmem:[%s0] sm:$0xff]
  %v15 = vld [vmem:[%s0 + $0x8] sm:$0xff]
  %v16 = vld [vmem:[%s0 + $0x10] sm:$0xff]
  %v17 = vld [vmem:[%s0 + $0x18] sm:$0xff]
  %v18 = vpack.c.bf16 %v16, %v14
  %v19 = vpack.c.bf16 %v17, %v15
  %v20 = vld [vmem:[%s1] sm:$0xff]
  %v21 = vld [vmem:[%s1 + $0x8] sm:$0xff]
  %v22 = vld [vmem:[%s1 + $0x10] sm:$0xff]
  %v23 = vld [vmem:[%s1 + $0x18] sm:$0xff]
  %v24 = vld [vmem:[%s1 + $0x20] sm:$0xff]
  %v25 = vld [vmem:[%s1 + $0x28] sm:$0xff]
  %v26 = vld [vmem:[%s1 + $0x30] sm:$0xff]
  %v27 = vld [vmem:[%s1 + $0x38] sm:$0xff]
  %v28 = vld [vmem:[%s1 + $0x40] sm:$0xff]
  %v29 = vld [vmem:[%s1 + $0x48] sm:$0xff]
  %v30 = vld [vmem:[%s1 + $0x50] sm:$0xff]
  %v31 = vld [vmem:[%s1 + $0x58] sm:$0xff]
  %v32 = vld [vmem:[%s1 + $0x60] sm:$0xff]
  %v33 = vld [vmem:[%s1 + $0x68] sm:$0xff]
  %v34 = vld [vmem:[%s1 + $0x70] sm:$0xff]
  %v35 = vld [vmem:[%s1 + $0x78] sm:$0xff]
  %v36 = vld [vmem:[%s1 + $0x80] sm:$0xff]
  %v37 = vld [vmem:[%s1 + $0x88] sm:$0xff]
  %v38 = vld [vmem:[%s1 + $0x90] sm:$0xff]
  %v39 = vld [vmem:[%s1 + $0x98] sm:$0xff]
  %v40 = vld [vmem:[%s1 + $0xa0] sm:$0xff]
  %v41 = vld [vmem:[%s1 + $0xa8] sm:$0xff]
  %v42 = vld [vmem:[%s1 + $0xb0] sm:$0xff]
  %v43 = vld [vmem:[%s1 + $0xb8] sm:$0xff]
  %v44 = vld [vmem:[%s1 + $0xc0] sm:$0xff]
  %v45 = vld [vmem:[%s1 + $0xc8] sm:$0xff]
  %v46 = vld [vmem:[%s1 + $0xd0] sm:$0xff]
  %v47 = vld [vmem:[%s1 + $0xd8] sm:$0xff]
  %v48 = vld [vmem:[%s1 + $0xe0] sm:$0xff]
  %v49 = vld [vmem:[%s1 + $0xe8] sm:$0xff]
  %v50 = vld [vmem:[%s1 + $0xf0] sm:$0xff]
  %v51 = vld [vmem:[%s1 + $0xf8] sm:$0xff]
  %v52 = vld [vmem:[%s1 + $0x100] sm:$0xff]
  %v53 = vld [vmem:[%s1 + $0x108] sm:$0xff]
  %v54 = vld [vmem:[%s1 + $0x110] sm:$0xff]
  %v55 = vld [vmem:[%s1 + $0x118] sm:$0xff]
  %v56 = vld [vmem:[%s1 + $0x120] sm:$0xff]
  %v57 = vld [vmem:[%s1 + $0x128] sm:$0xff]
  %v58 = vld [vmem:[%s1 + $0x130] sm:$0xff]
  %v59 = vld [vmem:[%s1 + $0x138] sm:$0xff]
  %v60 = vld [vmem:[%s1 + $0x140] sm:$0xff]
  %v61 = vld [vmem:[%s1 + $0x148] sm:$0xff]
  %v62 = vld [vmem:[%s1 + $0x150] sm:$0xff]
  %v63 = vld [vmem:[%s1 + $0x158] sm:$0xff]
  %v64 = vld [vmem:[%s1 + $0x160] sm:$0xff]
  %v65 = vld [vmem:[%s1 + $0x168] sm:$0xff]
  %v66 = vld [vmem:[%s1 + $0x170] sm:$0xff]
  %v67 = vld [vmem:[%s1 + $0x178] sm:$0xff]
  %v68 = vld [vmem:[%s1 + $0x180] sm:$0xff]
  %v69 = vld [vmem:[%s1 + $0x188] sm:$0xff]
  %v70 = vld [vmem:[%s1 + $0x190] sm:$0xff]
  %v71 = vld [vmem:[%s1 + $0x198] sm:$0xff]
  %v72 = vld [vmem:[%s1 + $0x1a0] sm:$0xff]
  %v73 = vld [vmem:[%s1 + $0x1a8] sm:$0xff]
  %v74 = vld [vmem:[%s1 + $0x1b0] sm:$0xff]
  %v75 = vld [vmem:[%s1 + $0x1b8] sm:$0xff]
  %v76 = vld [vmem:[%s1 + $0x1c0] sm:$0xff]
  %v77 = vld [vmem:[%s1 + $0x1c8] sm:$0xff]
  %v78 = vld [vmem:[%s1 + $0x1d0] sm:$0xff]
  %v79 = vld [vmem:[%s1 + $0x1d8] sm:$0xff]
  %v80 = vld [vmem:[%s1 + $0x1e0] sm:$0xff]
  %v81 = vld [vmem:[%s1 + $0x1e8] sm:$0xff]
  %v82 = vld [vmem:[%s1 + $0x1f0] sm:$0xff]
  %v83 = vld [vmem:[%s1 + $0x1f8] sm:$0xff]
  %v84 = vld [vmem:[%s1 + $0x200] sm:$0xff]
  %v85 = vld [vmem:[%s1 + $0x208] sm:$0xff]
  %v86 = vld [vmem:[%s1 + $0x210] sm:$0xff]
  %v87 = vld [vmem:[%s1 + $0x218] sm:$0xff]
  %v88 = vld [vmem:[%s1 + $0x220] sm:$0xff]
  %v89 = vld [vmem:[%s1 + $0x228] sm:$0xff]
  %v90 = vld [vmem:[%s1 + $0x230] sm:$0xff]
  %v91 = vld [vmem:[%s1 + $0x238] sm:$0xff]
  %v92 = vld [vmem:[%s1 + $0x240] sm:$0xff]
  %v93 = vld [vmem:[%s1 + $0x248] sm:$0xff]
  %v94 = vld [vmem:[%s1 + $0x250] sm:$0xff]
  %v95 = vld [vmem:[%s1 + $0x258] sm:$0xff]
  %v96 = vld [vmem:[%s1 + $0x260] sm:$0xff]
  %v97 = vld [vmem:[%s1 + $0x268] sm:$0xff]
  %v98 = vld [vmem:[%s1 + $0x270] sm:$0xff]
  %v99 = vld [vmem:[%s1 + $0x278] sm:$0xff]
  %v100 = vld [vmem:[%s1 + $0x280] sm:$0xff]
  %v101 = vld [vmem:[%s1 + $0x288] sm:$0xff]
  %v102 = vld [vmem:[%s1 + $0x290] sm:$0xff]
  %v103 = vld [vmem:[%s1 + $0x298] sm:$0xff]
  %v104 = vld [vmem:[%s1 + $0x2a0] sm:$0xff]
  %v105 = vld [vmem:[%s1 + $0x2a8] sm:$0xff]
  %v106 = vld [vmem:[%s1 + $0x2b0] sm:$0xff]
  %v107 = vld [vmem:[%s1 + $0x2b8] sm:$0xff]
  %v108 = vld [vmem:[%s1 + $0x2c0] sm:$0xff]
  %v109 = vld [vmem:[%s1 + $0x2c8] sm:$0xff]
  %v110 = vld [vmem:[%s1 + $0x2d0] sm:$0xff]
  %v111 = vld [vmem:[%s1 + $0x2d8] sm:$0xff]
  %v112 = vld [vmem:[%s1 + $0x2e0] sm:$0xff]
  %v113 = vld [vmem:[%s1 + $0x2e8] sm:$0xff]
  %v114 = vld [vmem:[%s1 + $0x2f0] sm:$0xff]
  %v115 = vld [vmem:[%s1 + $0x2f8] sm:$0xff]
  %v116 = vld [vmem:[%s2] sm:$0x3f]
  %v118 = vlaneseq
  %v119 = vshrl.u32 %v118, 7
  %v120 = vsub.s32 0, %v119
  %v121 = vrot.slane %v116, %v120
  %v122 = vlaneseq
  %v123 = vshrl.u32 %v122, 7
  %v124 = vsub.s32 1, %v123
  %v125 = vrot.slane %v116, %v124
  %v126 = vlaneseq
  %v127 = vshrl.u32 %v126, 7
  %v128 = vsub.s32 2, %v127
  %v129 = vrot.slane %v116, %v128
  %v130 = vlaneseq
  %v131 = vshrl.u32 %v130, 7
  %v132 = vsub.s32 3, %v131
  %v133 = vrot.slane %v116, %v132
  %v134 = vlaneseq
  %v135 = vshrl.u32 %v134, 7
  %v136 = vsub.s32 4, %v135
  %v137 = vrot.slane %v116, %v136
  %v138 = vlaneseq
  %v139 = vshrl.u32 %v138, 7
  %v140 = vsub.s32 5, %v139
  %v141 = vrot.slane %v116, %v140
  %v244 = vunpack.c.l.b16 %v20
  %v245 = vunpack.c.h.b16 %v20
  %v246 = vunpack.c.l.b16 %v21
  %v247 = vunpack.c.h.b16 %v21
  %v248 = vunpack.c.l.b16 %v22
  %v249 = vunpack.c.h.b16 %v22
  %v250 = vunpack.c.l.b16 %v23
  %v251 = vunpack.c.h.b16 %v23
  %v252 = vunpack.c.l.b16 %v24
  %v253 = vunpack.c.h.b16 %v24
  %v254 = vunpack.c.l.b16 %v25
  %v255 = vunpack.c.h.b16 %v25
  %v256 = vunpack.c.l.b16 %v26
  %v257 = vunpack.c.h.b16 %v26
  %v258 = vunpack.c.l.b16 %v27
  %v259 = vunpack.c.h.b16 %v27
  %v260 = vunpack.c.l.b16 %v28
  %v261 = vunpack.c.h.b16 %v28
  %v262 = vunpack.c.l.b16 %v29
  %v263 = vunpack.c.h.b16 %v29
  %v264 = vunpack.c.l.b16 %v30
  %v265 = vunpack.c.h.b16 %v30
  %v266 = vunpack.c.l.b16 %v31
  %v267 = vunpack.c.h.b16 %v31
  %v268 = vunpack.c.l.b16 %v32
  %v269 = vunpack.c.h.b16 %v32
  %v270 = vunpack.c.l.b16 %v33
  %v271 = vunpack.c.h.b16 %v33
  %v272 = vunpack.c.l.b16 %v34
  %v273 = vunpack.c.h.b16 %v34
  %v274 = vunpack.c.l.b16 %v35
  %v275 = vunpack.c.h.b16 %v35
  %v276 = vunpack.c.l.b16 %v36
  %v277 = vunpack.c.h.b16 %v36
  %v278 = vunpack.c.l.b16 %v37
  %v279 = vunpack.c.h.b16 %v37
  %v280 = vunpack.c.l.b16 %v38
  %v281 = vunpack.c.h.b16 %v38
  %v282 = vunpack.c.l.b16 %v39
  %v283 = vunpack.c.h.b16 %v39
  %v284 = vunpack.c.l.b16 %v40
  %v285 = vunpack.c.h.b16 %v40
  %v286 = vunpack.c.l.b16 %v41
  %v287 = vunpack.c.h.b16 %v41
  %v288 = vunpack.c.l.b16 %v42
  %v289 = vunpack.c.h.b16 %v42
  %v290 = vunpack.c.l.b16 %v43
  %v291 = vunpack.c.h.b16 %v43
  %v292 = vunpack.c.l.b16 %v44
  %v293 = vunpack.c.h.b16 %v44
  %v294 = vunpack.c.l.b16 %v45
  %v295 = vunpack.c.h.b16 %v45
  %v296 = vunpack.c.l.b16 %v46
  %v297 = vunpack.c.h.b16 %v46
  %v298 = vunpack.c.l.b16 %v47
  %v299 = vunpack.c.h.b16 %v47
  %v300 = vunpack.c.l.b16 %v48
  %v301 = vunpack.c.h.b16 %v48
  %v302 = vunpack.c.l.b16 %v49
  %v303 = vunpack.c.h.b16 %v49
  %v304 = vunpack.c.l.b16 %v50
  %v305 = vunpack.c.h.b16 %v50
  %v306 = vunpack.c.l.b16 %v51
  %v307 = vunpack.c.h.b16 %v51
  %v308 = vunpack.c.l.b16 %v52
  %v309 = vunpack.c.h.b16 %v52
  %v310 = vunpack.c.l.b16 %v53
  %v311 = vunpack.c.h.b16 %v53
  %v312 = vunpack.c.l.b16 %v54
  %v313 = vunpack.c.h.b16 %v54
  %v314 = vunpack.c.l.b16 %v55
  %v315 = vunpack.c.h.b16 %v55
  %v316 = vunpack.c.l.b16 %v56
  %v317 = vunpack.c.h.b16 %v56
  %v318 = vunpack.c.l.b16 %v57
  %v319 = vunpack.c.h.b16 %v57
  %v320 = vunpack.c.l.b16 %v58
  %v321 = vunpack.c.h.b16 %v58
  %v322 = vunpack.c.l.b16 %v59
  %v323 = vunpack.c.h.b16 %v59
  %v324 = vunpack.c.l.b16 %v60
  %v325 = vunpack.c.h.b16 %v60
  %v326 = vunpack.c.l.b16 %v61
  %v327 = vunpack.c.h.b16 %v61
  %v328 = vunpack.c.l.b16 %v62
  %v329 = vunpack.c.h.b16 %v62
  %v330 = vunpack.c.l.b16 %v63
  %v331 = vunpack.c.h.b16 %v63
  %v332 = vunpack.c.l.b16 %v64
  %v333 = vunpack.c.h.b16 %v64
  %v334 = vunpack.c.l.b16 %v65
  %v335 = vunpack.c.h.b16 %v65
  %v336 = vunpack.c.l.b16 %v66
  %v337 = vunpack.c.h.b16 %v66
  %v338 = vunpack.c.l.b16 %v67
  %v339 = vunpack.c.h.b16 %v67
  %v340 = vunpack.c.l.b16 %v68
  %v341 = vunpack.c.h.b16 %v68
  %v342 = vunpack.c.l.b16 %v69
  %v343 = vunpack.c.h.b16 %v69
  %v344 = vunpack.c.l.b16 %v70
  %v345 = vunpack.c.h.b16 %v70
  %v346 = vunpack.c.l.b16 %v71
  %v347 = vunpack.c.h.b16 %v71
  %v348 = vunpack.c.l.b16 %v72
  %v349 = vunpack.c.h.b16 %v72
  %v350 = vunpack.c.l.b16 %v73
  %v351 = vunpack.c.h.b16 %v73
  %v352 = vunpack.c.l.b16 %v74
  %v353 = vunpack.c.h.b16 %v74
  %v354 = vunpack.c.l.b16 %v75
  %v355 = vunpack.c.h.b16 %v75
  %v356 = vunpack.c.l.b16 %v76
  %v357 = vunpack.c.h.b16 %v76
  %v358 = vunpack.c.l.b16 %v77
  %v359 = vunpack.c.h.b16 %v77
  %v360 = vunpack.c.l.b16 %v78
  %v361 = vunpack.c.h.b16 %v78
  %v362 = vunpack.c.l.b16 %v79
  %v363 = vunpack.c.h.b16 %v79
  %v364 = vunpack.c.l.b16 %v80
  %v365 = vunpack.c.h.b16 %v80
  %v366 = vunpack.c.l.b16 %v81
  %v367 = vunpack.c.h.b16 %v81
  %v368 = vunpack.c.l.b16 %v82
  %v369 = vunpack.c.h.b16 %v82
  %v370 = vunpack.c.l.b16 %v83
  %v371 = vunpack.c.h.b16 %v83
  %v372 = vunpack.c.l.b16 %v84
  %v373 = vunpack.c.h.b16 %v84
  %v374 = vunpack.c.l.b16 %v85
  %v375 = vunpack.c.h.b16 %v85
  %v376 = vunpack.c.l.b16 %v86
  %v377 = vunpack.c.h.b16 %v86
  %v378 = vunpack.c.l.b16 %v87
  %v379 = vunpack.c.h.b16 %v87
  %v380 = vunpack.c.l.b16 %v88
  %v381 = vunpack.c.h.b16 %v88
  %v382 = vunpack.c.l.b16 %v89
  %v383 = vunpack.c.h.b16 %v89
  %v384 = vunpack.c.l.b16 %v90
  %v385 = vunpack.c.h.b16 %v90
  %v386 = vunpack.c.l.b16 %v91
  %v387 = vunpack.c.h.b16 %v91
  %v388 = vunpack.c.l.b16 %v92
  %v389 = vunpack.c.h.b16 %v92
  %v390 = vunpack.c.l.b16 %v93
  %v391 = vunpack.c.h.b16 %v93
  %v392 = vunpack.c.l.b16 %v94
  %v393 = vunpack.c.h.b16 %v94
  %v394 = vunpack.c.l.b16 %v95
  %v395 = vunpack.c.h.b16 %v95
  %v396 = vunpack.c.l.b16 %v96
  %v397 = vunpack.c.h.b16 %v96
  %v398 = vunpack.c.l.b16 %v97
  %v399 = vunpack.c.h.b16 %v97
  %v400 = vunpack.c.l.b16 %v98
  %v401 = vunpack.c.h.b16 %v98
  %v402 = vunpack.c.l.b16 %v99
  %v403 = vunpack.c.h.b16 %v99
  %v404 = vunpack.c.l.b16 %v100
  %v405 = vunpack.c.h.b16 %v100
  %v406 = vunpack.c.l.b16 %v101
  %v407 = vunpack.c.h.b16 %v101
  %v408 = vunpack.c.l.b16 %v102
  %v409 = vunpack.c.h.b16 %v102
  %v410 = vunpack.c.l.b16 %v103
  %v411 = vunpack.c.h.b16 %v103
  %v412 = vunpack.c.l.b16 %v104
  %v413 = vunpack.c.h.b16 %v104
  %v414 = vunpack.c.l.b16 %v105
  %v415 = vunpack.c.h.b16 %v105
  %v416 = vunpack.c.l.b16 %v106
  %v417 = vunpack.c.h.b16 %v106
  %v418 = vunpack.c.l.b16 %v107
  %v419 = vunpack.c.h.b16 %v107
  %v420 = vunpack.c.l.b16 %v108
  %v421 = vunpack.c.h.b16 %v108
  %v422 = vunpack.c.l.b16 %v109
  %v423 = vunpack.c.h.b16 %v109
  %v424 = vunpack.c.l.b16 %v110
  %v425 = vunpack.c.h.b16 %v110
  %v426 = vunpack.c.l.b16 %v111
  %v427 = vunpack.c.h.b16 %v111
  %v428 = vunpack.c.l.b16 %v112
  %v429 = vunpack.c.h.b16 %v112
  %v430 = vunpack.c.l.b16 %v113
  %v431 = vunpack.c.h.b16 %v113
  %v432 = vunpack.c.l.b16 %v114
  %v433 = vunpack.c.h.b16 %v114
  %v434 = vunpack.c.l.b16 %v115
  %v435 = vunpack.c.h.b16 %v115
  %v436 = vpack.c.b16 %v250, %v244
  %v437 = vpack.c.b16 %v251, %v245
  %v438 = vpack.c.b16 %v252, %v246
  %v439 = vpack.c.b16 %v253, %v247
  %v440 = vpack.c.b16 %v254, %v248
  %v441 = vpack.c.b16 %v255, %v249
  %v442 = vpack.c.b16 %v262, %v256
  %v443 = vpack.c.b16 %v263, %v257
  %v444 = vpack.c.b16 %v264, %v258
  %v445 = vpack.c.b16 %v265, %v259
  %v446 = vpack.c.b16 %v266, %v260
  %v447 = vpack.c.b16 %v267, %v261
  %v448 = vpack.c.b16 %v274, %v268
  %v449 = vpack.c.b16 %v275, %v269
  %v450 = vpack.c.b16 %v276, %v270
  %v451 = vpack.c.b16 %v277, %v271
  %v452 = vpack.c.b16 %v278, %v272
  %v453 = vpack.c.b16 %v279, %v273
  %v454 = vpack.c.b16 %v286, %v280
  %v455 = vpack.c.b16 %v287, %v281
  %v456 = vpack.c.b16 %v288, %v282
  %v457 = vpack.c.b16 %v289, %v283
  %v458 = vpack.c.b16 %v290, %v284
  %v459 = vpack.c.b16 %v291, %v285
  %v460 = vpack.c.b16 %v298, %v292
  %v461 = vpack.c.b16 %v299, %v293
  %v462 = vpack.c.b16 %v300, %v294
  %v463 = vpack.c.b16 %v301, %v295
  %v464 = vpack.c.b16 %v302, %v296
  %v465 = vpack.c.b16 %v303, %v297
  %v466 = vpack.c.b16 %v310, %v304
  %v467 = vpack.c.b16 %v311, %v305
  %v468 = vpack.c.b16 %v312, %v306
  %v469 = vpack.c.b16 %v313, %v307
  %v470 = vpack.c.b16 %v314, %v308
  %v471 = vpack.c.b16 %v315, %v309
  %v472 = vpack.c.b16 %v322, %v316
  %v473 = vpack.c.b16 %v323, %v317
  %v474 = vpack.c.b16 %v324, %v318
  %v475 = vpack.c.b16 %v325, %v319
  %v476 = vpack.c.b16 %v326, %v320
  %v477 = vpack.c.b16 %v327, %v321
  %v478 = vpack.c.b16 %v334, %v328
  %v479 = vpack.c.b16 %v335, %v329
  %v480 = vpack.c.b16 %v336, %v330
  %v481 = vpack.c.b16 %v337, %v331
  %v482 = vpack.c.b16 %v338, %v332
  %v483 = vpack.c.b16 %v339, %v333
  %v484 = vpack.c.b16 %v346, %v340
  %v485 = vpack.c.b16 %v347, %v341
  %v486 = vpack.c.b16 %v348, %v342
  %v487 = vpack.c.b16 %v349, %v343
  %v488 = vpack.c.b16 %v350, %v344
  %v489 = vpack.c.b16 %v351, %v345
  %v490 = vpack.c.b16 %v358, %v352
  %v491 = vpack.c.b16 %v359, %v353
  %v492 = vpack.c.b16 %v360, %v354
  %v493 = vpack.c.b16 %v361, %v355
  %v494 = vpack.c.b16 %v362, %v356
  %v495 = vpack.c.b16 %v363, %v357
  %v496 = vpack.c.b16 %v370, %v364
  %v497 = vpack.c.b16 %v371, %v365
  %v498 = vpack.c.b16 %v372, %v366
  %v499 = vpack.c.b16 %v373, %v367
  %v500 = vpack.c.b16 %v374, %v368
  %v501 = vpack.c.b16 %v375, %v369
  %v502 = vpack.c.b16 %v382, %v376
  %v503 = vpack.c.b16 %v383, %v377
  %v504 = vpack.c.b16 %v384, %v378
  %v505 = vpack.c.b16 %v385, %v379
  %v506 = vpack.c.b16 %v386, %v380
  %v507 = vpack.c.b16 %v387, %v381
  %v508 = vpack.c.b16 %v394, %v388
  %v509 = vpack.c.b16 %v395, %v389
  %v510 = vpack.c.b16 %v396, %v390
  %v511 = vpack.c.b16 %v397, %v391
  %v512 = vpack.c.b16 %v398, %v392
  %v513 = vpack.c.b16 %v399, %v393
  %v514 = vpack.c.b16 %v406, %v400
  %v515 = vpack.c.b16 %v407, %v401
  %v516 = vpack.c.b16 %v408, %v402
  %v517 = vpack.c.b16 %v409, %v403
  %v518 = vpack.c.b16 %v410, %v404
  %v519 = vpack.c.b16 %v411, %v405
  %v520 = vpack.c.b16 %v418, %v412
  %v521 = vpack.c.b16 %v419, %v413
  %v522 = vpack.c.b16 %v420, %v414
  %v523 = vpack.c.b16 %v421, %v415
  %v524 = vpack.c.b16 %v422, %v416
  %v525 = vpack.c.b16 %v423, %v417
  %v526 = vpack.c.b16 %v430, %v424
  %v527 = vpack.c.b16 %v431, %v425
  %v528 = vpack.c.b16 %v432, %v426
  %v529 = vpack.c.b16 %v433, %v427
  %v530 = vpack.c.b16 %v434, %v428
  %v531 = vpack.c.b16 %v435, %v429
  %628 = vmatprep.subr.bf16.mxu0 %v479
  %629 = vmatpush1.bf16.msra.mxu0 %v478
  %630 = vmatprep.subr.bf16.mxu0 %v473
  %631 = vmatpush1.bf16.msra.mxu0 %v472
  %632 = vmatprep.subr.bf16.mxu0 %v467
  %633 = vmatpush1.bf16.msra.mxu0 %v466
  %634 = vmatprep.subr.bf16.mxu0 %v461
  %635 = vmatpush1.bf16.msra.mxu0 %v460
  %636 = vmatprep.subr.bf16.mxu0 %v455
  %637 = vmatpush1.bf16.msra.mxu0 %v454
  %638 = vmatprep.subr.bf16.mxu0 %v449
  %639 = vmatpush1.bf16.msra.mxu0 %v448
  %640 = vmatprep.subr.bf16.mxu0 %v443
  %641 = vmatpush1.bf16.msra.mxu0 %v442
  %642 = vmatprep.subr.bf16.mxu0 %v437
  %643 = vmatpush1.bf16.msra.mxu0 %v436
  %644 = vmatprep.subr.bf16.mxu0 %v527
  %645 = vmatpush2.bf16.msra.mxu0 %v526
  %646 = vmatprep.subr.bf16.mxu0 %v521
  %647 = vmatpush2.bf16.msra.mxu0 %v520
  %648 = vmatprep.subr.bf16.mxu0 %v515
  %649 = vmatpush2.bf16.msra.mxu0 %v514
  %650 = vmatprep.subr.bf16.mxu0 %v509
  %651 = vmatpush2.bf16.msra.mxu0 %v508
  %652 = vmatprep.subr.bf16.mxu0 %v503
  %653 = vmatpush2.bf16.msra.mxu0 %v502
  %654 = vmatprep.subr.bf16.mxu0 %v497
  %655 = vmatpush2.bf16.msra.mxu0 %v496
  %656 = vmatprep.subr.bf16.mxu0 %v491
  %657 = vmatpush2.bf16.msra.mxu0 %v490
  %658 = vmatprep.subr.bf16.mxu0 %v485
  %659 = vmatpush2.bf16.msra.mxu0 %v484
  %660 = vmatprep.mubr.bf16.mxu0 %v19
  %661 = vmatmul.mubr.bf16.gmra.mxu0 %v18
  %v662 = vpop.f32.mrf.mxu0
  %v663 = vadd.f32 %v121, %v662
  %v664 = vpop.f32.mrf.mxu0
  %v665 = vadd.f32 %v125, %v664
  %v666 = vpop.f32.mrf.mxu0
  %v667 = vadd.f32 %v121, %v666
  %v668 = vpop.f32.mrf.mxu0
  %v669 = vadd.f32 %v125, %v668
  %670 = vdwg.mxu0
  %671 = vmatprep.subr.bf16.mxu0 %v481
  %672 = vmatpush1.bf16.msra.mxu0 %v480
  %673 = vmatprep.subr.bf16.mxu0 %v475
  %674 = vmatpush1.bf16.msra.mxu0 %v474
  %675 = vmatprep.subr.bf16.mxu0 %v469
  %676 = vmatpush1.bf16.msra.mxu0 %v468
  %677 = vmatprep.subr.bf16.mxu0 %v463
  %678 = vmatpush1.bf16.msra.mxu0 %v462
  %679 = vmatprep.subr.bf16.mxu0 %v457
  %680 = vmatpush1.bf16.msra.mxu0 %v456
  %681 = vmatprep.subr.bf16.mxu0 %v451
  %682 = vmatpush1.bf16.msra.mxu0 %v450
  %683 = vmatprep.subr.bf16.mxu0 %v445
  %684 = vmatpush1.bf16.msra.mxu0 %v444
  %685 = vmatprep.subr.bf16.mxu0 %v439
  %686 = vmatpush1.bf16.msra.mxu0 %v438
  %687 = vmatprep.subr.bf16.mxu0 %v529
  %688 = vmatpush2.bf16.msra.mxu0 %v528
  %689 = vmatprep.subr.bf16.mxu0 %v523
  %690 = vmatpush2.bf16.msra.mxu0 %v522
  %691 = vmatprep.subr.bf16.mxu0 %v517
  %692 = vmatpush2.bf16.msra.mxu0 %v516
  %693 = vmatprep.subr.bf16.mxu0 %v511
  %694 = vmatpush2.bf16.msra.mxu0 %v510
  %695 = vmatprep.subr.bf16.mxu0 %v505
  %696 = vmatpush2.bf16.msra.mxu0 %v504
  %697 = vmatprep.subr.bf16.mxu0 %v499
  %698 = vmatpush2.bf16.msra.mxu0 %v498
  %699 = vmatprep.subr.bf16.mxu0 %v493
  %700 = vmatpush2.bf16.msra.mxu0 %v492
  %701 = vmatprep.subr.bf16.mxu0 %v487
  %702 = vmatpush2.bf16.msra.mxu0 %v486
  %703 = vmatprep.mubr.bf16.mxu0 %v19
  %704 = vmatmul.mubr.bf16.gmra.mxu0 %v18
  %v705 = vpop.f32.mrf.mxu0
  %v706 = vadd.f32 %v129, %v705
  %v707 = vpop.f32.mrf.mxu0
  %v708 = vadd.f32 %v133, %v707
  %v709 = vpop.f32.mrf.mxu0
  %v710 = vadd.f32 %v129, %v709
  %v711 = vpop.f32.mrf.mxu0
  %v712 = vadd.f32 %v133, %v711
  %713 = vdwg.mxu0
  %714 = vmatprep.subr.bf16.mxu0 %v483
  %715 = vmatpush1.bf16.msra.mxu0 %v482
  %716 = vmatprep.subr.bf16.mxu0 %v477
  %717 = vmatpush1.bf16.msra.mxu0 %v476
  %718 = vmatprep.subr.bf16.mxu0 %v471
  %719 = vmatpush1.bf16.msra.mxu0 %v470
  %720 = vmatprep.subr.bf16.mxu0 %v465
  %721 = vmatpush1.bf16.msra.mxu0 %v464
  %722 = vmatprep.subr.bf16.mxu0 %v459
  %723 = vmatpush1.bf16.msra.mxu0 %v458
  %724 = vmatprep.subr.bf16.mxu0 %v453
  %725 = vmatpush1.bf16.msra.mxu0 %v452
  %726 = vmatprep.subr.bf16.mxu0 %v447
  %727 = vmatpush1.bf16.msra.mxu0 %v446
  %728 = vmatprep.subr.bf16.mxu0 %v441
  %729 = vmatpush1.bf16.msra.mxu0 %v440
  %730 = vmatprep.subr.bf16.mxu0 %v531
  %731 = vmatpush2.bf16.msra.mxu0 %v530
  %732 = vmatprep.subr.bf16.mxu0 %v525
  %733 = vmatpush2.bf16.msra.mxu0 %v524
  %734 = vmatprep.subr.bf16.mxu0 %v519
  %735 = vmatpush2.bf16.msra.mxu0 %v518
  %736 = vmatprep.subr.bf16.mxu0 %v513
  %737 = vmatpush2.bf16.msra.mxu0 %v512
  %738 = vmatprep.subr.bf16.mxu0 %v507
  %739 = vmatpush2.bf16.msra.mxu0 %v506
  %740 = vmatprep.subr.bf16.mxu0 %v501
  %741 = vmatpush2.bf16.msra.mxu0 %v500
  %742 = vmatprep.subr.bf16.mxu0 %v495
  %743 = vmatpush2.bf16.msra.mxu0 %v494
  %744 = vmatprep.subr.bf16.mxu0 %v489
  %745 = vmatpush2.bf16.msra.mxu0 %v488
  %746 = vmatprep.mubr.bf16.mxu0 %v19
  %747 = vmatmul.mubr.bf16.gmra.mxu0 %v18
  %v748 = vpop.f32.mrf.mxu0
  %v749 = vadd.f32 %v137, %v748
  %v750 = vpop.f32.mrf.mxu0
  %v751 = vadd.f32 %v141, %v750
  %v752 = vpop.f32.mrf.mxu0
  %v753 = vadd.f32 %v137, %v752
  %v754 = vpop.f32.mrf.mxu0
  %v755 = vadd.f32 %v141, %v754
  %756 = vdwg.mxu0
  %757 = vst [vmem:[%s3] sm:$0xff] %v663
  %758 = vst [vmem:[%s3 + $0x8] sm:$0xff] %v665
  %759 = vst [vmem:[%s3 + $0x10] sm:$0xff] %v706
  %760 = vst [vmem:[%s3 + $0x18] sm:$0xff] %v708
  %761 = vst [vmem:[%s3 + $0x20] sm:$0xff] %v749
  %762 = vst [vmem:[%s3 + $0x28] sm:$0xff] %v751
  %763 = vst [vmem:[%s3 + $0x30] sm:$0xff] %v667
  %764 = vst [vmem:[%s3 + $0x38] sm:$0xff] %v669
  %765 = vst [vmem:[%s3 + $0x40] sm:$0xff] %v710
  %766 = vst [vmem:[%s3 + $0x48] sm:$0xff] %v712
  %767 = vst [vmem:[%s3 + $0x50] sm:$0xff] %v753
  %768 = vst [vmem:[%s3 + $0x58] sm:$0xff] %v755
  // Predicated region
  $region14: #{forward.11} parent=0 // pred_check
    _
  $region15: #{forward.11} parent=0 // pred_check_branch
    %770 = sbr.rel (0) target = $region17
  $region16: #{forward.11} parent=0 // pred_region
    _
  $region17: #{forward.11} parent=0 // pred_fallthru
    _
  // Predicated region
  $region18: #{forward.11} parent=0 // pred_check
    _
  $region19: #{forward.11} parent=0 // pred_check_branch
    %772 = sbr.rel (0) target = $region21
  $region20: #{forward.11} parent=0 // pred_region
    _
  $region21: #{forward.11} parent=0 // pred_fallthru
    _

// kernel: forward.13
$region0: #{forward.13}
  #allocation0 [shape = 'u32[]', space=smem, size = 0x4, offset = 0x4, fixed_abs, tag = 'smem constant byte address 0x4 - core index']
  #allocation1 [shape = 'u32[144,128]{1,0:T(1,128)}', space=vmem, size = 0x12000, scoped, tag = 'internal scratch']
  %s0 = inlined_call_operand.vmem [shape: f32[2,8,256], index: 0, kind: input, shape index: {}]
  %s1 = inlined_call_operand.vmem [shape: bf16[256,768], index: 1, kind: input, shape index: {}]
  %s2 = inlined_call_operand.vmem [shape: f32[1,768], index: 2, kind: input, shape index: {}]
  %s3 = inlined_call_operand.vmem [shape: bf16[256,256], index: 3, kind: input, shape index: {}]
  %s4 = inlined_call_operand.vmem [shape: f32[1,256], index: 4, kind: input, shape index: {}]
  %s5 = inlined_call_operand.vmem [shape: f32[1,256], index: 5, kind: input, shape index: {}]
  %s6 = inlined_call_operand.vmem [shape: f32[1,256], index: 6, kind: input, shape index: {}]
  %s7 = inlined_call_operand.vmem [shape: bf16[256,1024], index: 7, kind: input, shape index: {}]
  %s8 = inlined_call_operand.vmem [shape: f32[1,1024], index: 8, kind: input, shape index: {}]
  %s9 = inlined_call_operand.vmem [shape: bf16[1024,256], index: 9, kind: input, shape index: {}]
  %s10 = inlined_call_operand.vmem [shape: f32[1,256], index: 10, kind: input, shape index: {}]
  %s11 = inlined_call_operand.vmem [shape: f32[1,256], index: 11, kind: input, shape index: {}]
  %s12 = inlined_call_operand.vmem [shape: f32[1,256], index: 12, kind: input, shape index: {}]
  %s13 = inlined_call_operand.vmem [shape: bf16[256,2], index: 13, kind: input, shape index: {}]
  %s14 = inlined_call_operand.vmem [shape: f32[1,2], index: 14, kind: input, shape index: {}]
  %s15 = inlined_call_operand.hbm [shape: f32[2,1,2], index: 15, kind: output, shape index: {}]
  %s16 = sld [smem:[#allocation0]]
  $region93: #{forward.13} parent=0
    _
  %s18 = ssub.s32 1, %s16
  %s19 = scalar_select 0, %s18, %s16
  $region1: #{forward.13} parent=0
    #allocation2 [shape = 'u8[1024]{0}', space=vmem, size = 0x400, scoped, tag = 'output window, operand 0']
    #allocation3 [shape = 's32[2]{0}', space=sflag, size = 0x8, scoped, tag = 'scoped memory for forward.13']
    %20 = vsyncpa [#allocation3], 0
    %s21 = scalar_lea.sflag [#allocation3], 1
    %22 = vsyncpa %s21, 0
    loop: start=0, step=1, limit=4
    $region2: #{forward.13} parent=1 // loop_pre_header
      _
    $region3: #{forward.13} parent=1 // loop_header
      %s24 = sphi 0, %s28
      %p25 = scmp.ge.s32.totalorder %s24, 4
      %s34 = sphi 0, %s36
      %s37 = sphi 0, %s34
      %s38 = sphi 0, %s37
      %s54 = sphi 0, %s38
      %s58 = sphi 0, %s58
      %s60 = sphi 0, %s58
      %s61 = sphi 0, %s60
      %s75 = sphi 0, %s61
      %s79 = sphi 0, %s79
      %s81 = sphi 0, %s79
      %s82 = sphi 0, %s81
      %s96 = sphi 0, %s82
      %s100 = sphi 0, %s100
      %s102 = sphi 0, %s100
      %s103 = sphi 0, %s102
      %s117 = sphi 0, %s103
      %s121 = sphi 0, %s121
      %s123 = sphi 0, %s121
      %s124 = sphi 0, %s123
      %s138 = sphi 0, %s124
      %s142 = sphi 0, %s142
      %s144 = sphi 0, %s142
      %s145 = sphi 0, %s144
      %s159 = sphi 0, %s145
      %s163 = sphi 0, %s163
      %s165 = sphi 0, %s163
      %s166 = sphi 0, %s165
      %s180 = sphi 0, %s166
      %s184 = sphi 0, %s184
      %s186 = sphi 0, %s184
      %s187 = sphi 0, %s186
      %s201 = sphi 0, %s187
      %s205 = sphi 0, %s205
      %s207 = sphi 0, %s205
      %s208 = sphi 0, %s207
      %s222 = sphi 0, %s208
      %s226 = sphi 0, %s226
      %s228 = sphi 0, %s226
      %s229 = sphi 0, %s228
      %s243 = sphi 0, %s229
      %s247 = sphi 0, %s247
      %s249 = sphi 0, %s247
      %s250 = sphi 0, %s249
      %s264 = sphi 0, %s250
      %s268 = sphi 0, %s268
      %s270 = sphi 0, %s268
      %s271 = sphi 0, %s270
      %s285 = sphi 0, %s271
      %s289 = sphi 0, %s289
      %s291 = sphi 0, %s289
      %s292 = sphi 0, %s291
      %s306 = sphi 0, %s292
      %s310 = sphi 0, %s310
      %s312 = sphi 0, %s310
      %s313 = sphi 0, %s312
      %s327 = sphi 0, %s313
      %s331 = sphi 0, %s331
      %s333 = sphi 0, %s331
      %s334 = sphi 0, %s333
      %s348 = sphi 0, %s334
      %s354 = sphi 0, %s356
      %s357 = sphi 0, %s354
      %s358 = sphi 0, %s357
      %s374 = sphi 0, %s358
    $region4: #{forward.13} parent=1 // loop_header_branch
      %27 = sbr.rel (%p25) target = $region8
    $region5: #{forward.13} parent=1 // loop_body
      %s29 = ssub.s32 %s24, 1
      %s30 = ssub.s32 %s24, 2
      %s31 = sadd.s32 %s24, 1
      %s32 = ssub.s32 %s24, %s31
      %p33 = scmp.eq.s32.totalorder %s32, 0
      %s35 = sadd.s32 %s34, 1
      %s36 = scalar_select %p33, %s34, %s35
      %p39 = pneg %p33
      %p40 = scmp.eq.s32.totalorder %s24, 1
      %p41 = por %p39, %p40
      %p42 = scmp.ne.s32.totalorder %s34, %s37
      %p43 = scmp.eq.s32.totalorder %s24, 0
      %p44 = por %p42, %p43
      %p45 = scmp.ne.s32.totalorder %s34, %s37
      %p46 = scmp.eq.s32.totalorder %s29, 1
      %p47 = por %p45, %p46
      %p48 = scmp.ne.s32.totalorder %s37, %s38
      %p49 = scmp.eq.s32.totalorder %s29, 0
      %p50 = por %p48, %p49
      %p51 = scmp.ne.s32.totalorder %s37, %s38
      %p52 = scmp.eq.s32.totalorder %s30, 1
      %p53 = por %p51, %p52
      %p55 = scmp.ne.s32.totalorder %s38, %s54
      %p56 = scmp.eq.s32.totalorder %s30, 0
      %p57 = por %p55, %p56
      %s59 = sadd.s32 %s58, 1
      %p62 = scmp.eq.s32.totalorder %s24, 1
      %p63 = scmp.ne.s32.totalorder %s58, %s60
      %p64 = scmp.eq.s32.totalorder %s24, 0
      %p65 = por %p63, %p64
      %p66 = scmp.ne.s32.totalorder %s58, %s60
      %p67 = scmp.eq.s32.totalorder %s29, 1
      %p68 = por %p66, %p67
      %p69 = scmp.ne.s32.totalorder %s60, %s61
      %p70 = scmp.eq.s32.totalorder %s29, 0
      %p71 = por %p69, %p70
      %p72 = scmp.ne.s32.totalorder %s60, %s61
      %p73 = scmp.eq.s32.totalorder %s30, 1
      %p74 = por %p72, %p73
      %p76 = scmp.ne.s32.totalorder %s61, %s75
      %p77 = scmp.eq.s32.totalorder %s30, 0
      %p78 = por %p76, %p77
      %s80 = sadd.s32 %s79, 1
      %p83 = scmp.eq.s32.totalorder %s24, 1
      %p84 = scmp.ne.s32.totalorder %s79, %s81
      %p85 = scmp.eq.s32.totalorder %s24, 0
      %p86 = por %p84, %p85
      %p87 = scmp.ne.s32.totalorder %s79, %s81
      %p88 = scmp.eq.s32.totalorder %s29, 1
      %p89 = por %p87, %p88
      %p90 = scmp.ne.s32.totalorder %s81, %s82
      %p91 = scmp.eq.s32.totalorder %s29, 0
      %p92 = por %p90, %p91
      %p93 = scmp.ne.s32.totalorder %s81, %s82
      %p94 = scmp.eq.s32.totalorder %s30, 1
      %p95 = por %p93, %p94
      %p97 = scmp.ne.s32.totalorder %s82, %s96
      %p98 = scmp.eq.s32.totalorder %s30, 0
      %p99 = por %p97, %p98
      %s101 = sadd.s32 %s100, 1
      %p104 = scmp.eq.s32.totalorder %s24, 1
      %p105 = scmp.ne.s32.totalorder %s100, %s102
      %p106 = scmp.eq.s32.totalorder %s24, 0
      %p107 = por %p105, %p106
      %p108 = scmp.ne.s32.totalorder %s100, %s102
      %p109 = scmp.eq.s32.totalorder %s29, 1
      %p110 = por %p108, %p109
      %p111 = scmp.ne.s32.totalorder %s102, %s103
      %p112 = scmp.eq.s32.totalorder %s29, 0
      %p113 = por %p111, %p112
      %p114 = scmp.ne.s32.totalorder %s102, %s103
      %p115 = scmp.eq.s32.totalorder %s30, 1
      %p116 = por %p114, %p115
      %p118 = scmp.ne.s32.totalorder %s103, %s117
      %p119 = scmp.eq.s32.totalorder %s30, 0
      %p120 = por %p118, %p119
      %s122 = sadd.s32 %s121, 1
      %p125 = scmp.eq.s32.totalorder %s24, 1
      %p126 = scmp.ne.s32.totalorder %s121, %s123
      %p127 = scmp.eq.s32.totalorder %s24, 0
      %p128 = por %p126, %p127
      %p129 = scmp.ne.s32.totalorder %s121, %s123
      %p130 = scmp.eq.s32.totalorder %s29, 1
      %p131 = por %p129, %p130
      %p132 = scmp.ne.s32.totalorder %s123, %s124
      %p133 = scmp.eq.s32.totalorder %s29, 0
      %p134 = por %p132, %p133
      %p135 = scmp.ne.s32.totalorder %s123, %s124
      %p136 = scmp.eq.s32.totalorder %s30, 1
      %p137 = por %p135, %p136
      %p139 = scmp.ne.s32.totalorder %s124, %s138
      %p140 = scmp.eq.s32.totalorder %s30, 0
      %p141 = por %p139, %p140
      %s143 = sadd.s32 %s142, 1
      %p146 = scmp.eq.s32.totalorder %s24, 1
      %p147 = scmp.ne.s32.totalorder %s142, %s144
      %p148 = scmp.eq.s32.totalorder %s24, 0
      %p149 = por %p147, %p148
      %p150 = scmp.ne.s32.totalorder %s142, %s144
      %p151 = scmp.eq.s32.totalorder %s29, 1
      %p152 = por %p150, %p151
      %p153 = scmp.ne.s32.totalorder %s144, %s145
      %p154 = scmp.eq.s32.totalorder %s29, 0
      %p155 = por %p153, %p154
      %p156 = scmp.ne.s32.totalorder %s144, %s145
      %p157 = scmp.eq.s32.totalorder %s30, 1
      %p158 = por %p156, %p157
      %p160 = scmp.ne.s32.totalorder %s145, %s159
      %p161 = scmp.eq.s32.totalorder %s30, 0
      %p162 = por %p160, %p161
      %s164 = sadd.s32 %s163, 1
      %p167 = scmp.eq.s32.totalorder %s24, 1
      %p168 = scmp.ne.s32.totalorder %s163, %s165
      %p169 = scmp.eq.s32.totalorder %s24, 0
      %p170 = por %p168, %p169
      %p171 = scmp.ne.s32.totalorder %s163, %s165
      %p172 = scmp.eq.s32.totalorder %s29, 1
      %p173 = por %p171, %p172
      %p174 = scmp.ne.s32.totalorder %s165, %s166
      %p175 = scmp.eq.s32.totalorder %s29, 0
      %p176 = por %p174, %p175
      %p177 = scmp.ne.s32.totalorder %s165, %s166
      %p178 = scmp.eq.s32.totalorder %s30, 1
      %p179 = por %p177, %p178
      %p181 = scmp.ne.s32.totalorder %s166, %s180
      %p182 = scmp.eq.s32.totalorder %s30, 0
      %p183 = por %p181, %p182
      %s185 = sadd.s32 %s184, 1
      %p188 = scmp.eq.s32.totalorder %s24, 1
      %p189 = scmp.ne.s32.totalorder %s184, %s186
      %p190 = scmp.eq.s32.totalorder %s24, 0
      %p191 = por %p189, %p190
      %p192 = scmp.ne.s32.totalorder %s184, %s186
      %p193 = scmp.eq.s32.totalorder %s29, 1
      %p194 = por %p192, %p193
      %p195 = scmp.ne.s32.totalorder %s186, %s187
      %p196 = scmp.eq.s32.totalorder %s29, 0
      %p197 = por %p195, %p196
      %p198 = scmp.ne.s32.totalorder %s186, %s187
      %p199 = scmp.eq.s32.totalorder %s30, 1
      %p200 = por %p198, %p199
      %p202 = scmp.ne.s32.totalorder %s187, %s201
      %p203 = scmp.eq.s32.totalorder %s30, 0
      %p204 = por %p202, %p203
      %s206 = sadd.s32 %s205, 1
      %p209 = scmp.eq.s32.totalorder %s24, 1
      %p210 = scmp.ne.s32.totalorder %s205, %s207
      %p211 = scmp.eq.s32.totalorder %s24, 0
      %p212 = por %p210, %p211
      %p213 = scmp.ne.s32.totalorder %s205, %s207
      %p214 = scmp.eq.s32.totalorder %s29, 1
      %p215 = por %p213, %p214
      %p216 = scmp.ne.s32.totalorder %s207, %s208
      %p217 = scmp.eq.s32.totalorder %s29, 0
      %p218 = por %p216, %p217
      %p219 = scmp.ne.s32.totalorder %s207, %s208
      %p220 = scmp.eq.s32.totalorder %s30, 1
      %p221 = por %p219, %p220
      %p223 = scmp.ne.s32.totalorder %s208, %s222
      %p224 = scmp.eq.s32.totalorder %s30, 0
      %p225 = por %p223, %p224
      %s227 = sadd.s32 %s226, 1
      %p230 = scmp.eq.s32.totalorder %s24, 1
      %p231 = scmp.ne.s32.totalorder %s226, %s228
      %p232 = scmp.eq.s32.totalorder %s24, 0
      %p233 = por %p231, %p232
      %p234 = scmp.ne.s32.totalorder %s226, %s228
      %p235 = scmp.eq.s32.totalorder %s29, 1
      %p236 = por %p234, %p235
      %p237 = scmp.ne.s32.totalorder %s228, %s229
      %p238 = scmp.eq.s32.totalorder %s29, 0
      %p239 = por %p237, %p238
      %p240 = scmp.ne.s32.totalorder %s228, %s229
      %p241 = scmp.eq.s32.totalorder %s30, 1
      %p242 = por %p240, %p241
      %p244 = scmp.ne.s32.totalorder %s229, %s243
      %p245 = scmp.eq.s32.totalorder %s30, 0
      %p246 = por %p244, %p245
      %s248 = sadd.s32 %s247, 1
      %p251 = scmp.eq.s32.totalorder %s24, 1
      %p252 = scmp.ne.s32.totalorder %s247, %s249
      %p253 = scmp.eq.s32.totalorder %s24, 0
      %p254 = por %p252, %p253
      %p255 = scmp.ne.s32.totalorder %s247, %s249
      %p256 = scmp.eq.s32.totalorder %s29, 1
      %p257 = por %p255, %p256
      %p258 = scmp.ne.s32.totalorder %s249, %s250
      %p259 = scmp.eq.s32.totalorder %s29, 0
      %p260 = por %p258, %p259
      %p261 = scmp.ne.s32.totalorder %s249, %s250
      %p262 = scmp.eq.s32.totalorder %s30, 1
      %p263 = por %p261, %p262
      %p265 = scmp.ne.s32.totalorder %s250, %s264
      %p266 = scmp.eq.s32.totalorder %s30, 0
      %p267 = por %p265, %p266
      %s269 = sadd.s32 %s268, 1
      %p272 = scmp.eq.s32.totalorder %s24, 1
      %p273 = scmp.ne.s32.totalorder %s268, %s270
      %p274 = scmp.eq.s32.totalorder %s24, 0
      %p275 = por %p273, %p274
      %p276 = scmp.ne.s32.totalorder %s268, %s270
      %p277 = scmp.eq.s32.totalorder %s29, 1
      %p278 = por %p276, %p277
      %p279 = scmp.ne.s32.totalorder %s270, %s271
      %p280 = scmp.eq.s32.totalorder %s29, 0
      %p281 = por %p279, %p280
      %p282 = scmp.ne.s32.totalorder %s270, %s271
      %p283 = scmp.eq.s32.totalorder %s30, 1
      %p284 = por %p282, %p283
      %p286 = scmp.ne.s32.totalorder %s271, %s285
      %p287 = scmp.eq.s32.totalorder %s30, 0
      %p288 = por %p286, %p287
      %s290 = sadd.s32 %s289, 1
      %p293 = scmp.eq.s32.totalorder %s24, 1
      %p294 = scmp.ne.s32.totalorder %s289, %s291
      %p295 = scmp.eq.s32.totalorder %s24, 0
      %p296 = por %p294, %p295
      %p297 = scmp.ne.s32.totalorder %s289, %s291
      %p298 = scmp.eq.s32.totalorder %s29, 1
      %p299 = por %p297, %p298
      %p300 = scmp.ne.s32.totalorder %s291, %s292
      %p301 = scmp.eq.s32.totalorder %s29, 0
      %p302 = por %p300, %p301
      %p303 = scmp.ne.s32.totalorder %s291, %s292
      %p304 = scmp.eq.s32.totalorder %s30, 1
      %p305 = por %p303, %p304
      %p307 = scmp.ne.s32.totalorder %s292, %s306
      %p308 = scmp.eq.s32.totalorder %s30, 0
      %p309 = por %p307, %p308
      %s311 = sadd.s32 %s310, 1
      %p314 = scmp.eq.s32.totalorder %s24, 1
      %p315 = scmp.ne.s32.totalorder %s310, %s312
      %p316 = scmp.eq.s32.totalorder %s24, 0
      %p317 = por %p315, %p316
      %p318 = scmp.ne.s32.totalorder %s310, %s312
      %p319 = scmp.eq.s32.totalorder %s29, 1
      %p320 = por %p318, %p319
      %p321 = scmp.ne.s32.totalorder %s312, %s313
      %p322 = scmp.eq.s32.totalorder %s29, 0
      %p323 = por %p321, %p322
      %p324 = scmp.ne.s32.totalorder %s312, %s313
      %p325 = scmp.eq.s32.totalorder %s30, 1
      %p326 = por %p324, %p325
      %p328 = scmp.ne.s32.totalorder %s313, %s327
      %p329 = scmp.eq.s32.totalorder %s30, 0
      %p330 = por %p328, %p329
      %s332 = sadd.s32 %s331, 1
      %p335 = scmp.eq.s32.totalorder %s24, 1
      %p336 = scmp.ne.s32.totalorder %s331, %s333
      %p337 = scmp.eq.s32.totalorder %s24, 0
      %p338 = por %p336, %p337
      %p339 = scmp.ne.s32.totalorder %s331, %s333
      %p340 = scmp.eq.s32.totalorder %s29, 1
      %p341 = por %p339, %p340
      %p342 = scmp.ne.s32.totalorder %s333, %s334
      %p343 = scmp.eq.s32.totalorder %s29, 0
      %p344 = por %p342, %p343
      %p345 = scmp.ne.s32.totalorder %s333, %s334
      %p346 = scmp.eq.s32.totalorder %s30, 1
      %p347 = por %p345, %p346
      %p349 = scmp.ne.s32.totalorder %s334, %s348
      %p350 = scmp.eq.s32.totalorder %s30, 0
      %p351 = por %p349, %p350
      %s352 = ssub.s32 %s24, %s31
      %p353 = scmp.eq.s32.totalorder %s352, 0
      %s355 = sadd.s32 %s354, 1
      %s356 = scalar_select %p353, %s354, %s355
      %p359 = pneg %p353
      %p360 = scmp.eq.s32.totalorder %s24, 1
      %p361 = por %p359, %p360
      %p362 = scmp.ne.s32.totalorder %s354, %s357
      %p363 = scmp.eq.s32.totalorder %s24, 0
      %p364 = por %p362, %p363
      %p365 = scmp.ne.s32.totalorder %s354, %s357
      %p366 = scmp.eq.s32.totalorder %s29, 1
      %p367 = por %p365, %p366
      %p368 = scmp.ne.s32.totalorder %s357, %s358
      %p369 = scmp.eq.s32.totalorder %s29, 0
      %p370 = por %p368, %p369
      %p371 = scmp.ne.s32.totalorder %s357, %s358
      %p372 = scmp.eq.s32.totalorder %s30, 1
      %p373 = por %p371, %p372
      %p375 = scmp.ne.s32.totalorder %s358, %s374
      %p376 = scmp.eq.s32.totalorder %s30, 0
      %p377 = por %p375, %p376
      %p378 = scmp.le.s32.totalorder 1, %s24
      %p379 = scmp.lt.s32.totalorder %s24, 3
      %p380 = pnand %p378, %p379
      %p381 = pneg %p380
      // Predicated region
      $region9: #{forward.13} parent=5 // pred_check
        _
      $region10: #{forward.13} parent=5 // pred_check_branch
        %383 = sbr.rel (%p380) target = $region12
      $region11: #{forward.13} parent=5 // pred_region
        %s384 = ssub.s32 %s24, 1
        // Predicated region
        $region13: #{forward.13} parent=11 // pred_check
          %p385 = pneg %p71
        $region14: #{forward.13} parent=11 // pred_check_branch
          %387 = sbr.rel (%p385) target = $region16
        $region15: #{forward.13} parent=11 // pred_region
          _
        $region16: #{forward.13} parent=11 // pred_fallthru
          _
        // Predicated region
        $region17: #{forward.13} parent=11 // pred_check
          %p388 = pneg %p92
        $region18: #{forward.13} parent=11 // pred_check_branch
          %390 = sbr.rel (%p388) target = $region20
        $region19: #{forward.13} parent=11 // pred_region
          _
        $region20: #{forward.13} parent=11 // pred_fallthru
          _
        // Predicated region
        $region21: #{forward.13} parent=11 // pred_check
          %p391 = pneg %p113
        $region22: #{forward.13} parent=11 // pred_check_branch
          %393 = sbr.rel (%p391) target = $region24
        $region23: #{forward.13} parent=11 // pred_region
          _
        $region24: #{forward.13} parent=11 // pred_fallthru
          _
        // Predicated region
        $region25: #{forward.13} parent=11 // pred_check
          %p394 = pneg %p134
        $region26: #{forward.13} parent=11 // pred_check_branch
          %396 = sbr.rel (%p394) target = $region28
        $region27: #{forward.13} parent=11 // pred_region
          _
        $region28: #{forward.13} parent=11 // pred_fallthru
          _
        // Predicated region
        $region29: #{forward.13} parent=11 // pred_check
          %p397 = pneg %p155
        $region30: #{forward.13} parent=11 // pred_check_branch
          %399 = sbr.rel (%p397) target = $region32
        $region31: #{forward.13} parent=11 // pred_region
          _
        $region32: #{forward.13} parent=11 // pred_fallthru
          _
        // Predicated region
        $region33: #{forward.13} parent=11 // pred_check
          %p400 = pneg %p176
        $region34: #{forward.13} parent=11 // pred_check_branch
          %402 = sbr.rel (%p400) target = $region36
        $region35: #{forward.13} parent=11 // pred_region
          _
        $region36: #{forward.13} parent=11 // pred_fallthru
          _
        // Predicated region
        $region37: #{forward.13} parent=11 // pred_check
          %p403 = pneg %p197
        $region38: #{forward.13} parent=11 // pred_check_branch
          %405 = sbr.rel (%p403) target = $region40
        $region39: #{forward.13} parent=11 // pred_region
          _
        $region40: #{forward.13} parent=11 // pred_fallthru
          _
        // Predicated region
        $region41: #{forward.13} parent=11 // pred_check
          %p406 = pneg %p218
        $region42: #{forward.13} parent=11 // pred_check_branch
          %408 = sbr.rel (%p406) target = $region44
        $region43: #{forward.13} parent=11 // pred_region
          _
        $region44: #{forward.13} parent=11 // pred_fallthru
          _
        // Predicated region
        $region45: #{forward.13} parent=11 // pred_check
          %p409 = pneg %p239
        $region46: #{forward.13} parent=11 // pred_check_branch
          %411 = sbr.rel (%p409) target = $region48
        $region47: #{forward.13} parent=11 // pred_region
          _
        $region48: #{forward.13} parent=11 // pred_fallthru
          _
        // Predicated region
        $region49: #{forward.13} parent=11 // pred_check
          %p412 = pneg %p260
        $region50: #{forward.13} parent=11 // pred_check_branch
          %414 = sbr.rel (%p412) target = $region52
        $region51: #{forward.13} parent=11 // pred_region
          _
        $region52: #{forward.13} parent=11 // pred_fallthru
          _
        // Predicated region
        $region53: #{forward.13} parent=11 // pred_check
          %p415 = pneg %p281
        $region54: #{forward.13} parent=11 // pred_check_branch
          %417 = sbr.rel (%p415) target = $region56
        $region55: #{forward.13} parent=11 // pred_region
          _
        $region56: #{forward.13} parent=11 // pred_fallthru
          _
        // Predicated region
        $region57: #{forward.13} parent=11 // pred_check
          %p418 = pneg %p302
        $region58: #{forward.13} parent=11 // pred_check_branch
          %420 = sbr.rel (%p418) target = $region60
        $region59: #{forward.13} parent=11 // pred_region
          _
        $region60: #{forward.13} parent=11 // pred_fallthru
          _
        // Predicated region
        $region61: #{forward.13} parent=11 // pred_check
          %p421 = pneg %p323
        $region62: #{forward.13} parent=11 // pred_check_branch
          %423 = sbr.rel (%p421) target = $region64
        $region63: #{forward.13} parent=11 // pred_region
          _
        $region64: #{forward.13} parent=11 // pred_fallthru
          _
        // Predicated region
        $region65: #{forward.13} parent=11 // pred_check
          %p424 = pneg %p344
        $region66: #{forward.13} parent=11 // pred_check_branch
          %426 = sbr.rel (%p424) target = $region68
        $region67: #{forward.13} parent=11 // pred_region
          _
        $region68: #{forward.13} parent=11 // pred_fallthru
          _
      $region12: #{forward.13} parent=5 // pred_fallthru
        _
      %p427 = scmp.lt.s32.totalorder %s24, 2
      // Predicated region
      $region69: #{forward.13} parent=5 // pred_check
        %p428 = pneg %p427
      $region70: #{forward.13} parent=5 // pred_check_branch
        %430 = sbr.rel (%p428) target = $region72
      $region71: #{forward.13} parent=5 // pred_region
        // Predicated region
        $region73: #{forward.13} parent=71 // pred_check
          %p431 = pneg %p44
        $region74: #{forward.13} parent=71 // pred_check_branch
          %433 = sbr.rel (%p431) target = $region76
        $region75: #{forward.13} parent=71 // pred_region
          %p434 = scmp.lt.s32.totalorder %s24, 1
          %s435 = scalar_select %p434, %s24, 1
          %s436 = smul.addr %s435, 2
          %s437 = smul.addr %s436, 8
          %s438 = scalar_lea.vmem %s0, %s437
        $region76: #{forward.13} parent=71 // pred_fallthru
          _
      $region72: #{forward.13} parent=5 // pred_fallthru
        _
      %p439 = scmp.le.s32.totalorder 1, %s24
      %p440 = scmp.lt.s32.totalorder %s24, 3
      %p441 = pnand %p439, %p440
      %p442 = pneg %p441
      // Predicated region
      $region77: #{forward.13} parent=5 // pred_check
        _
      $region78: #{forward.13} parent=5 // pred_check_branch
        %444 = sbr.rel (%p441) target = $region80
      $region79: #{forward.13} parent=5 // pred_region
        %s445 = ssub.s32 %s24, 1
        %p446 = scmp.lt.s32.totalorder %s29, 1
        %s447 = scalar_select %p446, %s29, 1
        %s448 = smul.addr %s447, 2
        %s449 = smul.addr %s448, 8
        %s450 = scalar_lea.vmem %s0, %s449
        %p451 = pneg %p50
        %p452 = pneg %p47
        %p453 = pneg %p71
        %p454 = pneg %p68
        %p455 = pneg %p92
        %p456 = pneg %p89
        %p457 = pneg %p113
        %p458 = pneg %p110
        %p459 = pneg %p134
        %p460 = pneg %p131
        %p461 = pneg %p155
        %p462 = pneg %p152
        %p463 = pneg %p176
        %p464 = pneg %p173
        %p465 = pneg %p197
        %p466 = pneg %p194
        %p467 = pneg %p218
        %p468 = pneg %p215
        %p469 = pneg %p239
        %p470 = pneg %p236
        %p471 = pneg %p260
        %p472 = pneg %p257
        %p473 = pneg %p281
        %p474 = pneg %p278
        %p475 = pneg %p302
        %p476 = pneg %p299
        %p477 = pneg %p323
        %p478 = pneg %p320
        %p479 = pneg %p344
        %p480 = pneg %p341
        %p481 = pneg %p370
        %p482 = pneg %p367
        %s483 = sand.u32 %s357, 1
        %s484 = scalar_lea.sflag [#allocation3], %s483
        %s485 = sand.u32 %s357, 1
        %s486 = scalar_lea.vmem [#allocation2], %s485
        %p487 = scmp.lt.s32.totalorder %s29, 1
        %s488 = scalar_select %p487, %s29, 1
        %s489 = smul.addr %s488, 2
        %s490 = smul.addr %s489, 8
        %s491 = scalar_lea.vmem %s0, %s490
        %v493 = vld [vmem:[%s491] sm:$0xff]
        %v494 = vld [vmem:[%s491 + $0x8] sm:$0xff]
        %v495 = vpack.c.bf16 %v493, %v493
        %v496 = vpack.c.bf16 %v494, %v494
        %v497 = vld [vmem:[%s1] sm:$0xff]
        %v498 = vld [vmem:[%s1 + $0x8] sm:$0xff]
        %v499 = vld [vmem:[%s1 + $0x10] sm:$0xff]
        %v500 = vld [vmem:[%s1 + $0x18] sm:$0xff]
        %v501 = vld [vmem:[%s1 + $0x20] sm:$0xff]
        %v502 = vld [vmem:[%s1 + $0x28] sm:$0xff]
        %v503 = vld [vmem:[%s1 + $0x30] sm:$0xff]
        %v504 = vld [vmem:[%s1 + $0x38] sm:$0xff]
        %v505 = vld [vmem:[%s1 + $0x40] sm:$0xff]
        %v506 = vld [vmem:[%s1 + $0x48] sm:$0xff]
        %v507 = vld [vmem:[%s1 + $0x50] sm:$0xff]
        %v508 = vld [vmem:[%s1 + $0x58] sm:$0xff]
        %v509 = vld [vmem:[%s1 + $0x60] sm:$0xff]
        %v510 = vld [vmem:[%s1 + $0x68] sm:$0xff]
        %v511 = vld [vmem:[%s1 + $0x70] sm:$0xff]
        %v512 = vld [vmem:[%s1 + $0x78] sm:$0xff]
        %v513 = vld [vmem:[%s1 + $0x80] sm:$0xff]
        %v514 = vld [vmem:[%s1 + $0x88] sm:$0xff]
        %v515 = vld [vmem:[%s1 + $0x90] sm:$0xff]
        %v516 = vld [vmem:[%s1 + $0x98] sm:$0xff]
        %v517 = vld [vmem:[%s1 + $0xa0] sm:$0xff]
        %v518 = vld [vmem:[%s1 + $0xa8] sm:$0xff]
        %v519 = vld [vmem:[%s1 + $0xb0] sm:$0xff]
        %v520 = vld [vmem:[%s1 + $0xb8] sm:$0xff]
        %v521 = vld [vmem:[%s1 + $0xc0] sm:$0xff]
        %v522 = vld [vmem:[%s1 + $0xc8] sm:$0xff]
        %v523 = vld [vmem:[%s1 + $0xd0] sm:$0xff]
        %v524 = vld [vmem:[%s1 + $0xd8] sm:$0xff]
        %v525 = vld [vmem:[%s1 + $0xe0] sm:$0xff]
        %v526 = vld [vmem:[%s1 + $0xe8] sm:$0xff]
        %v527 = vld [vmem:[%s1 + $0xf0] sm:$0xff]
        %v528 = vld [vmem:[%s1 + $0xf8] sm:$0xff]
        %v529 = vld [vmem:[%s1 + $0x100] sm:$0xff]
        %v530 = vld [vmem:[%s1 + $0x108] sm:$0xff]
        %v531 = vld [vmem:[%s1 + $0x110] sm:$0xff]
        %v532 = vld [vmem:[%s1 + $0x118] sm:$0xff]
        %v533 = vld [vmem:[%s1 + $0x120] sm:$0xff]
        %v534 = vld [vmem:[%s1 + $0x128] sm:$0xff]
        %v535 = vld [vmem:[%s1 + $0x130] sm:$0xff]
        %v536 = vld [vmem:[%s1 + $0x138] sm:$0xff]
        %v537 = vld [vmem:[%s1 + $0x140] sm:$0xff]
        %v538 = vld [vmem:[%s1 + $0x148] sm:$0xff]
        %v539 = vld [vmem:[%s1 + $0x150] sm:$0xff]
        %v540 = vld [vmem:[%s1 + $0x158] sm:$0xff]
        %v541 = vld [vmem:[%s1 + $0x160] sm:$0xff]
        %v542 = vld [vmem:[%s1 + $0x168] sm:$0xff]
        %v543 = vld [vmem:[%s1 + $0x170] sm:$0xff]
        %v544 = vld [vmem:[%s1 + $0x178] sm:$0xff]
        %v545 = vld [vmem:[%s1 + $0x180] sm:$0xff]
        %v546 = vld [vmem:[%s1 + $0x188] sm:$0xff]
        %v547 = vld [vmem:[%s1 + $0x190] sm:$0xff]
        %v548 = vld [vmem:[%s1 + $0x198] sm:$0xff]
        %v549 = vld [vmem:[%s1 + $0x1a0] sm:$0xff]
        %v550 = vld [vmem:[%s1 + $0x1a8] sm:$0xff]
        %v551 = vld [vmem:[%s1 + $0x1b0] sm:$0xff]
        %v552 = vld [vmem:[%s1 + $0x1b8] sm:$0xff]
        %v553 = vld [vmem:[%s1 + $0x1c0] sm:$0xff]
        %v554 = vld [vmem:[%s1 + $0x1c8] sm:$0xff]
        %v555 = vld [vmem:[%s1 + $0x1d0] sm:$0xff]
        %v556 = vld [vmem:[%s1 + $0x1d8] sm:$0xff]
        %v557 = vld [vmem:[%s1 + $0x1e0] sm:$0xff]
        %v558 = vld [vmem:[%s1 + $0x1e8] sm:$0xff]
        %v559 = vld [vmem:[%s1 + $0x1f0] sm:$0xff]
        %v560 = vld [vmem:[%s1 + $0x1f8] sm:$0xff]
        %v561 = vld [vmem:[%s1 + $0x200] sm:$0xff]
        %v562 = vld [vmem:[%s1 + $0x208] sm:$0xff]
        %v563 = vld [vmem:[%s1 + $0x210] sm:$0xff]
        %v564 = vld [vmem:[%s1 + $0x218] sm:$0xff]
        %v565 = vld [vmem:[%s1 + $0x220] sm:$0xff]
        %v566 = vld [vmem:[%s1 + $0x228] sm:$0xff]
        %v567 = vld [vmem:[%s1 + $0x230] sm:$0xff]
        %v568 = vld [vmem:[%s1 + $0x238] sm:$0xff]
        %v569 = vld [vmem:[%s1 + $0x240] sm:$0xff]
        %v570 = vld [vmem:[%s1 + $0x248] sm:$0xff]
        %v571 = vld [vmem:[%s1 + $0x250] sm:$0xff]
        %v572 = vld [vmem:[%s1 + $0x258] sm:$0xff]
        %v573 = vld [vmem:[%s1 + $0x260] sm:$0xff]
        %v574 = vld [vmem:[%s1 + $0x268] sm:$0xff]
        %v575 = vld [vmem:[%s1 + $0x270] sm:$0xff]
        %v576 = vld [vmem:[%s1 + $0x278] sm:$0xff]
        %v577 = vld [vmem:[%s1 + $0x280] sm:$0xff]
        %v578 = vld [vmem:[%s1 + $0x288] sm:$0xff]
        %v579 = vld [vmem:[%s1 + $0x290] sm:$0xff]
        %v580 = vld [vmem:[%s1 + $0x298] sm:$0xff]
        %v581 = vld [vmem:[%s1 + $0x2a0] sm:$0xff]
        %v582 = vld [vmem:[%s1 + $0x2a8] sm:$0xff]
        %v583 = vld [vmem:[%s1 + $0x2b0] sm:$0xff]
        %v584 = vld [vmem:[%s1 + $0x2b8] sm:$0xff]
        %v585 = vld [vmem:[%s1 + $0x2c0] sm:$0xff]
        %v586 = vld [vmem:[%s1 + $0x2c8] sm:$0xff]
        %v587 = vld [vmem:[%s1 + $0x2d0] sm:$0xff]
        %v588 = vld [vmem:[%s1 + $0x2d8] sm:$0xff]
        %v589 = vld [vmem:[%s1 + $0x2e0] sm:$0xff]
        %v590 = vld [vmem:[%s1 + $0x2e8] sm:$0xff]
        %v591 = vld [vmem:[%s1 + $0x2f0] sm:$0xff]
        %v592 = vld [vmem:[%s1 + $0x2f8] sm:$0xff]
        %v593 = vld [vmem:[%s2] sm:$0x3f]
        %v595 = vlaneseq
        %v596 = vshrl.u32 %v595, 7
        %v597 = vsub.s32 0, %v596
        %v598 = vrot.slane %v593, %v597
        %v599 = vlaneseq
        %v600 = vshrl.u32 %v599, 7
        %v601 = vsub.s32 1, %v600
        %v602 = vrot.slane %v593, %v601
        %v603 = vlaneseq
        %v604 = vshrl.u32 %v603, 7
        %v605 = vsub.s32 2, %v604
        %v606 = vrot.slane %v593, %v605
        %v607 = vlaneseq
        %v608 = vshrl.u32 %v607, 7
        %v609 = vsub.s32 3, %v608
        %v610 = vrot.slane %v593, %v609
        %v611 = vlaneseq
        %v612 = vshrl.u32 %v611, 7
        %v613 = vsub.s32 4, %v612
        %v614 = vrot.slane %v593, %v613
        %v615 = vlaneseq
        %v616 = vshrl.u32 %v615, 7
        %v617 = vsub.s32 5, %v616
        %v618 = vrot.slane %v593, %v617
        %v721 = vunpack.c.l.b16 %v497
        %v722 = vunpack.c.h.b16 %v497
        %v723 = vunpack.c.l.b16 %v498
        %v724 = vunpack.c.h.b16 %v498
        %v725 = vunpack.c.l.b16 %v499
        %v726 = vunpack.c.h.b16 %v499
        %v727 = vunpack.c.l.b16 %v500
        %v728 = vunpack.c.h.b16 %v500
        %v729 = vunpack.c.l.b16 %v501
        %v730 = vunpack.c.h.b16 %v501
        %v731 = vunpack.c.l.b16 %v502
        %v732 = vunpack.c.h.b16 %v502
        %v733 = vunpack.c.l.b16 %v503
        %v734 = vunpack.c.h.b16 %v503
        %v735 = vunpack.c.l.b16 %v504
        %v736 = vunpack.c.h.b16 %v504
        %v737 = vunpack.c.l.b16 %v505
        %v738 = vunpack.c.h.b16 %v505
        %v739 = vunpack.c.l.b16 %v506
        %v740 = vunpack.c.h.b16 %v506
        %v741 = vunpack.c.l.b16 %v507
        %v742 = vunpack.c.h.b16 %v507
        %v743 = vunpack.c.l.b16 %v508
        %v744 = vunpack.c.h.b16 %v508
        %v745 = vunpack.c.l.b16 %v509
        %v746 = vunpack.c.h.b16 %v509
        %v747 = vunpack.c.l.b16 %v510
        %v748 = vunpack.c.h.b16 %v510
        %v749 = vunpack.c.l.b16 %v511
        %v750 = vunpack.c.h.b16 %v511
        %v751 = vunpack.c.l.b16 %v512
        %v752 = vunpack.c.h.b16 %v512
        %v753 = vunpack.c.l.b16 %v513
        %v754 = vunpack.c.h.b16 %v513
        %v755 = vunpack.c.l.b16 %v514
        %v756 = vunpack.c.h.b16 %v514
        %v757 = vunpack.c.l.b16 %v515
        %v758 = vunpack.c.h.b16 %v515
        %v759 = vunpack.c.l.b16 %v516
        %v760 = vunpack.c.h.b16 %v516
        %v761 = vunpack.c.l.b16 %v517
        %v762 = vunpack.c.h.b16 %v517
        %v763 = vunpack.c.l.b16 %v518
        %v764 = vunpack.c.h.b16 %v518
        %v765 = vunpack.c.l.b16 %v519
        %v766 = vunpack.c.h.b16 %v519
        %v767 = vunpack.c.l.b16 %v520
        %v768 = vunpack.c.h.b16 %v520
        %v769 = vunpack.c.l.b16 %v521
        %v770 = vunpack.c.h.b16 %v521
        %v771 = vunpack.c.l.b16 %v522
        %v772 = vunpack.c.h.b16 %v522
        %v773 = vunpack.c.l.b16 %v523
        %v774 = vunpack.c.h.b16 %v523
        %v775 = vunpack.c.l.b16 %v524
        %v776 = vunpack.c.h.b16 %v524
        %v777 = vunpack.c.l.b16 %v525
        %v778 = vunpack.c.h.b16 %v525
        %v779 = vunpack.c.l.b16 %v526
        %v780 = vunpack.c.h.b16 %v526
        %v781 = vunpack.c.l.b16 %v527
        %v782 = vunpack.c.h.b16 %v527
        %v783 = vunpack.c.l.b16 %v528
        %v784 = vunpack.c.h.b16 %v528
        %v785 = vunpack.c.l.b16 %v529
        %v786 = vunpack.c.h.b16 %v529
        %v787 = vunpack.c.l.b16 %v530
        %v788 = vunpack.c.h.b16 %v530
        %v789 = vunpack.c.l.b16 %v531
        %v790 = vunpack.c.h.b16 %v531
        %v791 = vunpack.c.l.b16 %v532
        %v792 = vunpack.c.h.b16 %v532
        %v793 = vunpack.c.l.b16 %v533
        %v794 = vunpack.c.h.b16 %v533
        %v795 = vunpack.c.l.b16 %v534
        %v796 = vunpack.c.h.b16 %v534
        %v797 = vunpack.c.l.b16 %v535
        %v798 = vunpack.c.h.b16 %v535
        %v799 = vunpack.c.l.b16 %v536
        %v800 = vunpack.c.h.b16 %v536
        %v801 = vunpack.c.l.b16 %v537
        %v802 = vunpack.c.h.b16 %v537
        %v803 = vunpack.c.l.b16 %v538
        %v804 = vunpack.c.h.b16 %v538
        %v805 = vunpack.c.l.b16 %v539
        %v806 = vunpack.c.h.b16 %v539
        %v807 = vunpack.c.l.b16 %v540
        %v808 = vunpack.c.h.b16 %v540
        %v809 = vunpack.c.l.b16 %v541
        %v810 = vunpack.c.h.b16 %v541
        %v811 = vunpack.c.l.b16 %v542
        %v812 = vunpack.c.h.b16 %v542
        %v813 = vunpack.c.l.b16 %v543
        %v814 = vunpack.c.h.b16 %v543
        %v815 = vunpack.c.l.b16 %v544
        %v816 = vunpack.c.h.b16 %v544
        %v817 = vunpack.c.l.b16 %v545
        %v818 = vunpack.c.h.b16 %v545
        %v819 = vunpack.c.l.b16 %v546
        %v820 = vunpack.c.h.b16 %v546
        %v821 = vunpack.c.l.b16 %v547
        %v822 = vunpack.c.h.b16 %v547
        %v823 = vunpack.c.l.b16 %v548
        %v824 = vunpack.c.h.b16 %v548
        %v825 = vunpack.c.l.b16 %v549
        %v826 = vunpack.c.h.b16 %v549
        %v827 = vunpack.c.l.b16 %v550
        %v828 = vunpack.c.h.b16 %v550
        %v829 = vunpack.c.l.b16 %v551
        %v830 = vunpack.c.h.b16 %v551
        %v831 = vunpack.c.l.b16 %v552
        %v832 = vunpack.c.h.b16 %v552
        %v833 = vunpack.c.l.b16 %v553
        %v834 = vunpack.c.h.b16 %v553
        %v835 = vunpack.c.l.b16 %v554
        %v836 = vunpack.c.h.b16 %v554
        %v837 = vunpack.c.l.b16 %v555
        %v838 = vunpack.c.h.b16 %v555
        %v839 = vunpack.c.l.b16 %v556
        %v840 = vunpack.c.h.b16 %v556
        %v841 = vunpack.c.l.b16 %v557
        %v842 = vunpack.c.h.b16 %v557
        %v843 = vunpack.c.l.b16 %v558
        %v844 = vunpack.c.h.b16 %v558
        %v845 = vunpack.c.l.b16 %v559
        %v846 = vunpack.c.h.b16 %v559
        %v847 = vunpack.c.l.b16 %v560
        %v848 = vunpack.c.h.b16 %v560
        %v849 = vunpack.c.l.b16 %v561
        %v850 = vunpack.c.h.b16 %v561
        %v851 = vunpack.c.l.b16 %v562
        %v852 = vunpack.c.h.b16 %v562
        %v853 = vunpack.c.l.b16 %v563
        %v854 = vunpack.c.h.b16 %v563
        %v855 = vunpack.c.l.b16 %v564
        %v856 = vunpack.c.h.b16 %v564
        %v857 = vunpack.c.l.b16 %v565
        %v858 = vunpack.c.h.b16 %v565
        %v859 = vunpack.c.l.b16 %v566
        %v860 = vunpack.c.h.b16 %v566
        %v861 = vunpack.c.l.b16 %v567
        %v862 = vunpack.c.h.b16 %v567
        %v863 = vunpack.c.l.b16 %v568
        %v864 = vunpack.c.h.b16 %v568
        %v865 = vunpack.c.l.b16 %v569
        %v866 = vunpack.c.h.b16 %v569
        %v867 = vunpack.c.l.b16 %v570
        %v868 = vunpack.c.h.b16 %v570
        %v869 = vunpack.c.l.b16 %v571
        %v870 = vunpack.c.h.b16 %v571
        %v871 = vunpack.c.l.b16 %v572
        %v872 = vunpack.c.h.b16 %v572
        %v873 = vunpack.c.l.b16 %v573
        %v874 = vunpack.c.h.b16 %v573
        %v875 = vunpack.c.l.b16 %v574
        %v876 = vunpack.c.h.b16 %v574
        %v877 = vunpack.c.l.b16 %v575
        %v878 = vunpack.c.h.b16 %v575
        %v879 = vunpack.c.l.b16 %v576
        %v880 = vunpack.c.h.b16 %v576
        %v881 = vunpack.c.l.b16 %v577
        %v882 = vunpack.c.h.b16 %v577
        %v883 = vunpack.c.l.b16 %v578
        %v884 = vunpack.c.h.b16 %v578
        %v885 = vunpack.c.l.b16 %v579
        %v886 = vunpack.c.h.b16 %v579
        %v887 = vunpack.c.l.b16 %v580
        %v888 = vunpack.c.h.b16 %v580
        %v889 = vunpack.c.l.b16 %v581
        %v890 = vunpack.c.h.b16 %v581
        %v891 = vunpack.c.l.b16 %v582
        %v892 = vunpack.c.h.b16 %v582
        %v893 = vunpack.c.l.b16 %v583
        %v894 = vunpack.c.h.b16 %v583
        %v895 = vunpack.c.l.b16 %v584
        %v896 = vunpack.c.h.b16 %v584
        %v897 = vunpack.c.l.b16 %v585
        %v898 = vunpack.c.h.b16 %v585
        %v899 = vunpack.c.l.b16 %v586
        %v900 = vunpack.c.h.b16 %v586
        %v901 = vunpack.c.l.b16 %v587
        %v902 = vunpack.c.h.b16 %v587
        %v903 = vunpack.c.l.b16 %v588
        %v904 = vunpack.c.h.b16 %v588
        %v905 = vunpack.c.l.b16 %v589
        %v906 = vunpack.c.h.b16 %v589
        %v907 = vunpack.c.l.b16 %v590
        %v908 = vunpack.c.h.b16 %v590
        %v909 = vunpack.c.l.b16 %v591
        %v910 = vunpack.c.h.b16 %v591
        %v911 = vunpack.c.l.b16 %v592
        %v912 = vunpack.c.h.b16 %v592
        %v913 = vpack.c.b16 %v727, %v721
        %v914 = vpack.c.b16 %v728, %v722
        %v915 = vpack.c.b16 %v729, %v723
        %v916 = vpack.c.b16 %v730, %v724
        %v917 = vpack.c.b16 %v731, %v725
        %v918 = vpack.c.b16 %v732, %v726
        %v919 = vpack.c.b16 %v739, %v733
        %v920 = vpack.c.b16 %v740, %v734
        %v921 = vpack.c.b16 %v741, %v735
        %v922 = vpack.c.b16 %v742, %v736
        %v923 = vpack.c.b16 %v743, %v737
        %v924 = vpack.c.b16 %v744, %v738
        %v925 = vpack.c.b16 %v751, %v745
        %v926 = vpack.c.b16 %v752, %v746
        %v927 = vpack.c.b16 %v753, %v747
        %v928 = vpack.c.b16 %v754, %v748
        %v929 = vpack.c.b16 %v755, %v749
        %v930 = vpack.c.b16 %v756, %v750
        %v931 = vpack.c.b16 %v763, %v757
        %v932 = vpack.c.b16 %v764, %v758
        %v933 = vpack.c.b16 %v765, %v759
        %v934 = vpack.c.b16 %v766, %v760
        %v935 = vpack.c.b16 %v767, %v761
        %v936 = vpack.c.b16 %v768, %v762
        %v937 = vpack.c.b16 %v775, %v769
        %v938 = vpack.c.b16 %v776, %v770
        %v939 = vpack.c.b16 %v777, %v771
        %v940 = vpack.c.b16 %v778, %v772
        %v941 = vpack.c.b16 %v779, %v773
        %v942 = vpack.c.b16 %v780, %v774
        %v943 = vpack.c.b16 %v787, %v781
        %v944 = vpack.c.b16 %v788, %v782
        %v945 = vpack.c.b16 %v789, %v783
        %v946 = vpack.c.b16 %v790, %v784
        %v947 = vpack.c.b16 %v791, %v785
        %v948 = vpack.c.b16 %v792, %v786
        %v949 = vpack.c.b16 %v799, %v793
        %v950 = vpack.c.b16 %v800, %v794
        %v951 = vpack.c.b16 %v801, %v795
        %v952 = vpack.c.b16 %v802, %v796
        %v953 = vpack.c.b16 %v803, %v797
        %v954 = vpack.c.b16 %v804, %v798
        %v955 = vpack.c.b16 %v811, %v805
        %v956 = vpack.c.b16 %v812, %v806
        %v957 = vpack.c.b16 %v813, %v807
        %v958 = vpack.c.b16 %v814, %v808
        %v959 = vpack.c.b16 %v815, %v809
        %v960 = vpack.c.b16 %v816, %v810
        %v961 = vpack.c.b16 %v823, %v817
        %v962 = vpack.c.b16 %v824, %v818
        %v963 = vpack.c.b16 %v825, %v819
        %v964 = vpack.c.b16 %v826, %v820
        %v965 = vpack.c.b16 %v827, %v821
        %v966 = vpack.c.b16 %v828, %v822
        %v967 = vpack.c.b16 %v835, %v829
        %v968 = vpack.c.b16 %v836, %v830
        %v969 = vpack.c.b16 %v837, %v831
        %v970 = vpack.c.b16 %v838, %v832
        %v971 = vpack.c.b16 %v839, %v833
        %v972 = vpack.c.b16 %v840, %v834
        %v973 = vpack.c.b16 %v847, %v841
        %v974 = vpack.c.b16 %v848, %v842
        %v975 = vpack.c.b16 %v849, %v843
        %v976 = vpack.c.b16 %v850, %v844
        %v977 = vpack.c.b16 %v851, %v845
        %v978 = vpack.c.b16 %v852, %v846
        %v979 = vpack.c.b16 %v859, %v853
        %v980 = vpack.c.b16 %v860, %v854
        %v981 = vpack.c.b16 %v861, %v855
        %v982 = vpack.c.b16 %v862, %v856
        %v983 = vpack.c.b16 %v863, %v857
        %v984 = vpack.c.b16 %v864, %v858
        %v985 = vpack.c.b16 %v871, %v865
        %v986 = vpack.c.b16 %v872, %v866
        %v987 = vpack.c.b16 %v873, %v867
        %v988 = vpack.c.b16 %v874, %v868
        %v989 = vpack.c.b16 %v875, %v869
        %v990 = vpack.c.b16 %v876, %v870
        %v991 = vpack.c.b16 %v883, %v877
        %v992 = vpack.c.b16 %v884, %v878
        %v993 = vpack.c.b16 %v885, %v879
        %v994 = vpack.c.b16 %v886, %v880
        %v995 = vpack.c.b16 %v887, %v881
        %v996 = vpack.c.b16 %v888, %v882
        %v997 = vpack.c.b16 %v895, %v889
        %v998 = vpack.c.b16 %v896, %v890
        %v999 = vpack.c.b16 %v897, %v891
        %v1000 = vpack.c.b16 %v898, %v892
        %v1001 = vpack.c.b16 %v899, %v893
        %v1002 = vpack.c.b16 %v900, %v894
        %v1003 = vpack.c.b16 %v907, %v901
        %v1004 = vpack.c.b16 %v908, %v902
        %v1005 = vpack.c.b16 %v909, %v903
        %v1006 = vpack.c.b16 %v910, %v904
        %v1007 = vpack.c.b16 %v911, %v905
        %v1008 = vpack.c.b16 %v912, %v906
        %1105 = vmatprep.subr.bf16.mxu0 %v956
        %1106 = vmatpush1.bf16.msra.mxu0 %v955
        %1107 = vmatprep.subr.bf16.mxu0 %v950
        %1108 = vmatpush1.bf16.msra.mxu0 %v949
        %1109 = vmatprep.subr.bf16.mxu0 %v944
        %1110 = vmatpush1.bf16.msra.mxu0 %v943
        %1111 = vmatprep.subr.bf16.mxu0 %v938
        %1112 = vmatpush1.bf16.msra.mxu0 %v937
        %1113 = vmatprep.subr.bf16.mxu0 %v932
        %1114 = vmatpush1.bf16.msra.mxu0 %v931
        %1115 = vmatprep.subr.bf16.mxu0 %v926
        %1116 = vmatpush1.bf16.msra.mxu0 %v925
        %1117 = vmatprep.subr.bf16.mxu0 %v920
        %1118 = vmatpush1.bf16.msra.mxu0 %v919
        %1119 = vmatprep.subr.bf16.mxu0 %v914
        %1120 = vmatpush1.bf16.msra.mxu0 %v913
        %1121 = vmatprep.subr.bf16.mxu0 %v1004
        %1122 = vmatpush2.bf16.msra.mxu0 %v1003
        %1123 = vmatprep.subr.bf16.mxu0 %v998
        %1124 = vmatpush2.bf16.msra.mxu0 %v997
        %1125 = vmatprep.subr.bf16.mxu0 %v992
        %1126 = vmatpush2.bf16.msra.mxu0 %v991
        %1127 = vmatprep.subr.bf16.mxu0 %v986
        %1128 = vmatpush2.bf16.msra.mxu0 %v985
        %1129 = vmatprep.subr.bf16.mxu0 %v980
        %1130 = vmatpush2.bf16.msra.mxu0 %v979
        %1131 = vmatprep.subr.bf16.mxu0 %v974
        %1132 = vmatpush2.bf16.msra.mxu0 %v973
        %1133 = vmatprep.subr.bf16.mxu0 %v968
        %1134 = vmatpush2.bf16.msra.mxu0 %v967
        %1135 = vmatprep.subr.bf16.mxu0 %v962
        %1136 = vmatpush2.bf16.msra.mxu0 %v961
        %1137 = vmatprep.mubr.bf16.mxu0 %v496
        %1138 = vmatmul.mubr.bf16.gmra.mxu0 %v495
        %v1139 = vpop.f32.mrf.mxu0
        %v1140 = vadd.f32 %v598, %v1139
        %v1141 = vpop.f32.mrf.mxu0
        %v1142 = vadd.f32 %v602, %v1141
        %v1143 = vpop.f32.mrf.mxu0
        %v1144 = vpop.f32.mrf.mxu0
        %1145 = vdwg.mxu0
        %1146 = vmatprep.subr.bf16.mxu0 %v958
        %1147 = vmatpush1.bf16.msra.mxu0 %v957
        %1148 = vmatprep.subr.bf16.mxu0 %v952
        %1149 = vmatpush1.bf16.msra.mxu0 %v951
        %1150 = vmatprep.subr.bf16.mxu0 %v946
        %1151 = vmatpush1.bf16.msra.mxu0 %v945
        %1152 = vmatprep.subr.bf16.mxu0 %v940
        %1153 = vmatpush1.bf16.msra.mxu0 %v939
        %1154 = vmatprep.subr.bf16.mxu0 %v934
        %1155 = vmatpush1.bf16.msra.mxu0 %v933
        %1156 = vmatprep.subr.bf16.mxu0 %v928
        %1157 = vmatpush1.bf16.msra.mxu0 %v927
        %1158 = vmatprep.subr.bf16.mxu0 %v922
        %1159 = vmatpush1.bf16.msra.mxu0 %v921
        %1160 = vmatprep.subr.bf16.mxu0 %v916
        %1161 = vmatpush1.bf16.msra.mxu0 %v915
        %1162 = vmatprep.subr.bf16.mxu0 %v1006
        %1163 = vmatpush2.bf16.msra.mxu0 %v1005
        %1164 = vmatprep.subr.bf16.mxu0 %v1000
        %1165 = vmatpush2.bf16.msra.mxu0 %v999
        %1166 = vmatprep.subr.bf16.mxu0 %v994
        %1167 = vmatpush2.bf16.msra.mxu0 %v993
        %1168 = vmatprep.subr.bf16.mxu0 %v988
        %1169 = vmatpush2.bf16.msra.mxu0 %v987
        %1170 = vmatprep.subr.bf16.mxu0 %v982
        %1171 = vmatpush2.bf16.msra.mxu0 %v981
        %1172 = vmatprep.subr.bf16.mxu0 %v976
        %1173 = vmatpush2.bf16.msra.mxu0 %v975
        %1174 = vmatprep.subr.bf16.mxu0 %v970
        %1175 = vmatpush2.bf16.msra.mxu0 %v969
        %1176 = vmatprep.subr.bf16.mxu0 %v964
        %1177 = vmatpush2.bf16.msra.mxu0 %v963
        %1178 = vmatprep.mubr.bf16.mxu0 %v496
        %1179 = vmatmul.mubr.bf16.gmra.mxu0 %v495
        %v1180 = vpop.f32.mrf.mxu0
        %v1181 = vadd.f32 %v606, %v1180
        %v1182 = vpop.f32.mrf.mxu0
        %v1183 = vadd.f32 %v610, %v1182
        %v1184 = vpop.f32.mrf.mxu0
        %v1185 = vpop.f32.mrf.mxu0
        %1186 = vdwg.mxu0
        %1187 = vmatprep.subr.bf16.mxu0 %v960
        %1188 = vmatpush1.bf16.msra.mxu0 %v959
        %1189 = vmatprep.subr.bf16.mxu0 %v954
        %1190 = vmatpush1.bf16.msra.mxu0 %v953
        %1191 = vmatprep.subr.bf16.mxu0 %v948
        %1192 = vmatpush1.bf16.msra.mxu0 %v947
        %1193 = vmatprep.subr.bf16.mxu0 %v942
        %1194 = vmatpush1.bf16.msra.mxu0 %v941
        %1195 = vmatprep.subr.bf16.mxu0 %v936
        %1196 = vmatpush1.bf16.msra.mxu0 %v935
        %1197 = vmatprep.subr.bf16.mxu0 %v930
        %1198 = vmatpush1.bf16.msra.mxu0 %v929
        %1199 = vmatprep.subr.bf16.mxu0 %v924
        %1200 = vmatpush1.bf16.msra.mxu0 %v923
        %1201 = vmatprep.subr.bf16.mxu0 %v918
        %1202 = vmatpush1.bf16.msra.mxu0 %v917
        %1203 = vmatprep.subr.bf16.mxu0 %v1008
        %1204 = vmatpush2.bf16.msra.mxu0 %v1007
        %1205 = vmatprep.subr.bf16.mxu0 %v1002
        %1206 = vmatpush2.bf16.msra.mxu0 %v1001
        %1207 = vmatprep.subr.bf16.mxu0 %v996
        %1208 = vmatpush2.bf16.msra.mxu0 %v995
        %1209 = vmatprep.subr.bf16.mxu0 %v990
        %1210 = vmatpush2.bf16.msra.mxu0 %v989
        %1211 = vmatprep.subr.bf16.mxu0 %v984
        %1212 = vmatpush2.bf16.msra.mxu0 %v983
        %1213 = vmatprep.subr.bf16.mxu0 %v978
        %1214 = vmatpush2.bf16.msra.mxu0 %v977
        %1215 = vmatprep.subr.bf16.mxu0 %v972
        %1216 = vmatpush2.bf16.msra.mxu0 %v971
        %1217 = vmatprep.subr.bf16.mxu0 %v966
        %1218 = vmatpush2.bf16.msra.mxu0 %v965
        %1219 = vmatprep.mubr.bf16.mxu0 %v496
        %1220 = vmatmul.mubr.bf16.gmra.mxu0 %v495
        %v1221 = vpop.f32.mrf.mxu0
        %v1222 = vadd.f32 %v614, %v1221
        %v1223 = vpop.f32.mrf.mxu0
        %v1224 = vadd.f32 %v618, %v1223
        %v1225 = vpop.f32.mrf.mxu0
        %v1226 = vpop.f32.mrf.mxu0
        %1227 = vdwg.mxu0
        %v1228 = vmul.f32 %v1140, 0.125
        %v1229 = vmul.f32 %v1142, 0.125
        %v1230 = vpack.c.bf16 %v1228, %v1228
        %v1231 = vpack.c.bf16 %v1181, %v1181
        %v1232 = vpack.c.bf16 %v1222, %v1222
        %vm1233 = vcmask 523264
        %v1235 = vsel %vm1233, %v1230, 0
        %v1238 = vsel %vm1233, %v1231, 0
        %1240 = vmatprep.subr.bf16.mxu0 0
        %1241 = vmatpush1.bf16.xpose.msra.mxu0 0
        %1242 = vmatprep.subr.bf16.mxu0 0
        %1243 = vmatpush1.bf16.xpose.msra.mxu0 0
        %1244 = vmatprep.subr.bf16.mxu0 0
        %1245 = vmatpush1.bf16.xpose.msra.mxu0 0
        %1246 = vmatprep.subr.bf16.mxu0 0
        %1247 = vmatpush1.bf16.xpose.msra.mxu0 0
        %1248 = vmatprep.subr.bf16.mxu0 0
        %1249 = vmatpush1.bf16.xpose.msra.mxu0 0
        %1250 = vmatprep.subr.bf16.mxu0 0
        %1251 = vmatpush1.bf16.xpose.msra.mxu0 0
        %1252 = vmatprep.subr.bf16.mxu0 0
        %1253 = vmatpush1.bf16.xpose.msra.mxu0 0
        %1254 = vmatprep.subr.bf16.mxu0 0
        %1255 = vmatpush1.bf16.xpose.msra.mxu0 %v1238
        %1256 = vmatprep.subr.bf16.mxu0 0
        %1257 = vmatpush2.bf16.xpose.msra.mxu0 0
        %1258 = vmatprep.subr.bf16.mxu0 0
        %1259 = vmatpush2.bf16.xpose.msra.mxu0 0
        %1260 = vmatprep.subr.bf16.mxu0 0
        %1261 = vmatpush2.bf16.xpose.msra.mxu0 0
        %1262 = vmatprep.subr.bf16.mxu0 0
        %1263 = vmatpush2.bf16.xpose.msra.mxu0 0
        %1264 = vmatprep.subr.bf16.mxu0 0
        %1265 = vmatpush2.bf16.xpose.msra.mxu0 0
        %1266 = vmatprep.subr.bf16.mxu0 0
        %1267 = vmatpush2.bf16.xpose.msra.mxu0 0
        %1268 = vmatprep.subr.bf16.mxu0 0
        %1269 = vmatpush2.bf16.xpose.msra.mxu0 0
        %1270 = vmatprep.subr.bf16.mxu0 0
        %1271 = vmatpush2.bf16.xpose.msra.mxu0 0
        %1272 = vmatprep.mubr.bf16.mxu0 0
        %1273 = vmatmul.mubr.bf16.gmra.mxu0 %v1235
        %v1274 = vpop.f32.mrf.mxu0
        %v1275 = vadd.f32 0.0, %v1274
        %v1276 = vpop.f32.mrf.mxu0
        %v1277 = vpop.f32.mrf.mxu0
        %v1278 = vpop.f32.mrf.mxu0
        %1279 = vdwg.mxu0
        %vm1280 = vcmask 64512
        %v1281 = vsel %vm1280, %v1275, -inf
        %1282 = vmax.xlane.f32.xlu0 %v1281
        %v1283 = vpop.xlane.xlu0 %1282
        %v1284 = vsub.f32 %v1275, %v1283
        %v1285 = vmul.f32 %v1284, 1.442695
        %v1286 = vpow.pop %v1285
        %v1287 = vsel %vm1280, %v1286, 0.0
        %1288 = vadd.xlane.f32.xlu0 %v1287
        %v1289 = vpop.xlane.xlu0 %1288
        %v1290 = vrcp.pop %v1289
        %v1291 = vmul.f32 %v1286, %v1290
        %v1292 = vpack.c.bf16 %v1291, %v1291
        %v1294 = vsel %vm1280, %v1292, 0
        %vm1296 = vcmask 1043456
        %v1298 = vsel %vm1296, %v1232, 0
        %1300 = vmatprep.subr.bf16.mxu0 0
        %1301 = vmatpush1.bf16.msra.mxu0 0
        %1302 = vmatprep.subr.bf16.mxu0 0
        %1303 = vmatpush1.bf16.msra.mxu0 0
        %1304 = vmatprep.subr.bf16.mxu0 0
        %1305 = vmatpush1.bf16.msra.mxu0 0
        %1306 = vmatprep.subr.bf16.mxu0 0
        %1307 = vmatpush1.bf16.msra.mxu0 0
        %1308 = vmatprep.subr.bf16.mxu0 0
        %1309 = vmatpush1.bf16.msra.mxu0 0
        %1310 = vmatprep.subr.bf16.mxu0 0
        %1311 = vmatpush1.bf16.msra.mxu0 0
        %1312 = vmatprep.subr.bf16.mxu0 0
        %1313 = vmatpush1.bf16.msra.mxu0 0
        %1314 = vmatprep.subr.bf16.mxu0 0
        %1315 = vmatpush1.bf16.msra.mxu0 %v1298
        %1316 = vmatprep.subr.bf16.mxu0 0
        %1317 = vmatpush2.bf16.msra.mxu0 0
        %1318 = vmatprep.subr.bf16.mxu0 0
        %1319 = vmatpush2.bf16.msra.mxu0 0
        %1320 = vmatprep.subr.bf16.mxu0 0
        %1321 = vmatpush2.bf16.msra.mxu0 0
        %1322 = vmatprep.subr.bf16.mxu0 0
        %1323 = vmatpush2.bf16.msra.mxu0 0
        %1324 = vmatprep.subr.bf16.mxu0 0
        %1325 = vmatpush2.bf16.msra.mxu0 0
        %1326 = vmatprep.subr.bf16.mxu0 0
        %1327 = vmatpush2.bf16.msra.mxu0 0
        %1328 = vmatprep.subr.bf16.mxu0 0
        %1329 = vmatpush2.bf16.msra.mxu0 0
        %1330 = vmatprep.subr.bf16.mxu0 0
        %1331 = vmatpush2.bf16.msra.mxu0 0
        %1332 = vmatprep.mubr.bf16.mxu0 0
        %1333 = vmatmul.mubr.bf16.gmra.mxu0 %v1294
        %v1334 = vpop.f32.mrf.mxu0
        %v1335 = vadd.f32 0.0, %v1334
        %v1336 = vpop.f32.mrf.mxu0
        %v1337 = vpop.f32.mrf.mxu0
        %v1338 = vpop.f32.mrf.mxu0
        %1339 = vdwg.mxu0
        %v1340 = vpack.c.bf16 %v1335, %v1335
        %v1341 = vld [vmem:[%s3] sm:$0xff]
        %v1342 = vld [vmem:[%s3 + $0x8] sm:$0xff]
        %v1343 = vld [vmem:[%s3 + $0x10] sm:$0xff]
        %v1344 = vld [vmem:[%s3 + $0x18] sm:$0xff]
        %v1345 = vld [vmem:[%s3 + $0x20] sm:$0xff]
        %v1346 = vld [vmem:[%s3 + $0x28] sm:$0xff]
        %v1347 = vld [vmem:[%s3 + $0x30] sm:$0xff]
        %v1348 = vld [vmem:[%s3 + $0x38] sm:$0xff]
        %1350 = vrot.lane.b32.xlu0 %v1230, 64
        %v1351 = vpop.permute.xlu0 %1350
        %1353 = vrot.lane.b32.xlu0 %v1231, 64
        %v1354 = vpop.permute.xlu0 %1353
        %v1356 = vsel %vm1233, %v1351, 0
        %v1359 = vsel %vm1233, %v1354, 0
        %1361 = vmatprep.subr.bf16.mxu0 0
        %1362 = vmatpush1.bf16.xpose.msra.mxu0 0
        %1363 = vmatprep.subr.bf16.mxu0 0
        %1364 = vmatpush1.bf16.xpose.msra.mxu0 0
        %1365 = vmatprep.subr.bf16.mxu0 0
        %1366 = vmatpush1.bf16.xpose.msra.mxu0 0
        %1367 = vmatprep.subr.bf16.mxu0 0
        %1368 = vmatpush1.bf16.xpose.msra.mxu0 0
        %1369 = vmatprep.subr.bf16.mxu0 0
        %1370 = vmatpush1.bf16.xpose.msra.mxu0 0
        %1371 = vmatprep.subr.bf16.mxu0 0
        %1372 = vmatpush1.bf16.xpose.msra.mxu0 0
        %1373 = vmatprep.subr.bf16.mxu0 0
        %1374 = vmatpush1.bf16.xpose.msra.mxu0 0
        %1375 = vmatprep.subr.bf16.mxu0 0
        %1376 = vmatpush1.bf16.xpose.msra.mxu0 %v1359
        %1377 = vmatprep.subr.bf16.mxu0 0
        %1378 = vmatpush2.bf16.xpose.msra.mxu0 0
        %1379 = vmatprep.subr.bf16.mxu0 0
        %1380 = vmatpush2.bf16.xpose.msra.mxu0 0
        %1381 = vmatprep.subr.bf16.mxu0 0
        %1382 = vmatpush2.bf16.xpose.msra.mxu0 0
        %1383 = vmatprep.subr.bf16.mxu0 0
        %1384 = vmatpush2.bf16.xpose.msra.mxu0 0
        %1385 = vmatprep.subr.bf16.mxu0 0
        %1386 = vmatpush2.bf16.xpose.msra.mxu0 0
        %1387 = vmatprep.subr.bf16.mxu0 0
        %1388 = vmatpush2.bf16.xpose.msra.mxu0 0
        %1389 = vmatprep.subr.bf16.mxu0 0
        %1390 = vmatpush2.bf16.xpose.msra.mxu0 0
        %1391 = vmatprep.subr.bf16.mxu0 0
        %1392 = vmatpush2.bf16.xpose.msra.mxu0 0
        %1393 = vmatprep.mubr.bf16.mxu0 0
        %1394 = vmatmul.mubr.bf16.gmra.mxu0 %v1356
        %v1395 = vpop.f32.mrf.mxu0
        %v1396 = vadd.f32 0.0, %v1395
        %v1397 = vpop.f32.mrf.mxu0
        %v1398 = vpop.f32.mrf.mxu0
        %v1399 = vpop.f32.mrf.mxu0
        %1400 = vdwg.mxu0
        %v1401 = vsel %vm1280, %v1396, -inf
        %1402 = vmax.xlane.f32.xlu0 %v1401
        %v1403 = vpop.xlane.xlu0 %1402
        %v1404 = vsub.f32 %v1396, %v1403
        %v1405 = vmul.f32 %v1404, 1.442695
        %v1406 = vpow.pop %v1405
        %v1407 = vsel %vm1280, %v1406, 0.0
        %1408 = vadd.xlane.f32.xlu0 %v1407
        %v1409 = vpop.xlane.xlu0 %1408
        %v1410 = vrcp.pop %v1409
        %v1411 = vmul.f32 %v1406, %v1410
        %v1412 = vpack.c.bf16 %v1411, %v1411
        %1414 = vrot.lane.b32.xlu0 %v1232, 64
        %v1415 = vpop.permute.xlu0 %1414
        %v1417 = vsel %vm1280, %v1412, 0
        %v1420 = vsel %vm1296, %v1415, 0
        %1422 = vmatprep.subr.bf16.mxu0 0
        %1423 = vmatpush1.bf16.msra.mxu0 0
        %1424 = vmatprep.subr.bf16.mxu0 0
        %1425 = vmatpush1.bf16.msra.mxu0 0
        %1426 = vmatprep.subr.bf16.mxu0 0
        %1427 = vmatpush1.bf16.msra.mxu0 0
        %1428 = vmatprep.subr.bf16.mxu0 0
        %1429 = vmatpush1.bf16.msra.mxu0 0
        %1430 = vmatprep.subr.bf16.mxu0 0
        %1431 = vmatpush1.bf16.msra.mxu0 0
        %1432 = vmatprep.subr.bf16.mxu0 0
        %1433 = vmatpush1.bf16.msra.mxu0 0
        %1434 = vmatprep.subr.bf16.mxu0 0
        %1435 = vmatpush1.bf16.msra.mxu0 0
        %1436 = vmatprep.subr.bf16.mxu0 0
        %1437 = vmatpush1.bf16.msra.mxu0 %v1420
        %1438 = vmatprep.subr.bf16.mxu0 0
        %1439 = vmatpush2.bf16.msra.mxu0 0
        %1440 = vmatprep.subr.bf16.mxu0 0
        %1441 = vmatpush2.bf16.msra.mxu0 0
        %1442 = vmatprep.subr.bf16.mxu0 0
        %1443 = vmatpush2.bf16.msra.mxu0 0
        %1444 = vmatprep.subr.bf16.mxu0 0
        %1445 = vmatpush2.bf16.msra.mxu0 0
        %1446 = vmatprep.subr.bf16.mxu0 0
        %1447 = vmatpush2.bf16.msra.mxu0 0
        %1448 = vmatprep.subr.bf16.mxu0 0
        %1449 = vmatpush2.bf16.msra.mxu0 0
        %1450 = vmatprep.subr.bf16.mxu0 0
        %1451 = vmatpush2.bf16.msra.mxu0 0
        %1452 = vmatprep.subr.bf16.mxu0 0
        %1453 = vmatpush2.bf16.msra.mxu0 0
        %1454 = vmatprep.mubr.bf16.mxu0 0
        %1455 = vmatmul.mubr.bf16.gmra.mxu0 %v1417
        %v1456 = vpop.f32.mrf.mxu0
        %v1457 = vadd.f32 0.0, %v1456
        %v1458 = vpop.f32.mrf.mxu0
        %v1459 = vpop.f32.mrf.mxu0
        %v1460 = vpop.f32.mrf.mxu0
        %1461 = vdwg.mxu0
        %v1462 = vpack.c.bf16 %v1457, %v1457
        %v1463 = vld [vmem:[%s3 + $0x40] sm:$0xff]
        %v1464 = vld [vmem:[%s3 + $0x48] sm:$0xff]
        %v1465 = vld [vmem:[%s3 + $0x50] sm:$0xff]
        %v1466 = vld [vmem:[%s3 + $0x58] sm:$0xff]
        %v1467 = vld [vmem:[%s3 + $0x60] sm:$0xff]
        %v1468 = vld [vmem:[%s3 + $0x68] sm:$0xff]
        %v1469 = vld [vmem:[%s3 + $0x70] sm:$0xff]
        %v1470 = vld [vmem:[%s3 + $0x78] sm:$0xff]
        %v1479 = vunpack.c.l.b16 %v1463
        %v1480 = vunpack.c.h.b16 %v1463
        %v1481 = vunpack.c.l.b16 %v1464
        %v1482 = vunpack.c.h.b16 %v1464
        %v1483 = vunpack.c.l.b16 %v1465
        %v1484 = vunpack.c.h.b16 %v1465
        %v1485 = vunpack.c.l.b16 %v1466
        %v1486 = vunpack.c.h.b16 %v1466
        %v1487 = vunpack.c.l.b16 %v1467
        %v1488 = vunpack.c.h.b16 %v1467
        %v1489 = vunpack.c.l.b16 %v1468
        %v1490 = vunpack.c.h.b16 %v1468
        %v1491 = vunpack.c.l.b16 %v1469
        %v1492 = vunpack.c.h.b16 %v1469
        %v1493 = vunpack.c.l.b16 %v1470
        %v1494 = vunpack.c.h.b16 %v1470
        %v1495 = vpack.c.b16 %v1481, %v1479
        %v1496 = vpack.c.b16 %v1482, %v1480
        %v1497 = vpack.c.b16 %v1485, %v1483
        %v1498 = vpack.c.b16 %v1486, %v1484
        %v1499 = vpack.c.b16 %v1489, %v1487
        %v1500 = vpack.c.b16 %v1490, %v1488
        %v1501 = vpack.c.b16 %v1493, %v1491
        %v1502 = vpack.c.b16 %v1494, %v1492
        %v1512 = vsel %vm1233, %v1462, 0
        %1514 = vmatprep.subr.bf16.mxu0 0
        %1515 = vmatpush1.bf16.msra.mxu0 0
        %1516 = vmatprep.subr.bf16.mxu0 0
        %1517 = vmatpush1.bf16.msra.mxu0 0
        %1518 = vmatprep.subr.bf16.mxu0 0
        %1519 = vmatpush1.bf16.msra.mxu0 0
        %1520 = vmatprep.subr.bf16.mxu0 0
        %1521 = vmatpush1.bf16.msra.mxu0 0
        %1522 = vmatprep.subr.bf16.mxu0 %v1502
        %1523 = vmatpush1.bf16.msra.mxu0 %v1501
        %1524 = vmatprep.subr.bf16.mxu0 %v1500
        %1525 = vmatpush1.bf16.msra.mxu0 %v1499
        %1526 = vmatprep.subr.bf16.mxu0 %v1498
        %1527 = vmatpush1.bf16.msra.mxu0 %v1497
        %1528 = vmatprep.subr.bf16.mxu0 %v1496
        %1529 = vmatpush1.bf16.msra.mxu0 %v1495
        %1530 = vmatprep.subr.bf16.mxu0 0
        %1531 = vmatpush2.bf16.msra.mxu0 0
        %1532 = vmatprep.subr.bf16.mxu0 0
        %1533 = vmatpush2.bf16.msra.mxu0 0
        %1534 = vmatprep.subr.bf16.mxu0 0
        %1535 = vmatpush2.bf16.msra.mxu0 0
        %1536 = vmatprep.subr.bf16.mxu0 0
        %1537 = vmatpush2.bf16.msra.mxu0 0
        %1538 = vmatprep.subr.bf16.mxu0 0
        %1539 = vmatpush2.bf16.msra.mxu0 0
        %1540 = vmatprep.subr.bf16.mxu0 0
        %1541 = vmatpush2.bf16.msra.mxu0 0
        %1542 = vmatprep.subr.bf16.mxu0 0
        %1543 = vmatpush2.bf16.msra.mxu0 0
        %1544 = vmatprep.subr.bf16.mxu0 0
        %1545 = vmatpush2.bf16.msra.mxu0 0
        %1546 = vmatprep.mubr.bf16.mxu0 0
        %1547 = vmatmul.mubr.bf16.gmra.mxu0 %v1512
        %v1548 = vpop.f32.mrf.mxu0
        %v1549 = vadd.f32 0.0, %v1548
        %v1550 = vpop.f32.mrf.mxu0
        %v1551 = vadd.f32 0.0, %v1550
        %v1552 = vpop.f32.mrf.mxu0
        %v1553 = vpop.f32.mrf.mxu0
        %1554 = vdwg.mxu0
        %v1563 = vunpack.c.l.b16 %v1341
        %v1564 = vunpack.c.h.b16 %v1341
        %v1565 = vunpack.c.l.b16 %v1342
        %v1566 = vunpack.c.h.b16 %v1342
        %v1567 = vunpack.c.l.b16 %v1343
        %v1568 = vunpack.c.h.b16 %v1343
        %v1569 = vunpack.c.l.b16 %v1344
        %v1570 = vunpack.c.h.b16 %v1344
        %v1571 = vunpack.c.l.b16 %v1345
        %v1572 = vunpack.c.h.b16 %v1345
        %v1573 = vunpack.c.l.b16 %v1346
        %v1574 = vunpack.c.h.b16 %v1346
        %v1575 = vunpack.c.l.b16 %v1347
        %v1576 = vunpack.c.h.b16 %v1347
        %v1577 = vunpack.c.l.b16 %v1348
        %v1578 = vunpack.c.h.b16 %v1348
        %v1579 = vpack.c.b16 %v1565, %v1563
        %v1580 = vpack.c.b16 %v1566, %v1564
        %v1581 = vpack.c.b16 %v1569, %v1567
        %v1582 = vpack.c.b16 %v1570, %v1568
        %v1583 = vpack.c.b16 %v1573, %v1571
        %v1584 = vpack.c.b16 %v1574, %v1572
        %v1585 = vpack.c.b16 %v1577, %v1575
        %v1586 = vpack.c.b16 %v1578, %v1576
        %v1596 = vsel %vm1233, %v1340, 0
        %1598 = vmatprep.subr.bf16.mxu0 0
        %1599 = vmatpush1.bf16.msra.mxu0 0
        %1600 = vmatprep.subr.bf16.mxu0 0
        %1601 = vmatpush1.bf16.msra.mxu0 0
        %1602 = vmatprep.subr.bf16.mxu0 0
        %1603 = vmatpush1.bf16.msra.mxu0 0
        %1604 = vmatprep.subr.bf16.mxu0 0
        %1605 = vmatpush1.bf16.msra.mxu0 0
        %1606 = vmatprep.subr.bf16.mxu0 %v1586
        %1607 = vmatpush1.bf16.msra.mxu0 %v1585
        %1608 = vmatprep.subr.bf16.mxu0 %v1584
        %1609 = vmatpush1.bf16.msra.mxu0 %v1583
        %1610 = vmatprep.subr.bf16.mxu0 %v1582
        %1611 = vmatpush1.bf16.msra.mxu0 %v1581
        %1612 = vmatprep.subr.bf16.mxu0 %v1580
        %1613 = vmatpush1.bf16.msra.mxu0 %v1579
        %1614 = vmatprep.subr.bf16.mxu0 0
        %1615 = vmatpush2.bf16.msra.mxu0 0
        %1616 = vmatprep.subr.bf16.mxu0 0
        %1617 = vmatpush2.bf16.msra.mxu0 0
        %1618 = vmatprep.subr.bf16.mxu0 0
        %1619 = vmatpush2.bf16.msra.mxu0 0
        %1620 = vmatprep.subr.bf16.mxu0 0
        %1621 = vmatpush2.bf16.msra.mxu0 0
        %1622 = vmatprep.subr.bf16.mxu0 0
        %1623 = vmatpush2.bf16.msra.mxu0 0
        %1624 = vmatprep.subr.bf16.mxu0 0
        %1625 = vmatpush2.bf16.msra.mxu0 0
        %1626 = vmatprep.subr.bf16.mxu0 0
        %1627 = vmatpush2.bf16.msra.mxu0 0
        %1628 = vmatprep.subr.bf16.mxu0 0
        %1629 = vmatpush2.bf16.msra.mxu0 0
        %1630 = vmatprep.mubr.bf16.mxu0 0
        %1631 = vmatmul.mubr.bf16.gmra.mxu0 %v1596
        %v1632 = vpop.f32.mrf.mxu0
        %v1633 = vadd.f32 %v1549, %v1632
        %v1634 = vpop.f32.mrf.mxu0
        %v1635 = vadd.f32 %v1551, %v1634
        %v1636 = vpop.f32.mrf.mxu0
        %v1637 = vpop.f32.mrf.mxu0
        %1638 = vdwg.mxu0
        %v1639 = vpack.c.bf16 %v1229, %v1229
        %v1640 = vpack.c.bf16 %v1183, %v1183
        %v1641 = vpack.c.bf16 %v1224, %v1224
        %v1643 = vsel %vm1233, %v1639, 0
        %v1646 = vsel %vm1233, %v1640, 0
        %1648 = vmatprep.subr.bf16.mxu0 0
        %1649 = vmatpush1.bf16.xpose.msra.mxu0 0
        %1650 = vmatprep.subr.bf16.mxu0 0
        %1651 = vmatpush1.bf16.xpose.msra.mxu0 0
        %1652 = vmatprep.subr.bf16.mxu0 0
        %1653 = vmatpush1.bf16.xpose.msra.mxu0 0
        %1654 = vmatprep.subr.bf16.mxu0 0
        %1655 = vmatpush1.bf16.xpose.msra.mxu0 0
        %1656 = vmatprep.subr.bf16.mxu0 0
        %1657 = vmatpush1.bf16.xpose.msra.mxu0 0
        %1658 = vmatprep.subr.bf16.mxu0 0
        %1659 = vmatpush1.bf16.xpose.msra.mxu0 0
        %1660 = vmatprep.subr.bf16.mxu0 0
        %1661 = vmatpush1.bf16.xpose.msra.mxu0 0
        %1662 = vmatprep.subr.bf16.mxu0 0
        %1663 = vmatpush1.bf16.xpose.msra.mxu0 %v1646
        %1664 = vmatprep.subr.bf16.mxu0 0
        %1665 = vmatpush2.bf16.xpose.msra.mxu0 0
        %1666 = vmatprep.subr.bf16.mxu0 0
        %1667 = vmatpush2.bf16.xpose.msra.mxu0 0
        %1668 = vmatprep.subr.bf16.mxu0 0
        %1669 = vmatpush2.bf16.xpose.msra.mxu0 0
        %1670 = vmatprep.subr.bf16.mxu0 0
        %1671 = vmatpush2.bf16.xpose.msra.mxu0 0
        %1672 = vmatprep.subr.bf16.mxu0 0
        %1673 = vmatpush2.bf16.xpose.msra.mxu0 0
        %1674 = vmatprep.subr.bf16.mxu0 0
        %1675 = vmatpush2.bf16.xpose.msra.mxu0 0
        %1676 = vmatprep.subr.bf16.mxu0 0
        %1677 = vmatpush2.bf16.xpose.msra.mxu0 0
        %1678 = vmatprep.subr.bf16.mxu0 0
        %1679 = vmatpush2.bf16.xpose.msra.mxu0 0
        %1680 = vmatprep.mubr.bf16.mxu0 0
        %1681 = vmatmul.mubr.bf16.gmra.mxu0 %v1643
        %v1682 = vpop.f32.mrf.mxu0
        %v1683 = vadd.f32 0.0, %v1682
        %v1684 = vpop.f32.mrf.mxu0
        %v1685 = vpop.f32.mrf.mxu0
        %v1686 = vpop.f32.mrf.mxu0
        %1687 = vdwg.mxu0
        %v1688 = vsel %vm1280, %v1683, -inf
        %1689 = vmax.xlane.f32.xlu0 %v1688
        %v1690 = vpop.xlane.xlu0 %1689
        %v1691 = vsub.f32 %v1683, %v1690
        %v1692 = vmul.f32 %v1691, 1.442695
        %v1693 = vpow.pop %v1692
        %v1694 = vsel %vm1280, %v1693, 0.0
        %1695 = vadd.xlane.f32.xlu0 %v1694
        %v1696 = vpop.xlane.xlu0 %1695
        %v1697 = vrcp.pop %v1696
        %v1698 = vmul.f32 %v1693, %v1697
        %v1699 = vpack.c.bf16 %v1698, %v1698
        %v1701 = vsel %vm1280, %v1699, 0
        %v1704 = vsel %vm1296, %v1641, 0
        %1706 = vmatprep.subr.bf16.mxu0 0
        %1707 = vmatpush1.bf16.msra.mxu0 0
        %1708 = vmatprep.subr.bf16.mxu0 0
        %1709 = vmatpush1.bf16.msra.mxu0 0
        %1710 = vmatprep.subr.bf16.mxu0 0
        %1711 = vmatpush1.bf16.msra.mxu0 0
        %1712 = vmatprep.subr.bf16.mxu0 0
        %1713 = vmatpush1.bf16.msra.mxu0 0
        %1714 = vmatprep.subr.bf16.mxu0 0
        %1715 = vmatpush1.bf16.msra.mxu0 0
        %1716 = vmatprep.subr.bf16.mxu0 0
        %1717 = vmatpush1.bf16.msra.mxu0 0
        %1718 = vmatprep.subr.bf16.mxu0 0
        %1719 = vmatpush1.bf16.msra.mxu0 0
        %1720 = vmatprep.subr.bf16.mxu0 0
        %1721 = vmatpush1.bf16.msra.mxu0 %v1704
        %1722 = vmatprep.subr.bf16.mxu0 0
        %1723 = vmatpush2.bf16.msra.mxu0 0
        %1724 = vmatprep.subr.bf16.mxu0 0
        %1725 = vmatpush2.bf16.msra.mxu0 0
        %1726 = vmatprep.subr.bf16.mxu0 0
        %1727 = vmatpush2.bf16.msra.mxu0 0
        %1728 = vmatprep.subr.bf16.mxu0 0
        %1729 = vmatpush2.bf16.msra.mxu0 0
        %1730 = vmatprep.subr.bf16.mxu0 0
        %1731 = vmatpush2.bf16.msra.mxu0 0
        %1732 = vmatprep.subr.bf16.mxu0 0
        %1733 = vmatpush2.bf16.msra.mxu0 0
        %1734 = vmatprep.subr.bf16.mxu0 0
        %1735 = vmatpush2.bf16.msra.mxu0 0
        %1736 = vmatprep.subr.bf16.mxu0 0
        %1737 = vmatpush2.bf16.msra.mxu0 0
        %1738 = vmatprep.mubr.bf16.mxu0 0
        %1739 = vmatmul.mubr.bf16.gmra.mxu0 %v1701
        %v1740 = vpop.f32.mrf.mxu0
        %v1741 = vadd.f32 0.0, %v1740
        %v1742 = vpop.f32.mrf.mxu0
        %v1743 = vpop.f32.mrf.mxu0
        %v1744 = vpop.f32.mrf.mxu0
        %1745 = vdwg.mxu0
        %v1746 = vpack.c.bf16 %v1741, %v1741
        %v1747 = vld [vmem:[%s3 + $0x80] sm:$0xff]
        %v1748 = vld [vmem:[%s3 + $0x88] sm:$0xff]
        %v1749 = vld [vmem:[%s3 + $0x90] sm:$0xff]
        %v1750 = vld [vmem:[%s3 + $0x98] sm:$0xff]
        %v1751 = vld [vmem:[%s3 + $0xa0] sm:$0xff]
        %v1752 = vld [vmem:[%s3 + $0xa8] sm:$0xff]
        %v1753 = vld [vmem:[%s3 + $0xb0] sm:$0xff]
        %v1754 = vld [vmem:[%s3 + $0xb8] sm:$0xff]
        %v1763 = vunpack.c.l.b16 %v1747
        %v1764 = vunpack.c.h.b16 %v1747
        %v1765 = vunpack.c.l.b16 %v1748
        %v1766 = vunpack.c.h.b16 %v1748
        %v1767 = vunpack.c.l.b16 %v1749
        %v1768 = vunpack.c.h.b16 %v1749
        %v1769 = vunpack.c.l.b16 %v1750
        %v1770 = vunpack.c.h.b16 %v1750
        %v1771 = vunpack.c.l.b16 %v1751
        %v1772 = vunpack.c.h.b16 %v1751
        %v1773 = vunpack.c.l.b16 %v1752
        %v1774 = vunpack.c.h.b16 %v1752
        %v1775 = vunpack.c.l.b16 %v1753
        %v1776 = vunpack.c.h.b16 %v1753
        %v1777 = vunpack.c.l.b16 %v1754
        %v1778 = vunpack.c.h.b16 %v1754
        %v1779 = vpack.c.b16 %v1765, %v1763
        %v1780 = vpack.c.b16 %v1766, %v1764
        %v1781 = vpack.c.b16 %v1769, %v1767
        %v1782 = vpack.c.b16 %v1770, %v1768
        %v1783 = vpack.c.b16 %v1773, %v1771
        %v1784 = vpack.c.b16 %v1774, %v1772
        %v1785 = vpack.c.b16 %v1777, %v1775
        %v1786 = vpack.c.b16 %v1778, %v1776
        %v1796 = vsel %vm1233, %v1746, 0
        %1798 = vmatprep.subr.bf16.mxu0 0
        %1799 = vmatpush1.bf16.msra.mxu0 0
        %1800 = vmatprep.subr.bf16.mxu0 0
        %1801 = vmatpush1.bf16.msra.mxu0 0
        %1802 = vmatprep.subr.bf16.mxu0 0
        %1803 = vmatpush1.bf16.msra.mxu0 0
        %1804 = vmatprep.subr.bf16.mxu0 0
        %1805 = vmatpush1.bf16.msra.mxu0 0
        %1806 = vmatprep.subr.bf16.mxu0 %v1786
        %1807 = vmatpush1.bf16.msra.mxu0 %v1785
        %1808 = vmatprep.subr.bf16.mxu0 %v1784
        %1809 = vmatpush1.bf16.msra.mxu0 %v1783
        %1810 = vmatprep.subr.bf16.mxu0 %v1782
        %1811 = vmatpush1.bf16.msra.mxu0 %v1781
        %1812 = vmatprep.subr.bf16.mxu0 %v1780
        %1813 = vmatpush1.bf16.msra.mxu0 %v1779
        %1814 = vmatprep.subr.bf16.mxu0 0
        %1815 = vmatpush2.bf16.msra.mxu0 0
        %1816 = vmatprep.subr.bf16.mxu0 0
        %1817 = vmatpush2.bf16.msra.mxu0 0
        %1818 = vmatprep.subr.bf16.mxu0 0
        %1819 = vmatpush2.bf16.msra.mxu0 0
        %1820 = vmatprep.subr.bf16.mxu0 0
        %1821 = vmatpush2.bf16.msra.mxu0 0
        %1822 = vmatprep.subr.bf16.mxu0 0
        %1823 = vmatpush2.bf16.msra.mxu0 0
        %1824 = vmatprep.subr.bf16.mxu0 0
        %1825 = vmatpush2.bf16.msra.mxu0 0
        %1826 = vmatprep.subr.bf16.mxu0 0
        %1827 = vmatpush2.bf16.msra.mxu0 0
        %1828 = vmatprep.subr.bf16.mxu0 0
        %1829 = vmatpush2.bf16.msra.mxu0 0
        %1830 = vmatprep.mubr.bf16.mxu0 0
        %1831 = vmatmul.mubr.bf16.gmra.mxu0 %v1796
        %v1832 = vpop.f32.mrf.mxu0
        %v1833 = vadd.f32 0.0, %v1832
        %v1834 = vpop.f32.mrf.mxu0
        %v1835 = vadd.f32 0.0, %v1834
        %v1836 = vpop.f32.mrf.mxu0
        %v1837 = vpop.f32.mrf.mxu0
        %1838 = vdwg.mxu0
        %v1839 = vadd.f32 %v1633, %v1833
        %v1840 = vadd.f32 %v1635, %v1835
        %1842 = vrot.lane.b32.xlu0 %v1639, 64
        %v1843 = vpop.permute.xlu0 %1842
        %1845 = vrot.lane.b32.xlu0 %v1640, 64
        %v1846 = vpop.permute.xlu0 %1845
        %v1848 = vsel %vm1233, %v1843, 0
        %v1851 = vsel %vm1233, %v1846, 0
        %1853 = vmatprep.subr.bf16.mxu0 0
        %1854 = vmatpush1.bf16.xpose.msra.mxu0 0
        %1855 = vmatprep.subr.bf16.mxu0 0
        %1856 = vmatpush1.bf16.xpose.msra.mxu0 0
        %1857 = vmatprep.subr.bf16.mxu0 0
        %1858 = vmatpush1.bf16.xpose.msra.mxu0 0
        %1859 = vmatprep.subr.bf16.mxu0 0
        %1860 = vmatpush1.bf16.xpose.msra.mxu0 0
        %1861 = vmatprep.subr.bf16.mxu0 0
        %1862 = vmatpush1.bf16.xpose.msra.mxu0 0
        %1863 = vmatprep.subr.bf16.mxu0 0
        %1864 = vmatpush1.bf16.xpose.msra.mxu0 0
        %1865 = vmatprep.subr.bf16.mxu0 0
        %1866 = vmatpush1.bf16.xpose.msra.mxu0 0
        %1867 = vmatprep.subr.bf16.mxu0 0
        %1868 = vmatpush1.bf16.xpose.msra.mxu0 %v1851
        %1869 = vmatprep.subr.bf16.mxu0 0
        %1870 = vmatpush2.bf16.xpose.msra.mxu0 0
        %1871 = vmatprep.subr.bf16.mxu0 0
        %1872 = vmatpush2.bf16.xpose.msra.mxu0 0
        %1873 = vmatprep.subr.bf16.mxu0 0
        %1874 = vmatpush2.bf16.xpose.msra.mxu0 0
        %1875 = vmatprep.subr.bf16.mxu0 0
        %1876 = vmatpush2.bf16.xpose.msra.mxu0 0
        %1877 = vmatprep.subr.bf16.mxu0 0
        %1878 = vmatpush2.bf16.xpose.msra.mxu0 0
        %1879 = vmatprep.subr.bf16.mxu0 0
        %1880 = vmatpush2.bf16.xpose.msra.mxu0 0
        %1881 = vmatprep.subr.bf16.mxu0 0
        %1882 = vmatpush2.bf16.xpose.msra.mxu0 0
        %1883 = vmatprep.subr.bf16.mxu0 0
        %1884 = vmatpush2.bf16.xpose.msra.mxu0 0
        %1885 = vmatprep.mubr.bf16.mxu0 0
        %1886 = vmatmul.mubr.bf16.gmra.mxu0 %v1848
        %v1887 = vpop.f32.mrf.mxu0
        %v1888 = vadd.f32 0.0, %v1887
        %v1889 = vpop.f32.mrf.mxu0
        %v1890 = vpop.f32.mrf.mxu0
        %v1891 = vpop.f32.mrf.mxu0
        %1892 = vdwg.mxu0
        %v1893 = vsel %vm1280, %v1888, -inf
        %1894 = vmax.xlane.f32.xlu0 %v1893
        %v1895 = vpop.xlane.xlu0 %1894
        %v1896 = vsub.f32 %v1888, %v1895
        %v1897 = vmul.f32 %v1896, 1.442695
        %v1898 = vpow.pop %v1897
        %v1899 = vsel %vm1280, %v1898, 0.0
        %1900 = vadd.xlane.f32.xlu0 %v1899
        %v1901 = vpop.xlane.xlu0 %1900
        %v1902 = vrcp.pop %v1901
        %v1903 = vmul.f32 %v1898, %v1902
        %v1904 = vpack.c.bf16 %v1903, %v1903
        %1906 = vrot.lane.b32.xlu0 %v1641, 64
        %v1907 = vpop.permute.xlu0 %1906
        %v1909 = vsel %vm1280, %v1904, 0
        %v1912 = vsel %vm1296, %v1907, 0
        %1914 = vmatprep.subr.bf16.mxu0 0
        %1915 = vmatpush1.bf16.msra.mxu0 0
        %1916 = vmatprep.subr.bf16.mxu0 0
        %1917 = vmatpush1.bf16.msra.mxu0 0
        %1918 = vmatprep.subr.bf16.mxu0 0
        %1919 = vmatpush1.bf16.msra.mxu0 0
        %1920 = vmatprep.subr.bf16.mxu0 0
        %1921 = vmatpush1.bf16.msra.mxu0 0
        %1922 = vmatprep.subr.bf16.mxu0 0
        %1923 = vmatpush1.bf16.msra.mxu0 0
        %1924 = vmatprep.subr.bf16.mxu0 0
        %1925 = vmatpush1.bf16.msra.mxu0 0
        %1926 = vmatprep.subr.bf16.mxu0 0
        %1927 = vmatpush1.bf16.msra.mxu0 0
        %1928 = vmatprep.subr.bf16.mxu0 0
        %1929 = vmatpush1.bf16.msra.mxu0 %v1912
        %1930 = vmatprep.subr.bf16.mxu0 0
        %1931 = vmatpush2.bf16.msra.mxu0 0
        %1932 = vmatprep.subr.bf16.mxu0 0
        %1933 = vmatpush2.bf16.msra.mxu0 0
        %1934 = vmatprep.subr.bf16.mxu0 0
        %1935 = vmatpush2.bf16.msra.mxu0 0
        %1936 = vmatprep.subr.bf16.mxu0 0
        %1937 = vmatpush2.bf16.msra.mxu0 0
        %1938 = vmatprep.subr.bf16.mxu0 0
        %1939 = vmatpush2.bf16.msra.mxu0 0
        %1940 = vmatprep.subr.bf16.mxu0 0
        %1941 = vmatpush2.bf16.msra.mxu0 0
        %1942 = vmatprep.subr.bf16.mxu0 0
        %1943 = vmatpush2.bf16.msra.mxu0 0
        %1944 = vmatprep.subr.bf16.mxu0 0
        %1945 = vmatpush2.bf16.msra.mxu0 0
        %1946 = vmatprep.mubr.bf16.mxu0 0
        %1947 = vmatmul.mubr.bf16.gmra.mxu0 %v1909
        %v1948 = vpop.f32.mrf.mxu0
        %v1949 = vadd.f32 0.0, %v1948
        %v1950 = vpop.f32.mrf.mxu0
        %v1951 = vpop.f32.mrf.mxu0
        %v1952 = vpop.f32.mrf.mxu0
        %1953 = vdwg.mxu0
        %v1954 = vpack.c.bf16 %v1949, %v1949
        %v1955 = vld [vmem:[%s3 + $0xc0] sm:$0xff]
        %v1956 = vld [vmem:[%s3 + $0xc8] sm:$0xff]
        %v1957 = vld [vmem:[%s3 + $0xd0] sm:$0xff]
        %v1958 = vld [vmem:[%s3 + $0xd8] sm:$0xff]
        %v1959 = vld [vmem:[%s3 + $0xe0] sm:$0xff]
        %v1960 = vld [vmem:[%s3 + $0xe8] sm:$0xff]
        %v1961 = vld [vmem:[%s3 + $0xf0] sm:$0xff]
        %v1962 = vld [vmem:[%s3 + $0xf8] sm:$0xff]
        %v1971 = vunpack.c.l.b16 %v1955
        %v1972 = vunpack.c.h.b16 %v1955
        %v1973 = vunpack.c.l.b16 %v1956
        %v1974 = vunpack.c.h.b16 %v1956
        %v1975 = vunpack.c.l.b16 %v1957
        %v1976 = vunpack.c.h.b16 %v1957
        %v1977 = vunpack.c.l.b16 %v1958
        %v1978 = vunpack.c.h.b16 %v1958
        %v1979 = vunpack.c.l.b16 %v1959
        %v1980 = vunpack.c.h.b16 %v1959
        %v1981 = vunpack.c.l.b16 %v1960
        %v1982 = vunpack.c.h.b16 %v1960
        %v1983 = vunpack.c.l.b16 %v1961
        %v1984 = vunpack.c.h.b16 %v1961
        %v1985 = vunpack.c.l.b16 %v1962
        %v1986 = vunpack.c.h.b16 %v1962
        %v1987 = vpack.c.b16 %v1973, %v1971
        %v1988 = vpack.c.b16 %v1974, %v1972
        %v1989 = vpack.c.b16 %v1977, %v1975
        %v1990 = vpack.c.b16 %v1978, %v1976
        %v1991 = vpack.c.b16 %v1981, %v1979
        %v1992 = vpack.c.b16 %v1982, %v1980
        %v1993 = vpack.c.b16 %v1985, %v1983
        %v1994 = vpack.c.b16 %v1986, %v1984
        %v2004 = vsel %vm1233, %v1954, 0
        %2006 = vmatprep.subr.bf16.mxu0 0
        %2007 = vmatpush1.bf16.msra.mxu0 0
        %2008 = vmatprep.subr.bf16.mxu0 0
        %2009 = vmatpush1.bf16.msra.mxu0 0
        %2010 = vmatprep.subr.bf16.mxu0 0
        %2011 = vmatpush1.bf16.msra.mxu0 0
        %2012 = vmatprep.subr.bf16.mxu0 0
        %2013 = vmatpush1.bf16.msra.mxu0 0
        %2014 = vmatprep.subr.bf16.mxu0 %v1994
        %2015 = vmatpush1.bf16.msra.mxu0 %v1993
        %2016 = vmatprep.subr.bf16.mxu0 %v1992
        %2017 = vmatpush1.bf16.msra.mxu0 %v1991
        %2018 = vmatprep.subr.bf16.mxu0 %v1990
        %2019 = vmatpush1.bf16.msra.mxu0 %v1989
        %2020 = vmatprep.subr.bf16.mxu0 %v1988
        %2021 = vmatpush1.bf16.msra.mxu0 %v1987
        %2022 = vmatprep.subr.bf16.mxu0 0
        %2023 = vmatpush2.bf16.msra.mxu0 0
        %2024 = vmatprep.subr.bf16.mxu0 0
        %2025 = vmatpush2.bf16.msra.mxu0 0
        %2026 = vmatprep.subr.bf16.mxu0 0
        %2027 = vmatpush2.bf16.msra.mxu0 0
        %2028 = vmatprep.subr.bf16.mxu0 0
        %2029 = vmatpush2.bf16.msra.mxu0 0
        %2030 = vmatprep.subr.bf16.mxu0 0
        %2031 = vmatpush2.bf16.msra.mxu0 0
        %2032 = vmatprep.subr.bf16.mxu0 0
        %2033 = vmatpush2.bf16.msra.mxu0 0
        %2034 = vmatprep.subr.bf16.mxu0 0
        %2035 = vmatpush2.bf16.msra.mxu0 0
        %2036 = vmatprep.subr.bf16.mxu0 0
        %2037 = vmatpush2.bf16.msra.mxu0 0
        %2038 = vmatprep.mubr.bf16.mxu0 0
        %2039 = vmatmul.mubr.bf16.gmra.mxu0 %v2004
        %v2040 = vpop.f32.mrf.mxu0
        %v2041 = vadd.f32 0.0, %v2040
        %v2042 = vpop.f32.mrf.mxu0
        %v2043 = vadd.f32 0.0, %v2042
        %v2044 = vpop.f32.mrf.mxu0
        %v2045 = vpop.f32.mrf.mxu0
        %2046 = vdwg.mxu0
        %v2047 = vadd.f32 %v1839, %v2041
        %v2048 = vadd.f32 %v1840, %v2043
        %v2049 = vld [vmem:[%s4] sm:$0x3]
        %v2051 = vlaneseq
        %v2052 = vshrl.u32 %v2051, 7
        %v2053 = vsub.s32 0, %v2052
        %v2054 = vrot.slane %v2049, %v2053
        %v2055 = vlaneseq
        %v2056 = vshrl.u32 %v2055, 7
        %v2057 = vsub.s32 1, %v2056
        %v2058 = vrot.slane %v2049, %v2057
        %v2061 = vadd.f32 %v2047, %v2054
        %v2062 = vadd.f32 %v2048, %v2058
        %v2063 = vadd.f32 %v493, %v2061
        %v2064 = vadd.f32 %v494, %v2062
        %v2065 = vld [vmem:[%s5] sm:$0x3]
        %v2066 = vld [vmem:[%s6] sm:$0x3]
        %v2067 = vadd.f32 %v2063, %v2064
        %2068 = vadd.xlane.f32.xlu0 %v2067
        %v2069 = vpop.xlane.xlu0 %2068
        %v2070 = vrcp.pop 256.0
        %v2071 = vmul.f32 %v2069, %v2070
        %v2072 = vsub.f32 %v2063, %v2071
        %v2073 = vsub.f32 %v2064, %v2071
        %v2074 = vmul.f32 %v2072, %v2072
        %v2075 = vmul.f32 %v2073, %v2073
        %v2076 = vadd.f32 %v2074, %v2075
        %2077 = vadd.xlane.f32.xlu0 %v2076
        %v2078 = vpop.xlane.xlu0 %2077
        %v2079 = vmul.f32 %v2078, %v2070
        %v2080 = vadd.f32 %v2079, 1e-05
        %v2081 = vrsqrt.pop %v2080
        %v2082 = vmul.f32 %v2072, %v2081
        %v2083 = vmul.f32 %v2073, %v2081
        %v2085 = vlaneseq
        %v2086 = vshrl.u32 %v2085, 7
        %v2087 = vsub.s32 0, %v2086
        %v2088 = vrot.slane %v2065, %v2087
        %v2089 = vlaneseq
        %v2090 = vshrl.u32 %v2089, 7
        %v2091 = vsub.s32 1, %v2090
        %v2092 = vrot.slane %v2065, %v2091
        %v2095 = vmul.f32 %v2082, %v2088
        %v2096 = vmul.f32 %v2083, %v2092
        %v2098 = vlaneseq
        %v2099 = vshrl.u32 %v2098, 7
        %v2100 = vsub.s32 0, %v2099
        %v2101 = vrot.slane %v2066, %v2100
        %v2102 = vlaneseq
        %v2103 = vshrl.u32 %v2102, 7
        %v2104 = vsub.s32 1, %v2103
        %v2105 = vrot.slane %v2066, %v2104
        %v2108 = vadd.f32 %v2095, %v2101
        %v2109 = vadd.f32 %v2096, %v2105
        %v2110 = vpack.c.bf16 %v2108, %v2108
        %v2111 = vpack.c.bf16 %v2109, %v2109
        %v2112 = vld [vmem:[%s7] sm:$0xff]
        %v2113 = vld [vmem:[%s7 + $0x8] sm:$0xff]
        %v2114 = vld [vmem:[%s7 + $0x10] sm:$0xff]
        %v2115 = vld [vmem:[%s7 + $0x18] sm:$0xff]
        %v2116 = vld [vmem:[%s7 + $0x20] sm:$0xff]
        %v2117 = vld [vmem:[%s7 + $0x28] sm:$0xff]
        %v2118 = vld [vmem:[%s7 + $0x30] sm:$0xff]
        %v2119 = vld [vmem:[%s7 + $0x38] sm:$0xff]
        %v2120 = vld [vmem:[%s7 + $0x40] sm:$0xff]
        %v2121 = vld [vmem:[%s7 + $0x48] sm:$0xff]
        %v2122 = vld [vmem:[%s7 + $0x50] sm:$0xff]
        %v2123 = vld [vmem:[%s7 + $0x58] sm:$0xff]
        %v2124 = vld [vmem:[%s7 + $0x60] sm:$0xff]
        %v2125 = vld [vmem:[%s7 + $0x68] sm:$0xff]
        %v2126 = vld [vmem:[%s7 + $0x70] sm:$0xff]
        %v2127 = vld [vmem:[%s7 + $0x78] sm:$0xff]
        %v2128 = vld [vmem:[%s7 + $0x80] sm:$0xff]
        %v2129 = vld [vmem:[%s7 + $0x88] sm:$0xff]
        %v2130 = vld [vmem:[%s7 + $0x90] sm:$0xff]
        %v2131 = vld [vmem:[%s7 + $0x98] sm:$0xff]
        %v2132 = vld [vmem:[%s7 + $0xa0] sm:$0xff]
        %v2133 = vld [vmem:[%s7 + $0xa8] sm:$0xff]
        %v2134 = vld [vmem:[%s7 + $0xb0] sm:$0xff]
        %v2135 = vld [vmem:[%s7 + $0xb8] sm:$0xff]
        %v2136 = vld [vmem:[%s7 + $0xc0] sm:$0xff]
        %v2137 = vld [vmem:[%s7 + $0xc8] sm:$0xff]
        %v2138 = vld [vmem:[%s7 + $0xd0] sm:$0xff]
        %v2139 = vld [vmem:[%s7 + $0xd8] sm:$0xff]
        %v2140 = vld [vmem:[%s7 + $0xe0] sm:$0xff]
        %v2141 = vld [vmem:[%s7 + $0xe8] sm:$0xff]
        %v2142 = vld [vmem:[%s7 + $0xf0] sm:$0xff]
        %v2143 = vld [vmem:[%s7 + $0xf8] sm:$0xff]
        %v2144 = vld [vmem:[%s7 + $0x100] sm:$0xff]
        %v2145 = vld [vmem:[%s7 + $0x108] sm:$0xff]
        %v2146 = vld [vmem:[%s7 + $0x110] sm:$0xff]
        %v2147 = vld [vmem:[%s7 + $0x118] sm:$0xff]
        %v2148 = vld [vmem:[%s7 + $0x120] sm:$0xff]
        %v2149 = vld [vmem:[%s7 + $0x128] sm:$0xff]
        %v2150 = vld [vmem:[%s7 + $0x130] sm:$0xff]
        %v2151 = vld [vmem:[%s7 + $0x138] sm:$0xff]
        %v2152 = vld [vmem:[%s7 + $0x140] sm:$0xff]
        %v2153 = vld [vmem:[%s7 + $0x148] sm:$0xff]
        %v2154 = vld [vmem:[%s7 + $0x150] sm:$0xff]
        %v2155 = vld [vmem:[%s7 + $0x158] sm:$0xff]
        %v2156 = vld [vmem:[%s7 + $0x160] sm:$0xff]
        %v2157 = vld [vmem:[%s7 + $0x168] sm:$0xff]
        %v2158 = vld [vmem:[%s7 + $0x170] sm:$0xff]
        %v2159 = vld [vmem:[%s7 + $0x178] sm:$0xff]
        %v2160 = vld [vmem:[%s7 + $0x180] sm:$0xff]
        %v2161 = vld [vmem:[%s7 + $0x188] sm:$0xff]
        %v2162 = vld [vmem:[%s7 + $0x190] sm:$0xff]
        %v2163 = vld [vmem:[%s7 + $0x198] sm:$0xff]
        %v2164 = vld [vmem:[%s7 + $0x1a0] sm:$0xff]
        %v2165 = vld [vmem:[%s7 + $0x1a8] sm:$0xff]
        %v2166 = vld [vmem:[%s7 + $0x1b0] sm:$0xff]
        %v2167 = vld [vmem:[%s7 + $0x1b8] sm:$0xff]
        %v2168 = vld [vmem:[%s7 + $0x1c0] sm:$0xff]
        %v2169 = vld [vmem:[%s7 + $0x1c8] sm:$0xff]
        %v2170 = vld [vmem:[%s7 + $0x1d0] sm:$0xff]
        %v2171 = vld [vmem:[%s7 + $0x1d8] sm:$0xff]
        %v2172 = vld [vmem:[%s7 + $0x1e0] sm:$0xff]
        %v2173 = vld [vmem:[%s7 + $0x1e8] sm:$0xff]
        %v2174 = vld [vmem:[%s7 + $0x1f0] sm:$0xff]
        %v2175 = vld [vmem:[%s7 + $0x1f8] sm:$0xff]
        %v2176 = vld [vmem:[%s7 + $0x200] sm:$0xff]
        %v2177 = vld [vmem:[%s7 + $0x208] sm:$0xff]
        %v2178 = vld [vmem:[%s7 + $0x210] sm:$0xff]
        %v2179 = vld [vmem:[%s7 + $0x218] sm:$0xff]
        %v2180 = vld [vmem:[%s7 + $0x220] sm:$0xff]
        %v2181 = vld [vmem:[%s7 + $0x228] sm:$0xff]
        %v2182 = vld [vmem:[%s7 + $0x230] sm:$0xff]
        %v2183 = vld [vmem:[%s7 + $0x238] sm:$0xff]
        %v2184 = vld [vmem:[%s7 + $0x240] sm:$0xff]
        %v2185 = vld [vmem:[%s7 + $0x248] sm:$0xff]
        %v2186 = vld [vmem:[%s7 + $0x250] sm:$0xff]
        %v2187 = vld [vmem:[%s7 + $0x258] sm:$0xff]
        %v2188 = vld [vmem:[%s7 + $0x260] sm:$0xff]
        %v2189 = vld [vmem:[%s7 + $0x268] sm:$0xff]
        %v2190 = vld [vmem:[%s7 + $0x270] sm:$0xff]
        %v2191 = vld [vmem:[%s7 + $0x278] sm:$0xff]
        %v2192 = vld [vmem:[%s7 + $0x280] sm:$0xff]
        %v2193 = vld [vmem:[%s7 + $0x288] sm:$0xff]
        %v2194 = vld [vmem:[%s7 + $0x290] sm:$0xff]
        %v2195 = vld [vmem:[%s7 + $0x298] sm:$0xff]
        %v2196 = vld [vmem:[%s7 + $0x2a0] sm:$0xff]
        %v2197 = vld [vmem:[%s7 + $0x2a8] sm:$0xff]
        %v2198 = vld [vmem:[%s7 + $0x2b0] sm:$0xff]
        %v2199 = vld [vmem:[%s7 + $0x2b8] sm:$0xff]
        %v2200 = vld [vmem:[%s7 + $0x2c0] sm:$0xff]
        %v2201 = vld [vmem:[%s7 + $0x2c8] sm:$0xff]
        %v2202 = vld [vmem:[%s7 + $0x2d0] sm:$0xff]
        %v2203 = vld [vmem:[%s7 + $0x2d8] sm:$0xff]
        %v2204 = vld [vmem:[%s7 + $0x2e0] sm:$0xff]
        %v2205 = vld [vmem:[%s7 + $0x2e8] sm:$0xff]
        %v2206 = vld [vmem:[%s7 + $0x2f0] sm:$0xff]
        %v2207 = vld [vmem:[%s7 + $0x2f8] sm:$0xff]
        %v2208 = vld [vmem:[%s7 + $0x300] sm:$0xff]
        %v2209 = vld [vmem:[%s7 + $0x308] sm:$0xff]
        %v2210 = vld [vmem:[%s7 + $0x310] sm:$0xff]
        %v2211 = vld [vmem:[%s7 + $0x318] sm:$0xff]
        %v2212 = vld [vmem:[%s7 + $0x320] sm:$0xff]
        %v2213 = vld [vmem:[%s7 + $0x328] sm:$0xff]
        %v2214 = vld [vmem:[%s7 + $0x330] sm:$0xff]
        %v2215 = vld [vmem:[%s7 + $0x338] sm:$0xff]
        %v2216 = vld [vmem:[%s7 + $0x340] sm:$0xff]
        %v2217 = vld [vmem:[%s7 + $0x348] sm:$0xff]
        %v2218 = vld [vmem:[%s7 + $0x350] sm:$0xff]
        %v2219 = vld [vmem:[%s7 + $0x358] sm:$0xff]
        %v2220 = vld [vmem:[%s7 + $0x360] sm:$0xff]
        %v2221 = vld [vmem:[%s7 + $0x368] sm:$0xff]
        %v2222 = vld [vmem:[%s7 + $0x370] sm:$0xff]
        %v2223 = vld [vmem:[%s7 + $0x378] sm:$0xff]
        %v2224 = vld [vmem:[%s7 + $0x380] sm:$0xff]
        %v2225 = vld [vmem:[%s7 + $0x388] sm:$0xff]
        %v2226 = vld [vmem:[%s7 + $0x390] sm:$0xff]
        %v2227 = vld [vmem:[%s7 + $0x398] sm:$0xff]
        %v2228 = vld [vmem:[%s7 + $0x3a0] sm:$0xff]
        %v2229 = vld [vmem:[%s7 + $0x3a8] sm:$0xff]
        %v2230 = vld [vmem:[%s7 + $0x3b0] sm:$0xff]
        %v2231 = vld [vmem:[%s7 + $0x3b8] sm:$0xff]
        %v2232 = vld [vmem:[%s7 + $0x3c0] sm:$0xff]
        %v2233 = vld [vmem:[%s7 + $0x3c8] sm:$0xff]
        %v2234 = vld [vmem:[%s7 + $0x3d0] sm:$0xff]
        %v2235 = vld [vmem:[%s7 + $0x3d8] sm:$0xff]
        %v2236 = vld [vmem:[%s7 + $0x3e0] sm:$0xff]
        %v2237 = vld [vmem:[%s7 + $0x3e8] sm:$0xff]
        %v2238 = vld [vmem:[%s7 + $0x3f0] sm:$0xff]
        %v2239 = vld [vmem:[%s7 + $0x3f8] sm:$0xff]
        %v2240 = vld [vmem:[%s8] sm:$0xff]
        %v2242 = vlaneseq
        %v2243 = vshrl.u32 %v2242, 7
        %v2244 = vsub.s32 0, %v2243
        %v2245 = vrot.slane %v2240, %v2244
        %v2246 = vlaneseq
        %v2247 = vshrl.u32 %v2246, 7
        %v2248 = vsub.s32 1, %v2247
        %v2249 = vrot.slane %v2240, %v2248
        %v2250 = vlaneseq
        %v2251 = vshrl.u32 %v2250, 7
        %v2252 = vsub.s32 2, %v2251
        %v2253 = vrot.slane %v2240, %v2252
        %v2254 = vlaneseq
        %v2255 = vshrl.u32 %v2254, 7
        %v2256 = vsub.s32 3, %v2255
        %v2257 = vrot.slane %v2240, %v2256
        %v2258 = vlaneseq
        %v2259 = vshrl.u32 %v2258, 7
        %v2260 = vsub.s32 4, %v2259
        %v2261 = vrot.slane %v2240, %v2260
        %v2262 = vlaneseq
        %v2263 = vshrl.u32 %v2262, 7
        %v2264 = vsub.s32 5, %v2263
        %v2265 = vrot.slane %v2240, %v2264
        %v2266 = vlaneseq
        %v2267 = vshrl.u32 %v2266, 7
        %v2268 = vsub.s32 6, %v2267
        %v2269 = vrot.slane %v2240, %v2268
        %v2270 = vlaneseq
        %v2271 = vshrl.u32 %v2270, 7
        %v2272 = vsub.s32 7, %v2271
        %v2273 = vrot.slane %v2240, %v2272
        %v2410 = vunpack.c.l.b16 %v2112
        %v2411 = vunpack.c.h.b16 %v2112
        %v2412 = vunpack.c.l.b16 %v2113
        %v2413 = vunpack.c.h.b16 %v2113
        %v2414 = vunpack.c.l.b16 %v2114
        %v2415 = vunpack.c.h.b16 %v2114
        %v2416 = vunpack.c.l.b16 %v2115
        %v2417 = vunpack.c.h.b16 %v2115
        %v2418 = vunpack.c.l.b16 %v2116
        %v2419 = vunpack.c.h.b16 %v2116
        %v2420 = vunpack.c.l.b16 %v2117
        %v2421 = vunpack.c.h.b16 %v2117
        %v2422 = vunpack.c.l.b16 %v2118
        %v2423 = vunpack.c.h.b16 %v2118
        %v2424 = vunpack.c.l.b16 %v2119
        %v2425 = vunpack.c.h.b16 %v2119
        %v2426 = vunpack.c.l.b16 %v2120
        %v2427 = vunpack.c.h.b16 %v2120
        %v2428 = vunpack.c.l.b16 %v2121
        %v2429 = vunpack.c.h.b16 %v2121
        %v2430 = vunpack.c.l.b16 %v2122
        %v2431 = vunpack.c.h.b16 %v2122
        %v2432 = vunpack.c.l.b16 %v2123
        %v2433 = vunpack.c.h.b16 %v2123
        %v2434 = vunpack.c.l.b16 %v2124
        %v2435 = vunpack.c.h.b16 %v2124
        %v2436 = vunpack.c.l.b16 %v2125
        %v2437 = vunpack.c.h.b16 %v2125
        %v2438 = vunpack.c.l.b16 %v2126
        %v2439 = vunpack.c.h.b16 %v2126
        %v2440 = vunpack.c.l.b16 %v2127
        %v2441 = vunpack.c.h.b16 %v2127
        %v2442 = vunpack.c.l.b16 %v2128
        %v2443 = vunpack.c.h.b16 %v2128
        %v2444 = vunpack.c.l.b16 %v2129
        %v2445 = vunpack.c.h.b16 %v2129
        %v2446 = vunpack.c.l.b16 %v2130
        %v2447 = vunpack.c.h.b16 %v2130
        %v2448 = vunpack.c.l.b16 %v2131
        %v2449 = vunpack.c.h.b16 %v2131
        %v2450 = vunpack.c.l.b16 %v2132
        %v2451 = vunpack.c.h.b16 %v2132
        %v2452 = vunpack.c.l.b16 %v2133
        %v2453 = vunpack.c.h.b16 %v2133
        %v2454 = vunpack.c.l.b16 %v2134
        %v2455 = vunpack.c.h.b16 %v2134
        %v2456 = vunpack.c.l.b16 %v2135
        %v2457 = vunpack.c.h.b16 %v2135
        %v2458 = vunpack.c.l.b16 %v2136
        %v2459 = vunpack.c.h.b16 %v2136
        %v2460 = vunpack.c.l.b16 %v2137
        %v2461 = vunpack.c.h.b16 %v2137
        %v2462 = vunpack.c.l.b16 %v2138
        %v2463 = vunpack.c.h.b16 %v2138
        %v2464 = vunpack.c.l.b16 %v2139
        %v2465 = vunpack.c.h.b16 %v2139
        %v2466 = vunpack.c.l.b16 %v2140
        %v2467 = vunpack.c.h.b16 %v2140
        %v2468 = vunpack.c.l.b16 %v2141
        %v2469 = vunpack.c.h.b16 %v2141
        %v2470 = vunpack.c.l.b16 %v2142
        %v2471 = vunpack.c.h.b16 %v2142
        %v2472 = vunpack.c.l.b16 %v2143
        %v2473 = vunpack.c.h.b16 %v2143
        %v2474 = vunpack.c.l.b16 %v2144
        %v2475 = vunpack.c.h.b16 %v2144
        %v2476 = vunpack.c.l.b16 %v2145
        %v2477 = vunpack.c.h.b16 %v2145
        %v2478 = vunpack.c.l.b16 %v2146
        %v2479 = vunpack.c.h.b16 %v2146
        %v2480 = vunpack.c.l.b16 %v2147
        %v2481 = vunpack.c.h.b16 %v2147
        %v2482 = vunpack.c.l.b16 %v2148
        %v2483 = vunpack.c.h.b16 %v2148
        %v2484 = vunpack.c.l.b16 %v2149
        %v2485 = vunpack.c.h.b16 %v2149
        %v2486 = vunpack.c.l.b16 %v2150
        %v2487 = vunpack.c.h.b16 %v2150
        %v2488 = vunpack.c.l.b16 %v2151
        %v2489 = vunpack.c.h.b16 %v2151
        %v2490 = vunpack.c.l.b16 %v2152
        %v2491 = vunpack.c.h.b16 %v2152
        %v2492 = vunpack.c.l.b16 %v2153
        %v2493 = vunpack.c.h.b16 %v2153
        %v2494 = vunpack.c.l.b16 %v2154
        %v2495 = vunpack.c.h.b16 %v2154
        %v2496 = vunpack.c.l.b16 %v2155
        %v2497 = vunpack.c.h.b16 %v2155
        %v2498 = vunpack.c.l.b16 %v2156
        %v2499 = vunpack.c.h.b16 %v2156
        %v2500 = vunpack.c.l.b16 %v2157
        %v2501 = vunpack.c.h.b16 %v2157
        %v2502 = vunpack.c.l.b16 %v2158
        %v2503 = vunpack.c.h.b16 %v2158
        %v2504 = vunpack.c.l.b16 %v2159
        %v2505 = vunpack.c.h.b16 %v2159
        %v2506 = vunpack.c.l.b16 %v2160
        %v2507 = vunpack.c.h.b16 %v2160
        %v2508 = vunpack.c.l.b16 %v2161
        %v2509 = vunpack.c.h.b16 %v2161
        %v2510 = vunpack.c.l.b16 %v2162
        %v2511 = vunpack.c.h.b16 %v2162
        %v2512 = vunpack.c.l.b16 %v2163
        %v2513 = vunpack.c.h.b16 %v2163
        %v2514 = vunpack.c.l.b16 %v2164
        %v2515 = vunpack.c.h.b16 %v2164
        %v2516 = vunpack.c.l.b16 %v2165
        %v2517 = vunpack.c.h.b16 %v2165
        %v2518 = vunpack.c.l.b16 %v2166
        %v2519 = vunpack.c.h.b16 %v2166
        %v2520 = vunpack.c.l.b16 %v2167
        %v2521 = vunpack.c.h.b16 %v2167
        %v2522 = vunpack.c.l.b16 %v2168
        %v2523 = vunpack.c.h.b16 %v2168
        %v2524 = vunpack.c.l.b16 %v2169
        %v2525 = vunpack.c.h.b16 %v2169
        %v2526 = vunpack.c.l.b16 %v2170
        %v2527 = vunpack.c.h.b16 %v2170
        %v2528 = vunpack.c.l.b16 %v2171
        %v2529 = vunpack.c.h.b16 %v2171
        %v2530 = vunpack.c.l.b16 %v2172
        %v2531 = vunpack.c.h.b16 %v2172
        %v2532 = vunpack.c.l.b16 %v2173
        %v2533 = vunpack.c.h.b16 %v2173
        %v2534 = vunpack.c.l.b16 %v2174
        %v2535 = vunpack.c.h.b16 %v2174
        %v2536 = vunpack.c.l.b16 %v2175
        %v2537 = vunpack.c.h.b16 %v2175
        %v2538 = vunpack.c.l.b16 %v2176
        %v2539 = vunpack.c.h.b16 %v2176
        %v2540 = vunpack.c.l.b16 %v2177
        %v2541 = vunpack.c.h.b16 %v2177
        %v2542 = vunpack.c.l.b16 %v2178
        %v2543 = vunpack.c.h.b16 %v2178
        %v2544 = vunpack.c.l.b16 %v2179
        %v2545 = vunpack.c.h.b16 %v2179
        %v2546 = vunpack.c.l.b16 %v2180
        %v2547 = vunpack.c.h.b16 %v2180
        %v2548 = vunpack.c.l.b16 %v2181
        %v2549 = vunpack.c.h.b16 %v2181
        %v2550 = vunpack.c.l.b16 %v2182
        %v2551 = vunpack.c.h.b16 %v2182
        %v2552 = vunpack.c.l.b16 %v2183
        %v2553 = vunpack.c.h.b16 %v2183
        %v2554 = vunpack.c.l.b16 %v2184
        %v2555 = vunpack.c.h.b16 %v2184
        %v2556 = vunpack.c.l.b16 %v2185
        %v2557 = vunpack.c.h.b16 %v2185
        %v2558 = vunpack.c.l.b16 %v2186
        %v2559 = vunpack.c.h.b16 %v2186
        %v2560 = vunpack.c.l.b16 %v2187
        %v2561 = vunpack.c.h.b16 %v2187
        %v2562 = vunpack.c.l.b16 %v2188
        %v2563 = vunpack.c.h.b16 %v2188
        %v2564 = vunpack.c.l.b16 %v2189
        %v2565 = vunpack.c.h.b16 %v2189
        %v2566 = vunpack.c.l.b16 %v2190
        %v2567 = vunpack.c.h.b16 %v2190
        %v2568 = vunpack.c.l.b16 %v2191
        %v2569 = vunpack.c.h.b16 %v2191
        %v2570 = vunpack.c.l.b16 %v2192
        %v2571 = vunpack.c.h.b16 %v2192
        %v2572 = vunpack.c.l.b16 %v2193
        %v2573 = vunpack.c.h.b16 %v2193
        %v2574 = vunpack.c.l.b16 %v2194
        %v2575 = vunpack.c.h.b16 %v2194
        %v2576 = vunpack.c.l.b16 %v2195
        %v2577 = vunpack.c.h.b16 %v2195
        %v2578 = vunpack.c.l.b16 %v2196
        %v2579 = vunpack.c.h.b16 %v2196
        %v2580 = vunpack.c.l.b16 %v2197
        %v2581 = vunpack.c.h.b16 %v2197
        %v2582 = vunpack.c.l.b16 %v2198
        %v2583 = vunpack.c.h.b16 %v2198
        %v2584 = vunpack.c.l.b16 %v2199
        %v2585 = vunpack.c.h.b16 %v2199
        %v2586 = vunpack.c.l.b16 %v2200
        %v2587 = vunpack.c.h.b16 %v2200
        %v2588 = vunpack.c.l.b16 %v2201
        %v2589 = vunpack.c.h.b16 %v2201
        %v2590 = vunpack.c.l.b16 %v2202
        %v2591 = vunpack.c.h.b16 %v2202
        %v2592 = vunpack.c.l.b16 %v2203
        %v2593 = vunpack.c.h.b16 %v2203
        %v2594 = vunpack.c.l.b16 %v2204
        %v2595 = vunpack.c.h.b16 %v2204
        %v2596 = vunpack.c.l.b16 %v2205
        %v2597 = vunpack.c.h.b16 %v2205
        %v2598 = vunpack.c.l.b16 %v2206
        %v2599 = vunpack.c.h.b16 %v2206
        %v2600 = vunpack.c.l.b16 %v2207
        %v2601 = vunpack.c.h.b16 %v2207
        %v2602 = vunpack.c.l.b16 %v2208
        %v2603 = vunpack.c.h.b16 %v2208
        %v2604 = vunpack.c.l.b16 %v2209
        %v2605 = vunpack.c.h.b16 %v2209
        %v2606 = vunpack.c.l.b16 %v2210
        %v2607 = vunpack.c.h.b16 %v2210
        %v2608 = vunpack.c.l.b16 %v2211
        %v2609 = vunpack.c.h.b16 %v2211
        %v2610 = vunpack.c.l.b16 %v2212
        %v2611 = vunpack.c.h.b16 %v2212
        %v2612 = vunpack.c.l.b16 %v2213
        %v2613 = vunpack.c.h.b16 %v2213
        %v2614 = vunpack.c.l.b16 %v2214
        %v2615 = vunpack.c.h.b16 %v2214
        %v2616 = vunpack.c.l.b16 %v2215
        %v2617 = vunpack.c.h.b16 %v2215
        %v2618 = vunpack.c.l.b16 %v2216
        %v2619 = vunpack.c.h.b16 %v2216
        %v2620 = vunpack.c.l.b16 %v2217
        %v2621 = vunpack.c.h.b16 %v2217
        %v2622 = vunpack.c.l.b16 %v2218
        %v2623 = vunpack.c.h.b16 %v2218
        %v2624 = vunpack.c.l.b16 %v2219
        %v2625 = vunpack.c.h.b16 %v2219
        %v2626 = vunpack.c.l.b16 %v2220
        %v2627 = vunpack.c.h.b16 %v2220
        %v2628 = vunpack.c.l.b16 %v2221
        %v2629 = vunpack.c.h.b16 %v2221
        %v2630 = vunpack.c.l.b16 %v2222
        %v2631 = vunpack.c.h.b16 %v2222
        %v2632 = vunpack.c.l.b16 %v2223
        %v2633 = vunpack.c.h.b16 %v2223
        %v2634 = vunpack.c.l.b16 %v2224
        %v2635 = vunpack.c.h.b16 %v2224
        %v2636 = vunpack.c.l.b16 %v2225
        %v2637 = vunpack.c.h.b16 %v2225
        %v2638 = vunpack.c.l.b16 %v2226
        %v2639 = vunpack.c.h.b16 %v2226
        %v2640 = vunpack.c.l.b16 %v2227
        %v2641 = vunpack.c.h.b16 %v2227
        %v2642 = vunpack.c.l.b16 %v2228
        %v2643 = vunpack.c.h.b16 %v2228
        %v2644 = vunpack.c.l.b16 %v2229
        %v2645 = vunpack.c.h.b16 %v2229
        %v2646 = vunpack.c.l.b16 %v2230
        %v2647 = vunpack.c.h.b16 %v2230
        %v2648 = vunpack.c.l.b16 %v2231
        %v2649 = vunpack.c.h.b16 %v2231
        %v2650 = vunpack.c.l.b16 %v2232
        %v2651 = vunpack.c.h.b16 %v2232
        %v2652 = vunpack.c.l.b16 %v2233
        %v2653 = vunpack.c.h.b16 %v2233
        %v2654 = vunpack.c.l.b16 %v2234
        %v2655 = vunpack.c.h.b16 %v2234
        %v2656 = vunpack.c.l.b16 %v2235
        %v2657 = vunpack.c.h.b16 %v2235
        %v2658 = vunpack.c.l.b16 %v2236
        %v2659 = vunpack.c.h.b16 %v2236
        %v2660 = vunpack.c.l.b16 %v2237
        %v2661 = vunpack.c.h.b16 %v2237
        %v2662 = vunpack.c.l.b16 %v2238
        %v2663 = vunpack.c.h.b16 %v2238
        %v2664 = vunpack.c.l.b16 %v2239
        %v2665 = vunpack.c.h.b16 %v2239
        %v2666 = vpack.c.b16 %v2418, %v2410
        %v2667 = vpack.c.b16 %v2419, %v2411
        %v2668 = vpack.c.b16 %v2420, %v2412
        %v2669 = vpack.c.b16 %v2421, %v2413
        %v2670 = vpack.c.b16 %v2422, %v2414
        %v2671 = vpack.c.b16 %v2423, %v2415
        %v2672 = vpack.c.b16 %v2424, %v2416
        %v2673 = vpack.c.b16 %v2425, %v2417
        %v2674 = vpack.c.b16 %v2434, %v2426
        %v2675 = vpack.c.b16 %v2435, %v2427
        %v2676 = vpack.c.b16 %v2436, %v2428
        %v2677 = vpack.c.b16 %v2437, %v2429
        %v2678 = vpack.c.b16 %v2438, %v2430
        %v2679 = vpack.c.b16 %v2439, %v2431
        %v2680 = vpack.c.b16 %v2440, %v2432
        %v2681 = vpack.c.b16 %v2441, %v2433
        %v2682 = vpack.c.b16 %v2450, %v2442
        %v2683 = vpack.c.b16 %v2451, %v2443
        %v2684 = vpack.c.b16 %v2452, %v2444
        %v2685 = vpack.c.b16 %v2453, %v2445
        %v2686 = vpack.c.b16 %v2454, %v2446
        %v2687 = vpack.c.b16 %v2455, %v2447
        %v2688 = vpack.c.b16 %v2456, %v2448
        %v2689 = vpack.c.b16 %v2457, %v2449
        %v2690 = vpack.c.b16 %v2466, %v2458
        %v2691 = vpack.c.b16 %v2467, %v2459
        %v2692 = vpack.c.b16 %v2468, %v2460
        %v2693 = vpack.c.b16 %v2469, %v2461
        %v2694 = vpack.c.b16 %v2470, %v2462
        %v2695 = vpack.c.b16 %v2471, %v2463
        %v2696 = vpack.c.b16 %v2472, %v2464
        %v2697 = vpack.c.b16 %v2473, %v2465
        %v2698 = vpack.c.b16 %v2482, %v2474
        %v2699 = vpack.c.b16 %v2483, %v2475
        %v2700 = vpack.c.b16 %v2484, %v2476
        %v2701 = vpack.c.b16 %v2485, %v2477
        %v2702 = vpack.c.b16 %v2486, %v2478
        %v2703 = vpack.c.b16 %v2487, %v2479
        %v2704 = vpack.c.b16 %v2488, %v2480
        %v2705 = vpack.c.b16 %v2489, %v2481
        %v2706 = vpack.c.b16 %v2498, %v2490
        %v2707 = vpack.c.b16 %v2499, %v2491
        %v2708 = vpack.c.b16 %v2500, %v2492
        %v2709 = vpack.c.b16 %v2501, %v2493
        %v2710 = vpack.c.b16 %v2502, %v2494
        %v2711 = vpack.c.b16 %v2503, %v2495
        %v2712 = vpack.c.b16 %v2504, %v2496
        %v2713 = vpack.c.b16 %v2505, %v2497
        %v2714 = vpack.c.b16 %v2514, %v2506
        %v2715 = vpack.c.b16 %v2515, %v2507
        %v2716 = vpack.c.b16 %v2516, %v2508
        %v2717 = vpack.c.b16 %v2517, %v2509
        %v2718 = vpack.c.b16 %v2518, %v2510
        %v2719 = vpack.c.b16 %v2519, %v2511
        %v2720 = vpack.c.b16 %v2520, %v2512
        %v2721 = vpack.c.b16 %v2521, %v2513
        %v2722 = vpack.c.b16 %v2530, %v2522
        %v2723 = vpack.c.b16 %v2531, %v2523
        %v2724 = vpack.c.b16 %v2532, %v2524
        %v2725 = vpack.c.b16 %v2533, %v2525
        %v2726 = vpack.c.b16 %v2534, %v2526
        %v2727 = vpack.c.b16 %v2535, %v2527
        %v2728 = vpack.c.b16 %v2536, %v2528
        %v2729 = vpack.c.b16 %v2537, %v2529
        %v2730 = vpack.c.b16 %v2546, %v2538
        %v2731 = vpack.c.b16 %v2547, %v2539
        %v2732 = vpack.c.b16 %v2548, %v2540
        %v2733 = vpack.c.b16 %v2549, %v2541
        %v2734 = vpack.c.b16 %v2550, %v2542
        %v2735 = vpack.c.b16 %v2551, %v2543
        %v2736 = vpack.c.b16 %v2552, %v2544
        %v2737 = vpack.c.b16 %v2553, %v2545
        %v2738 = vpack.c.b16 %v2562, %v2554
        %v2739 = vpack.c.b16 %v2563, %v2555
        %v2740 = vpack.c.b16 %v2564, %v2556
        %v2741 = vpack.c.b16 %v2565, %v2557
        %v2742 = vpack.c.b16 %v2566, %v2558
        %v2743 = vpack.c.b16 %v2567, %v2559
        %v2744 = vpack.c.b16 %v2568, %v2560
        %v2745 = vpack.c.b16 %v2569, %v2561
        %v2746 = vpack.c.b16 %v2578, %v2570
        %v2747 = vpack.c.b16 %v2579, %v2571
        %v2748 = vpack.c.b16 %v2580, %v2572
        %v2749 = vpack.c.b16 %v2581, %v2573
        %v2750 = vpack.c.b16 %v2582, %v2574
        %v2751 = vpack.c.b16 %v2583, %v2575
        %v2752 = vpack.c.b16 %v2584, %v2576
        %v2753 = vpack.c.b16 %v2585, %v2577
        %v2754 = vpack.c.b16 %v2594, %v2586
        %v2755 = vpack.c.b16 %v2595, %v2587
        %v2756 = vpack.c.b16 %v2596, %v2588
        %v2757 = vpack.c.b16 %v2597, %v2589
        %v2758 = vpack.c.b16 %v2598, %v2590
        %v2759 = vpack.c.b16 %v2599, %v2591
        %v2760 = vpack.c.b16 %v2600, %v2592
        %v2761 = vpack.c.b16 %v2601, %v2593
        %v2762 = vpack.c.b16 %v2610, %v2602
        %v2763 = vpack.c.b16 %v2611, %v2603
        %v2764 = vpack.c.b16 %v2612, %v2604
        %v2765 = vpack.c.b16 %v2613, %v2605
        %v2766 = vpack.c.b16 %v2614, %v2606
        %v2767 = vpack.c.b16 %v2615, %v2607
        %v2768 = vpack.c.b16 %v2616, %v2608
        %v2769 = vpack.c.b16 %v2617, %v2609
        %v2770 = vpack.c.b16 %v2626, %v2618
        %v2771 = vpack.c.b16 %v2627, %v2619
        %v2772 = vpack.c.b16 %v2628, %v2620
        %v2773 = vpack.c.b16 %v2629, %v2621
        %v2774 = vpack.c.b16 %v2630, %v2622
        %v2775 = vpack.c.b16 %v2631, %v2623
        %v2776 = vpack.c.b16 %v2632, %v2624
        %v2777 = vpack.c.b16 %v2633, %v2625
        %v2778 = vpack.c.b16 %v2642, %v2634
        %v2779 = vpack.c.b16 %v2643, %v2635
        %v2780 = vpack.c.b16 %v2644, %v2636
        %v2781 = vpack.c.b16 %v2645, %v2637
        %v2782 = vpack.c.b16 %v2646, %v2638
        %v2783 = vpack.c.b16 %v2647, %v2639
        %v2784 = vpack.c.b16 %v2648, %v2640
        %v2785 = vpack.c.b16 %v2649, %v2641
        %v2786 = vpack.c.b16 %v2658, %v2650
        %v2787 = vpack.c.b16 %v2659, %v2651
        %v2788 = vpack.c.b16 %v2660, %v2652
        %v2789 = vpack.c.b16 %v2661, %v2653
        %v2790 = vpack.c.b16 %v2662, %v2654
        %v2791 = vpack.c.b16 %v2663, %v2655
        %v2792 = vpack.c.b16 %v2664, %v2656
        %v2793 = vpack.c.b16 %v2665, %v2657
        %2922 = vmatprep.subr.bf16.mxu0 %v2723
        %2923 = vmatpush1.bf16.msra.mxu0 %v2722
        %2924 = vmatprep.subr.bf16.mxu0 %v2715
        %2925 = vmatpush1.bf16.msra.mxu0 %v2714
        %2926 = vmatprep.subr.bf16.mxu0 %v2707
        %2927 = vmatpush1.bf16.msra.mxu0 %v2706
        %2928 = vmatprep.subr.bf16.mxu0 %v2699
        %2929 = vmatpush1.bf16.msra.mxu0 %v2698
        %2930 = vmatprep.subr.bf16.mxu0 %v2691
        %2931 = vmatpush1.bf16.msra.mxu0 %v2690
        %2932 = vmatprep.subr.bf16.mxu0 %v2683
        %2933 = vmatpush1.bf16.msra.mxu0 %v2682
        %2934 = vmatprep.subr.bf16.mxu0 %v2675
        %2935 = vmatpush1.bf16.msra.mxu0 %v2674
        %2936 = vmatprep.subr.bf16.mxu0 %v2667
        %2937 = vmatpush1.bf16.msra.mxu0 %v2666
        %2938 = vmatprep.subr.bf16.mxu0 %v2787
        %2939 = vmatpush2.bf16.msra.mxu0 %v2786
        %2940 = vmatprep.subr.bf16.mxu0 %v2779
        %2941 = vmatpush2.bf16.msra.mxu0 %v2778
        %2942 = vmatprep.subr.bf16.mxu0 %v2771
        %2943 = vmatpush2.bf16.msra.mxu0 %v2770
        %2944 = vmatprep.subr.bf16.mxu0 %v2763
        %2945 = vmatpush2.bf16.msra.mxu0 %v2762
        %2946 = vmatprep.subr.bf16.mxu0 %v2755
        %2947 = vmatpush2.bf16.msra.mxu0 %v2754
        %2948 = vmatprep.subr.bf16.mxu0 %v2747
        %2949 = vmatpush2.bf16.msra.mxu0 %v2746
        %2950 = vmatprep.subr.bf16.mxu0 %v2739
        %2951 = vmatpush2.bf16.msra.mxu0 %v2738
        %2952 = vmatprep.subr.bf16.mxu0 %v2731
        %2953 = vmatpush2.bf16.msra.mxu0 %v2730
        %2954 = vmatprep.mubr.bf16.mxu0 %v2111
        %2955 = vmatmul.mubr.bf16.gmra.mxu0 %v2110
        %v2956 = vpop.f32.mrf.mxu0
        %v2957 = vadd.f32 %v2245, %v2956
        %v2958 = vpop.f32.mrf.mxu0
        %v2959 = vadd.f32 %v2249, %v2958
        %v2960 = vpop.f32.mrf.mxu0
        %v2961 = vpop.f32.mrf.mxu0
        %2962 = vdwg.mxu0
        %2963 = vmatprep.subr.bf16.mxu0 %v2725
        %2964 = vmatpush1.bf16.msra.mxu0 %v2724
        %2965 = vmatprep.subr.bf16.mxu0 %v2717
        %2966 = vmatpush1.bf16.msra.mxu0 %v2716
        %2967 = vmatprep.subr.bf16.mxu0 %v2709
        %2968 = vmatpush1.bf16.msra.mxu0 %v2708
        %2969 = vmatprep.subr.bf16.mxu0 %v2701
        %2970 = vmatpush1.bf16.msra.mxu0 %v2700
        %2971 = vmatprep.subr.bf16.mxu0 %v2693
        %2972 = vmatpush1.bf16.msra.mxu0 %v2692
        %2973 = vmatprep.subr.bf16.mxu0 %v2685
        %2974 = vmatpush1.bf16.msra.mxu0 %v2684
        %2975 = vmatprep.subr.bf16.mxu0 %v2677
        %2976 = vmatpush1.bf16.msra.mxu0 %v2676
        %2977 = vmatprep.subr.bf16.mxu0 %v2669
        %2978 = vmatpush1.bf16.msra.mxu0 %v2668
        %2979 = vmatprep.subr.bf16.mxu0 %v2789
        %2980 = vmatpush2.bf16.msra.mxu0 %v2788
        %2981 = vmatprep.subr.bf16.mxu0 %v2781
        %2982 = vmatpush2.bf16.msra.mxu0 %v2780
        %2983 = vmatprep.subr.bf16.mxu0 %v2773
        %2984 = vmatpush2.bf16.msra.mxu0 %v2772
        %2985 = vmatprep.subr.bf16.mxu0 %v2765
        %2986 = vmatpush2.bf16.msra.mxu0 %v2764
        %2987 = vmatprep.subr.bf16.mxu0 %v2757
        %2988 = vmatpush2.bf16.msra.mxu0 %v2756
        %2989 = vmatprep.subr.bf16.mxu0 %v2749
        %2990 = vmatpush2.bf16.msra.mxu0 %v2748
        %2991 = vmatprep.subr.bf16.mxu0 %v2741
        %2992 = vmatpush2.bf16.msra.mxu0 %v2740
        %2993 = vmatprep.subr.bf16.mxu0 %v2733
        %2994 = vmatpush2.bf16.msra.mxu0 %v2732
        %2995 = vmatprep.mubr.bf16.mxu0 %v2111
        %2996 = vmatmul.mubr.bf16.gmra.mxu0 %v2110
        %v2997 = vpop.f32.mrf.mxu0
        %v2998 = vadd.f32 %v2253, %v2997
        %v2999 = vpop.f32.mrf.mxu0
        %v3000 = vadd.f32 %v2257, %v2999
        %v3001 = vpop.f32.mrf.mxu0
        %v3002 = vpop.f32.mrf.mxu0
        %3003 = vdwg.mxu0
        %3004 = vmatprep.subr.bf16.mxu0 %v2727
        %3005 = vmatpush1.bf16.msra.mxu0 %v2726
        %3006 = vmatprep.subr.bf16.mxu0 %v2719
        %3007 = vmatpush1.bf16.msra.mxu0 %v2718
        %3008 = vmatprep.subr.bf16.mxu0 %v2711
        %3009 = vmatpush1.bf16.msra.mxu0 %v2710
        %3010 = vmatprep.subr.bf16.mxu0 %v2703
        %3011 = vmatpush1.bf16.msra.mxu0 %v2702
        %3012 = vmatprep.subr.bf16.mxu0 %v2695
        %3013 = vmatpush1.bf16.msra.mxu0 %v2694
        %3014 = vmatprep.subr.bf16.mxu0 %v2687
        %3015 = vmatpush1.bf16.msra.mxu0 %v2686
        %3016 = vmatprep.subr.bf16.mxu0 %v2679
        %3017 = vmatpush1.bf16.msra.mxu0 %v2678
        %3018 = vmatprep.subr.bf16.mxu0 %v2671
        %3019 = vmatpush1.bf16.msra.mxu0 %v2670
        %3020 = vmatprep.subr.bf16.mxu0 %v2791
        %3021 = vmatpush2.bf16.msra.mxu0 %v2790
        %3022 = vmatprep.subr.bf16.mxu0 %v2783
        %3023 = vmatpush2.bf16.msra.mxu0 %v2782
        %3024 = vmatprep.subr.bf16.mxu0 %v2775
        %3025 = vmatpush2.bf16.msra.mxu0 %v2774
        %3026 = vmatprep.subr.bf16.mxu0 %v2767
        %3027 = vmatpush2.bf16.msra.mxu0 %v2766
        %3028 = vmatprep.subr.bf16.mxu0 %v2759
        %3029 = vmatpush2.bf16.msra.mxu0 %v2758
        %3030 = vmatprep.subr.bf16.mxu0 %v2751
        %3031 = vmatpush2.bf16.msra.mxu0 %v2750
        %3032 = vmatprep.subr.bf16.mxu0 %v2743
        %3033 = vmatpush2.bf16.msra.mxu0 %v2742
        %3034 = vmatprep.subr.bf16.mxu0 %v2735
        %3035 = vmatpush2.bf16.msra.mxu0 %v2734
        %3036 = vmatprep.mubr.bf16.mxu0 %v2111
        %3037 = vmatmul.mubr.bf16.gmra.mxu0 %v2110
        %v3038 = vpop.f32.mrf.mxu0
        %v3039 = vadd.f32 %v2261, %v3038
        %v3040 = vpop.f32.mrf.mxu0
        %v3041 = vadd.f32 %v2265, %v3040
        %v3042 = vpop.f32.mrf.mxu0
        %v3043 = vpop.f32.mrf.mxu0
        %3044 = vdwg.mxu0
        %3045 = vmatprep.subr.bf16.mxu0 %v2729
        %3046 = vmatpush1.bf16.msra.mxu0 %v2728
        %3047 = vmatprep.subr.bf16.mxu0 %v2721
        %3048 = vmatpush1.bf16.msra.mxu0 %v2720
        %3049 = vmatprep.subr.bf16.mxu0 %v2713
        %3050 = vmatpush1.bf16.msra.mxu0 %v2712
        %3051 = vmatprep.subr.bf16.mxu0 %v2705
        %3052 = vmatpush1.bf16.msra.mxu0 %v2704
        %3053 = vmatprep.subr.bf16.mxu0 %v2697
        %3054 = vmatpush1.bf16.msra.mxu0 %v2696
        %3055 = vmatprep.subr.bf16.mxu0 %v2689
        %3056 = vmatpush1.bf16.msra.mxu0 %v2688
        %3057 = vmatprep.subr.bf16.mxu0 %v2681
        %3058 = vmatpush1.bf16.msra.mxu0 %v2680
        %3059 = vmatprep.subr.bf16.mxu0 %v2673
        %3060 = vmatpush1.bf16.msra.mxu0 %v2672
        %3061 = vmatprep.subr.bf16.mxu0 %v2793
        %3062 = vmatpush2.bf16.msra.mxu0 %v2792
        %3063 = vmatprep.subr.bf16.mxu0 %v2785
        %3064 = vmatpush2.bf16.msra.mxu0 %v2784
        %3065 = vmatprep.subr.bf16.mxu0 %v2777
        %3066 = vmatpush2.bf16.msra.mxu0 %v2776
        %3067 = vmatprep.subr.bf16.mxu0 %v2769
        %3068 = vmatpush2.bf16.msra.mxu0 %v2768
        %3069 = vmatprep.subr.bf16.mxu0 %v2761
        %3070 = vmatpush2.bf16.msra.mxu0 %v2760
        %3071 = vmatprep.subr.bf16.mxu0 %v2753
        %3072 = vmatpush2.bf16.msra.mxu0 %v2752
        %3073 = vmatprep.subr.bf16.mxu0 %v2745
        %3074 = vmatpush2.bf16.msra.mxu0 %v2744
        %3075 = vmatprep.subr.bf16.mxu0 %v2737
        %3076 = vmatpush2.bf16.msra.mxu0 %v2736
        %3077 = vmatprep.mubr.bf16.mxu0 %v2111
        %3078 = vmatmul.mubr.bf16.gmra.mxu0 %v2110
        %v3079 = vpop.f32.mrf.mxu0
        %v3080 = vadd.f32 %v2269, %v3079
        %v3081 = vpop.f32.mrf.mxu0
        %v3082 = vadd.f32 %v2273, %v3081
        %v3083 = vpop.f32.mrf.mxu0
        %v3084 = vpop.f32.mrf.mxu0
        %3085 = vdwg.mxu0
        %v3086 = vmax.f32 %v2957, 0.0
        %v3087 = vmax.f32 %v2959, 0.0
        %v3088 = vmax.f32 %v2998, 0.0
        %v3089 = vmax.f32 %v3000, 0.0
        %v3090 = vmax.f32 %v3039, 0.0
        %v3091 = vmax.f32 %v3041, 0.0
        %v3092 = vmax.f32 %v3080, 0.0
        %v3093 = vmax.f32 %v3082, 0.0
        %v3094 = vpack.c.bf16 %v3086, %v3086
        %v3095 = vpack.c.bf16 %v3087, %v3087
        %v3096 = vpack.c.bf16 %v3088, %v3088
        %v3097 = vpack.c.bf16 %v3089, %v3089
        %v3098 = vpack.c.bf16 %v3090, %v3090
        %v3099 = vpack.c.bf16 %v3091, %v3091
        %v3100 = vpack.c.bf16 %v3092, %v3092
        %v3101 = vpack.c.bf16 %v3093, %v3093
        %v3102 = vld [vmem:[%s9] sm:$0xff]
        %v3103 = vld [vmem:[%s9 + $0x8] sm:$0xff]
        %v3104 = vld [vmem:[%s9 + $0x10] sm:$0xff]
        %v3105 = vld [vmem:[%s9 + $0x18] sm:$0xff]
        %v3106 = vld [vmem:[%s9 + $0x20] sm:$0xff]
        %v3107 = vld [vmem:[%s9 + $0x28] sm:$0xff]
        %v3108 = vld [vmem:[%s9 + $0x30] sm:$0xff]
        %v3109 = vld [vmem:[%s9 + $0x38] sm:$0xff]
        %v3110 = vld [vmem:[%s9 + $0x40] sm:$0xff]
        %v3111 = vld [vmem:[%s9 + $0x48] sm:$0xff]
        %v3112 = vld [vmem:[%s9 + $0x50] sm:$0xff]
        %v3113 = vld [vmem:[%s9 + $0x58] sm:$0xff]
        %v3114 = vld [vmem:[%s9 + $0x60] sm:$0xff]
        %v3115 = vld [vmem:[%s9 + $0x68] sm:$0xff]
        %v3116 = vld [vmem:[%s9 + $0x70] sm:$0xff]
        %v3117 = vld [vmem:[%s9 + $0x78] sm:$0xff]
        %v3118 = vld [vmem:[%s9 + $0x80] sm:$0xff]
        %v3119 = vld [vmem:[%s9 + $0x88] sm:$0xff]
        %v3120 = vld [vmem:[%s9 + $0x90] sm:$0xff]
        %v3121 = vld [vmem:[%s9 + $0x98] sm:$0xff]
        %v3122 = vld [vmem:[%s9 + $0xa0] sm:$0xff]
        %v3123 = vld [vmem:[%s9 + $0xa8] sm:$0xff]
        %v3124 = vld [vmem:[%s9 + $0xb0] sm:$0xff]
        %v3125 = vld [vmem:[%s9 + $0xb8] sm:$0xff]
        %v3126 = vld [vmem:[%s9 + $0xc0] sm:$0xff]
        %v3127 = vld [vmem:[%s9 + $0xc8] sm:$0xff]
        %v3128 = vld [vmem:[%s9 + $0xd0] sm:$0xff]
        %v3129 = vld [vmem:[%s9 + $0xd8] sm:$0xff]
        %v3130 = vld [vmem:[%s9 + $0xe0] sm:$0xff]
        %v3131 = vld [vmem:[%s9 + $0xe8] sm:$0xff]
        %v3132 = vld [vmem:[%s9 + $0xf0] sm:$0xff]
        %v3133 = vld [vmem:[%s9 + $0xf8] sm:$0xff]
        %v3134 = vld [vmem:[%s9 + $0x100] sm:$0xff]
        %v3135 = vld [vmem:[%s9 + $0x108] sm:$0xff]
        %v3136 = vld [vmem:[%s9 + $0x110] sm:$0xff]
        %v3137 = vld [vmem:[%s9 + $0x118] sm:$0xff]
        %v3138 = vld [vmem:[%s9 + $0x120] sm:$0xff]
        %v3139 = vld [vmem:[%s9 + $0x128] sm:$0xff]
        %v3140 = vld [vmem:[%s9 + $0x130] sm:$0xff]
        %v3141 = vld [vmem:[%s9 + $0x138] sm:$0xff]
        %v3142 = vld [vmem:[%s9 + $0x140] sm:$0xff]
        %v3143 = vld [vmem:[%s9 + $0x148] sm:$0xff]
        %v3144 = vld [vmem:[%s9 + $0x150] sm:$0xff]
        %v3145 = vld [vmem:[%s9 + $0x158] sm:$0xff]
        %v3146 = vld [vmem:[%s9 + $0x160] sm:$0xff]
        %v3147 = vld [vmem:[%s9 + $0x168] sm:$0xff]
        %v3148 = vld [vmem:[%s9 + $0x170] sm:$0xff]
        %v3149 = vld [vmem:[%s9 + $0x178] sm:$0xff]
        %v3150 = vld [vmem:[%s9 + $0x180] sm:$0xff]
        %v3151 = vld [vmem:[%s9 + $0x188] sm:$0xff]
        %v3152 = vld [vmem:[%s9 + $0x190] sm:$0xff]
        %v3153 = vld [vmem:[%s9 + $0x198] sm:$0xff]
        %v3154 = vld [vmem:[%s9 + $0x1a0] sm:$0xff]
        %v3155 = vld [vmem:[%s9 + $0x1a8] sm:$0xff]
        %v3156 = vld [vmem:[%s9 + $0x1b0] sm:$0xff]
        %v3157 = vld [vmem:[%s9 + $0x1b8] sm:$0xff]
        %v3158 = vld [vmem:[%s9 + $0x1c0] sm:$0xff]
        %v3159 = vld [vmem:[%s9 + $0x1c8] sm:$0xff]
        %v3160 = vld [vmem:[%s9 + $0x1d0] sm:$0xff]
        %v3161 = vld [vmem:[%s9 + $0x1d8] sm:$0xff]
        %v3162 = vld [vmem:[%s9 + $0x1e0] sm:$0xff]
        %v3163 = vld [vmem:[%s9 + $0x1e8] sm:$0xff]
        %v3164 = vld [vmem:[%s9 + $0x1f0] sm:$0xff]
        %v3165 = vld [vmem:[%s9 + $0x1f8] sm:$0xff]
        %v3166 = vld [vmem:[%s9 + $0x200] sm:$0xff]
        %v3167 = vld [vmem:[%s9 + $0x208] sm:$0xff]
        %v3168 = vld [vmem:[%s9 + $0x210] sm:$0xff]
        %v3169 = vld [vmem:[%s9 + $0x218] sm:$0xff]
        %v3170 = vld [vmem:[%s9 + $0x220] sm:$0xff]
        %v3171 = vld [vmem:[%s9 + $0x228] sm:$0xff]
        %v3172 = vld [vmem:[%s9 + $0x230] sm:$0xff]
        %v3173 = vld [vmem:[%s9 + $0x238] sm:$0xff]
        %v3174 = vld [vmem:[%s9 + $0x240] sm:$0xff]
        %v3175 = vld [vmem:[%s9 + $0x248] sm:$0xff]
        %v3176 = vld [vmem:[%s9 + $0x250] sm:$0xff]
        %v3177 = vld [vmem:[%s9 + $0x258] sm:$0xff]
        %v3178 = vld [vmem:[%s9 + $0x260] sm:$0xff]
        %v3179 = vld [vmem:[%s9 + $0x268] sm:$0xff]
        %v3180 = vld [vmem:[%s9 + $0x270] sm:$0xff]
        %v3181 = vld [vmem:[%s9 + $0x278] sm:$0xff]
        %v3182 = vld [vmem:[%s9 + $0x280] sm:$0xff]
        %v3183 = vld [vmem:[%s9 + $0x288] sm:$0xff]
        %v3184 = vld [vmem:[%s9 + $0x290] sm:$0xff]
        %v3185 = vld [vmem:[%s9 + $0x298] sm:$0xff]
        %v3186 = vld [vmem:[%s9 + $0x2a0] sm:$0xff]
        %v3187 = vld [vmem:[%s9 + $0x2a8] sm:$0xff]
        %v3188 = vld [vmem:[%s9 + $0x2b0] sm:$0xff]
        %v3189 = vld [vmem:[%s9 + $0x2b8] sm:$0xff]
        %v3190 = vld [vmem:[%s9 + $0x2c0] sm:$0xff]
        %v3191 = vld [vmem:[%s9 + $0x2c8] sm:$0xff]
        %v3192 = vld [vmem:[%s9 + $0x2d0] sm:$0xff]
        %v3193 = vld [vmem:[%s9 + $0x2d8] sm:$0xff]
        %v3194 = vld [vmem:[%s9 + $0x2e0] sm:$0xff]
        %v3195 = vld [vmem:[%s9 + $0x2e8] sm:$0xff]
        %v3196 = vld [vmem:[%s9 + $0x2f0] sm:$0xff]
        %v3197 = vld [vmem:[%s9 + $0x2f8] sm:$0xff]
        %v3198 = vld [vmem:[%s9 + $0x300] sm:$0xff]
        %v3199 = vld [vmem:[%s9 + $0x308] sm:$0xff]
        %v3200 = vld [vmem:[%s9 + $0x310] sm:$0xff]
        %v3201 = vld [vmem:[%s9 + $0x318] sm:$0xff]
        %v3202 = vld [vmem:[%s9 + $0x320] sm:$0xff]
        %v3203 = vld [vmem:[%s9 + $0x328] sm:$0xff]
        %v3204 = vld [vmem:[%s9 + $0x330] sm:$0xff]
        %v3205 = vld [vmem:[%s9 + $0x338] sm:$0xff]
        %v3206 = vld [vmem:[%s9 + $0x340] sm:$0xff]
        %v3207 = vld [vmem:[%s9 + $0x348] sm:$0xff]
        %v3208 = vld [vmem:[%s9 + $0x350] sm:$0xff]
        %v3209 = vld [vmem:[%s9 + $0x358] sm:$0xff]
        %v3210 = vld [vmem:[%s9 + $0x360] sm:$0xff]
        %v3211 = vld [vmem:[%s9 + $0x368] sm:$0xff]
        %v3212 = vld [vmem:[%s9 + $0x370] sm:$0xff]
        %v3213 = vld [vmem:[%s9 + $0x378] sm:$0xff]
        %v3214 = vld [vmem:[%s9 + $0x380] sm:$0xff]
        %v3215 = vld [vmem:[%s9 + $0x388] sm:$0xff]
        %v3216 = vld [vmem:[%s9 + $0x390] sm:$0xff]
        %v3217 = vld [vmem:[%s9 + $0x398] sm:$0xff]
        %v3218 = vld [vmem:[%s9 + $0x3a0] sm:$0xff]
        %v3219 = vld [vmem:[%s9 + $0x3a8] sm:$0xff]
        %v3220 = vld [vmem:[%s9 + $0x3b0] sm:$0xff]
        %v3221 = vld [vmem:[%s9 + $0x3b8] sm:$0xff]
        %v3222 = vld [vmem:[%s9 + $0x3c0] sm:$0xff]
        %v3223 = vld [vmem:[%s9 + $0x3c8] sm:$0xff]
        %v3224 = vld [vmem:[%s9 + $0x3d0] sm:$0xff]
        %v3225 = vld [vmem:[%s9 + $0x3d8] sm:$0xff]
        %v3226 = vld [vmem:[%s9 + $0x3e0] sm:$0xff]
        %v3227 = vld [vmem:[%s9 + $0x3e8] sm:$0xff]
        %v3228 = vld [vmem:[%s9 + $0x3f0] sm:$0xff]
        %v3229 = vld [vmem:[%s9 + $0x3f8] sm:$0xff]
        %v3230 = vld [vmem:[%s10] sm:$0x3]
        %v3232 = vlaneseq
        %v3233 = vshrl.u32 %v3232, 7
        %v3234 = vsub.s32 0, %v3233
        %v3235 = vrot.slane %v3230, %v3234
        %v3236 = vlaneseq
        %v3237 = vshrl.u32 %v3236, 7
        %v3238 = vsub.s32 1, %v3237
        %v3239 = vrot.slane %v3230, %v3238
        %v3370 = vunpack.c.l.b16 %v3102
        %v3371 = vunpack.c.h.b16 %v3102
        %v3372 = vunpack.c.l.b16 %v3103
        %v3373 = vunpack.c.h.b16 %v3103
        %v3374 = vunpack.c.l.b16 %v3104
        %v3375 = vunpack.c.h.b16 %v3104
        %v3376 = vunpack.c.l.b16 %v3105
        %v3377 = vunpack.c.h.b16 %v3105
        %v3378 = vunpack.c.l.b16 %v3106
        %v3379 = vunpack.c.h.b16 %v3106
        %v3380 = vunpack.c.l.b16 %v3107
        %v3381 = vunpack.c.h.b16 %v3107
        %v3382 = vunpack.c.l.b16 %v3108
        %v3383 = vunpack.c.h.b16 %v3108
        %v3384 = vunpack.c.l.b16 %v3109
        %v3385 = vunpack.c.h.b16 %v3109
        %v3386 = vunpack.c.l.b16 %v3110
        %v3387 = vunpack.c.h.b16 %v3110
        %v3388 = vunpack.c.l.b16 %v3111
        %v3389 = vunpack.c.h.b16 %v3111
        %v3390 = vunpack.c.l.b16 %v3112
        %v3391 = vunpack.c.h.b16 %v3112
        %v3392 = vunpack.c.l.b16 %v3113
        %v3393 = vunpack.c.h.b16 %v3113
        %v3394 = vunpack.c.l.b16 %v3114
        %v3395 = vunpack.c.h.b16 %v3114
        %v3396 = vunpack.c.l.b16 %v3115
        %v3397 = vunpack.c.h.b16 %v3115
        %v3398 = vunpack.c.l.b16 %v3116
        %v3399 = vunpack.c.h.b16 %v3116
        %v3400 = vunpack.c.l.b16 %v3117
        %v3401 = vunpack.c.h.b16 %v3117
        %v3402 = vunpack.c.l.b16 %v3118
        %v3403 = vunpack.c.h.b16 %v3118
        %v3404 = vunpack.c.l.b16 %v3119
        %v3405 = vunpack.c.h.b16 %v3119
        %v3406 = vunpack.c.l.b16 %v3120
        %v3407 = vunpack.c.h.b16 %v3120
        %v3408 = vunpack.c.l.b16 %v3121
        %v3409 = vunpack.c.h.b16 %v3121
        %v3410 = vunpack.c.l.b16 %v3122
        %v3411 = vunpack.c.h.b16 %v3122
        %v3412 = vunpack.c.l.b16 %v3123
        %v3413 = vunpack.c.h.b16 %v3123
        %v3414 = vunpack.c.l.b16 %v3124
        %v3415 = vunpack.c.h.b16 %v3124
        %v3416 = vunpack.c.l.b16 %v3125
        %v3417 = vunpack.c.h.b16 %v3125
        %v3418 = vunpack.c.l.b16 %v3126
        %v3419 = vunpack.c.h.b16 %v3126
        %v3420 = vunpack.c.l.b16 %v3127
        %v3421 = vunpack.c.h.b16 %v3127
        %v3422 = vunpack.c.l.b16 %v3128
        %v3423 = vunpack.c.h.b16 %v3128
        %v3424 = vunpack.c.l.b16 %v3129
        %v3425 = vunpack.c.h.b16 %v3129
        %v3426 = vunpack.c.l.b16 %v3130
        %v3427 = vunpack.c.h.b16 %v3130
        %v3428 = vunpack.c.l.b16 %v3131
        %v3429 = vunpack.c.h.b16 %v3131
        %v3430 = vunpack.c.l.b16 %v3132
        %v3431 = vunpack.c.h.b16 %v3132
        %v3432 = vunpack.c.l.b16 %v3133
        %v3433 = vunpack.c.h.b16 %v3133
        %v3434 = vunpack.c.l.b16 %v3134
        %v3435 = vunpack.c.h.b16 %v3134
        %v3436 = vunpack.c.l.b16 %v3135
        %v3437 = vunpack.c.h.b16 %v3135
        %v3438 = vunpack.c.l.b16 %v3136
        %v3439 = vunpack.c.h.b16 %v3136
        %v3440 = vunpack.c.l.b16 %v3137
        %v3441 = vunpack.c.h.b16 %v3137
        %v3442 = vunpack.c.l.b16 %v3138
        %v3443 = vunpack.c.h.b16 %v3138
        %v3444 = vunpack.c.l.b16 %v3139
        %v3445 = vunpack.c.h.b16 %v3139
        %v3446 = vunpack.c.l.b16 %v3140
        %v3447 = vunpack.c.h.b16 %v3140
        %v3448 = vunpack.c.l.b16 %v3141
        %v3449 = vunpack.c.h.b16 %v3141
        %v3450 = vunpack.c.l.b16 %v3142
        %v3451 = vunpack.c.h.b16 %v3142
        %v3452 = vunpack.c.l.b16 %v3143
        %v3453 = vunpack.c.h.b16 %v3143
        %v3454 = vunpack.c.l.b16 %v3144
        %v3455 = vunpack.c.h.b16 %v3144
        %v3456 = vunpack.c.l.b16 %v3145
        %v3457 = vunpack.c.h.b16 %v3145
        %v3458 = vunpack.c.l.b16 %v3146
        %v3459 = vunpack.c.h.b16 %v3146
        %v3460 = vunpack.c.l.b16 %v3147
        %v3461 = vunpack.c.h.b16 %v3147
        %v3462 = vunpack.c.l.b16 %v3148
        %v3463 = vunpack.c.h.b16 %v3148
        %v3464 = vunpack.c.l.b16 %v3149
        %v3465 = vunpack.c.h.b16 %v3149
        %v3466 = vunpack.c.l.b16 %v3150
        %v3467 = vunpack.c.h.b16 %v3150
        %v3468 = vunpack.c.l.b16 %v3151
        %v3469 = vunpack.c.h.b16 %v3151
        %v3470 = vunpack.c.l.b16 %v3152
        %v3471 = vunpack.c.h.b16 %v3152
        %v3472 = vunpack.c.l.b16 %v3153
        %v3473 = vunpack.c.h.b16 %v3153
        %v3474 = vunpack.c.l.b16 %v3154
        %v3475 = vunpack.c.h.b16 %v3154
        %v3476 = vunpack.c.l.b16 %v3155
        %v3477 = vunpack.c.h.b16 %v3155
        %v3478 = vunpack.c.l.b16 %v3156
        %v3479 = vunpack.c.h.b16 %v3156
        %v3480 = vunpack.c.l.b16 %v3157
        %v3481 = vunpack.c.h.b16 %v3157
        %v3482 = vunpack.c.l.b16 %v3158
        %v3483 = vunpack.c.h.b16 %v3158
        %v3484 = vunpack.c.l.b16 %v3159
        %v3485 = vunpack.c.h.b16 %v3159
        %v3486 = vunpack.c.l.b16 %v3160
        %v3487 = vunpack.c.h.b16 %v3160
        %v3488 = vunpack.c.l.b16 %v3161
        %v3489 = vunpack.c.h.b16 %v3161
        %v3490 = vunpack.c.l.b16 %v3162
        %v3491 = vunpack.c.h.b16 %v3162
        %v3492 = vunpack.c.l.b16 %v3163
        %v3493 = vunpack.c.h.b16 %v3163
        %v3494 = vunpack.c.l.b16 %v3164
        %v3495 = vunpack.c.h.b16 %v3164
        %v3496 = vunpack.c.l.b16 %v3165
        %v3497 = vunpack.c.h.b16 %v3165
        %v3498 = vunpack.c.l.b16 %v3166
        %v3499 = vunpack.c.h.b16 %v3166
        %v3500 = vunpack.c.l.b16 %v3167
        %v3501 = vunpack.c.h.b16 %v3167
        %v3502 = vunpack.c.l.b16 %v3168
        %v3503 = vunpack.c.h.b16 %v3168
        %v3504 = vunpack.c.l.b16 %v3169
        %v3505 = vunpack.c.h.b16 %v3169
        %v3506 = vunpack.c.l.b16 %v3170
        %v3507 = vunpack.c.h.b16 %v3170
        %v3508 = vunpack.c.l.b16 %v3171
        %v3509 = vunpack.c.h.b16 %v3171
        %v3510 = vunpack.c.l.b16 %v3172
        %v3511 = vunpack.c.h.b16 %v3172
        %v3512 = vunpack.c.l.b16 %v3173
        %v3513 = vunpack.c.h.b16 %v3173
        %v3514 = vunpack.c.l.b16 %v3174
        %v3515 = vunpack.c.h.b16 %v3174
        %v3516 = vunpack.c.l.b16 %v3175
        %v3517 = vunpack.c.h.b16 %v3175
        %v3518 = vunpack.c.l.b16 %v3176
        %v3519 = vunpack.c.h.b16 %v3176
        %v3520 = vunpack.c.l.b16 %v3177
        %v3521 = vunpack.c.h.b16 %v3177
        %v3522 = vunpack.c.l.b16 %v3178
        %v3523 = vunpack.c.h.b16 %v3178
        %v3524 = vunpack.c.l.b16 %v3179
        %v3525 = vunpack.c.h.b16 %v3179
        %v3526 = vunpack.c.l.b16 %v3180
        %v3527 = vunpack.c.h.b16 %v3180
        %v3528 = vunpack.c.l.b16 %v3181
        %v3529 = vunpack.c.h.b16 %v3181
        %v3530 = vunpack.c.l.b16 %v3182
        %v3531 = vunpack.c.h.b16 %v3182
        %v3532 = vunpack.c.l.b16 %v3183
        %v3533 = vunpack.c.h.b16 %v3183
        %v3534 = vunpack.c.l.b16 %v3184
        %v3535 = vunpack.c.h.b16 %v3184
        %v3536 = vunpack.c.l.b16 %v3185
        %v3537 = vunpack.c.h.b16 %v3185
        %v3538 = vunpack.c.l.b16 %v3186
        %v3539 = vunpack.c.h.b16 %v3186
        %v3540 = vunpack.c.l.b16 %v3187
        %v3541 = vunpack.c.h.b16 %v3187
        %v3542 = vunpack.c.l.b16 %v3188
        %v3543 = vunpack.c.h.b16 %v3188
        %v3544 = vunpack.c.l.b16 %v3189
        %v3545 = vunpack.c.h.b16 %v3189
        %v3546 = vunpack.c.l.b16 %v3190
        %v3547 = vunpack.c.h.b16 %v3190
        %v3548 = vunpack.c.l.b16 %v3191
        %v3549 = vunpack.c.h.b16 %v3191
        %v3550 = vunpack.c.l.b16 %v3192
        %v3551 = vunpack.c.h.b16 %v3192
        %v3552 = vunpack.c.l.b16 %v3193
        %v3553 = vunpack.c.h.b16 %v3193
        %v3554 = vunpack.c.l.b16 %v3194
        %v3555 = vunpack.c.h.b16 %v3194
        %v3556 = vunpack.c.l.b16 %v3195
        %v3557 = vunpack.c.h.b16 %v3195
        %v3558 = vunpack.c.l.b16 %v3196
        %v3559 = vunpack.c.h.b16 %v3196
        %v3560 = vunpack.c.l.b16 %v3197
        %v3561 = vunpack.c.h.b16 %v3197
        %v3562 = vunpack.c.l.b16 %v3198
        %v3563 = vunpack.c.h.b16 %v3198
        %v3564 = vunpack.c.l.b16 %v3199
        %v3565 = vunpack.c.h.b16 %v3199
        %v3566 = vunpack.c.l.b16 %v3200
        %v3567 = vunpack.c.h.b16 %v3200
        %v3568 = vunpack.c.l.b16 %v3201
        %v3569 = vunpack.c.h.b16 %v3201
        %v3570 = vunpack.c.l.b16 %v3202
        %v3571 = vunpack.c.h.b16 %v3202
        %v3572 = vunpack.c.l.b16 %v3203
        %v3573 = vunpack.c.h.b16 %v3203
        %v3574 = vunpack.c.l.b16 %v3204
        %v3575 = vunpack.c.h.b16 %v3204
        %v3576 = vunpack.c.l.b16 %v3205
        %v3577 = vunpack.c.h.b16 %v3205
        %v3578 = vunpack.c.l.b16 %v3206
        %v3579 = vunpack.c.h.b16 %v3206
        %v3580 = vunpack.c.l.b16 %v3207
        %v3581 = vunpack.c.h.b16 %v3207
        %v3582 = vunpack.c.l.b16 %v3208
        %v3583 = vunpack.c.h.b16 %v3208
        %v3584 = vunpack.c.l.b16 %v3209
        %v3585 = vunpack.c.h.b16 %v3209
        %v3586 = vunpack.c.l.b16 %v3210
        %v3587 = vunpack.c.h.b16 %v3210
        %v3588 = vunpack.c.l.b16 %v3211
        %v3589 = vunpack.c.h.b16 %v3211
        %v3590 = vunpack.c.l.b16 %v3212
        %v3591 = vunpack.c.h.b16 %v3212
        %v3592 = vunpack.c.l.b16 %v3213
        %v3593 = vunpack.c.h.b16 %v3213
        %v3594 = vunpack.c.l.b16 %v3214
        %v3595 = vunpack.c.h.b16 %v3214
        %v3596 = vunpack.c.l.b16 %v3215
        %v3597 = vunpack.c.h.b16 %v3215
        %v3598 = vunpack.c.l.b16 %v3216
        %v3599 = vunpack.c.h.b16 %v3216
        %v3600 = vunpack.c.l.b16 %v3217
        %v3601 = vunpack.c.h.b16 %v3217
        %v3602 = vunpack.c.l.b16 %v3218
        %v3603 = vunpack.c.h.b16 %v3218
        %v3604 = vunpack.c.l.b16 %v3219
        %v3605 = vunpack.c.h.b16 %v3219
        %v3606 = vunpack.c.l.b16 %v3220
        %v3607 = vunpack.c.h.b16 %v3220
        %v3608 = vunpack.c.l.b16 %v3221
        %v3609 = vunpack.c.h.b16 %v3221
        %v3610 = vunpack.c.l.b16 %v3222
        %v3611 = vunpack.c.h.b16 %v3222
        %v3612 = vunpack.c.l.b16 %v3223
        %v3613 = vunpack.c.h.b16 %v3223
        %v3614 = vunpack.c.l.b16 %v3224
        %v3615 = vunpack.c.h.b16 %v3224
        %v3616 = vunpack.c.l.b16 %v3225
        %v3617 = vunpack.c.h.b16 %v3225
        %v3618 = vunpack.c.l.b16 %v3226
        %v3619 = vunpack.c.h.b16 %v3226
        %v3620 = vunpack.c.l.b16 %v3227
        %v3621 = vunpack.c.h.b16 %v3227
        %v3622 = vunpack.c.l.b16 %v3228
        %v3623 = vunpack.c.h.b16 %v3228
        %v3624 = vunpack.c.l.b16 %v3229
        %v3625 = vunpack.c.h.b16 %v3229
        %v3626 = vpack.c.b16 %v3372, %v3370
        %v3627 = vpack.c.b16 %v3373, %v3371
        %v3628 = vpack.c.b16 %v3376, %v3374
        %v3629 = vpack.c.b16 %v3377, %v3375
        %v3630 = vpack.c.b16 %v3380, %v3378
        %v3631 = vpack.c.b16 %v3381, %v3379
        %v3632 = vpack.c.b16 %v3384, %v3382
        %v3633 = vpack.c.b16 %v3385, %v3383
        %v3634 = vpack.c.b16 %v3388, %v3386
        %v3635 = vpack.c.b16 %v3389, %v3387
        %v3636 = vpack.c.b16 %v3392, %v3390
        %v3637 = vpack.c.b16 %v3393, %v3391
        %v3638 = vpack.c.b16 %v3396, %v3394
        %v3639 = vpack.c.b16 %v3397, %v3395
        %v3640 = vpack.c.b16 %v3400, %v3398
        %v3641 = vpack.c.b16 %v3401, %v3399
        %v3642 = vpack.c.b16 %v3404, %v3402
        %v3643 = vpack.c.b16 %v3405, %v3403
        %v3644 = vpack.c.b16 %v3408, %v3406
        %v3645 = vpack.c.b16 %v3409, %v3407
        %v3646 = vpack.c.b16 %v3412, %v3410
        %v3647 = vpack.c.b16 %v3413, %v3411
        %v3648 = vpack.c.b16 %v3416, %v3414
        %v3649 = vpack.c.b16 %v3417, %v3415
        %v3650 = vpack.c.b16 %v3420, %v3418
        %v3651 = vpack.c.b16 %v3421, %v3419
        %v3652 = vpack.c.b16 %v3424, %v3422
        %v3653 = vpack.c.b16 %v3425, %v3423
        %v3654 = vpack.c.b16 %v3428, %v3426
        %v3655 = vpack.c.b16 %v3429, %v3427
        %v3656 = vpack.c.b16 %v3432, %v3430
        %v3657 = vpack.c.b16 %v3433, %v3431
        %v3658 = vpack.c.b16 %v3436, %v3434
        %v3659 = vpack.c.b16 %v3437, %v3435
        %v3660 = vpack.c.b16 %v3440, %v3438
        %v3661 = vpack.c.b16 %v3441, %v3439
        %v3662 = vpack.c.b16 %v3444, %v3442
        %v3663 = vpack.c.b16 %v3445, %v3443
        %v3664 = vpack.c.b16 %v3448, %v3446
        %v3665 = vpack.c.b16 %v3449, %v3447
        %v3666 = vpack.c.b16 %v3452, %v3450
        %v3667 = vpack.c.b16 %v3453, %v3451
        %v3668 = vpack.c.b16 %v3456, %v3454
        %v3669 = vpack.c.b16 %v3457, %v3455
        %v3670 = vpack.c.b16 %v3460, %v3458
        %v3671 = vpack.c.b16 %v3461, %v3459
        %v3672 = vpack.c.b16 %v3464, %v3462
        %v3673 = vpack.c.b16 %v3465, %v3463
        %v3674 = vpack.c.b16 %v3468, %v3466
        %v3675 = vpack.c.b16 %v3469, %v3467
        %v3676 = vpack.c.b16 %v3472, %v3470
        %v3677 = vpack.c.b16 %v3473, %v3471
        %v3678 = vpack.c.b16 %v3476, %v3474
        %v3679 = vpack.c.b16 %v3477, %v3475
        %v3680 = vpack.c.b16 %v3480, %v3478
        %v3681 = vpack.c.b16 %v3481, %v3479
        %v3682 = vpack.c.b16 %v3484, %v3482
        %v3683 = vpack.c.b16 %v3485, %v3483
        %v3684 = vpack.c.b16 %v3488, %v3486
        %v3685 = vpack.c.b16 %v3489, %v3487
        %v3686 = vpack.c.b16 %v3492, %v3490
        %v3687 = vpack.c.b16 %v3493, %v3491
        %v3688 = vpack.c.b16 %v3496, %v3494
        %v3689 = vpack.c.b16 %v3497, %v3495
        %v3690 = vpack.c.b16 %v3500, %v3498
        %v3691 = vpack.c.b16 %v3501, %v3499
        %v3692 = vpack.c.b16 %v3504, %v3502
        %v3693 = vpack.c.b16 %v3505, %v3503
        %v3694 = vpack.c.b16 %v3508, %v3506
        %v3695 = vpack.c.b16 %v3509, %v3507
        %v3696 = vpack.c.b16 %v3512, %v3510
        %v3697 = vpack.c.b16 %v3513, %v3511
        %v3698 = vpack.c.b16 %v3516, %v3514
        %v3699 = vpack.c.b16 %v3517, %v3515
        %v3700 = vpack.c.b16 %v3520, %v3518
        %v3701 = vpack.c.b16 %v3521, %v3519
        %v3702 = vpack.c.b16 %v3524, %v3522
        %v3703 = vpack.c.b16 %v3525, %v3523
        %v3704 = vpack.c.b16 %v3528, %v3526
        %v3705 = vpack.c.b16 %v3529, %v3527
        %v3706 = vpack.c.b16 %v3532, %v3530
        %v3707 = vpack.c.b16 %v3533, %v3531
        %v3708 = vpack.c.b16 %v3536, %v3534
        %v3709 = vpack.c.b16 %v3537, %v3535
        %v3710 = vpack.c.b16 %v3540, %v3538
        %v3711 = vpack.c.b16 %v3541, %v3539
        %v3712 = vpack.c.b16 %v3544, %v3542
        %v3713 = vpack.c.b16 %v3545, %v3543
        %v3714 = vpack.c.b16 %v3548, %v3546
        %v3715 = vpack.c.b16 %v3549, %v3547
        %v3716 = vpack.c.b16 %v3552, %v3550
        %v3717 = vpack.c.b16 %v3553, %v3551
        %v3718 = vpack.c.b16 %v3556, %v3554
        %v3719 = vpack.c.b16 %v3557, %v3555
        %v3720 = vpack.c.b16 %v3560, %v3558
        %v3721 = vpack.c.b16 %v3561, %v3559
        %v3722 = vpack.c.b16 %v3564, %v3562
        %v3723 = vpack.c.b16 %v3565, %v3563
        %v3724 = vpack.c.b16 %v3568, %v3566
        %v3725 = vpack.c.b16 %v3569, %v3567
        %v3726 = vpack.c.b16 %v3572, %v3570
        %v3727 = vpack.c.b16 %v3573, %v3571
        %v3728 = vpack.c.b16 %v3576, %v3574
        %v3729 = vpack.c.b16 %v3577, %v3575
        %v3730 = vpack.c.b16 %v3580, %v3578
        %v3731 = vpack.c.b16 %v3581, %v3579
        %v3732 = vpack.c.b16 %v3584, %v3582
        %v3733 = vpack.c.b16 %v3585, %v3583
        %v3734 = vpack.c.b16 %v3588, %v3586
        %v3735 = vpack.c.b16 %v3589, %v3587
        %v3736 = vpack.c.b16 %v3592, %v3590
        %v3737 = vpack.c.b16 %v3593, %v3591
        %v3738 = vpack.c.b16 %v3596, %v3594
        %v3739 = vpack.c.b16 %v3597, %v3595
        %v3740 = vpack.c.b16 %v3600, %v3598
        %v3741 = vpack.c.b16 %v3601, %v3599
        %v3742 = vpack.c.b16 %v3604, %v3602
        %v3743 = vpack.c.b16 %v3605, %v3603
        %v3744 = vpack.c.b16 %v3608, %v3606
        %v3745 = vpack.c.b16 %v3609, %v3607
        %v3746 = vpack.c.b16 %v3612, %v3610
        %v3747 = vpack.c.b16 %v3613, %v3611
        %v3748 = vpack.c.b16 %v3616, %v3614
        %v3749 = vpack.c.b16 %v3617, %v3615
        %v3750 = vpack.c.b16 %v3620, %v3618
        %v3751 = vpack.c.b16 %v3621, %v3619
        %v3752 = vpack.c.b16 %v3624, %v3622
        %v3753 = vpack.c.b16 %v3625, %v3623
        %3882 = vmatprep.subr.bf16.mxu0 %v3641
        %3883 = vmatpush1.bf16.msra.mxu0 %v3640
        %3884 = vmatprep.subr.bf16.mxu0 %v3639
        %3885 = vmatpush1.bf16.msra.mxu0 %v3638
        %3886 = vmatprep.subr.bf16.mxu0 %v3637
        %3887 = vmatpush1.bf16.msra.mxu0 %v3636
        %3888 = vmatprep.subr.bf16.mxu0 %v3635
        %3889 = vmatpush1.bf16.msra.mxu0 %v3634
        %3890 = vmatprep.subr.bf16.mxu0 %v3633
        %3891 = vmatpush1.bf16.msra.mxu0 %v3632
        %3892 = vmatprep.subr.bf16.mxu0 %v3631
        %3893 = vmatpush1.bf16.msra.mxu0 %v3630
        %3894 = vmatprep.subr.bf16.mxu0 %v3629
        %3895 = vmatpush1.bf16.msra.mxu0 %v3628
        %3896 = vmatprep.subr.bf16.mxu0 %v3627
        %3897 = vmatpush1.bf16.msra.mxu0 %v3626
        %3898 = vmatprep.subr.bf16.mxu0 %v3657
        %3899 = vmatpush2.bf16.msra.mxu0 %v3656
        %3900 = vmatprep.subr.bf16.mxu0 %v3655
        %3901 = vmatpush2.bf16.msra.mxu0 %v3654
        %3902 = vmatprep.subr.bf16.mxu0 %v3653
        %3903 = vmatpush2.bf16.msra.mxu0 %v3652
        %3904 = vmatprep.subr.bf16.mxu0 %v3651
        %3905 = vmatpush2.bf16.msra.mxu0 %v3650
        %3906 = vmatprep.subr.bf16.mxu0 %v3649
        %3907 = vmatpush2.bf16.msra.mxu0 %v3648
        %3908 = vmatprep.subr.bf16.mxu0 %v3647
        %3909 = vmatpush2.bf16.msra.mxu0 %v3646
        %3910 = vmatprep.subr.bf16.mxu0 %v3645
        %3911 = vmatpush2.bf16.msra.mxu0 %v3644
        %3912 = vmatprep.subr.bf16.mxu0 %v3643
        %3913 = vmatpush2.bf16.msra.mxu0 %v3642
        %3914 = vmatprep.mubr.bf16.mxu0 %v3095
        %3915 = vmatmul.mubr.bf16.gmra.mxu0 %v3094
        %v3916 = vpop.f32.mrf.mxu0
        %v3917 = vadd.f32 %v3235, %v3916
        %v3918 = vpop.f32.mrf.mxu0
        %v3919 = vadd.f32 %v3239, %v3918
        %v3920 = vpop.f32.mrf.mxu0
        %v3921 = vpop.f32.mrf.mxu0
        %3922 = vdwg.mxu0
        %3923 = vmatprep.subr.bf16.mxu0 %v3673
        %3924 = vmatpush1.bf16.msra.mxu0 %v3672
        %3925 = vmatprep.subr.bf16.mxu0 %v3671
        %3926 = vmatpush1.bf16.msra.mxu0 %v3670
        %3927 = vmatprep.subr.bf16.mxu0 %v3669
        %3928 = vmatpush1.bf16.msra.mxu0 %v3668
        %3929 = vmatprep.subr.bf16.mxu0 %v3667
        %3930 = vmatpush1.bf16.msra.mxu0 %v3666
        %3931 = vmatprep.subr.bf16.mxu0 %v3665
        %3932 = vmatpush1.bf16.msra.mxu0 %v3664
        %3933 = vmatprep.subr.bf16.mxu0 %v3663
        %3934 = vmatpush1.bf16.msra.mxu0 %v3662
        %3935 = vmatprep.subr.bf16.mxu0 %v3661
        %3936 = vmatpush1.bf16.msra.mxu0 %v3660
        %3937 = vmatprep.subr.bf16.mxu0 %v3659
        %3938 = vmatpush1.bf16.msra.mxu0 %v3658
        %3939 = vmatprep.subr.bf16.mxu0 %v3689
        %3940 = vmatpush2.bf16.msra.mxu0 %v3688
        %3941 = vmatprep.subr.bf16.mxu0 %v3687
        %3942 = vmatpush2.bf16.msra.mxu0 %v3686
        %3943 = vmatprep.subr.bf16.mxu0 %v3685
        %3944 = vmatpush2.bf16.msra.mxu0 %v3684
        %3945 = vmatprep.subr.bf16.mxu0 %v3683
        %3946 = vmatpush2.bf16.msra.mxu0 %v3682
        %3947 = vmatprep.subr.bf16.mxu0 %v3681
        %3948 = vmatpush2.bf16.msra.mxu0 %v3680
        %3949 = vmatprep.subr.bf16.mxu0 %v3679
        %3950 = vmatpush2.bf16.msra.mxu0 %v3678
        %3951 = vmatprep.subr.bf16.mxu0 %v3677
        %3952 = vmatpush2.bf16.msra.mxu0 %v3676
        %3953 = vmatprep.subr.bf16.mxu0 %v3675
        %3954 = vmatpush2.bf16.msra.mxu0 %v3674
        %3955 = vmatprep.mubr.bf16.mxu0 %v3097
        %3956 = vmatmul.mubr.bf16.gmra.mxu0 %v3096
        %v3957 = vpop.f32.mrf.mxu0
        %v3958 = vadd.f32 %v3917, %v3957
        %v3959 = vpop.f32.mrf.mxu0
        %v3960 = vadd.f32 %v3919, %v3959
        %v3961 = vpop.f32.mrf.mxu0
        %v3962 = vpop.f32.mrf.mxu0
        %3963 = vdwg.mxu0
        %3964 = vmatprep.subr.bf16.mxu0 %v3705
        %3965 = vmatpush1.bf16.msra.mxu0 %v3704
        %3966 = vmatprep.subr.bf16.mxu0 %v3703
        %3967 = vmatpush1.bf16.msra.mxu0 %v3702
        %3968 = vmatprep.subr.bf16.mxu0 %v3701
        %3969 = vmatpush1.bf16.msra.mxu0 %v3700
        %3970 = vmatprep.subr.bf16.mxu0 %v3699
        %3971 = vmatpush1.bf16.msra.mxu0 %v3698
        %3972 = vmatprep.subr.bf16.mxu0 %v3697
        %3973 = vmatpush1.bf16.msra.mxu0 %v3696
        %3974 = vmatprep.subr.bf16.mxu0 %v3695
        %3975 = vmatpush1.bf16.msra.mxu0 %v3694
        %3976 = vmatprep.subr.bf16.mxu0 %v3693
        %3977 = vmatpush1.bf16.msra.mxu0 %v3692
        %3978 = vmatprep.subr.bf16.mxu0 %v3691
        %3979 = vmatpush1.bf16.msra.mxu0 %v3690
        %3980 = vmatprep.subr.bf16.mxu0 %v3721
        %3981 = vmatpush2.bf16.msra.mxu0 %v3720
        %3982 = vmatprep.subr.bf16.mxu0 %v3719
        %3983 = vmatpush2.bf16.msra.mxu0 %v3718
        %3984 = vmatprep.subr.bf16.mxu0 %v3717
        %3985 = vmatpush2.bf16.msra.mxu0 %v3716
        %3986 = vmatprep.subr.bf16.mxu0 %v3715
        %3987 = vmatpush2.bf16.msra.mxu0 %v3714
        %3988 = vmatprep.subr.bf16.mxu0 %v3713
        %3989 = vmatpush2.bf16.msra.mxu0 %v3712
        %3990 = vmatprep.subr.bf16.mxu0 %v3711
        %3991 = vmatpush2.bf16.msra.mxu0 %v3710
        %3992 = vmatprep.subr.bf16.mxu0 %v3709
        %3993 = vmatpush2.bf16.msra.mxu0 %v3708
        %3994 = vmatprep.subr.bf16.mxu0 %v3707
        %3995 = vmatpush2.bf16.msra.mxu0 %v3706
        %3996 = vmatprep.mubr.bf16.mxu0 %v3099
        %3997 = vmatmul.mubr.bf16.gmra.mxu0 %v3098
        %v3998 = vpop.f32.mrf.mxu0
        %v3999 = vadd.f32 %v3958, %v3998
        %v4000 = vpop.f32.mrf.mxu0
        %v4001 = vadd.f32 %v3960, %v4000
        %v4002 = vpop.f32.mrf.mxu0
        %v4003 = vpop.f32.mrf.mxu0
        %4004 = vdwg.mxu0
        %4005 = vmatprep.subr.bf16.mxu0 %v3737
        %4006 = vmatpush1.bf16.msra.mxu0 %v3736
        %4007 = vmatprep.subr.bf16.mxu0 %v3735
        %4008 = vmatpush1.bf16.msra.mxu0 %v3734
        %4009 = vmatprep.subr.bf16.mxu0 %v3733
        %4010 = vmatpush1.bf16.msra.mxu0 %v3732
        %4011 = vmatprep.subr.bf16.mxu0 %v3731
        %4012 = vmatpush1.bf16.msra.mxu0 %v3730
        %4013 = vmatprep.subr.bf16.mxu0 %v3729
        %4014 = vmatpush1.bf16.msra.mxu0 %v3728
        %4015 = vmatprep.subr.bf16.mxu0 %v3727
        %4016 = vmatpush1.bf16.msra.mxu0 %v3726
        %4017 = vmatprep.subr.bf16.mxu0 %v3725
        %4018 = vmatpush1.bf16.msra.mxu0 %v3724
        %4019 = vmatprep.subr.bf16.mxu0 %v3723
        %4020 = vmatpush1.bf16.msra.mxu0 %v3722
        %4021 = vmatprep.subr.bf16.mxu0 %v3753
        %4022 = vmatpush2.bf16.msra.mxu0 %v3752
        %4023 = vmatprep.subr.bf16.mxu0 %v3751
        %4024 = vmatpush2.bf16.msra.mxu0 %v3750
        %4025 = vmatprep.subr.bf16.mxu0 %v3749
        %4026 = vmatpush2.bf16.msra.mxu0 %v3748
        %4027 = vmatprep.subr.bf16.mxu0 %v3747
        %4028 = vmatpush2.bf16.msra.mxu0 %v3746
        %4029 = vmatprep.subr.bf16.mxu0 %v3745
        %4030 = vmatpush2.bf16.msra.mxu0 %v3744
        %4031 = vmatprep.subr.bf16.mxu0 %v3743
        %4032 = vmatpush2.bf16.msra.mxu0 %v3742
        %4033 = vmatprep.subr.bf16.mxu0 %v3741
        %4034 = vmatpush2.bf16.msra.mxu0 %v3740
        %4035 = vmatprep.subr.bf16.mxu0 %v3739
        %4036 = vmatpush2.bf16.msra.mxu0 %v3738
        %4037 = vmatprep.mubr.bf16.mxu0 %v3101
        %4038 = vmatmul.mubr.bf16.gmra.mxu0 %v3100
        %v4039 = vpop.f32.mrf.mxu0
        %v4040 = vadd.f32 %v3999, %v4039
        %v4041 = vpop.f32.mrf.mxu0
        %v4042 = vadd.f32 %v4001, %v4041
        %v4043 = vpop.f32.mrf.mxu0
        %v4044 = vpop.f32.mrf.mxu0
        %4045 = vdwg.mxu0
        %v4046 = vadd.f32 %v2108, %v4040
        %v4047 = vadd.f32 %v2109, %v4042
        %v4048 = vld [vmem:[%s11] sm:$0x3]
        %v4049 = vld [vmem:[%s12] sm:$0x3]
        %v4050 = vadd.f32 %v4046, %v4047
        %4051 = vadd.xlane.f32.xlu0 %v4050
        %v4052 = vpop.xlane.xlu0 %4051
        %v4053 = vmul.f32 %v4052, %v2070
        %v4054 = vsub.f32 %v4046, %v4053
        %v4055 = vsub.f32 %v4047, %v4053
        %v4056 = vmul.f32 %v4054, %v4054
        %v4057 = vmul.f32 %v4055, %v4055
        %v4058 = vadd.f32 %v4056, %v4057
        %4059 = vadd.xlane.f32.xlu0 %v4058
        %v4060 = vpop.xlane.xlu0 %4059
        %v4061 = vmul.f32 %v4060, %v2070
        %v4062 = vadd.f32 %v4061, 1e-05
        %v4063 = vrsqrt.pop %v4062
        %v4064 = vmul.f32 %v4054, %v4063
        %v4065 = vmul.f32 %v4055, %v4063
        %v4067 = vlaneseq
        %v4068 = vshrl.u32 %v4067, 7
        %v4069 = vsub.s32 0, %v4068
        %v4070 = vrot.slane %v4048, %v4069
        %v4071 = vlaneseq
        %v4072 = vshrl.u32 %v4071, 7
        %v4073 = vsub.s32 1, %v4072
        %v4074 = vrot.slane %v4048, %v4073
        %v4077 = vmul.f32 %v4064, %v4070
        %v4078 = vmul.f32 %v4065, %v4074
        %v4080 = vlaneseq
        %v4081 = vshrl.u32 %v4080, 7
        %v4082 = vsub.s32 0, %v4081
        %v4083 = vrot.slane %v4049, %v4082
        %v4084 = vlaneseq
        %v4085 = vshrl.u32 %v4084, 7
        %v4086 = vsub.s32 1, %v4085
        %v4087 = vrot.slane %v4049, %v4086
        %v4090 = vadd.f32 %v4077, %v4083
        %v4091 = vadd.f32 %v4078, %v4087
        %v4092 = vpack.c.bf16 %v4090, %v4090
        %v4093 = vpack.c.bf16 %v4091, %v4091
        %v4094 = vld [vmem:[%s13] sm:$0xf]
        %v4095 = vld [vmem:[%s13 + $0x4] sm:$0xf]
        %v4096 = vld [vmem:[%s13 + $0x8] sm:$0xf]
        %v4097 = vld [vmem:[%s13 + $0xc] sm:$0xf]
        %v4098 = vld [vmem:[%s13 + $0x10] sm:$0xf]
        %v4099 = vld [vmem:[%s13 + $0x14] sm:$0xf]
        %v4100 = vld [vmem:[%s13 + $0x18] sm:$0xf]
        %v4101 = vld [vmem:[%s13 + $0x1c] sm:$0xf]
        %v4102 = vld [vmem:[%s13 + $0x20] sm:$0xf]
        %v4103 = vld [vmem:[%s13 + $0x24] sm:$0xf]
        %v4104 = vld [vmem:[%s13 + $0x28] sm:$0xf]
        %v4105 = vld [vmem:[%s13 + $0x2c] sm:$0xf]
        %v4106 = vld [vmem:[%s13 + $0x30] sm:$0xf]
        %v4107 = vld [vmem:[%s13 + $0x34] sm:$0xf]
        %v4108 = vld [vmem:[%s13 + $0x38] sm:$0xf]
        %v4109 = vld [vmem:[%s13 + $0x3c] sm:$0xf]
        %v4110 = vld [vmem:[%s13 + $0x40] sm:$0xf]
        %v4111 = vld [vmem:[%s13 + $0x44] sm:$0xf]
        %v4112 = vld [vmem:[%s13 + $0x48] sm:$0xf]
        %v4113 = vld [vmem:[%s13 + $0x4c] sm:$0xf]
        %v4114 = vld [vmem:[%s13 + $0x50] sm:$0xf]
        %v4115 = vld [vmem:[%s13 + $0x54] sm:$0xf]
        %v4116 = vld [vmem:[%s13 + $0x58] sm:$0xf]
        %v4117 = vld [vmem:[%s13 + $0x5c] sm:$0xf]
        %v4118 = vld [vmem:[%s13 + $0x60] sm:$0xf]
        %v4119 = vld [vmem:[%s13 + $0x64] sm:$0xf]
        %v4120 = vld [vmem:[%s13 + $0x68] sm:$0xf]
        %v4121 = vld [vmem:[%s13 + $0x6c] sm:$0xf]
        %v4122 = vld [vmem:[%s13 + $0x70] sm:$0xf]
        %v4123 = vld [vmem:[%s13 + $0x74] sm:$0xf]
        %v4124 = vld [vmem:[%s13 + $0x78] sm:$0xf]
        %v4125 = vld [vmem:[%s13 + $0x7c] sm:$0xf]
        %v4126 = vld [vmem:[%s14] sm:$0x1]
        %v4128 = vshrl.u32 %v4092, 16
        %v4130 = vrot.slane %v4128, 3
        %v4132 = vshrl.u32 %v4093, 16
        %v4134 = vrot.slane %v4132, 3
        %v4169 = vunpack.c.l.b16 %v4094
        %v4170 = vunpack.c.l.b16 %v4095
        %v4171 = vunpack.c.l.b16 %v4096
        %v4172 = vunpack.c.l.b16 %v4097
        %v4173 = vunpack.c.l.b16 %v4098
        %v4174 = vunpack.c.l.b16 %v4099
        %v4175 = vunpack.c.l.b16 %v4100
        %v4176 = vunpack.c.l.b16 %v4101
        %v4177 = vunpack.c.l.b16 %v4102
        %v4178 = vunpack.c.l.b16 %v4103
        %v4179 = vunpack.c.l.b16 %v4104
        %v4180 = vunpack.c.l.b16 %v4105
        %v4181 = vunpack.c.l.b16 %v4106
        %v4182 = vunpack.c.l.b16 %v4107
        %v4183 = vunpack.c.l.b16 %v4108
        %v4184 = vunpack.c.l.b16 %v4109
        %v4185 = vunpack.c.l.b16 %v4110
        %v4186 = vunpack.c.l.b16 %v4111
        %v4187 = vunpack.c.l.b16 %v4112
        %v4188 = vunpack.c.l.b16 %v4113
        %v4189 = vunpack.c.l.b16 %v4114
        %v4190 = vunpack.c.l.b16 %v4115
        %v4191 = vunpack.c.l.b16 %v4116
        %v4192 = vunpack.c.l.b16 %v4117
        %v4193 = vunpack.c.l.b16 %v4118
        %v4194 = vunpack.c.l.b16 %v4119
        %v4195 = vunpack.c.l.b16 %v4120
        %v4196 = vunpack.c.l.b16 %v4121
        %v4197 = vunpack.c.l.b16 %v4122
        %v4198 = vunpack.c.l.b16 %v4123
        %v4199 = vunpack.c.l.b16 %v4124
        %v4200 = vunpack.c.l.b16 %v4125
        %v4201 = vpack.c.b16 %v4170, %v4169
        %v4202 = vpack.c.b16 %v4172, %v4171
        %v4203 = vpack.c.b16 %v4174, %v4173
        %v4204 = vpack.c.b16 %v4176, %v4175
        %v4205 = vpack.c.b16 %v4178, %v4177
        %v4206 = vpack.c.b16 %v4180, %v4179
        %v4207 = vpack.c.b16 %v4182, %v4181
        %v4208 = vpack.c.b16 %v4184, %v4183
        %v4209 = vpack.c.b16 %v4186, %v4185
        %v4210 = vpack.c.b16 %v4188, %v4187
        %v4211 = vpack.c.b16 %v4190, %v4189
        %v4212 = vpack.c.b16 %v4192, %v4191
        %v4213 = vpack.c.b16 %v4194, %v4193
        %v4214 = vpack.c.b16 %v4196, %v4195
        %v4215 = vpack.c.b16 %v4198, %v4197
        %v4216 = vpack.c.b16 %v4200, %v4199
        %4233 = vmatprep.subr.bf16.mxu0 0
        %4234 = vmatpush1.bf16.msra.mxu0 %v4208
        %4235 = vmatprep.subr.bf16.mxu0 0
        %4236 = vmatpush1.bf16.msra.mxu0 %v4207
        %4237 = vmatprep.subr.bf16.mxu0 0
        %4238 = vmatpush1.bf16.msra.mxu0 %v4206
        %4239 = vmatprep.subr.bf16.mxu0 0
        %4240 = vmatpush1.bf16.msra.mxu0 %v4205
        %4241 = vmatprep.subr.bf16.mxu0 0
        %4242 = vmatpush1.bf16.msra.mxu0 %v4204
        %4243 = vmatprep.subr.bf16.mxu0 0
        %4244 = vmatpush1.bf16.msra.mxu0 %v4203
        %4245 = vmatprep.subr.bf16.mxu0 0
        %4246 = vmatpush1.bf16.msra.mxu0 %v4202
        %4247 = vmatprep.subr.bf16.mxu0 0
        %4248 = vmatpush1.bf16.msra.mxu0 %v4201
        %4249 = vmatprep.subr.bf16.mxu0 0
        %4250 = vmatpush2.bf16.msra.mxu0 %v4216
        %4251 = vmatprep.subr.bf16.mxu0 0
        %4252 = vmatpush2.bf16.msra.mxu0 %v4215
        %4253 = vmatprep.subr.bf16.mxu0 0
        %4254 = vmatpush2.bf16.msra.mxu0 %v4214
        %4255 = vmatprep.subr.bf16.mxu0 0
        %4256 = vmatpush2.bf16.msra.mxu0 %v4213
        %4257 = vmatprep.subr.bf16.mxu0 0
        %4258 = vmatpush2.bf16.msra.mxu0 %v4212
        %4259 = vmatprep.subr.bf16.mxu0 0
        %4260 = vmatpush2.bf16.msra.mxu0 %v4211
        %4261 = vmatprep.subr.bf16.mxu0 0
        %4262 = vmatpush2.bf16.msra.mxu0 %v4210
        %4263 = vmatprep.subr.bf16.mxu0 0
        %4264 = vmatpush2.bf16.msra.mxu0 %v4209
        %4265 = vmatprep.mubr.bf16.mxu0 %v4134
        %4266 = vmatmul.mubr.bf16.gmra.mxu0 %v4130
        %v4267 = vpop.f32.mrf.mxu0
        %v4268 = vadd.f32 %v4126, %v4267
        %v4269 = vpop.f32.mrf.mxu0
        %v4270 = vpop.f32.mrf.mxu0
        %v4271 = vpop.f32.mrf.mxu0
        %4272 = vdwg.mxu0
        %vm4273 = vcmask 8192
        %4274 = vst.msk [vmem:[%s486] sm:$0x1] %vm4273, %v4268
        %s4275 = sand.u32 %s357, 1
        %s4276 = scalar_lea.sflag [#allocation3], %s4275
        %s4277 = sand.u32 %s357, 1
        %s4278 = scalar_lea.vmem [#allocation2], %s4277
        // Predicated region
        $region81: #{forward.13} parent=79 // pred_check
          %p4279 = pneg %p367
        $region82: #{forward.13} parent=79 // pred_check_branch
          %4281 = sbr.rel (%p4279) target = $region84
        $region83: #{forward.13} parent=79 // pred_region
          %s4283 = ssub.s32 16, 16
          %4284 = vsyncadd %s4276, %s4283
          %s4285 = smul.addr %s29, 16
          %s4286 = scalar_lea.hbm %s15, %s4285
          %s4288 = sshll.u32 %s4278, 4
          %s4289 = int_to_ptr.vmem [resolvable:$true] %s4288
          %4291 = dma.vmem_to_hbm [thread:$0]  %s4289, 16, %s4286, %s4276
        $region84: #{forward.13} parent=79 // pred_fallthru
          _
      $region80: #{forward.13} parent=5 // pred_fallthru
        _
      %p4292 = scmp.le.s32.totalorder 2, %s24
      // Predicated region
      $region85: #{forward.13} parent=5 // pred_check
        %p4293 = pneg %p4292
      $region86: #{forward.13} parent=5 // pred_check_branch
        %4295 = sbr.rel (%p4293) target = $region88
      $region87: #{forward.13} parent=5 // pred_region
        %s4296 = ssub.s32 %s24, 2
        // Predicated region
        $region89: #{forward.13} parent=87 // pred_check
          %p4297 = pneg %p373
        $region90: #{forward.13} parent=87 // pred_check_branch
          %4299 = sbr.rel (%p4297) target = $region92
        $region91: #{forward.13} parent=87 // pred_region
          %s4300 = sand.u32 %s358, 1
          %s4301 = scalar_lea.sflag [#allocation3], %s4300
          %s4302 = sand.u32 %s358, 1
          %s4303 = scalar_lea.vmem [#allocation2], %s4302
          %4304 = dma.done %s4301, 16
        $region92: #{forward.13} parent=87 // pred_fallthru
          _
      $region88: #{forward.13} parent=5 // pred_fallthru
        _
    $region6: #{forward.13} parent=1 // loop_footer
      %s28 = sadd.s32 1, %s24
    $region7: #{forward.13} parent=1 // loop_footer_branch
      %23 = sbr.rel target = $region3
    $region8: #{forward.13} parent=1 // loop_exit
      _
    %4305 = vsyncpa [#allocation3], 1
    %s4306 = scalar_lea.sflag [#allocation3], 1
    %4307 = vsyncpa %s4306, 1

</llo_original>
